<compile_context>
chip_gen: v6e
topology: v6e:2x2x1
jax: 0.10.0
libtpu: 0.0.40
codegen_flags: <defaults>
</compile_context>

<pallas_src>
import jax
import jax.numpy as jnp
from jax import lax
from jax.experimental import pallas as pl
from jax.experimental.pallas import tpu as pltpu


NUM_CLASSES = 10
LANE = 128
K1 = 16                      # conv1 im2col K: 9 real taps zero-padded to a full bf16 tile
VMEM_LIMIT = 32 * 1024 * 1024


# ----------------------------------------------------------------------------
# Pallas kernels
# ----------------------------------------------------------------------------
def _conv1_kernel(lhs_e_ref, lhs_o_ref, w_ref, b_ref, o_ref):
    """3x3 conv (Cin=1, K=16-padded im2col) + bias + ReLU + 2x2 max-pool.

    lhs_e_ref: (N*H*Wo, K1) bf16  rows (n, h, wo) for even output cols w=2*wo
    lhs_o_ref: (N*H*Wo, K1) bf16  rows (n, h, wo) for odd  output cols w=2*wo+1
    w_ref    : (K1, tn)     bf16  tap-major (kh*3+kw) weights, rows 9..15 zero
    b_ref    : (1, tn)      f32
    o_ref    : (N, Ho, Wo, tn) bf16  pooled NHWC output tile
    """
    N, Ho, Wo, tn = o_ref.shape
    ye = jnp.dot(lhs_e_ref[...], w_ref[...], preferred_element_type=jnp.float32)
    yo = jnp.dot(lhs_o_ref[...], w_ref[...], preferred_element_type=jnp.float32)
    # W-direction max-pool (commutes with +bias / ReLU), then bias + ReLU.
    y = jnp.maximum(jnp.maximum(ye, yo) + b_ref[...], 0.0)        # (N*H*Wo, tn)
    # H-direction max-pool: rows are (n, h, wo); pair h = 2*ho / 2*ho+1.
    y4 = y.reshape(N * Ho, 2, Wo, tn)                             # free (aligned split)
    pooled = jnp.maximum(y4[:, 0], y4[:, 1])                      # (N*Ho, Wo, tn)
    o_ref[...] = pooled.reshape(N, Ho, Wo, tn).astype(o_ref.dtype)


def _conv2_pool_avg_kernel(xp_ref, w_ref, b_ref, o_ref):
    """3x3 conv (in-VMEM im2col, one long-K matmul) + bias + ReLU +
    2x2 max-pool + AdaptiveAvgPool2d((1,1)), one Cout tile.

    xp_ref: (N, H+2, W+2, Cin) bf16 zero-padded NHWC activation (full block)
    w_ref : (9*Cin, tn) bf16
    b_ref : (1, tn) f32
    o_ref : (N, tn) f32   per-channel spatial mean of the pooled activation
    """
    N = xp_ref.shape[0]
    H = xp_ref.shape[1] - 2
    W = xp_ref.shape[2] - 2
    Cin = xp_ref.shape[3]
    tn = o_ref.shape[-1]
    M = N * H * W

    # Build the (M, 9*Cin) bf16 im2col LHS once (value; Mosaic keeps it in VMEM).
    taps = []
    for kh in range(3):
        for kw in range(3):
            t = xp_ref[:, kh:kh + H, kw:kw + W, :]          # (N, H, W, Cin) bf16
            taps.append(t.reshape(M, Cin))                  # free leading-dim collapse
    lhs = jnp.concatenate(taps, axis=-1)                    # (M, 9*Cin)

    # Single K = 9*Cin MXU pass, f32 accumulation (no scratch accumulator).
    act = jnp.dot(lhs, w_ref[...], preferred_element_type=jnp.float32)   # (M, tn)
    act = jnp.maximum(act + b_ref[...], 0.0)

    # Fused 2x2/stride-2 max-pool + global average pool:
    #   mean over the (H/2 * W/2) windows of the per-window max.
    a = act.reshape(N, H // 2, 2, W, tn)                    # free (aligned split)
    hmax = jnp.maximum(a[:, :, 0], a[:, :, 1])              # (N, H/2, W, tn)
    lo = hmax[:, :, 0:W - 1, :]
    hi = hmax[:, :, 1:W, :]
    pm = jnp.maximum(lo, hi)                                # pm[..., w, :] = max(col w, col w+1)
    wsel = lax.broadcasted_iota(jnp.int32, (W - 1, 1), 0) % 2 == 0   # keep even w
    win = jnp.where(wsel, pm, 0.0)                          # one entry per 2x2 window
    inv = 1.0 / float((H // 2) * (W // 2))
    o_ref[...] = jnp.sum(win, axis=(1, 2)) * inv            # (N, tn)


def _fc_kernel(x_ref, w1_ref, b1_ref, w2_ref, b2_ref, o_ref):
    """fc1 + ReLU + fc2 fused; lane-dense (zero-padded) output columns.

    x_ref : (N, C) f32   w1: (C, F1) bf16  b1: (1, F1) f32
    w2    : (F1, Fp) bf16  b2: (1, Fp) f32  o: (N, Fp) f32
    """
    h = jnp.dot(x_ref[...].astype(jnp.bfloat16), w1_ref[...],
                preferred_element_type=jnp.float32) + b1_ref[...]
    h = jnp.maximum(h, 0.0)
    y = jnp.dot(h.astype(jnp.bfloat16), w2_ref[...],
                preferred_element_type=jnp.float32) + b2_ref[...]
    o_ref[...] = y.astype(o_ref.dtype)


# ----------------------------------------------------------------------------
# Pallas wrappers
# ----------------------------------------------------------------------------
def pallas_conv1_relu_pool(lhs_e, lhs_o, w, b, *, N, H, W, tn=128):
    """(im2col LHS, (K1,Cout) weights) -> pooled (N, H/2, W/2, Cout) bf16."""
    Cout = w.shape[-1]
    assert H % 2 == 0 and W % 2 == 0 and Cout % tn == 0
    Ho, Wo = H // 2, W // 2
    M = N * H * Wo
    return pl.pallas_call(
        _conv1_kernel,
        out_shape=jax.ShapeDtypeStruct((N, Ho, Wo, Cout), jnp.bfloat16),
        grid=(Cout // tn,),
        in_specs=[
            pl.BlockSpec((M, K1), lambda j: (0, 0)),
            pl.BlockSpec((M, K1), lambda j: (0, 0)),
            pl.BlockSpec((K1, tn), lambda j: (0, j)),
            pl.BlockSpec((1, tn), lambda j: (0, j)),
        ],
        out_specs=pl.BlockSpec((N, Ho, Wo, tn), lambda j: (0, 0, 0, j)),
        compiler_params=pltpu.CompilerParams(
            dimension_semantics=("parallel",),
            vmem_limit_bytes=VMEM_LIMIT),
    )(lhs_e, lhs_o, w, b)


def pallas_conv2_relu_pool_avg(xp, w, b, *, tn=512):
    """Padded bf16 NHWC activation -> fused conv/ReLU/maxpool/avgpool (N, Cout) f32."""
    N, Hp, Wp, Cin = xp.shape
    K, Cout = w.shape
    assert K == 9 * Cin
    if Cout % tn != 0:
        tn = Cout
    return pl.pallas_call(
        _conv2_pool_avg_kernel,
        out_shape=jax.ShapeDtypeStruct((N, Cout), jnp.float32),
        grid=(Cout // tn,),
        in_specs=[
            pl.BlockSpec((N, Hp, Wp, Cin), lambda j: (0, 0, 0, 0)),
            pl.BlockSpec((K, tn), lambda j: (0, j)),
            pl.BlockSpec((1, tn), lambda j: (0, j)),
        ],
        out_specs=pl.BlockSpec((N, tn), lambda j: (0, j)),
        compiler_params=pltpu.CompilerParams(
            dimension_semantics=("parallel",),
            vmem_limit_bytes=VMEM_LIMIT),
    )(xp, w, b)


def pallas_fc(x, w1, b1, w2, b2):
    """Fused fc1 + ReLU + fc2; output columns padded to a lane-dense 128."""
    N, C = x.shape
    F1 = w1.shape[-1]
    Fp = w2.shape[-1]
    return pl.pallas_call(
        _fc_kernel,
        out_shape=jax.ShapeDtypeStruct((N, Fp), jnp.float32),
        in_specs=[
            pl.BlockSpec((N, C), lambda: (0, 0)),
            pl.BlockSpec((C, F1), lambda: (0, 0)),
            pl.BlockSpec((1, F1), lambda: (0, 0)),
            pl.BlockSpec((F1, Fp), lambda: (0, 0)),
            pl.BlockSpec((1, Fp), lambda: (0, 0)),
        ],
        out_specs=pl.BlockSpec((N, Fp), lambda: (0, 0)),
        compiler_params=pltpu.CompilerParams(vmem_limit_bytes=VMEM_LIMIT),
    )(x, w1, b1, w2, b2)


# ----------------------------------------------------------------------------
# Layout plumbing (no FLOPs) for the Cin=1 first conv
# ----------------------------------------------------------------------------
def _conv1_im2col_even_odd(x_nchw):
    """K=9 im2col of the single-channel input, split into even/odd output
    columns so the in-kernel W-direction max-pool is a plain elementwise max.
    K is zero-padded from 9 to K1=16 (one full bf16 sublane tile)."""
    N, Cin, H, W = x_nchw.shape
    assert Cin == 1
    x = x_nchw.reshape(N, H, W).astype(jnp.float32)
    xp = jnp.pad(x, ((0, 0), (1, 1), (1, 1)))                 # (N, H+2, W+2)
    te, to = [], []
    for kh in range(3):
        for kw in range(3):
            win = xp[:, kh:kh + H, kw:kw + W]                 # value at out (h,w) = xp[h+kh, w+kw]
            te.append(win[:, :, 0::2])                        # even output cols
            to.append(win[:, :, 1::2])                        # odd  output cols
    Wo = W // 2
    lhs_e = jnp.stack(te, axis=-1).reshape(N * H * Wo, 9)
    lhs_o = jnp.stack(to, axis=-1).reshape(N * H * Wo, 9)
    pad = ((0, 0), (0, K1 - 9))
    lhs_e = jnp.pad(lhs_e, pad).astype(jnp.bfloat16)
    lhs_o = jnp.pad(lhs_o, pad).astype(jnp.bfloat16)
    return lhs_e, lhs_o


# ----------------------------------------------------------------------------
# Params
# ----------------------------------------------------------------------------
def init_params(key, num_classes=NUM_CLASSES):
    ks = jax.random.split(key, 8)

    def u(k, shape, fan_in):
        bound = 1.0 / jnp.sqrt(fan_in)
        return jax.random.uniform(k, shape, jnp.float32, -bound, bound)

    return {
        "conv1_w": u(ks[0], (256, 1, 3, 3), 1 * 9),
        "conv1_b": u(ks[1], (256,), 1 * 9),
        "conv2_w": u(ks[2], (1024, 256, 3, 3), 256 * 9),
        "conv2_b": u(ks[3], (1024,), 256 * 9),
        "fc1_w": u(ks[4], (1024, 256), 1024),   # stored (in, out)
        "fc1_b": u(ks[5], (256,), 1024),
        "fc2_w": u(ks[6], (256, num_classes), 256),
        "fc2_b": u(ks[7], (num_classes,), 256),
    }


def prepare_params(params):
    """One-time layout conversion / bf16 cast (run OUTSIDE the jitted forward)."""
    def conv_w(w_oihw):
        cout, cin = w_oihw.shape[0], w_oihw.shape[1]
        # (Cout,Cin,3,3) -> (kh,kw,Cin,Cout) -> (9*Cin, Cout), K tap-major.
        return jnp.transpose(w_oihw, (2, 3, 1, 0)).reshape(9 * cin, cout)

    w1 = conv_w(params["conv1_w"])                                  # (9, 256)
    w1 = jnp.pad(w1, ((0, K1 - 9), (0, 0))).astype(jnp.bfloat16)    # K padded to 16

    num_classes = params["fc2_w"].shape[1]
    fc2_w = jnp.zeros((params["fc2_w"].shape[0], LANE), jnp.float32)
    fc2_w = fc2_w.at[:, :num_classes].set(params["fc2_w"])
    fc2_b = jnp.zeros((LANE,), jnp.float32).at[:num_classes].set(params["fc2_b"])

    # TODO(synk): generation-conditional int8 (v5e/v6e) / fp8 (v7x) weight
    # quantization with per-channel scales folded into the bias.
    return {
        "conv1_w": w1,
        "conv1_b": params["conv1_b"].reshape(1, -1).astype(jnp.float32),
        "conv2_w": conv_w(params["conv2_w"]).astype(jnp.bfloat16),  # (2304, 1024), 4.7 MB
        "conv2_b": params["conv2_b"].reshape(1, -1).astype(jnp.float32),
        "fc1_w": params["fc1_w"].astype(jnp.bfloat16),
        "fc1_b": params["fc1_b"].reshape(1, -1).astype(jnp.float32),
        "fc2_w": fc2_w.astype(jnp.bfloat16),                        # lane-dense padded
        "fc2_b": fc2_b.reshape(1, -1).astype(jnp.float32),
    }


# ----------------------------------------------------------------------------
# Model forward
# ----------------------------------------------------------------------------
@jax.jit
def simple_cnn_forward(kparams, x_nchw):
    N, _, H, W = x_nchw.shape
    lhs_e, lhs_o = _conv1_im2col_even_odd(x_nchw)                        # layout only
    h1 = pallas_conv1_relu_pool(lhs_e, lhs_o, kparams["conv1_w"],
                                kparams["conv1_b"], N=N, H=H, W=W)       # (N,8,8,256) bf16
    xp = jnp.pad(h1, ((0, 0), (1, 1), (1, 1), (0, 0)))                   # (N,10,10,256) bf16
    pooled = pallas_conv2_relu_pool_avg(xp, kparams["conv2_w"],
                                        kparams["conv2_b"])             # (N,1024) f32
    logits = pallas_fc(pooled, kparams["fc1_w"], kparams["fc1_b"],
                       kparams["fc2_w"], kparams["fc2_b"])               # (N,128) f32
    return logits[:, :NUM_CLASSES]


# ----------------------------------------------------------------------------
# Pure-JAX reference (mirrors the kernel's bf16 rounding points)
# ----------------------------------------------------------------------------
def reference_forward(params, x_nchw):
    f32 = jnp.float32

    def bf(t):
        return t.astype(jnp.bfloat16).astype(f32)

    def conv(x, w, b):
        y = lax.conv_general_dilated(
            x, w, window_strides=(1, 1), padding=((1, 1), (1, 1)),
            dimension_numbers=("NCHW", "OIHW", "NCHW"))
        return jax.nn.relu(y + b[None, :, None, None])

    def maxpool(x):
        return lax.reduce_window(x, -jnp.inf, lax.max,
                                 (1, 1, 2, 2), (1, 1, 2, 2), "VALID")

    x = x_nchw.astype(f32)
    x = maxpool(conv(bf(x), bf(params["conv1_w"]), params["conv1_b"]))    # bf16 MXU inputs
    x = bf(x)                                                             # conv1 out stored bf16
    x = maxpool(conv(x, bf(params["conv2_w"]), params["conv2_b"]))
    x = jnp.mean(x, axis=(2, 3))                                          # (N, 1024) f32
    x = jax.nn.relu(bf(x) @ bf(params["fc1_w"]) + params["fc1_b"])
    x = bf(x) @ bf(params["fc2_w"]) + params["fc2_b"]
    return x


if __name__ == "__main__":
    key = jax.random.PRNGKey(0)
    pkey, xkey = jax.random.split(key)
    params = init_params(pkey, num_classes=NUM_CLASSES)
    kparams = prepare_params(params)                    # one-time layout / bf16 conversion
    x = jax.random.normal(xkey, (2, 1, 16, 16), jnp.float32)   # NCHW, Cin=1

    out = simple_cnn_forward(kparams, x)
    out = jax.block_until_ready(out)
    assert out.shape == (2, NUM_CLASSES), out.shape

    ref = reference_forward(params, x)
    err = float(jnp.max(jnp.abs(out - ref)))
    assert jnp.allclose(out, ref, rtol=1e-2, atol=1e-2), f"max abs err {err}"

    print("KERNEL_OK")
</pallas_src>

<mosaic_0001>
module attributes {stable_mosaic.version = 11 : i64} {
  func.func @_conv1_kernel(%arg0: i32, %arg1: memref<256x16xbf16, #tpu.memory_space<vmem>>, %arg2: memref<256x16xbf16, #tpu.memory_space<vmem>>, %arg3: memref<16x128xbf16, #tpu.memory_space<vmem>>, %arg4: memref<1x128xf32, #tpu.memory_space<vmem>>, %arg5: memref<2x8x8x128xbf16, #tpu.memory_space<vmem>>) attributes {dimension_semantics = [#tpu.dimension_semantics<parallel>], iteration_bounds = array<i64: 2>, scalar_prefetch = 0 : i64, scratch_operands = 0 : i64, tpu.core_type = #tpu.core_type<tc>, window_params = [{pipeline_mode = #tpu.pipeline_mode<synchronous>, transform_indices = @transform_0, window_bounds = array<i64: 256, 16>}, {pipeline_mode = #tpu.pipeline_mode<synchronous>, transform_indices = @transform_1, window_bounds = array<i64: 256, 16>}, {transform_indices = @transform_2, window_bounds = array<i64: 16, 128>}, {transform_indices = @transform_3, window_bounds = array<i64: 1, 128>}, {transform_indices = @transform_4, window_bounds = array<i64: 2, 8, 8, 128>}]} {
    %c0 = arith.constant 0 : index
    %c0_0 = arith.constant 0 : index
    %0 = vector.load %arg1[%c0, %c0_0] : memref<256x16xbf16, #tpu.memory_space<vmem>>, vector<256x16xbf16>
    %c0_1 = arith.constant 0 : index
    %c0_2 = arith.constant 0 : index
    %1 = vector.load %arg3[%c0_1, %c0_2] : memref<16x128xbf16, #tpu.memory_space<vmem>>, vector<16x128xbf16>
    %cst = arith.constant dense<0.000000e+00> : vector<256x128xf32>
    %2 = tpu.matmul %0, %1, %cst {dimension_numbers = #tpu.dot_dimension_numbers<[1], [0], [0], [1], [0, 0, 1, 1], [], []>} : vector<256x16xbf16>, vector<16x128xbf16>, vector<256x128xf32> -> vector<256x128xf32>
    %c0_3 = arith.constant 0 : index
    %c0_4 = arith.constant 0 : index
    %3 = vector.load %arg2[%c0_3, %c0_4] : memref<256x16xbf16, #tpu.memory_space<vmem>>, vector<256x16xbf16>
    %c0_5 = arith.constant 0 : index
    %c0_6 = arith.constant 0 : index
    %4 = vector.load %arg3[%c0_5, %c0_6] : memref<16x128xbf16, #tpu.memory_space<vmem>>, vector<16x128xbf16>
    %cst_7 = arith.constant dense<0.000000e+00> : vector<256x128xf32>
    %5 = tpu.matmul %3, %4, %cst_7 {dimension_numbers = #tpu.dot_dimension_numbers<[1], [0], [0], [1], [0, 0, 1, 1], [], []>} : vector<256x16xbf16>, vector<16x128xbf16>, vector<256x128xf32> -> vector<256x128xf32>
    %6 = arith.maximumf %2, %5 : vector<256x128xf32>
    %c0_8 = arith.constant 0 : index
    %c0_9 = arith.constant 0 : index
    %7 = vector.load %arg4[%c0_8, %c0_9] : memref<1x128xf32, #tpu.memory_space<vmem>>, vector<1x128xf32>
    %8 = vector.broadcast %7 : vector<1x128xf32> to vector<256x128xf32>
    %9 = arith.addf %6, %8 : vector<256x128xf32>
    %cst_10 = arith.constant 0.000000e+00 : f32
    %10 = vector.broadcast %cst_10 : f32 to vector<256x128xf32>
    %11 = arith.maximumf %9, %10 : vector<256x128xf32>
    %12 = vector.shape_cast %11 : vector<256x128xf32> to vector<16x2x8x128xf32>
    %13 = vector.extract_strided_slice %12 {offsets = [0, 0, 0, 0], sizes = [16, 1, 8, 128], strides = [1, 1, 1, 1]} : vector<16x2x8x128xf32> to vector<16x1x8x128xf32>
    %14 = vector.shape_cast %13 : vector<16x1x8x128xf32> to vector<16x8x128xf32>
    %15 = vector.extract_strided_slice %12 {offsets = [0, 1, 0, 0], sizes = [16, 1, 8, 128], strides = [1, 1, 1, 1]} : vector<16x2x8x128xf32> to vector<16x1x8x128xf32>
    %16 = vector.shape_cast %15 : vector<16x1x8x128xf32> to vector<16x8x128xf32>
    %17 = arith.maximumf %14, %16 : vector<16x8x128xf32>
    %18 = vector.shape_cast %17 : vector<16x8x128xf32> to vector<2x8x8x128xf32>
    %19 = arith.truncf %18 : vector<2x8x8x128xf32> to vector<2x8x8x128xbf16>
    %c0_11 = arith.constant 0 : index
    %c0_12 = arith.constant 0 : index
    %c0_13 = arith.constant 0 : index
    %c0_14 = arith.constant 0 : index
    %20 = vector.load %arg5[%c0_11, %c0_12, %c0_13, %c0_14] : memref<2x8x8x128xbf16, #tpu.memory_space<vmem>>, vector<2x8x8x128xbf16>
    tpu.vector_store %arg5[%c0_11, %c0_12, %c0_13, %c0_14], %19 {strides = array<i32>} : memref<2x8x8x128xbf16, #tpu.memory_space<vmem>>, vector<2x8x8x128xbf16>,
    return
  }
  func.func @transform_0(%arg0: i32) -> (i32, i32) {
    %c0_i32 = arith.constant 0 : i32
    %c0_i32_0 = arith.constant 0 : i32
    %c0_i32_1 = arith.constant 0 : i32
    return %c0_i32, %c0_i32_0 : i32, i32
  }
  func.func @transform_1(%arg0: i32) -> (i32, i32) {
    %c0_i32 = arith.constant 0 : i32
    %c0_i32_0 = arith.constant 0 : i32
    %c0_i32_1 = arith.constant 0 : i32
    return %c0_i32, %c0_i32_0 : i32, i32
  }
  func.func @transform_2(%arg0: i32) -> (i32, i32) {
    %c0_i32 = arith.constant 0 : i32
    %c0_i32_0 = arith.constant 0 : i32
    return %c0_i32, %arg0 : i32, i32
  }
  func.func @transform_3(%arg0: i32) -> (i32, i32) {
    %c0_i32 = arith.constant 0 : i32
    %c0_i32_0 = arith.constant 0 : i32
    return %c0_i32, %arg0 : i32, i32
  }
  func.func @transform_4(%arg0: i32) -> (i32, i32, i32, i32) {
    %c0_i32 = arith.constant 0 : i32
    %c0_i32_0 = arith.constant 0 : i32
    %c0_i32_1 = arith.constant 0 : i32
    %c0_i32_2 = arith.constant 0 : i32
    return %c0_i32, %c0_i32_0, %c0_i32_1, %arg0 : i32, i32, i32, i32
  }
}

module attributes {stable_mosaic.version = 11 : i64} {
  func.func @_conv2_pool_avg_kernel(%arg0: i32, %arg1: memref<2x10x10x256xbf16, #tpu.memory_space<vmem>>, %arg2: memref<2304x512xbf16, #tpu.memory_space<vmem>>, %arg3: memref<1x512xf32, #tpu.memory_space<vmem>>, %arg4: memref<2x512xf32, #tpu.memory_space<vmem>>) attributes {dimension_semantics = [#tpu.dimension_semantics<parallel>], iteration_bounds = array<i64: 2>, scalar_prefetch = 0 : i64, scratch_operands = 0 : i64, tpu.core_type = #tpu.core_type<tc>, window_params = [{pipeline_mode = #tpu.pipeline_mode<synchronous>, transform_indices = @transform_0, window_bounds = array<i64: 2, 10, 10, 256>}, {transform_indices = @transform_1, window_bounds = array<i64: 2304, 512>}, {transform_indices = @transform_2, window_bounds = array<i64: 1, 512>}, {transform_indices = @transform_3, window_bounds = array<i64: 2, 512>}]} {
    %c0 = arith.constant 0 : index
    %c0_0 = arith.constant 0 : index
    %c0_1 = arith.constant 0 : index
    %c0_2 = arith.constant 0 : index
    %0 = vector.load %arg1[%c0, %c0_0, %c0_1, %c0_2] : memref<2x10x10x256xbf16, #tpu.memory_space<vmem>>, vector<2x8x8x256xbf16>
    %1 = vector.shape_cast %0 : vector<2x8x8x256xbf16> to vector<128x256xbf16>
    %c0_3 = arith.constant 0 : index
    %c0_4 = arith.constant 0 : index
    %c1 = arith.constant 1 : index
    %c0_5 = arith.constant 0 : index
    %2 = vector.load %arg1[%c0_3, %c0_4, %c1, %c0_5] : memref<2x10x10x256xbf16, #tpu.memory_space<vmem>>, vector<2x8x8x256xbf16>
    %3 = vector.shape_cast %2 : vector<2x8x8x256xbf16> to vector<128x256xbf16>
    %c0_6 = arith.constant 0 : index
    %c0_7 = arith.constant 0 : index
    %c2 = arith.constant 2 : index
    %c0_8 = arith.constant 0 : index
    %4 = vector.load %arg1[%c0_6, %c0_7, %c2, %c0_8] : memref<2x10x10x256xbf16, #tpu.memory_space<vmem>>, vector<2x8x8x256xbf16>
    %5 = vector.shape_cast %4 : vector<2x8x8x256xbf16> to vector<128x256xbf16>
    %c0_9 = arith.constant 0 : index
    %c1_10 = arith.constant 1 : index
    %c0_11 = arith.constant 0 : index
    %c0_12 = arith.constant 0 : index
    %6 = vector.load %arg1[%c0_9, %c1_10, %c0_11, %c0_12] : memref<2x10x10x256xbf16, #tpu.memory_space<vmem>>, vector<2x8x8x256xbf16>
    %7 = vector.shape_cast %6 : vector<2x8x8x256xbf16> to vector<128x256xbf16>
    %c0_13 = arith.constant 0 : index
    %c1_14 = arith.constant 1 : index
    %c1_15 = arith.constant 1 : index
    %c0_16 = arith.constant 0 : index
    %8 = vector.load %arg1[%c0_13, %c1_14, %c1_15, %c0_16] : memref<2x10x10x256xbf16, #tpu.memory_space<vmem>>, vector<2x8x8x256xbf16>
    %9 = vector.shape_cast %8 : vector<2x8x8x256xbf16> to vector<128x256xbf16>
    %c0_17 = arith.constant 0 : index
    %c1_18 = arith.constant 1 : index
    %c2_19 = arith.constant 2 : index
    %c0_20 = arith.constant 0 : index
    %10 = vector.load %arg1[%c0_17, %c1_18, %c2_19, %c0_20] : memref<2x10x10x256xbf16, #tpu.memory_space<vmem>>, vector<2x8x8x256xbf16>
    %11 = vector.shape_cast %10 : vector<2x8x8x256xbf16> to vector<128x256xbf16>
    %c0_21 = arith.constant 0 : index
    %c2_22 = arith.constant 2 : index
    %c0_23 = arith.constant 0 : index
    %c0_24 = arith.constant 0 : index
    %12 = vector.load %arg1[%c0_21, %c2_22, %c0_23, %c0_24] : memref<2x10x10x256xbf16, #tpu.memory_space<vmem>>, vector<2x8x8x256xbf16>
    %13 = vector.shape_cast %12 : vector<2x8x8x256xbf16> to vector<128x256xbf16>
    %c0_25 = arith.constant 0 : index
    %c2_26 = arith.constant 2 : index
    %c1_27 = arith.constant 1 : index
    %c0_28 = arith.constant 0 : index
    %14 = vector.load %arg1[%c0_25, %c2_26, %c1_27, %c0_28] : memref<2x10x10x256xbf16, #tpu.memory_space<vmem>>, vector<2x8x8x256xbf16>
    %15 = vector.shape_cast %14 : vector<2x8x8x256xbf16> to vector<128x256xbf16>
    %c0_29 = arith.constant 0 : index
    %c2_30 = arith.constant 2 : index
    %c2_31 = arith.constant 2 : index
    %c0_32 = arith.constant 0 : index
    %16 = vector.load %arg1[%c0_29, %c2_30, %c2_31, %c0_32] : memref<2x10x10x256xbf16, #tpu.memory_space<vmem>>, vector<2x8x8x256xbf16>
    %17 = vector.shape_cast %16 : vector<2x8x8x256xbf16> to vector<128x256xbf16>
    %18 = tpu.concatenate %1, %3, %5, %7, %9, %11, %13, %15, %17 in 1 : vector<128x256xbf16>, vector<128x256xbf16>, vector<128x256xbf16>, vector<128x256xbf16>, vector<128x256xbf16>, vector<128x256xbf16>, vector<128x256xbf16>, vector<128x256xbf16>, vector<128x256xbf16> -> vector<128x2304xbf16>
    %c0_33 = arith.constant 0 : index
    %c0_34 = arith.constant 0 : index
    %19 = vector.load %arg2[%c0_33, %c0_34] : memref<2304x512xbf16, #tpu.memory_space<vmem>>, vector<2304x512xbf16>
    %cst = arith.constant dense<0.000000e+00> : vector<128x512xf32>
    %20 = tpu.matmul %18, %19, %cst {dimension_numbers = #tpu.dot_dimension_numbers<[1], [0], [0], [1], [0, 0, 1, 1], [], []>} : vector<128x2304xbf16>, vector<2304x512xbf16>, vector<128x512xf32> -> vector<128x512xf32>
    %c0_35 = arith.constant 0 : index
    %c0_36 = arith.constant 0 : index
    %21 = vector.load %arg3[%c0_35, %c0_36] : memref<1x512xf32, #tpu.memory_space<vmem>>, vector<1x512xf32>
    %22 = vector.broadcast %21 : vector<1x512xf32> to vector<128x512xf32>
    %23 = arith.addf %20, %22 : vector<128x512xf32>
    %cst_37 = arith.constant 0.000000e+00 : f32
    %24 = vector.broadcast %cst_37 : f32 to vector<128x512xf32>
    %25 = arith.maximumf %23, %24 : vector<128x512xf32>
    %26 = vector.shape_cast %25 : vector<128x512xf32> to vector<2x4x2x8x512xf32>
    %27 = vector.extract_strided_slice %26 {offsets = [0, 0, 0, 0, 0], sizes = [2, 4, 1, 8, 512], strides = [1, 1, 1, 1, 1]} : vector<2x4x2x8x512xf32> to vector<2x4x1x8x512xf32>
    %28 = vector.shape_cast %27 : vector<2x4x1x8x512xf32> to vector<2x4x8x512xf32>
    %29 = vector.extract_strided_slice %26 {offsets = [0, 0, 1, 0, 0], sizes = [2, 4, 1, 8, 512], strides = [1, 1, 1, 1, 1]} : vector<2x4x2x8x512xf32> to vector<2x4x1x8x512xf32>
    %30 = vector.shape_cast %29 : vector<2x4x1x8x512xf32> to vector<2x4x8x512xf32>
    %31 = arith.maximumf %28, %30 : vector<2x4x8x512xf32>
    %32 = vector.extract_strided_slice %31 {offsets = [0, 0, 0, 0], sizes = [2, 4, 7, 512], strides = [1, 1, 1, 1]} : vector<2x4x8x512xf32> to vector<2x4x7x512xf32>
    %33 = vector.extract_strided_slice %31 {offsets = [0, 0, 1, 0], sizes = [2, 4, 7, 512], strides = [1, 1, 1, 1]} : vector<2x4x8x512xf32> to vector<2x4x7x512xf32>
    %34 = arith.maximumf %32, %33 : vector<2x4x7x512xf32>
    %35 = tpu.iota {dimensions = array<i32: 0>} : vector<7x1xi32>
    %c2_i32 = arith.constant 2 : i32
    %c0_i32 = arith.constant 0 : i32
    %36 = arith.cmpi eq, %c2_i32, %c0_i32 : i32
    %c1_i32 = arith.constant 1 : i32
    %37 = arith.select %36, %c1_i32, %c2_i32 : i32
    %38 = vector.broadcast %37 : i32 to vector<7x1xi32>
    %39 = arith.remsi %35, %38 : vector<7x1xi32>
    %c0_i32_38 = arith.constant 0 : i32
    %40 = vector.broadcast %c0_i32_38 : i32 to vector<7x1xi32>
    %41 = arith.cmpi ne, %39, %40 : vector<7x1xi32>
    %c0_i32_39 = arith.constant 0 : i32
    %42 = vector.broadcast %c0_i32_39 : i32 to vector<7x1xi32>
    %43 = arith.cmpi slt, %39, %42 : vector<7x1xi32>
    %c0_i32_40 = arith.constant 0 : i32
    %44 = arith.cmpi slt, %37, %c0_i32_40 : i32
    %45 = vector.broadcast %44 : i1 to vector<7x1xi1>
    %46 = vector.broadcast %45 : vector<7x1xi1> to vector<7x1xi1>
    %47 = arith.xori %43, %46 : vector<7x1xi1>
    %48 = arith.andi %47, %41 : vector<7x1xi1>
    %49 = vector.broadcast %37 : i32 to vector<7x1xi32>
    %50 = arith.addi %39, %49 : vector<7x1xi32>
    %51 = arith.select %48, %50, %39 : vector<7x1xi1>, vector<7x1xi32>
    %c0_i32_41 = arith.constant 0 : i32
    %52 = vector.broadcast %c0_i32_41 : i32 to vector<7x1xi32>
    %53 = arith.cmpi eq, %51, %52 : vector<7x1xi32>
    %cst_42 = arith.constant 0.000000e+00 : f32
    %54 = vector.shape_cast %53 : vector<7x1xi1> to vector<1x1x7x1xi1>
    %55 = vector.broadcast %54 : vector<1x1x7x1xi1> to vector<2x4x7x512xi1>
    %56 = vector.broadcast %cst_42 : f32 to vector<2x4x7x512xf32>
    %57 = arith.select %55, %34, %56 : vector<2x4x7x512xi1>, vector<2x4x7x512xf32>
    %cst_43 = arith.constant dense<0.000000e+00> : vector<2x512xf32>
    %58 = vector.multi_reduction <add>, %57, %cst_43 [1, 2] : vector<2x4x7x512xf32> to vector<2x512xf32>
    %cst_44 = arith.constant 6.250000e-02 : f32
    %59 = vector.broadcast %cst_44 : f32 to vector<2x512xf32>
    %60 = arith.mulf %58, %59 : vector<2x512xf32>
    %c0_45 = arith.constant 0 : index
    %c0_46 = arith.constant 0 : index
    %61 = vector.load %arg4[%c0_45, %c0_46] : memref<2x512xf32, #tpu.memory_space<vmem>>, vector<2x512xf32>
    tpu.vector_store %arg4[%c0_45, %c0_46], %60 {strides = array<i32>} : memref<2x512xf32, #tpu.memory_space<vmem>>, vector<2x512xf32>,
    return
  }
  func.func @transform_0(%arg0: i32) -> (i32, i32, i32, i32) {
    %c0_i32 = arith.constant 0 : i32
    %c0_i32_0 = arith.constant 0 : i32
    %c0_i32_1 = arith.constant 0 : i32
    %c0_i32_2 = arith.constant 0 : i32
    %c0_i32_3 = arith.constant 0 : i32
    return %c0_i32, %c0_i32_0, %c0_i32_1, %c0_i32_2 : i32, i32, i32, i32
  }
  func.func @transform_1(%arg0: i32) -> (i32, i32) {
    %c0_i32 = arith.constant 0 : i32
    %c0_i32_0 = arith.constant 0 : i32
    return %c0_i32, %arg0 : i32, i32
  }
  func.func @transform_2(%arg0: i32) -> (i32, i32) {
    %c0_i32 = arith.constant 0 : i32
    %c0_i32_0 = arith.constant 0 : i32
    return %c0_i32, %arg0 : i32, i32
  }
  func.func @transform_3(%arg0: i32) -> (i32, i32) {
    %c0_i32 = arith.constant 0 : i32
    %c0_i32_0 = arith.constant 0 : i32
    return %c0_i32, %arg0 : i32, i32
  }
}

module attributes {stable_mosaic.version = 11 : i64} {
  func.func @_fc_kernel(%arg0: memref<2x1024xf32, #tpu.memory_space<vmem>>, %arg1: memref<1024x256xbf16, #tpu.memory_space<vmem>>, %arg2: memref<1x256xf32, #tpu.memory_space<vmem>>, %arg3: memref<256x128xbf16, #tpu.memory_space<vmem>>, %arg4: memref<1x128xf32, #tpu.memory_space<vmem>>, %arg5: memref<2x128xf32, #tpu.memory_space<vmem>>) attributes {dimension_semantics = [], scalar_prefetch = 0 : i64, scratch_operands = 0 : i64, tpu.core_type = #tpu.core_type<tc>} {
    %c0 = arith.constant 0 : index
    %c0_0 = arith.constant 0 : index
    %0 = vector.load %arg0[%c0, %c0_0] : memref<2x1024xf32, #tpu.memory_space<vmem>>, vector<2x1024xf32>
    %1 = arith.truncf %0 : vector<2x1024xf32> to vector<2x1024xbf16>
    %c0_1 = arith.constant 0 : index
    %c0_2 = arith.constant 0 : index
    %2 = vector.load %arg1[%c0_1, %c0_2] : memref<1024x256xbf16, #tpu.memory_space<vmem>>, vector<1024x256xbf16>
    %cst = arith.constant dense<0.000000e+00> : vector<2x256xf32>
    %3 = tpu.matmul %1, %2, %cst {dimension_numbers = #tpu.dot_dimension_numbers<[1], [0], [0], [1], [0, 0, 1, 1], [], []>} : vector<2x1024xbf16>, vector<1024x256xbf16>, vector<2x256xf32> -> vector<2x256xf32>
    %c0_3 = arith.constant 0 : index
    %c0_4 = arith.constant 0 : index
    %4 = vector.load %arg2[%c0_3, %c0_4] : memref<1x256xf32, #tpu.memory_space<vmem>>, vector<1x256xf32>
    %5 = vector.broadcast %4 : vector<1x256xf32> to vector<2x256xf32>
    %6 = arith.addf %3, %5 : vector<2x256xf32>
    %cst_5 = arith.constant 0.000000e+00 : f32
    %7 = vector.broadcast %cst_5 : f32 to vector<2x256xf32>
    %8 = arith.maximumf %6, %7 : vector<2x256xf32>
    %9 = arith.truncf %8 : vector<2x256xf32> to vector<2x256xbf16>
    %c0_6 = arith.constant 0 : index
    %c0_7 = arith.constant 0 : index
    %10 = vector.load %arg3[%c0_6, %c0_7] : memref<256x128xbf16, #tpu.memory_space<vmem>>, vector<256x128xbf16>
    %cst_8 = arith.constant dense<0.000000e+00> : vector<2x128xf32>
    %11 = tpu.matmul %9, %10, %cst_8 {dimension_numbers = #tpu.dot_dimension_numbers<[1], [0], [0], [1], [0, 0, 1, 1], [], []>} : vector<2x256xbf16>, vector<256x128xbf16>, vector<2x128xf32> -> vector<2x128xf32>
    %c0_9 = arith.constant 0 : index
    %c0_10 = arith.constant 0 : index
    %12 = vector.load %arg4[%c0_9, %c0_10] : memref<1x128xf32, #tpu.memory_space<vmem>>, vector<1x128xf32>
    %13 = vector.broadcast %12 : vector<1x128xf32> to vector<2x128xf32>
    %14 = arith.addf %11, %13 : vector<2x128xf32>
    %c0_11 = arith.constant 0 : index
    %c0_12 = arith.constant 0 : index
    %15 = vector.load %arg5[%c0_11, %c0_12] : memref<2x128xf32, #tpu.memory_space<vmem>>, vector<2x128xf32>
    tpu.vector_store %arg5[%c0_11, %c0_12], %14 {strides = array<i32>} : memref<2x128xf32, #tpu.memory_space<vmem>>, vector<2x128xf32>,
    return
  }
}

</mosaic_0001>

<llo_original>
// kernel: simple_cnn_forward.3
$region0: #{simple_cnn_forward.3}
  #allocation0 [shape = 'u32[]', space=smem, size = 0x4, offset = 0x4, fixed_abs, tag = 'smem constant byte address 0x4 - core index']
  #allocation1 [shape = 'u32[144,128]{1,0:T(1,128)}', space=vmem, size = 0x12000, scoped, tag = 'internal scratch']
  %s0 = inlined_call_operand.vmem [shape: bf16[256,16], index: 0, kind: input, shape index: {}]
  %s1 = inlined_call_operand.vmem [shape: bf16[256,16], index: 1, kind: input, shape index: {}]
  %s2 = inlined_call_operand.hbm [shape: bf16[16,256], index: 2, kind: input, shape index: {}]
  %s3 = inlined_call_operand.hbm [shape: f32[1,256], index: 3, kind: input, shape index: {}]
  %s4 = inlined_call_operand.vmem [shape: bf16[2,8,8,256], index: 4, kind: output, shape index: {}]
  %s5 = sld [smem:[#allocation0]]
  $region94: #{simple_cnn_forward.3} parent=0
    _
  %s7 = ssub.s32 1, %s5
  %s8 = scalar_select 0, %s7, %s5
  $region1: #{simple_cnn_forward.3} parent=0
    #allocation2 [shape = 'u8[8192]{0}', space=vmem, size = 0x2000, scoped, tag = 'input window, operand 2']
    #allocation3 [shape = 's32[2]{0}', space=sflag, size = 0x8, scoped, tag = 'scoped memory for simple_cnn_forward.3']
    #allocation4 [shape = 'u8[1024]{0}', space=vmem, size = 0x400, scoped, tag = 'input window, operand 3']
    #allocation5 [shape = 's32[2]{0}', space=sflag, size = 0x8, scoped, tag = 'scoped memory for simple_cnn_forward.3']
    #allocation6 [shape = 'u8[65536]{0}', space=vmem, size = 0x10000, scoped, tag = 'output window, operand 0']
    %9 = vsyncpa [#allocation3], 0
    %s10 = scalar_lea.sflag [#allocation3], 1
    %11 = vsyncpa %s10, 0
    %12 = vsyncpa [#allocation5], 0
    %s13 = scalar_lea.sflag [#allocation5], 1
    %14 = vsyncpa %s13, 0
    loop: start=0, step=1, limit=4
    $region2: #{simple_cnn_forward.3} parent=1 // loop_pre_header
      _
    $region3: #{simple_cnn_forward.3} parent=1 // loop_header
      %s16 = sphi 0, %s20
      %p17 = scmp.ge.s32.totalorder %s16, 4
      %s24 = sphi 0, %s24
      %s26 = sphi 0, %s24
      %s27 = sphi 0, %s26
      %s41 = sphi 0, %s27
      %s45 = sphi 0, %s45
      %s47 = sphi 0, %s45
      %s48 = sphi 0, %s47
      %s62 = sphi 0, %s48
      %s68 = sphi 0, %s70
      %s71 = sphi 0, %s68
      %s72 = sphi 0, %s71
      %s88 = sphi 0, %s72
      %s94 = sphi 0, %s96
      %s97 = sphi 0, %s94
      %s98 = sphi 0, %s97
      %s114 = sphi 0, %s98
      %s120 = sphi 0, %s122
      %s123 = sphi 0, %s120
      %s124 = sphi 0, %s123
      %s140 = sphi 0, %s124
    $region4: #{simple_cnn_forward.3} parent=1 // loop_header_branch
      %19 = sbr.rel (%p17) target = $region8
    $region5: #{simple_cnn_forward.3} parent=1 // loop_body
      %s21 = ssub.s32 %s16, 1
      %s22 = ssub.s32 %s16, 2
      %s23 = sadd.s32 %s16, 1
      %s25 = sadd.s32 %s24, 1
      %p28 = scmp.eq.s32.totalorder %s16, 1
      %p29 = scmp.ne.s32.totalorder %s24, %s26
      %p30 = scmp.eq.s32.totalorder %s16, 0
      %p31 = por %p29, %p30
      %p32 = scmp.ne.s32.totalorder %s24, %s26
      %p33 = scmp.eq.s32.totalorder %s21, 1
      %p34 = por %p32, %p33
      %p35 = scmp.ne.s32.totalorder %s26, %s27
      %p36 = scmp.eq.s32.totalorder %s21, 0
      %p37 = por %p35, %p36
      %p38 = scmp.ne.s32.totalorder %s26, %s27
      %p39 = scmp.eq.s32.totalorder %s22, 1
      %p40 = por %p38, %p39
      %p42 = scmp.ne.s32.totalorder %s27, %s41
      %p43 = scmp.eq.s32.totalorder %s22, 0
      %p44 = por %p42, %p43
      %s46 = sadd.s32 %s45, 1
      %p49 = scmp.eq.s32.totalorder %s16, 1
      %p50 = scmp.ne.s32.totalorder %s45, %s47
      %p51 = scmp.eq.s32.totalorder %s16, 0
      %p52 = por %p50, %p51
      %p53 = scmp.ne.s32.totalorder %s45, %s47
      %p54 = scmp.eq.s32.totalorder %s21, 1
      %p55 = por %p53, %p54
      %p56 = scmp.ne.s32.totalorder %s47, %s48
      %p57 = scmp.eq.s32.totalorder %s21, 0
      %p58 = por %p56, %p57
      %p59 = scmp.ne.s32.totalorder %s47, %s48
      %p60 = scmp.eq.s32.totalorder %s22, 1
      %p61 = por %p59, %p60
      %p63 = scmp.ne.s32.totalorder %s48, %s62
      %p64 = scmp.eq.s32.totalorder %s22, 0
      %p65 = por %p63, %p64
      %s66 = ssub.s32 %s16, %s23
      %p67 = scmp.eq.s32.totalorder %s66, 0
      %s69 = sadd.s32 %s68, 1
      %s70 = scalar_select %p67, %s68, %s69
      %p73 = pneg %p67
      %p74 = scmp.eq.s32.totalorder %s16, 1
      %p75 = por %p73, %p74
      %p76 = scmp.ne.s32.totalorder %s68, %s71
      %p77 = scmp.eq.s32.totalorder %s16, 0
      %p78 = por %p76, %p77
      %p79 = scmp.ne.s32.totalorder %s68, %s71
      %p80 = scmp.eq.s32.totalorder %s21, 1
      %p81 = por %p79, %p80
      %p82 = scmp.ne.s32.totalorder %s71, %s72
      %p83 = scmp.eq.s32.totalorder %s21, 0
      %p84 = por %p82, %p83
      %p85 = scmp.ne.s32.totalorder %s71, %s72
      %p86 = scmp.eq.s32.totalorder %s22, 1
      %p87 = por %p85, %p86
      %p89 = scmp.ne.s32.totalorder %s72, %s88
      %p90 = scmp.eq.s32.totalorder %s22, 0
      %p91 = por %p89, %p90
      %s92 = ssub.s32 %s16, %s23
      %p93 = scmp.eq.s32.totalorder %s92, 0
      %s95 = sadd.s32 %s94, 1
      %s96 = scalar_select %p93, %s94, %s95
      %p99 = pneg %p93
      %p100 = scmp.eq.s32.totalorder %s16, 1
      %p101 = por %p99, %p100
      %p102 = scmp.ne.s32.totalorder %s94, %s97
      %p103 = scmp.eq.s32.totalorder %s16, 0
      %p104 = por %p102, %p103
      %p105 = scmp.ne.s32.totalorder %s94, %s97
      %p106 = scmp.eq.s32.totalorder %s21, 1
      %p107 = por %p105, %p106
      %p108 = scmp.ne.s32.totalorder %s97, %s98
      %p109 = scmp.eq.s32.totalorder %s21, 0
      %p110 = por %p108, %p109
      %p111 = scmp.ne.s32.totalorder %s97, %s98
      %p112 = scmp.eq.s32.totalorder %s22, 1
      %p113 = por %p111, %p112
      %p115 = scmp.ne.s32.totalorder %s98, %s114
      %p116 = scmp.eq.s32.totalorder %s22, 0
      %p117 = por %p115, %p116
      %s118 = ssub.s32 %s16, %s23
      %p119 = scmp.eq.s32.totalorder %s118, 0
      %s121 = sadd.s32 %s120, 1
      %s122 = scalar_select %p119, %s120, %s121
      %p125 = pneg %p119
      %p126 = scmp.eq.s32.totalorder %s16, 1
      %p127 = por %p125, %p126
      %p128 = scmp.ne.s32.totalorder %s120, %s123
      %p129 = scmp.eq.s32.totalorder %s16, 0
      %p130 = por %p128, %p129
      %p131 = scmp.ne.s32.totalorder %s120, %s123
      %p132 = scmp.eq.s32.totalorder %s21, 1
      %p133 = por %p131, %p132
      %p134 = scmp.ne.s32.totalorder %s123, %s124
      %p135 = scmp.eq.s32.totalorder %s21, 0
      %p136 = por %p134, %p135
      %p137 = scmp.ne.s32.totalorder %s123, %s124
      %p138 = scmp.eq.s32.totalorder %s22, 1
      %p139 = por %p137, %p138
      %p141 = scmp.ne.s32.totalorder %s124, %s140
      %p142 = scmp.eq.s32.totalorder %s22, 0
      %p143 = por %p141, %p142
      %p144 = scmp.le.s32.totalorder 1, %s16
      %p145 = scmp.lt.s32.totalorder %s16, 3
      %p146 = pnand %p144, %p145
      %p147 = pneg %p146
      // Predicated region
      $region9: #{simple_cnn_forward.3} parent=5 // pred_check
        _
      $region10: #{simple_cnn_forward.3} parent=5 // pred_check_branch
        %149 = sbr.rel (%p146) target = $region12
      $region11: #{simple_cnn_forward.3} parent=5 // pred_region
        %s150 = ssub.s32 %s16, 1
        // Predicated region
        $region13: #{simple_cnn_forward.3} parent=11 // pred_check
          %p151 = pneg %p37
        $region14: #{simple_cnn_forward.3} parent=11 // pred_check_branch
          %153 = sbr.rel (%p151) target = $region16
        $region15: #{simple_cnn_forward.3} parent=11 // pred_region
          _
        $region16: #{simple_cnn_forward.3} parent=11 // pred_fallthru
          _
        // Predicated region
        $region17: #{simple_cnn_forward.3} parent=11 // pred_check
          %p154 = pneg %p58
        $region18: #{simple_cnn_forward.3} parent=11 // pred_check_branch
          %156 = sbr.rel (%p154) target = $region20
        $region19: #{simple_cnn_forward.3} parent=11 // pred_region
          _
        $region20: #{simple_cnn_forward.3} parent=11 // pred_fallthru
          _
      $region12: #{simple_cnn_forward.3} parent=5 // pred_fallthru
        _
      %p157 = scmp.lt.s32.totalorder %s16, 2
      // Predicated region
      $region21: #{simple_cnn_forward.3} parent=5 // pred_check
        %p158 = pneg %p157
      $region22: #{simple_cnn_forward.3} parent=5 // pred_check_branch
        %160 = sbr.rel (%p158) target = $region24
      $region23: #{simple_cnn_forward.3} parent=5 // pred_region
        // Predicated region
        $region25: #{simple_cnn_forward.3} parent=23 // pred_check
          %p161 = pneg %p78
        $region26: #{simple_cnn_forward.3} parent=23 // pred_check_branch
          %163 = sbr.rel (%p161) target = $region28
        $region27: #{simple_cnn_forward.3} parent=23 // pred_region
          %s164 = sand.u32 %s68, 1
          %s165 = scalar_lea.sflag [#allocation3], %s164
          %s166 = sand.u32 %s68, 1
          %s167 = smul.addr %s166, 8
          %s168 = scalar_lea.vmem [#allocation2], %s167
          %s170 = ssub.s32 128, 128
          %171 = vsyncadd %s165, %s170
          %s172 = smul.addr %s16, 64
          %s173 = scalar_lea.hbm %s2, %s172
          %s174 = sshll.u32 %s168, 4
          %s175 = int_to_ptr.vmem [resolvable:$true] %s174
          %180 = dma.hbm_to_vmem [thread:$0]  %s173, 128, %s175, %s165, 128, 64, 4
        $region28: #{simple_cnn_forward.3} parent=23 // pred_fallthru
          _
        // Predicated region
        $region29: #{simple_cnn_forward.3} parent=23 // pred_check
          %p181 = pneg %p104
        $region30: #{simple_cnn_forward.3} parent=23 // pred_check_branch
          %183 = sbr.rel (%p181) target = $region32
        $region31: #{simple_cnn_forward.3} parent=23 // pred_region
          %s184 = sand.u32 %s94, 1
          %s185 = scalar_lea.sflag [#allocation5], %s184
          %s186 = sand.u32 %s94, 1
          %s187 = scalar_lea.vmem [#allocation4], %s186
          %s189 = ssub.s32 16, 16
          %190 = vsyncadd %s185, %s189
          %s191 = smul.addr %s16, 16
          %s192 = scalar_lea.hbm %s3, %s191
          %s194 = sshll.u32 %s187, 4
          %s195 = int_to_ptr.vmem [resolvable:$true] %s194
          %197 = dma.hbm_to_vmem [thread:$0]  %s192, 16, %s195, %s185
        $region32: #{simple_cnn_forward.3} parent=23 // pred_fallthru
          _
      $region24: #{simple_cnn_forward.3} parent=5 // pred_fallthru
        _
      %p198 = scmp.le.s32.totalorder 1, %s16
      %p199 = scmp.lt.s32.totalorder %s16, 3
      %p200 = pnand %p198, %p199
      %p201 = pneg %p200
      // Predicated region
      $region33: #{simple_cnn_forward.3} parent=5 // pred_check
        _
      $region34: #{simple_cnn_forward.3} parent=5 // pred_check_branch
        %203 = sbr.rel (%p200) target = $region36
      $region35: #{simple_cnn_forward.3} parent=5 // pred_region
        %s204 = ssub.s32 %s16, 1
        %s205 = sand.u32 %s71, 1
        %s206 = scalar_lea.sflag [#allocation3], %s205
        %s207 = sand.u32 %s71, 1
        %s208 = smul.addr %s207, 8
        %s209 = scalar_lea.vmem [#allocation2], %s208
        // Predicated region
        $region37: #{simple_cnn_forward.3} parent=35 // pred_check
          %p210 = pneg %p84
        $region38: #{simple_cnn_forward.3} parent=35 // pred_check_branch
          %212 = sbr.rel (%p210) target = $region40
        $region39: #{simple_cnn_forward.3} parent=35 // pred_region
          %213 = dma.done %s206, 128
        $region40: #{simple_cnn_forward.3} parent=35 // pred_fallthru
          _
        %s214 = sand.u32 %s97, 1
        %s215 = scalar_lea.sflag [#allocation5], %s214
        %s216 = sand.u32 %s97, 1
        %s217 = scalar_lea.vmem [#allocation4], %s216
        // Predicated region
        $region41: #{simple_cnn_forward.3} parent=35 // pred_check
          %p218 = pneg %p110
        $region42: #{simple_cnn_forward.3} parent=35 // pred_check_branch
          %220 = sbr.rel (%p218) target = $region44
        $region43: #{simple_cnn_forward.3} parent=35 // pred_region
          %221 = dma.done %s215, 16
        $region44: #{simple_cnn_forward.3} parent=35 // pred_fallthru
          _
        %p222 = pneg %p37
        %p223 = pneg %p34
        %p224 = pneg %p58
        %p225 = pneg %p55
        %s226 = sand.u32 %s71, 1
        %s227 = scalar_lea.sflag [#allocation3], %s226
        %s228 = sand.u32 %s71, 1
        %s229 = smul.addr %s228, 8
        %s230 = scalar_lea.vmem [#allocation2], %s229
        %p231 = pneg %p84
        %p232 = pneg %p81
        %s233 = sand.u32 %s97, 1
        %s234 = scalar_lea.sflag [#allocation5], %s233
        %s235 = sand.u32 %s97, 1
        %s236 = scalar_lea.vmem [#allocation4], %s235
        %p237 = pneg %p110
        %p238 = pneg %p107
        %p239 = pneg %p136
        %p240 = pneg %p133
        %s241 = sand.u32 %s123, 1
        %s242 = sand.u32 %s123, 1
        %s243 = smul.addr %s242, 64
        %s244 = scalar_lea.vmem [#allocation6], %s243
        %v246 = vld [vmem:[%s0] sm:$0xf]
        %v247 = vld [vmem:[%s0 + $0x4] sm:$0xf]
        %v248 = vld [vmem:[%s0 + $0x8] sm:$0xf]
        %v249 = vld [vmem:[%s0 + $0xc] sm:$0xf]
        %v250 = vld [vmem:[%s0 + $0x10] sm:$0xf]
        %v251 = vld [vmem:[%s0 + $0x14] sm:$0xf]
        %v252 = vld [vmem:[%s0 + $0x18] sm:$0xf]
        %v253 = vld [vmem:[%s0 + $0x1c] sm:$0xf]
        %v254 = vld [vmem:[%s0 + $0x20] sm:$0xf]
        %v255 = vld [vmem:[%s0 + $0x24] sm:$0xf]
        %v256 = vld [vmem:[%s0 + $0x28] sm:$0xf]
        %v257 = vld [vmem:[%s0 + $0x2c] sm:$0xf]
        %v258 = vld [vmem:[%s0 + $0x30] sm:$0xf]
        %v259 = vld [vmem:[%s0 + $0x34] sm:$0xf]
        %v260 = vld [vmem:[%s0 + $0x38] sm:$0xf]
        %v261 = vld [vmem:[%s0 + $0x3c] sm:$0xf]
        %v262 = vld [vmem:[%s0 + $0x40] sm:$0xf]
        %v263 = vld [vmem:[%s0 + $0x44] sm:$0xf]
        %v264 = vld [vmem:[%s0 + $0x48] sm:$0xf]
        %v265 = vld [vmem:[%s0 + $0x4c] sm:$0xf]
        %v266 = vld [vmem:[%s0 + $0x50] sm:$0xf]
        %v267 = vld [vmem:[%s0 + $0x54] sm:$0xf]
        %v268 = vld [vmem:[%s0 + $0x58] sm:$0xf]
        %v269 = vld [vmem:[%s0 + $0x5c] sm:$0xf]
        %v270 = vld [vmem:[%s0 + $0x60] sm:$0xf]
        %v271 = vld [vmem:[%s0 + $0x64] sm:$0xf]
        %v272 = vld [vmem:[%s0 + $0x68] sm:$0xf]
        %v273 = vld [vmem:[%s0 + $0x6c] sm:$0xf]
        %v274 = vld [vmem:[%s0 + $0x70] sm:$0xf]
        %v275 = vld [vmem:[%s0 + $0x74] sm:$0xf]
        %v276 = vld [vmem:[%s0 + $0x78] sm:$0xf]
        %v277 = vld [vmem:[%s0 + $0x7c] sm:$0xf]
        %v278 = vld [vmem:[%s209] sm:$0xf]
        %v279 = vld [vmem:[%s209 + $0x4] sm:$0xf]
        %v312 = vunpack.c.l.b16 %v246
        %v313 = vunpack.c.l.b16 %v247
        %v314 = vunpack.c.l.b16 %v248
        %v315 = vunpack.c.l.b16 %v249
        %v316 = vunpack.c.l.b16 %v250
        %v317 = vunpack.c.l.b16 %v251
        %v318 = vunpack.c.l.b16 %v252
        %v319 = vunpack.c.l.b16 %v253
        %v320 = vunpack.c.l.b16 %v254
        %v321 = vunpack.c.l.b16 %v255
        %v322 = vunpack.c.l.b16 %v256
        %v323 = vunpack.c.l.b16 %v257
        %v324 = vunpack.c.l.b16 %v258
        %v325 = vunpack.c.l.b16 %v259
        %v326 = vunpack.c.l.b16 %v260
        %v327 = vunpack.c.l.b16 %v261
        %v328 = vunpack.c.l.b16 %v262
        %v329 = vunpack.c.l.b16 %v263
        %v330 = vunpack.c.l.b16 %v264
        %v331 = vunpack.c.l.b16 %v265
        %v332 = vunpack.c.l.b16 %v266
        %v333 = vunpack.c.l.b16 %v267
        %v334 = vunpack.c.l.b16 %v268
        %v335 = vunpack.c.l.b16 %v269
        %v336 = vunpack.c.l.b16 %v270
        %v337 = vunpack.c.l.b16 %v271
        %v338 = vunpack.c.l.b16 %v272
        %v339 = vunpack.c.l.b16 %v273
        %v340 = vunpack.c.l.b16 %v274
        %v341 = vunpack.c.l.b16 %v275
        %v342 = vunpack.c.l.b16 %v276
        %v343 = vunpack.c.l.b16 %v277
        %v344 = vpack.c.b16 %v313, %v312
        %v345 = vpack.c.b16 %v315, %v314
        %v346 = vpack.c.b16 %v317, %v316
        %v347 = vpack.c.b16 %v319, %v318
        %v348 = vpack.c.b16 %v321, %v320
        %v349 = vpack.c.b16 %v323, %v322
        %v350 = vpack.c.b16 %v325, %v324
        %v351 = vpack.c.b16 %v327, %v326
        %v352 = vpack.c.b16 %v329, %v328
        %v353 = vpack.c.b16 %v331, %v330
        %v354 = vpack.c.b16 %v333, %v332
        %v355 = vpack.c.b16 %v335, %v334
        %v356 = vpack.c.b16 %v337, %v336
        %v357 = vpack.c.b16 %v339, %v338
        %v358 = vpack.c.b16 %v341, %v340
        %v359 = vpack.c.b16 %v343, %v342
        %v362 = vunpack.c.l.b16 %v278
        %v363 = vunpack.c.l.b16 %v279
        %v364 = vpack.c.b16 %v363, %v362
        %vm366 = vcmask 130048
        %v368 = vsel %vm366, %v344, 0
        %v371 = vsel %vm366, %v345, 0
        %v374 = vsel %vm366, %v346, 0
        %v377 = vsel %vm366, %v347, 0
        %v380 = vsel %vm366, %v348, 0
        %v383 = vsel %vm366, %v349, 0
        %v386 = vsel %vm366, %v350, 0
        %v389 = vsel %vm366, %v351, 0
        %v392 = vsel %vm366, %v352, 0
        %v395 = vsel %vm366, %v353, 0
        %v398 = vsel %vm366, %v354, 0
        %v401 = vsel %vm366, %v355, 0
        %v404 = vsel %vm366, %v356, 0
        %v407 = vsel %vm366, %v357, 0
        %v410 = vsel %vm366, %v358, 0
        %v413 = vsel %vm366, %v359, 0
        %415 = vmatprep.subr.bf16.mxu0 0
        %416 = vmatpush1.bf16.msra.mxu0 0
        %417 = vmatprep.subr.bf16.mxu0 0
        %418 = vmatpush1.bf16.msra.mxu0 0
        %419 = vmatprep.subr.bf16.mxu0 0
        %420 = vmatpush1.bf16.msra.mxu0 0
        %421 = vmatprep.subr.bf16.mxu0 0
        %422 = vmatpush1.bf16.msra.mxu0 0
        %423 = vmatprep.subr.bf16.mxu0 0
        %424 = vmatpush1.bf16.msra.mxu0 0
        %425 = vmatprep.subr.bf16.mxu0 0
        %426 = vmatpush1.bf16.msra.mxu0 0
        %427 = vmatprep.subr.bf16.mxu0 0
        %428 = vmatpush1.bf16.msra.mxu0 0
        %429 = vmatprep.subr.bf16.mxu0 0
        %430 = vmatpush1.bf16.msra.mxu0 %v364
        %431 = vmatprep.subr.bf16.mxu0 0
        %432 = vmatpush2.bf16.msra.mxu0 0
        %433 = vmatprep.subr.bf16.mxu0 0
        %434 = vmatpush2.bf16.msra.mxu0 0
        %435 = vmatprep.subr.bf16.mxu0 0
        %436 = vmatpush2.bf16.msra.mxu0 0
        %437 = vmatprep.subr.bf16.mxu0 0
        %438 = vmatpush2.bf16.msra.mxu0 0
        %439 = vmatprep.subr.bf16.mxu0 0
        %440 = vmatpush2.bf16.msra.mxu0 0
        %441 = vmatprep.subr.bf16.mxu0 0
        %442 = vmatpush2.bf16.msra.mxu0 0
        %443 = vmatprep.subr.bf16.mxu0 0
        %444 = vmatpush2.bf16.msra.mxu0 0
        %445 = vmatprep.subr.bf16.mxu0 0
        %446 = vmatpush2.bf16.msra.mxu0 0
        %447 = vmatprep.mubr.bf16.mxu0 0
        %448 = vmatmul.mubr.bf16.gmra.mxu0 %v368
        %v449 = vpop.f32.mrf.mxu0
        %v450 = vadd.f32 0.0, %v449
        %v451 = vpop.f32.mrf.mxu0
        %v452 = vpop.f32.mrf.mxu0
        %v453 = vadd.f32 0.0, %v452
        %v454 = vpop.f32.mrf.mxu0
        %455 = vmatprep.mubr.bf16.mxu0 0
        %456 = vmatmul.mubr.bf16.gmra.mxu0 %v371
        %v457 = vpop.f32.mrf.mxu0
        %v458 = vadd.f32 0.0, %v457
        %v459 = vpop.f32.mrf.mxu0
        %v460 = vpop.f32.mrf.mxu0
        %v461 = vadd.f32 0.0, %v460
        %v462 = vpop.f32.mrf.mxu0
        %463 = vmatprep.mubr.bf16.mxu0 0
        %464 = vmatmul.mubr.bf16.gmra.mxu0 %v374
        %v465 = vpop.f32.mrf.mxu0
        %v466 = vadd.f32 0.0, %v465
        %v467 = vpop.f32.mrf.mxu0
        %v468 = vpop.f32.mrf.mxu0
        %v469 = vadd.f32 0.0, %v468
        %v470 = vpop.f32.mrf.mxu0
        %471 = vmatprep.mubr.bf16.mxu0 0
        %472 = vmatmul.mubr.bf16.gmra.mxu0 %v377
        %v473 = vpop.f32.mrf.mxu0
        %v474 = vadd.f32 0.0, %v473
        %v475 = vpop.f32.mrf.mxu0
        %v476 = vpop.f32.mrf.mxu0
        %v477 = vadd.f32 0.0, %v476
        %v478 = vpop.f32.mrf.mxu0
        %479 = vmatprep.mubr.bf16.mxu0 0
        %480 = vmatmul.mubr.bf16.gmra.mxu0 %v380
        %v481 = vpop.f32.mrf.mxu0
        %v482 = vadd.f32 0.0, %v481
        %v483 = vpop.f32.mrf.mxu0
        %v484 = vpop.f32.mrf.mxu0
        %v485 = vadd.f32 0.0, %v484
        %v486 = vpop.f32.mrf.mxu0
        %487 = vmatprep.mubr.bf16.mxu0 0
        %488 = vmatmul.mubr.bf16.gmra.mxu0 %v383
        %v489 = vpop.f32.mrf.mxu0
        %v490 = vadd.f32 0.0, %v489
        %v491 = vpop.f32.mrf.mxu0
        %v492 = vpop.f32.mrf.mxu0
        %v493 = vadd.f32 0.0, %v492
        %v494 = vpop.f32.mrf.mxu0
        %495 = vmatprep.mubr.bf16.mxu0 0
        %496 = vmatmul.mubr.bf16.gmra.mxu0 %v386
        %v497 = vpop.f32.mrf.mxu0
        %v498 = vadd.f32 0.0, %v497
        %v499 = vpop.f32.mrf.mxu0
        %v500 = vpop.f32.mrf.mxu0
        %v501 = vadd.f32 0.0, %v500
        %v502 = vpop.f32.mrf.mxu0
        %503 = vmatprep.mubr.bf16.mxu0 0
        %504 = vmatmul.mubr.bf16.gmra.mxu0 %v389
        %v505 = vpop.f32.mrf.mxu0
        %v506 = vadd.f32 0.0, %v505
        %v507 = vpop.f32.mrf.mxu0
        %v508 = vpop.f32.mrf.mxu0
        %v509 = vadd.f32 0.0, %v508
        %v510 = vpop.f32.mrf.mxu0
        %511 = vmatprep.mubr.bf16.mxu0 0
        %512 = vmatmul.mubr.bf16.gmra.mxu0 %v392
        %v513 = vpop.f32.mrf.mxu0
        %v514 = vadd.f32 0.0, %v513
        %v515 = vpop.f32.mrf.mxu0
        %v516 = vpop.f32.mrf.mxu0
        %v517 = vadd.f32 0.0, %v516
        %v518 = vpop.f32.mrf.mxu0
        %519 = vmatprep.mubr.bf16.mxu0 0
        %520 = vmatmul.mubr.bf16.gmra.mxu0 %v395
        %v521 = vpop.f32.mrf.mxu0
        %v522 = vadd.f32 0.0, %v521
        %v523 = vpop.f32.mrf.mxu0
        %v524 = vpop.f32.mrf.mxu0
        %v525 = vadd.f32 0.0, %v524
        %v526 = vpop.f32.mrf.mxu0
        %527 = vmatprep.mubr.bf16.mxu0 0
        %528 = vmatmul.mubr.bf16.gmra.mxu0 %v398
        %v529 = vpop.f32.mrf.mxu0
        %v530 = vadd.f32 0.0, %v529
        %v531 = vpop.f32.mrf.mxu0
        %v532 = vpop.f32.mrf.mxu0
        %v533 = vadd.f32 0.0, %v532
        %v534 = vpop.f32.mrf.mxu0
        %535 = vmatprep.mubr.bf16.mxu0 0
        %536 = vmatmul.mubr.bf16.gmra.mxu0 %v401
        %v537 = vpop.f32.mrf.mxu0
        %v538 = vadd.f32 0.0, %v537
        %v539 = vpop.f32.mrf.mxu0
        %v540 = vpop.f32.mrf.mxu0
        %v541 = vadd.f32 0.0, %v540
        %v542 = vpop.f32.mrf.mxu0
        %543 = vmatprep.mubr.bf16.mxu0 0
        %544 = vmatmul.mubr.bf16.gmra.mxu0 %v404
        %v545 = vpop.f32.mrf.mxu0
        %v546 = vadd.f32 0.0, %v545
        %v547 = vpop.f32.mrf.mxu0
        %v548 = vpop.f32.mrf.mxu0
        %v549 = vadd.f32 0.0, %v548
        %v550 = vpop.f32.mrf.mxu0
        %551 = vmatprep.mubr.bf16.mxu0 0
        %552 = vmatmul.mubr.bf16.gmra.mxu0 %v407
        %v553 = vpop.f32.mrf.mxu0
        %v554 = vadd.f32 0.0, %v553
        %v555 = vpop.f32.mrf.mxu0
        %v556 = vpop.f32.mrf.mxu0
        %v557 = vadd.f32 0.0, %v556
        %v558 = vpop.f32.mrf.mxu0
        %559 = vmatprep.mubr.bf16.mxu0 0
        %560 = vmatmul.mubr.bf16.gmra.mxu0 %v410
        %v561 = vpop.f32.mrf.mxu0
        %v562 = vadd.f32 0.0, %v561
        %v563 = vpop.f32.mrf.mxu0
        %v564 = vpop.f32.mrf.mxu0
        %v565 = vadd.f32 0.0, %v564
        %v566 = vpop.f32.mrf.mxu0
        %567 = vmatprep.mubr.bf16.mxu0 0
        %568 = vmatmul.mubr.bf16.gmra.mxu0 %v413
        %v569 = vpop.f32.mrf.mxu0
        %v570 = vadd.f32 0.0, %v569
        %v571 = vpop.f32.mrf.mxu0
        %v572 = vpop.f32.mrf.mxu0
        %v573 = vadd.f32 0.0, %v572
        %v574 = vpop.f32.mrf.mxu0
        %575 = vdwg.mxu0
        %v576 = vld [vmem:[%s1] sm:$0xf]
        %v577 = vld [vmem:[%s1 + $0x4] sm:$0xf]
        %v578 = vld [vmem:[%s1 + $0x8] sm:$0xf]
        %v579 = vld [vmem:[%s1 + $0xc] sm:$0xf]
        %v580 = vld [vmem:[%s1 + $0x10] sm:$0xf]
        %v581 = vld [vmem:[%s1 + $0x14] sm:$0xf]
        %v582 = vld [vmem:[%s1 + $0x18] sm:$0xf]
        %v583 = vld [vmem:[%s1 + $0x1c] sm:$0xf]
        %v584 = vld [vmem:[%s1 + $0x20] sm:$0xf]
        %v585 = vld [vmem:[%s1 + $0x24] sm:$0xf]
        %v586 = vld [vmem:[%s1 + $0x28] sm:$0xf]
        %v587 = vld [vmem:[%s1 + $0x2c] sm:$0xf]
        %v588 = vld [vmem:[%s1 + $0x30] sm:$0xf]
        %v589 = vld [vmem:[%s1 + $0x34] sm:$0xf]
        %v590 = vld [vmem:[%s1 + $0x38] sm:$0xf]
        %v591 = vld [vmem:[%s1 + $0x3c] sm:$0xf]
        %v592 = vld [vmem:[%s1 + $0x40] sm:$0xf]
        %v593 = vld [vmem:[%s1 + $0x44] sm:$0xf]
        %v594 = vld [vmem:[%s1 + $0x48] sm:$0xf]
        %v595 = vld [vmem:[%s1 + $0x4c] sm:$0xf]
        %v596 = vld [vmem:[%s1 + $0x50] sm:$0xf]
        %v597 = vld [vmem:[%s1 + $0x54] sm:$0xf]
        %v598 = vld [vmem:[%s1 + $0x58] sm:$0xf]
        %v599 = vld [vmem:[%s1 + $0x5c] sm:$0xf]
        %v600 = vld [vmem:[%s1 + $0x60] sm:$0xf]
        %v601 = vld [vmem:[%s1 + $0x64] sm:$0xf]
        %v602 = vld [vmem:[%s1 + $0x68] sm:$0xf]
        %v603 = vld [vmem:[%s1 + $0x6c] sm:$0xf]
        %v604 = vld [vmem:[%s1 + $0x70] sm:$0xf]
        %v605 = vld [vmem:[%s1 + $0x74] sm:$0xf]
        %v606 = vld [vmem:[%s1 + $0x78] sm:$0xf]
        %v607 = vld [vmem:[%s1 + $0x7c] sm:$0xf]
        %v640 = vunpack.c.l.b16 %v576
        %v641 = vunpack.c.l.b16 %v577
        %v642 = vunpack.c.l.b16 %v578
        %v643 = vunpack.c.l.b16 %v579
        %v644 = vunpack.c.l.b16 %v580
        %v645 = vunpack.c.l.b16 %v581
        %v646 = vunpack.c.l.b16 %v582
        %v647 = vunpack.c.l.b16 %v583
        %v648 = vunpack.c.l.b16 %v584
        %v649 = vunpack.c.l.b16 %v585
        %v650 = vunpack.c.l.b16 %v586
        %v651 = vunpack.c.l.b16 %v587
        %v652 = vunpack.c.l.b16 %v588
        %v653 = vunpack.c.l.b16 %v589
        %v654 = vunpack.c.l.b16 %v590
        %v655 = vunpack.c.l.b16 %v591
        %v656 = vunpack.c.l.b16 %v592
        %v657 = vunpack.c.l.b16 %v593
        %v658 = vunpack.c.l.b16 %v594
        %v659 = vunpack.c.l.b16 %v595
        %v660 = vunpack.c.l.b16 %v596
        %v661 = vunpack.c.l.b16 %v597
        %v662 = vunpack.c.l.b16 %v598
        %v663 = vunpack.c.l.b16 %v599
        %v664 = vunpack.c.l.b16 %v600
        %v665 = vunpack.c.l.b16 %v601
        %v666 = vunpack.c.l.b16 %v602
        %v667 = vunpack.c.l.b16 %v603
        %v668 = vunpack.c.l.b16 %v604
        %v669 = vunpack.c.l.b16 %v605
        %v670 = vunpack.c.l.b16 %v606
        %v671 = vunpack.c.l.b16 %v607
        %v672 = vpack.c.b16 %v641, %v640
        %v673 = vpack.c.b16 %v643, %v642
        %v674 = vpack.c.b16 %v645, %v644
        %v675 = vpack.c.b16 %v647, %v646
        %v676 = vpack.c.b16 %v649, %v648
        %v677 = vpack.c.b16 %v651, %v650
        %v678 = vpack.c.b16 %v653, %v652
        %v679 = vpack.c.b16 %v655, %v654
        %v680 = vpack.c.b16 %v657, %v656
        %v681 = vpack.c.b16 %v659, %v658
        %v682 = vpack.c.b16 %v661, %v660
        %v683 = vpack.c.b16 %v663, %v662
        %v684 = vpack.c.b16 %v665, %v664
        %v685 = vpack.c.b16 %v667, %v666
        %v686 = vpack.c.b16 %v669, %v668
        %v687 = vpack.c.b16 %v671, %v670
        %v689 = vsel %vm366, %v672, 0
        %v692 = vsel %vm366, %v673, 0
        %v695 = vsel %vm366, %v674, 0
        %v698 = vsel %vm366, %v675, 0
        %v701 = vsel %vm366, %v676, 0
        %v704 = vsel %vm366, %v677, 0
        %v707 = vsel %vm366, %v678, 0
        %v710 = vsel %vm366, %v679, 0
        %v713 = vsel %vm366, %v680, 0
        %v716 = vsel %vm366, %v681, 0
        %v719 = vsel %vm366, %v682, 0
        %v722 = vsel %vm366, %v683, 0
        %v725 = vsel %vm366, %v684, 0
        %v728 = vsel %vm366, %v685, 0
        %v731 = vsel %vm366, %v686, 0
        %v734 = vsel %vm366, %v687, 0
        %736 = vmatprep.subr.bf16.mxu0 0
        %737 = vmatpush1.bf16.msra.mxu0 0
        %738 = vmatprep.subr.bf16.mxu0 0
        %739 = vmatpush1.bf16.msra.mxu0 0
        %740 = vmatprep.subr.bf16.mxu0 0
        %741 = vmatpush1.bf16.msra.mxu0 0
        %742 = vmatprep.subr.bf16.mxu0 0
        %743 = vmatpush1.bf16.msra.mxu0 0
        %744 = vmatprep.subr.bf16.mxu0 0
        %745 = vmatpush1.bf16.msra.mxu0 0
        %746 = vmatprep.subr.bf16.mxu0 0
        %747 = vmatpush1.bf16.msra.mxu0 0
        %748 = vmatprep.subr.bf16.mxu0 0
        %749 = vmatpush1.bf16.msra.mxu0 0
        %750 = vmatprep.subr.bf16.mxu0 0
        %751 = vmatpush1.bf16.msra.mxu0 %v364
        %752 = vmatprep.subr.bf16.mxu0 0
        %753 = vmatpush2.bf16.msra.mxu0 0
        %754 = vmatprep.subr.bf16.mxu0 0
        %755 = vmatpush2.bf16.msra.mxu0 0
        %756 = vmatprep.subr.bf16.mxu0 0
        %757 = vmatpush2.bf16.msra.mxu0 0
        %758 = vmatprep.subr.bf16.mxu0 0
        %759 = vmatpush2.bf16.msra.mxu0 0
        %760 = vmatprep.subr.bf16.mxu0 0
        %761 = vmatpush2.bf16.msra.mxu0 0
        %762 = vmatprep.subr.bf16.mxu0 0
        %763 = vmatpush2.bf16.msra.mxu0 0
        %764 = vmatprep.subr.bf16.mxu0 0
        %765 = vmatpush2.bf16.msra.mxu0 0
        %766 = vmatprep.subr.bf16.mxu0 0
        %767 = vmatpush2.bf16.msra.mxu0 0
        %768 = vmatprep.mubr.bf16.mxu0 0
        %769 = vmatmul.mubr.bf16.gmra.mxu0 %v689
        %v770 = vpop.f32.mrf.mxu0
        %v771 = vadd.f32 0.0, %v770
        %v772 = vpop.f32.mrf.mxu0
        %v773 = vpop.f32.mrf.mxu0
        %v774 = vadd.f32 0.0, %v773
        %v775 = vpop.f32.mrf.mxu0
        %776 = vmatprep.mubr.bf16.mxu0 0
        %777 = vmatmul.mubr.bf16.gmra.mxu0 %v692
        %v778 = vpop.f32.mrf.mxu0
        %v779 = vadd.f32 0.0, %v778
        %v780 = vpop.f32.mrf.mxu0
        %v781 = vpop.f32.mrf.mxu0
        %v782 = vadd.f32 0.0, %v781
        %v783 = vpop.f32.mrf.mxu0
        %784 = vmatprep.mubr.bf16.mxu0 0
        %785 = vmatmul.mubr.bf16.gmra.mxu0 %v695
        %v786 = vpop.f32.mrf.mxu0
        %v787 = vadd.f32 0.0, %v786
        %v788 = vpop.f32.mrf.mxu0
        %v789 = vpop.f32.mrf.mxu0
        %v790 = vadd.f32 0.0, %v789
        %v791 = vpop.f32.mrf.mxu0
        %792 = vmatprep.mubr.bf16.mxu0 0
        %793 = vmatmul.mubr.bf16.gmra.mxu0 %v698
        %v794 = vpop.f32.mrf.mxu0
        %v795 = vadd.f32 0.0, %v794
        %v796 = vpop.f32.mrf.mxu0
        %v797 = vpop.f32.mrf.mxu0
        %v798 = vadd.f32 0.0, %v797
        %v799 = vpop.f32.mrf.mxu0
        %800 = vmatprep.mubr.bf16.mxu0 0
        %801 = vmatmul.mubr.bf16.gmra.mxu0 %v701
        %v802 = vpop.f32.mrf.mxu0
        %v803 = vadd.f32 0.0, %v802
        %v804 = vpop.f32.mrf.mxu0
        %v805 = vpop.f32.mrf.mxu0
        %v806 = vadd.f32 0.0, %v805
        %v807 = vpop.f32.mrf.mxu0
        %808 = vmatprep.mubr.bf16.mxu0 0
        %809 = vmatmul.mubr.bf16.gmra.mxu0 %v704
        %v810 = vpop.f32.mrf.mxu0
        %v811 = vadd.f32 0.0, %v810
        %v812 = vpop.f32.mrf.mxu0
        %v813 = vpop.f32.mrf.mxu0
        %v814 = vadd.f32 0.0, %v813
        %v815 = vpop.f32.mrf.mxu0
        %816 = vmatprep.mubr.bf16.mxu0 0
        %817 = vmatmul.mubr.bf16.gmra.mxu0 %v707
        %v818 = vpop.f32.mrf.mxu0
        %v819 = vadd.f32 0.0, %v818
        %v820 = vpop.f32.mrf.mxu0
        %v821 = vpop.f32.mrf.mxu0
        %v822 = vadd.f32 0.0, %v821
        %v823 = vpop.f32.mrf.mxu0
        %824 = vmatprep.mubr.bf16.mxu0 0
        %825 = vmatmul.mubr.bf16.gmra.mxu0 %v710
        %v826 = vpop.f32.mrf.mxu0
        %v827 = vadd.f32 0.0, %v826
        %v828 = vpop.f32.mrf.mxu0
        %v829 = vpop.f32.mrf.mxu0
        %v830 = vadd.f32 0.0, %v829
        %v831 = vpop.f32.mrf.mxu0
        %832 = vmatprep.mubr.bf16.mxu0 0
        %833 = vmatmul.mubr.bf16.gmra.mxu0 %v713
        %v834 = vpop.f32.mrf.mxu0
        %v835 = vadd.f32 0.0, %v834
        %v836 = vpop.f32.mrf.mxu0
        %v837 = vpop.f32.mrf.mxu0
        %v838 = vadd.f32 0.0, %v837
        %v839 = vpop.f32.mrf.mxu0
        %840 = vmatprep.mubr.bf16.mxu0 0
        %841 = vmatmul.mubr.bf16.gmra.mxu0 %v716
        %v842 = vpop.f32.mrf.mxu0
        %v843 = vadd.f32 0.0, %v842
        %v844 = vpop.f32.mrf.mxu0
        %v845 = vpop.f32.mrf.mxu0
        %v846 = vadd.f32 0.0, %v845
        %v847 = vpop.f32.mrf.mxu0
        %848 = vmatprep.mubr.bf16.mxu0 0
        %849 = vmatmul.mubr.bf16.gmra.mxu0 %v719
        %v850 = vpop.f32.mrf.mxu0
        %v851 = vadd.f32 0.0, %v850
        %v852 = vpop.f32.mrf.mxu0
        %v853 = vpop.f32.mrf.mxu0
        %v854 = vadd.f32 0.0, %v853
        %v855 = vpop.f32.mrf.mxu0
        %856 = vmatprep.mubr.bf16.mxu0 0
        %857 = vmatmul.mubr.bf16.gmra.mxu0 %v722
        %v858 = vpop.f32.mrf.mxu0
        %v859 = vadd.f32 0.0, %v858
        %v860 = vpop.f32.mrf.mxu0
        %v861 = vpop.f32.mrf.mxu0
        %v862 = vadd.f32 0.0, %v861
        %v863 = vpop.f32.mrf.mxu0
        %864 = vmatprep.mubr.bf16.mxu0 0
        %865 = vmatmul.mubr.bf16.gmra.mxu0 %v725
        %v866 = vpop.f32.mrf.mxu0
        %v867 = vadd.f32 0.0, %v866
        %v868 = vpop.f32.mrf.mxu0
        %v869 = vpop.f32.mrf.mxu0
        %v870 = vadd.f32 0.0, %v869
        %v871 = vpop.f32.mrf.mxu0
        %872 = vmatprep.mubr.bf16.mxu0 0
        %873 = vmatmul.mubr.bf16.gmra.mxu0 %v728
        %v874 = vpop.f32.mrf.mxu0
        %v875 = vadd.f32 0.0, %v874
        %v876 = vpop.f32.mrf.mxu0
        %v877 = vpop.f32.mrf.mxu0
        %v878 = vadd.f32 0.0, %v877
        %v879 = vpop.f32.mrf.mxu0
        %880 = vmatprep.mubr.bf16.mxu0 0
        %881 = vmatmul.mubr.bf16.gmra.mxu0 %v731
        %v882 = vpop.f32.mrf.mxu0
        %v883 = vadd.f32 0.0, %v882
        %v884 = vpop.f32.mrf.mxu0
        %v885 = vpop.f32.mrf.mxu0
        %v886 = vadd.f32 0.0, %v885
        %v887 = vpop.f32.mrf.mxu0
        %888 = vmatprep.mubr.bf16.mxu0 0
        %889 = vmatmul.mubr.bf16.gmra.mxu0 %v734
        %v890 = vpop.f32.mrf.mxu0
        %v891 = vadd.f32 0.0, %v890
        %v892 = vpop.f32.mrf.mxu0
        %v893 = vpop.f32.mrf.mxu0
        %v894 = vadd.f32 0.0, %v893
        %v895 = vpop.f32.mrf.mxu0
        %896 = vdwg.mxu0
        %v897 = vmax.f32 %v450, %v771
        %v898 = vmax.f32 %v453, %v774
        %v899 = vmax.f32 %v458, %v779
        %v900 = vmax.f32 %v461, %v782
        %v901 = vmax.f32 %v466, %v787
        %v902 = vmax.f32 %v469, %v790
        %v903 = vmax.f32 %v474, %v795
        %v904 = vmax.f32 %v477, %v798
        %v905 = vmax.f32 %v482, %v803
        %v906 = vmax.f32 %v485, %v806
        %v907 = vmax.f32 %v490, %v811
        %v908 = vmax.f32 %v493, %v814
        %v909 = vmax.f32 %v498, %v819
        %v910 = vmax.f32 %v501, %v822
        %v911 = vmax.f32 %v506, %v827
        %v912 = vmax.f32 %v509, %v830
        %v913 = vmax.f32 %v514, %v835
        %v914 = vmax.f32 %v517, %v838
        %v915 = vmax.f32 %v522, %v843
        %v916 = vmax.f32 %v525, %v846
        %v917 = vmax.f32 %v530, %v851
        %v918 = vmax.f32 %v533, %v854
        %v919 = vmax.f32 %v538, %v859
        %v920 = vmax.f32 %v541, %v862
        %v921 = vmax.f32 %v546, %v867
        %v922 = vmax.f32 %v549, %v870
        %v923 = vmax.f32 %v554, %v875
        %v924 = vmax.f32 %v557, %v878
        %v925 = vmax.f32 %v562, %v883
        %v926 = vmax.f32 %v565, %v886
        %v927 = vmax.f32 %v570, %v891
        %v928 = vmax.f32 %v573, %v894
        %v929 = vld [vmem:[%s217] sm:$0x1]
        %v931 = vlaneseq
        %v932 = vshrl.u32 %v931, 7
        %v933 = vsub.s32 0, %v932
        %v934 = vrot.slane %v929, %v933
        %v936 = vadd.f32 %v897, %v934
        %v937 = vadd.f32 %v898, %v934
        %v938 = vadd.f32 %v899, %v934
        %v939 = vadd.f32 %v900, %v934
        %v940 = vadd.f32 %v901, %v934
        %v941 = vadd.f32 %v902, %v934
        %v942 = vadd.f32 %v903, %v934
        %v943 = vadd.f32 %v904, %v934
        %v944 = vadd.f32 %v905, %v934
        %v945 = vadd.f32 %v906, %v934
        %v946 = vadd.f32 %v907, %v934
        %v947 = vadd.f32 %v908, %v934
        %v948 = vadd.f32 %v909, %v934
        %v949 = vadd.f32 %v910, %v934
        %v950 = vadd.f32 %v911, %v934
        %v951 = vadd.f32 %v912, %v934
        %v952 = vadd.f32 %v913, %v934
        %v953 = vadd.f32 %v914, %v934
        %v954 = vadd.f32 %v915, %v934
        %v955 = vadd.f32 %v916, %v934
        %v956 = vadd.f32 %v917, %v934
        %v957 = vadd.f32 %v918, %v934
        %v958 = vadd.f32 %v919, %v934
        %v959 = vadd.f32 %v920, %v934
        %v960 = vadd.f32 %v921, %v934
        %v961 = vadd.f32 %v922, %v934
        %v962 = vadd.f32 %v923, %v934
        %v963 = vadd.f32 %v924, %v934
        %v964 = vadd.f32 %v925, %v934
        %v965 = vadd.f32 %v926, %v934
        %v966 = vadd.f32 %v927, %v934
        %v967 = vadd.f32 %v928, %v934
        %v968 = vmax.f32 %v936, 0.0
        %v969 = vmax.f32 %v937, 0.0
        %v970 = vmax.f32 %v938, 0.0
        %v971 = vmax.f32 %v939, 0.0
        %v972 = vmax.f32 %v940, 0.0
        %v973 = vmax.f32 %v941, 0.0
        %v974 = vmax.f32 %v942, 0.0
        %v975 = vmax.f32 %v943, 0.0
        %v976 = vmax.f32 %v944, 0.0
        %v977 = vmax.f32 %v945, 0.0
        %v978 = vmax.f32 %v946, 0.0
        %v979 = vmax.f32 %v947, 0.0
        %v980 = vmax.f32 %v948, 0.0
        %v981 = vmax.f32 %v949, 0.0
        %v982 = vmax.f32 %v950, 0.0
        %v983 = vmax.f32 %v951, 0.0
        %v984 = vmax.f32 %v952, 0.0
        %v985 = vmax.f32 %v953, 0.0
        %v986 = vmax.f32 %v954, 0.0
        %v987 = vmax.f32 %v955, 0.0
        %v988 = vmax.f32 %v956, 0.0
        %v989 = vmax.f32 %v957, 0.0
        %v990 = vmax.f32 %v958, 0.0
        %v991 = vmax.f32 %v959, 0.0
        %v992 = vmax.f32 %v960, 0.0
        %v993 = vmax.f32 %v961, 0.0
        %v994 = vmax.f32 %v962, 0.0
        %v995 = vmax.f32 %v963, 0.0
        %v996 = vmax.f32 %v964, 0.0
        %v997 = vmax.f32 %v965, 0.0
        %v998 = vmax.f32 %v966, 0.0
        %v999 = vmax.f32 %v967, 0.0
        %v1000 = vmax.f32 %v968, %v969
        %v1001 = vmax.f32 %v970, %v971
        %v1002 = vmax.f32 %v972, %v973
        %v1003 = vmax.f32 %v974, %v975
        %v1004 = vmax.f32 %v976, %v977
        %v1005 = vmax.f32 %v978, %v979
        %v1006 = vmax.f32 %v980, %v981
        %v1007 = vmax.f32 %v982, %v983
        %v1008 = vmax.f32 %v984, %v985
        %v1009 = vmax.f32 %v986, %v987
        %v1010 = vmax.f32 %v988, %v989
        %v1011 = vmax.f32 %v990, %v991
        %v1012 = vmax.f32 %v992, %v993
        %v1013 = vmax.f32 %v994, %v995
        %v1014 = vmax.f32 %v996, %v997
        %v1015 = vmax.f32 %v998, %v999
        %v1016 = vpack.c.bf16 %v1000, %v1000
        %v1017 = vpack.c.bf16 %v1001, %v1001
        %v1018 = vpack.c.bf16 %v1002, %v1002
        %v1019 = vpack.c.bf16 %v1003, %v1003
        %v1020 = vpack.c.bf16 %v1004, %v1004
        %v1021 = vpack.c.bf16 %v1005, %v1005
        %v1022 = vpack.c.bf16 %v1006, %v1006
        %v1023 = vpack.c.bf16 %v1007, %v1007
        %v1024 = vpack.c.bf16 %v1008, %v1008
        %v1025 = vpack.c.bf16 %v1009, %v1009
        %v1026 = vpack.c.bf16 %v1010, %v1010
        %v1027 = vpack.c.bf16 %v1011, %v1011
        %v1028 = vpack.c.bf16 %v1012, %v1012
        %v1029 = vpack.c.bf16 %v1013, %v1013
        %v1030 = vpack.c.bf16 %v1014, %v1014
        %v1031 = vpack.c.bf16 %v1015, %v1015
        %1032 = vst [vmem:[%s244] sm:$0xf] %v1016
        %1033 = vst [vmem:[%s244 + $0x4] sm:$0xf] %v1017
        %1034 = vst [vmem:[%s244 + $0x8] sm:$0xf] %v1018
        %1035 = vst [vmem:[%s244 + $0xc] sm:$0xf] %v1019
        %1036 = vst [vmem:[%s244 + $0x10] sm:$0xf] %v1020
        %1037 = vst [vmem:[%s244 + $0x14] sm:$0xf] %v1021
        %1038 = vst [vmem:[%s244 + $0x18] sm:$0xf] %v1022
        %1039 = vst [vmem:[%s244 + $0x1c] sm:$0xf] %v1023
        %1040 = vst [vmem:[%s244 + $0x20] sm:$0xf] %v1024
        %1041 = vst [vmem:[%s244 + $0x24] sm:$0xf] %v1025
        %1042 = vst [vmem:[%s244 + $0x28] sm:$0xf] %v1026
        %1043 = vst [vmem:[%s244 + $0x2c] sm:$0xf] %v1027
        %1044 = vst [vmem:[%s244 + $0x30] sm:$0xf] %v1028
        %1045 = vst [vmem:[%s244 + $0x34] sm:$0xf] %v1029
        %1046 = vst [vmem:[%s244 + $0x38] sm:$0xf] %v1030
        %1047 = vst [vmem:[%s244 + $0x3c] sm:$0xf] %v1031
        %s1048 = sand.u32 %s123, 1
        %s1049 = sand.u32 %s123, 1
        %s1050 = smul.addr %s1049, 64
        %s1051 = scalar_lea.vmem [#allocation6], %s1050
        // Predicated region
        $region45: #{simple_cnn_forward.3} parent=35 // pred_check
          %p1052 = pneg %p133
        $region46: #{simple_cnn_forward.3} parent=35 // pred_check_branch
          %1054 = sbr.rel (%p1052) target = $region48
        $region47: #{simple_cnn_forward.3} parent=35 // pred_region
          %s1055 = smul.addr %s21, 4
          %s1056 = scalar_lea.vmem %s4, %s1055
          // Predicated region
          $region49: #{simple_cnn_forward.3} parent=47 // pred_check
            _
          $region50: #{simple_cnn_forward.3} parent=47 // pred_check_branch
            %1058 = sbr.rel (0) target = $region52
          $region51: #{simple_cnn_forward.3} parent=47 // pred_region
            // Predicated region
            $region53: #{simple_cnn_forward.3} parent=51 // pred_check
              _
            $region54: #{simple_cnn_forward.3} parent=51 // pred_check_branch
              %1060 = sbr.rel target = $region56
            $region55: #{simple_cnn_forward.3} parent=51 // pred_region
              // Predicated region
              $region68: #{simple_cnn_forward.3} parent=55 // pred_check
                _
              $region69: #{simple_cnn_forward.3} parent=55 // pred_check_branch
                %1106 = sbr.rel (0) target = $region71
              $region70: #{simple_cnn_forward.3} parent=55 // pred_region
                loop: start=0, step=1, limit=1
                $region72: #{simple_cnn_forward.3} parent=70 // loop_pre_header
                  _
                $region73: #{simple_cnn_forward.3} parent=70 // loop_header
                  %s1108 = sphi 0, %s1112
                  %p1109 = scmp.ge.s32.totalorder %s1108, 1
                  %s1113 = sphi %s1051, %s1051
                  %s1114 = sphi %s1056, %s1056
                $region74: #{simple_cnn_forward.3} parent=70 // loop_header_branch
                  %1111 = sbr.rel (%p1109) target = $region78
                $region75: #{simple_cnn_forward.3} parent=70 // loop_body
                  _
                $region76: #{simple_cnn_forward.3} parent=70 // loop_footer
                  %s1112 = sadd.s32 1, %s1108
                $region77: #{simple_cnn_forward.3} parent=70 // loop_footer_branch
                  %1107 = sbr.rel target = $region73
                $region78: #{simple_cnn_forward.3} parent=70 // loop_exit
                  _
                %s1116 = ssub.s32 16, 1
                loop: start=0, step=1, limit=1
                $region79: #{simple_cnn_forward.3} parent=70 // loop_pre_header
                  _
                $region80: #{simple_cnn_forward.3} parent=70 // loop_header
                  %s1118 = sphi 0, %s1122
                  %p1119 = scmp.ge.s32.totalorder %s1118, 1
                  %s1123 = sphi %s1051, %s1051
                  %s1124 = sphi %s1056, %s1056
                $region81: #{simple_cnn_forward.3} parent=70 // loop_header_branch
                  %1121 = sbr.rel (%p1119) target = $region85
                $region82: #{simple_cnn_forward.3} parent=70 // loop_body
                  %v1125 = vld [vmem:[%s1123] sm:%s1116]
                  %1126 = vst [vmem:[%s1124] sm:%s1116] %v1125
                  %v1127 = vld [vmem:[%s1123 + $0x4] sm:%s1116]
                  %1128 = vst [vmem:[%s1124 + $0x8] sm:%s1116] %v1127
                  %v1129 = vld [vmem:[%s1123 + $0x8] sm:%s1116]
                  %1130 = vst [vmem:[%s1124 + $0x10] sm:%s1116] %v1129
                  %v1131 = vld [vmem:[%s1123 + $0xc] sm:%s1116]
                  %1132 = vst [vmem:[%s1124 + $0x18] sm:%s1116] %v1131
                  %v1133 = vld [vmem:[%s1123 + $0x10] sm:%s1116]
                  %1134 = vst [vmem:[%s1124 + $0x20] sm:%s1116] %v1133
                  %v1135 = vld [vmem:[%s1123 + $0x14] sm:%s1116]
                  %1136 = vst [vmem:[%s1124 + $0x28] sm:%s1116] %v1135
                  %v1137 = vld [vmem:[%s1123 + $0x18] sm:%s1116]
                  %1138 = vst [vmem:[%s1124 + $0x30] sm:%s1116] %v1137
                  %v1139 = vld [vmem:[%s1123 + $0x1c] sm:%s1116]
                  %1140 = vst [vmem:[%s1124 + $0x38] sm:%s1116] %v1139
                  %v1141 = vld [vmem:[%s1123 + $0x20] sm:%s1116]
                  %1142 = vst [vmem:[%s1124 + $0x40] sm:%s1116] %v1141
                  %v1143 = vld [vmem:[%s1123 + $0x24] sm:%s1116]
                  %1144 = vst [vmem:[%s1124 + $0x48] sm:%s1116] %v1143
                  %v1145 = vld [vmem:[%s1123 + $0x28] sm:%s1116]
                  %1146 = vst [vmem:[%s1124 + $0x50] sm:%s1116] %v1145
                  %v1147 = vld [vmem:[%s1123 + $0x2c] sm:%s1116]
                  %1148 = vst [vmem:[%s1124 + $0x58] sm:%s1116] %v1147
                  %v1149 = vld [vmem:[%s1123 + $0x30] sm:%s1116]
                  %1150 = vst [vmem:[%s1124 + $0x60] sm:%s1116] %v1149
                  %v1151 = vld [vmem:[%s1123 + $0x34] sm:%s1116]
                  %1152 = vst [vmem:[%s1124 + $0x68] sm:%s1116] %v1151
                  %v1153 = vld [vmem:[%s1123 + $0x38] sm:%s1116]
                  %1154 = vst [vmem:[%s1124 + $0x70] sm:%s1116] %v1153
                  %v1155 = vld [vmem:[%s1123 + $0x3c] sm:%s1116]
                  %1156 = vst [vmem:[%s1124 + $0x78] sm:%s1116] %v1155
                $region83: #{simple_cnn_forward.3} parent=70 // loop_footer
                  %s1122 = sadd.s32 1, %s1118
                $region84: #{simple_cnn_forward.3} parent=70 // loop_footer_branch
                  %1117 = sbr.rel target = $region80
                $region85: #{simple_cnn_forward.3} parent=70 // loop_exit
                  _
              $region71: #{simple_cnn_forward.3} parent=55 // pred_fallthru
                _
            $region56: #{simple_cnn_forward.3} parent=51 // pred_fallthru
              _
            // Predicated region
            $region57: #{simple_cnn_forward.3} parent=51 // pred_check
              _
            $region58: #{simple_cnn_forward.3} parent=51 // pred_check_branch
              %1062 = sbr.rel (0) target = $region60
            $region59: #{simple_cnn_forward.3} parent=51 // pred_region
              %s1064 = ssub.s32 16, 1
              loop: start=0, step=1, limit=1
              $region61: #{simple_cnn_forward.3} parent=59 // loop_pre_header
                _
              $region62: #{simple_cnn_forward.3} parent=59 // loop_header
                %s1066 = sphi 0, %s1070
                %p1067 = scmp.ge.s32.totalorder %s1066, 1
                %s1071 = sphi %s1051, %s1051
                %s1072 = sphi %s1056, %s1056
              $region63: #{simple_cnn_forward.3} parent=59 // loop_header_branch
                %1069 = sbr.rel (%p1067) target = $region67
              $region64: #{simple_cnn_forward.3} parent=59 // loop_body
                %v1073 = vld [vmem:[%s1071] sm:%s1064]
                %1074 = vst [vmem:[%s1072] sm:%s1064] %v1073
                %v1075 = vld [vmem:[%s1071 + $0x4] sm:%s1064]
                %1076 = vst [vmem:[%s1072 + $0x8] sm:%s1064] %v1075
                %v1077 = vld [vmem:[%s1071 + $0x8] sm:%s1064]
                %1078 = vst [vmem:[%s1072 + $0x10] sm:%s1064] %v1077
                %v1079 = vld [vmem:[%s1071 + $0xc] sm:%s1064]
                %1080 = vst [vmem:[%s1072 + $0x18] sm:%s1064] %v1079
                %v1081 = vld [vmem:[%s1071 + $0x10] sm:%s1064]
                %1082 = vst [vmem:[%s1072 + $0x20] sm:%s1064] %v1081
                %v1083 = vld [vmem:[%s1071 + $0x14] sm:%s1064]
                %1084 = vst [vmem:[%s1072 + $0x28] sm:%s1064] %v1083
                %v1085 = vld [vmem:[%s1071 + $0x18] sm:%s1064]
                %1086 = vst [vmem:[%s1072 + $0x30] sm:%s1064] %v1085
                %v1087 = vld [vmem:[%s1071 + $0x1c] sm:%s1064]
                %1088 = vst [vmem:[%s1072 + $0x38] sm:%s1064] %v1087
                %v1089 = vld [vmem:[%s1071 + $0x20] sm:%s1064]
                %1090 = vst [vmem:[%s1072 + $0x40] sm:%s1064] %v1089
                %v1091 = vld [vmem:[%s1071 + $0x24] sm:%s1064]
                %1092 = vst [vmem:[%s1072 + $0x48] sm:%s1064] %v1091
                %v1093 = vld [vmem:[%s1071 + $0x28] sm:%s1064]
                %1094 = vst [vmem:[%s1072 + $0x50] sm:%s1064] %v1093
                %v1095 = vld [vmem:[%s1071 + $0x2c] sm:%s1064]
                %1096 = vst [vmem:[%s1072 + $0x58] sm:%s1064] %v1095
                %v1097 = vld [vmem:[%s1071 + $0x30] sm:%s1064]
                %1098 = vst [vmem:[%s1072 + $0x60] sm:%s1064] %v1097
                %v1099 = vld [vmem:[%s1071 + $0x34] sm:%s1064]
                %1100 = vst [vmem:[%s1072 + $0x68] sm:%s1064] %v1099
                %v1101 = vld [vmem:[%s1071 + $0x38] sm:%s1064]
                %1102 = vst [vmem:[%s1072 + $0x70] sm:%s1064] %v1101
                %v1103 = vld [vmem:[%s1071 + $0x3c] sm:%s1064]
                %1104 = vst [vmem:[%s1072 + $0x78] sm:%s1064] %v1103
              $region65: #{simple_cnn_forward.3} parent=59 // loop_footer
                %s1070 = sadd.s32 1, %s1066
              $region66: #{simple_cnn_forward.3} parent=59 // loop_footer_branch
                %1065 = sbr.rel target = $region62
              $region67: #{simple_cnn_forward.3} parent=59 // loop_exit
                _
            $region60: #{simple_cnn_forward.3} parent=51 // pred_fallthru
              _
          $region52: #{simple_cnn_forward.3} parent=47 // pred_fallthru
            _
          %1157 = vnop
        $region48: #{simple_cnn_forward.3} parent=35 // pred_fallthru
          _
      $region36: #{simple_cnn_forward.3} parent=5 // pred_fallthru
        _
      %p1158 = scmp.le.s32.totalorder 2, %s16
      // Predicated region
      $region86: #{simple_cnn_forward.3} parent=5 // pred_check
        %p1159 = pneg %p1158
      $region87: #{simple_cnn_forward.3} parent=5 // pred_check_branch
        %1161 = sbr.rel (%p1159) target = $region89
      $region88: #{simple_cnn_forward.3} parent=5 // pred_region
        %s1162 = ssub.s32 %s16, 2
        // Predicated region
        $region90: #{simple_cnn_forward.3} parent=88 // pred_check
          %p1163 = pneg %p139
        $region91: #{simple_cnn_forward.3} parent=88 // pred_check_branch
          %1165 = sbr.rel (%p1163) target = $region93
        $region92: #{simple_cnn_forward.3} parent=88 // pred_region
          %s1166 = sand.u32 %s124, 1
          %s1167 = sand.u32 %s124, 1
          %s1168 = smul.addr %s1167, 64
          %s1169 = scalar_lea.vmem [#allocation6], %s1168
        $region93: #{simple_cnn_forward.3} parent=88 // pred_fallthru
          _
      $region89: #{simple_cnn_forward.3} parent=5 // pred_fallthru
        _
    $region6: #{simple_cnn_forward.3} parent=1 // loop_footer
      %s20 = sadd.s32 1, %s16
    $region7: #{simple_cnn_forward.3} parent=1 // loop_footer_branch
      %15 = sbr.rel target = $region3
    $region8: #{simple_cnn_forward.3} parent=1 // loop_exit
      _
    %1170 = vsyncpa [#allocation3], 1
    %s1171 = scalar_lea.sflag [#allocation3], 1
    %1172 = vsyncpa %s1171, 1
    %1173 = vsyncpa [#allocation5], 1
    %s1174 = scalar_lea.sflag [#allocation5], 1
    %1175 = vsyncpa %s1174, 1

// kernel: simple_cnn_forward.5
$region0: #{simple_cnn_forward.5}
  #allocation0 [shape = 'u32[]', space=smem, size = 0x4, offset = 0x4, fixed_abs, tag = 'smem constant byte address 0x4 - core index']
  #allocation1 [shape = 'u32[144,128]{1,0:T(1,128)}', space=vmem, size = 0x12000, scoped, tag = 'internal scratch']
  %s0 = inlined_call_operand.vmem [shape: f32[2,1024], index: 0, kind: input, shape index: {}]
  %s1 = inlined_call_operand.vmem [shape: bf16[1024,256], index: 1, kind: input, shape index: {}]
  %s2 = inlined_call_operand.vmem [shape: f32[1,256], index: 2, kind: input, shape index: {}]
  %s3 = inlined_call_operand.vmem [shape: bf16[256,128], index: 3, kind: input, shape index: {}]
  %s4 = inlined_call_operand.vmem [shape: f32[1,128], index: 4, kind: input, shape index: {}]
  %s5 = inlined_call_operand.hbm [shape: f32[2,128], index: 5, kind: output, shape index: {}]
  %s6 = sld [smem:[#allocation0]]
  $region30: #{simple_cnn_forward.5} parent=0
    _
  %s8 = ssub.s32 1, %s6
  %s9 = scalar_select 0, %s8, %s6
  $region1: #{simple_cnn_forward.5} parent=0
    #allocation2 [shape = 'u8[1024]{0}', space=vmem, size = 0x400, scoped, tag = 'output window, operand 0, single buffered']
    #allocation3 [shape = 's32[1]{0}', space=sflag, size = 0x4, scoped, tag = 'scoped memory for simple_cnn_forward.5']
    %10 = vsyncpa [#allocation3], 0
    // Predicated region
    $region2: #{simple_cnn_forward.5} parent=1 // pred_check
      _
    $region3: #{simple_cnn_forward.5} parent=1 // pred_check_branch
      %12 = sbr.rel (0) target = $region5
    $region4: #{simple_cnn_forward.5} parent=1 // pred_region
      _
    $region5: #{simple_cnn_forward.5} parent=1 // pred_fallthru
      _
    // Predicated region
    $region6: #{simple_cnn_forward.5} parent=1 // pred_check
      _
    $region7: #{simple_cnn_forward.5} parent=1 // pred_check_branch
      %14 = sbr.rel (0) target = $region9
    $region8: #{simple_cnn_forward.5} parent=1 // pred_region
      _
    $region9: #{simple_cnn_forward.5} parent=1 // pred_fallthru
      _
    // Predicated region
    $region10: #{simple_cnn_forward.5} parent=1 // pred_check
      _
    $region11: #{simple_cnn_forward.5} parent=1 // pred_check_branch
      %16 = sbr.rel (0) target = $region13
    $region12: #{simple_cnn_forward.5} parent=1 // pred_region
      _
    $region13: #{simple_cnn_forward.5} parent=1 // pred_fallthru
      _
    // Predicated region
    $region14: #{simple_cnn_forward.5} parent=1 // pred_check
      _
    $region15: #{simple_cnn_forward.5} parent=1 // pred_check_branch
      %18 = sbr.rel (0) target = $region17
    $region16: #{simple_cnn_forward.5} parent=1 // pred_region
      _
    $region17: #{simple_cnn_forward.5} parent=1 // pred_fallthru
      _
    // Predicated region
    $region18: #{simple_cnn_forward.5} parent=1 // pred_check
      _
    $region19: #{simple_cnn_forward.5} parent=1 // pred_check_branch
      %20 = sbr.rel (0) target = $region21
    $region20: #{simple_cnn_forward.5} parent=1 // pred_region
      _
    $region21: #{simple_cnn_forward.5} parent=1 // pred_fallthru
      _
    %v22 = vld [vmem:[%s0] sm:$0xff]
    %v23 = vld [vmem:[%s0 + $0x8] sm:$0xff]
    %v26 = vcombine.high %v22, %v22
    %v28 = vunpack.c.l.s4 1983009808
    %v29 = vunpack.c.0.s8 %v28
    %v30 = vlaneseq
    %v31 = vshrl.u32 %v30, 7
    %v32 = vsub.s32 %v29, %v31
    %v33 = vrot.slane %v22, %v32
    %v35 = vunpack.c.l.s4 1983009808
    %v36 = vunpack.c.0.s8 %v35
    %v37 = vlaneseq
    %v38 = vshrl.u32 %v37, 7
    %v39 = vsub.s32 %v36, %v38
    %v40 = vrot.slane %v26, %v39
    %v41 = vcombine.high %v33, %v33
    %v42 = vcombine.high %v40, %v40
    %v43 = vcombine.high %v23, %v23
    %v45 = vunpack.c.l.s4 1983009808
    %v46 = vunpack.c.0.s8 %v45
    %v47 = vlaneseq
    %v48 = vshrl.u32 %v47, 7
    %v49 = vsub.s32 %v46, %v48
    %v50 = vrot.slane %v23, %v49
    %v52 = vunpack.c.l.s4 1983009808
    %v53 = vunpack.c.0.s8 %v52
    %v54 = vlaneseq
    %v55 = vshrl.u32 %v54, 7
    %v56 = vsub.s32 %v53, %v55
    %v57 = vrot.slane %v43, %v56
    %v58 = vcombine.high %v50, %v50
    %v59 = vcombine.high %v57, %v57
    %v68 = vpack.c.bf16 %v33, %v33
    %v69 = vpack.c.bf16 %v41, %v41
    %v70 = vpack.c.bf16 %v40, %v40
    %v71 = vpack.c.bf16 %v42, %v42
    %v72 = vpack.c.bf16 %v50, %v50
    %v73 = vpack.c.bf16 %v58, %v58
    %v74 = vpack.c.bf16 %v57, %v57
    %v75 = vpack.c.bf16 %v59, %v59
    %v76 = vld [vmem:[%s1] sm:$0xff]
    %v77 = vld [vmem:[%s1 + $0x8] sm:$0xff]
    %v78 = vld [vmem:[%s1 + $0x10] sm:$0xff]
    %v79 = vld [vmem:[%s1 + $0x18] sm:$0xff]
    %v80 = vld [vmem:[%s1 + $0x20] sm:$0xff]
    %v81 = vld [vmem:[%s1 + $0x28] sm:$0xff]
    %v82 = vld [vmem:[%s1 + $0x30] sm:$0xff]
    %v83 = vld [vmem:[%s1 + $0x38] sm:$0xff]
    %v84 = vld [vmem:[%s1 + $0x40] sm:$0xff]
    %v85 = vld [vmem:[%s1 + $0x48] sm:$0xff]
    %v86 = vld [vmem:[%s1 + $0x50] sm:$0xff]
    %v87 = vld [vmem:[%s1 + $0x58] sm:$0xff]
    %v88 = vld [vmem:[%s1 + $0x60] sm:$0xff]
    %v89 = vld [vmem:[%s1 + $0x68] sm:$0xff]
    %v90 = vld [vmem:[%s1 + $0x70] sm:$0xff]
    %v91 = vld [vmem:[%s1 + $0x78] sm:$0xff]
    %v92 = vld [vmem:[%s1 + $0x80] sm:$0xff]
    %v93 = vld [vmem:[%s1 + $0x88] sm:$0xff]
    %v94 = vld [vmem:[%s1 + $0x90] sm:$0xff]
    %v95 = vld [vmem:[%s1 + $0x98] sm:$0xff]
    %v96 = vld [vmem:[%s1 + $0xa0] sm:$0xff]
    %v97 = vld [vmem:[%s1 + $0xa8] sm:$0xff]
    %v98 = vld [vmem:[%s1 + $0xb0] sm:$0xff]
    %v99 = vld [vmem:[%s1 + $0xb8] sm:$0xff]
    %v100 = vld [vmem:[%s1 + $0xc0] sm:$0xff]
    %v101 = vld [vmem:[%s1 + $0xc8] sm:$0xff]
    %v102 = vld [vmem:[%s1 + $0xd0] sm:$0xff]
    %v103 = vld [vmem:[%s1 + $0xd8] sm:$0xff]
    %v104 = vld [vmem:[%s1 + $0xe0] sm:$0xff]
    %v105 = vld [vmem:[%s1 + $0xe8] sm:$0xff]
    %v106 = vld [vmem:[%s1 + $0xf0] sm:$0xff]
    %v107 = vld [vmem:[%s1 + $0xf8] sm:$0xff]
    %v108 = vld [vmem:[%s1 + $0x100] sm:$0xff]
    %v109 = vld [vmem:[%s1 + $0x108] sm:$0xff]
    %v110 = vld [vmem:[%s1 + $0x110] sm:$0xff]
    %v111 = vld [vmem:[%s1 + $0x118] sm:$0xff]
    %v112 = vld [vmem:[%s1 + $0x120] sm:$0xff]
    %v113 = vld [vmem:[%s1 + $0x128] sm:$0xff]
    %v114 = vld [vmem:[%s1 + $0x130] sm:$0xff]
    %v115 = vld [vmem:[%s1 + $0x138] sm:$0xff]
    %v116 = vld [vmem:[%s1 + $0x140] sm:$0xff]
    %v117 = vld [vmem:[%s1 + $0x148] sm:$0xff]
    %v118 = vld [vmem:[%s1 + $0x150] sm:$0xff]
    %v119 = vld [vmem:[%s1 + $0x158] sm:$0xff]
    %v120 = vld [vmem:[%s1 + $0x160] sm:$0xff]
    %v121 = vld [vmem:[%s1 + $0x168] sm:$0xff]
    %v122 = vld [vmem:[%s1 + $0x170] sm:$0xff]
    %v123 = vld [vmem:[%s1 + $0x178] sm:$0xff]
    %v124 = vld [vmem:[%s1 + $0x180] sm:$0xff]
    %v125 = vld [vmem:[%s1 + $0x188] sm:$0xff]
    %v126 = vld [vmem:[%s1 + $0x190] sm:$0xff]
    %v127 = vld [vmem:[%s1 + $0x198] sm:$0xff]
    %v128 = vld [vmem:[%s1 + $0x1a0] sm:$0xff]
    %v129 = vld [vmem:[%s1 + $0x1a8] sm:$0xff]
    %v130 = vld [vmem:[%s1 + $0x1b0] sm:$0xff]
    %v131 = vld [vmem:[%s1 + $0x1b8] sm:$0xff]
    %v132 = vld [vmem:[%s1 + $0x1c0] sm:$0xff]
    %v133 = vld [vmem:[%s1 + $0x1c8] sm:$0xff]
    %v134 = vld [vmem:[%s1 + $0x1d0] sm:$0xff]
    %v135 = vld [vmem:[%s1 + $0x1d8] sm:$0xff]
    %v136 = vld [vmem:[%s1 + $0x1e0] sm:$0xff]
    %v137 = vld [vmem:[%s1 + $0x1e8] sm:$0xff]
    %v138 = vld [vmem:[%s1 + $0x1f0] sm:$0xff]
    %v139 = vld [vmem:[%s1 + $0x1f8] sm:$0xff]
    %v140 = vld [vmem:[%s1 + $0x200] sm:$0xff]
    %v141 = vld [vmem:[%s1 + $0x208] sm:$0xff]
    %v142 = vld [vmem:[%s1 + $0x210] sm:$0xff]
    %v143 = vld [vmem:[%s1 + $0x218] sm:$0xff]
    %v144 = vld [vmem:[%s1 + $0x220] sm:$0xff]
    %v145 = vld [vmem:[%s1 + $0x228] sm:$0xff]
    %v146 = vld [vmem:[%s1 + $0x230] sm:$0xff]
    %v147 = vld [vmem:[%s1 + $0x238] sm:$0xff]
    %v148 = vld [vmem:[%s1 + $0x240] sm:$0xff]
    %v149 = vld [vmem:[%s1 + $0x248] sm:$0xff]
    %v150 = vld [vmem:[%s1 + $0x250] sm:$0xff]
    %v151 = vld [vmem:[%s1 + $0x258] sm:$0xff]
    %v152 = vld [vmem:[%s1 + $0x260] sm:$0xff]
    %v153 = vld [vmem:[%s1 + $0x268] sm:$0xff]
    %v154 = vld [vmem:[%s1 + $0x270] sm:$0xff]
    %v155 = vld [vmem:[%s1 + $0x278] sm:$0xff]
    %v156 = vld [vmem:[%s1 + $0x280] sm:$0xff]
    %v157 = vld [vmem:[%s1 + $0x288] sm:$0xff]
    %v158 = vld [vmem:[%s1 + $0x290] sm:$0xff]
    %v159 = vld [vmem:[%s1 + $0x298] sm:$0xff]
    %v160 = vld [vmem:[%s1 + $0x2a0] sm:$0xff]
    %v161 = vld [vmem:[%s1 + $0x2a8] sm:$0xff]
    %v162 = vld [vmem:[%s1 + $0x2b0] sm:$0xff]
    %v163 = vld [vmem:[%s1 + $0x2b8] sm:$0xff]
    %v164 = vld [vmem:[%s1 + $0x2c0] sm:$0xff]
    %v165 = vld [vmem:[%s1 + $0x2c8] sm:$0xff]
    %v166 = vld [vmem:[%s1 + $0x2d0] sm:$0xff]
    %v167 = vld [vmem:[%s1 + $0x2d8] sm:$0xff]
    %v168 = vld [vmem:[%s1 + $0x2e0] sm:$0xff]
    %v169 = vld [vmem:[%s1 + $0x2e8] sm:$0xff]
    %v170 = vld [vmem:[%s1 + $0x2f0] sm:$0xff]
    %v171 = vld [vmem:[%s1 + $0x2f8] sm:$0xff]
    %v172 = vld [vmem:[%s1 + $0x300] sm:$0xff]
    %v173 = vld [vmem:[%s1 + $0x308] sm:$0xff]
    %v174 = vld [vmem:[%s1 + $0x310] sm:$0xff]
    %v175 = vld [vmem:[%s1 + $0x318] sm:$0xff]
    %v176 = vld [vmem:[%s1 + $0x320] sm:$0xff]
    %v177 = vld [vmem:[%s1 + $0x328] sm:$0xff]
    %v178 = vld [vmem:[%s1 + $0x330] sm:$0xff]
    %v179 = vld [vmem:[%s1 + $0x338] sm:$0xff]
    %v180 = vld [vmem:[%s1 + $0x340] sm:$0xff]
    %v181 = vld [vmem:[%s1 + $0x348] sm:$0xff]
    %v182 = vld [vmem:[%s1 + $0x350] sm:$0xff]
    %v183 = vld [vmem:[%s1 + $0x358] sm:$0xff]
    %v184 = vld [vmem:[%s1 + $0x360] sm:$0xff]
    %v185 = vld [vmem:[%s1 + $0x368] sm:$0xff]
    %v186 = vld [vmem:[%s1 + $0x370] sm:$0xff]
    %v187 = vld [vmem:[%s1 + $0x378] sm:$0xff]
    %v188 = vld [vmem:[%s1 + $0x380] sm:$0xff]
    %v189 = vld [vmem:[%s1 + $0x388] sm:$0xff]
    %v190 = vld [vmem:[%s1 + $0x390] sm:$0xff]
    %v191 = vld [vmem:[%s1 + $0x398] sm:$0xff]
    %v192 = vld [vmem:[%s1 + $0x3a0] sm:$0xff]
    %v193 = vld [vmem:[%s1 + $0x3a8] sm:$0xff]
    %v194 = vld [vmem:[%s1 + $0x3b0] sm:$0xff]
    %v195 = vld [vmem:[%s1 + $0x3b8] sm:$0xff]
    %v196 = vld [vmem:[%s1 + $0x3c0] sm:$0xff]
    %v197 = vld [vmem:[%s1 + $0x3c8] sm:$0xff]
    %v198 = vld [vmem:[%s1 + $0x3d0] sm:$0xff]
    %v199 = vld [vmem:[%s1 + $0x3d8] sm:$0xff]
    %v200 = vld [vmem:[%s1 + $0x3e0] sm:$0xff]
    %v201 = vld [vmem:[%s1 + $0x3e8] sm:$0xff]
    %v202 = vld [vmem:[%s1 + $0x3f0] sm:$0xff]
    %v203 = vld [vmem:[%s1 + $0x3f8] sm:$0xff]
    %v204 = vld [vmem:[%s2] sm:$0x3]
    %v206 = vlaneseq
    %v207 = vshrl.u32 %v206, 7
    %v208 = vsub.s32 0, %v207
    %v209 = vrot.slane %v204, %v208
    %v210 = vlaneseq
    %v211 = vshrl.u32 %v210, 7
    %v212 = vsub.s32 1, %v211
    %v213 = vrot.slane %v204, %v212
    %v344 = vunpack.c.l.b16 %v76
    %v345 = vunpack.c.h.b16 %v76
    %v346 = vunpack.c.l.b16 %v77
    %v347 = vunpack.c.h.b16 %v77
    %v348 = vunpack.c.l.b16 %v78
    %v349 = vunpack.c.h.b16 %v78
    %v350 = vunpack.c.l.b16 %v79
    %v351 = vunpack.c.h.b16 %v79
    %v352 = vunpack.c.l.b16 %v80
    %v353 = vunpack.c.h.b16 %v80
    %v354 = vunpack.c.l.b16 %v81
    %v355 = vunpack.c.h.b16 %v81
    %v356 = vunpack.c.l.b16 %v82
    %v357 = vunpack.c.h.b16 %v82
    %v358 = vunpack.c.l.b16 %v83
    %v359 = vunpack.c.h.b16 %v83
    %v360 = vunpack.c.l.b16 %v84
    %v361 = vunpack.c.h.b16 %v84
    %v362 = vunpack.c.l.b16 %v85
    %v363 = vunpack.c.h.b16 %v85
    %v364 = vunpack.c.l.b16 %v86
    %v365 = vunpack.c.h.b16 %v86
    %v366 = vunpack.c.l.b16 %v87
    %v367 = vunpack.c.h.b16 %v87
    %v368 = vunpack.c.l.b16 %v88
    %v369 = vunpack.c.h.b16 %v88
    %v370 = vunpack.c.l.b16 %v89
    %v371 = vunpack.c.h.b16 %v89
    %v372 = vunpack.c.l.b16 %v90
    %v373 = vunpack.c.h.b16 %v90
    %v374 = vunpack.c.l.b16 %v91
    %v375 = vunpack.c.h.b16 %v91
    %v376 = vunpack.c.l.b16 %v92
    %v377 = vunpack.c.h.b16 %v92
    %v378 = vunpack.c.l.b16 %v93
    %v379 = vunpack.c.h.b16 %v93
    %v380 = vunpack.c.l.b16 %v94
    %v381 = vunpack.c.h.b16 %v94
    %v382 = vunpack.c.l.b16 %v95
    %v383 = vunpack.c.h.b16 %v95
    %v384 = vunpack.c.l.b16 %v96
    %v385 = vunpack.c.h.b16 %v96
    %v386 = vunpack.c.l.b16 %v97
    %v387 = vunpack.c.h.b16 %v97
    %v388 = vunpack.c.l.b16 %v98
    %v389 = vunpack.c.h.b16 %v98
    %v390 = vunpack.c.l.b16 %v99
    %v391 = vunpack.c.h.b16 %v99
    %v392 = vunpack.c.l.b16 %v100
    %v393 = vunpack.c.h.b16 %v100
    %v394 = vunpack.c.l.b16 %v101
    %v395 = vunpack.c.h.b16 %v101
    %v396 = vunpack.c.l.b16 %v102
    %v397 = vunpack.c.h.b16 %v102
    %v398 = vunpack.c.l.b16 %v103
    %v399 = vunpack.c.h.b16 %v103
    %v400 = vunpack.c.l.b16 %v104
    %v401 = vunpack.c.h.b16 %v104
    %v402 = vunpack.c.l.b16 %v105
    %v403 = vunpack.c.h.b16 %v105
    %v404 = vunpack.c.l.b16 %v106
    %v405 = vunpack.c.h.b16 %v106
    %v406 = vunpack.c.l.b16 %v107
    %v407 = vunpack.c.h.b16 %v107
    %v408 = vunpack.c.l.b16 %v108
    %v409 = vunpack.c.h.b16 %v108
    %v410 = vunpack.c.l.b16 %v109
    %v411 = vunpack.c.h.b16 %v109
    %v412 = vunpack.c.l.b16 %v110
    %v413 = vunpack.c.h.b16 %v110
    %v414 = vunpack.c.l.b16 %v111
    %v415 = vunpack.c.h.b16 %v111
    %v416 = vunpack.c.l.b16 %v112
    %v417 = vunpack.c.h.b16 %v112
    %v418 = vunpack.c.l.b16 %v113
    %v419 = vunpack.c.h.b16 %v113
    %v420 = vunpack.c.l.b16 %v114
    %v421 = vunpack.c.h.b16 %v114
    %v422 = vunpack.c.l.b16 %v115
    %v423 = vunpack.c.h.b16 %v115
    %v424 = vunpack.c.l.b16 %v116
    %v425 = vunpack.c.h.b16 %v116
    %v426 = vunpack.c.l.b16 %v117
    %v427 = vunpack.c.h.b16 %v117
    %v428 = vunpack.c.l.b16 %v118
    %v429 = vunpack.c.h.b16 %v118
    %v430 = vunpack.c.l.b16 %v119
    %v431 = vunpack.c.h.b16 %v119
    %v432 = vunpack.c.l.b16 %v120
    %v433 = vunpack.c.h.b16 %v120
    %v434 = vunpack.c.l.b16 %v121
    %v435 = vunpack.c.h.b16 %v121
    %v436 = vunpack.c.l.b16 %v122
    %v437 = vunpack.c.h.b16 %v122
    %v438 = vunpack.c.l.b16 %v123
    %v439 = vunpack.c.h.b16 %v123
    %v440 = vunpack.c.l.b16 %v124
    %v441 = vunpack.c.h.b16 %v124
    %v442 = vunpack.c.l.b16 %v125
    %v443 = vunpack.c.h.b16 %v125
    %v444 = vunpack.c.l.b16 %v126
    %v445 = vunpack.c.h.b16 %v126
    %v446 = vunpack.c.l.b16 %v127
    %v447 = vunpack.c.h.b16 %v127
    %v448 = vunpack.c.l.b16 %v128
    %v449 = vunpack.c.h.b16 %v128
    %v450 = vunpack.c.l.b16 %v129
    %v451 = vunpack.c.h.b16 %v129
    %v452 = vunpack.c.l.b16 %v130
    %v453 = vunpack.c.h.b16 %v130
    %v454 = vunpack.c.l.b16 %v131
    %v455 = vunpack.c.h.b16 %v131
    %v456 = vunpack.c.l.b16 %v132
    %v457 = vunpack.c.h.b16 %v132
    %v458 = vunpack.c.l.b16 %v133
    %v459 = vunpack.c.h.b16 %v133
    %v460 = vunpack.c.l.b16 %v134
    %v461 = vunpack.c.h.b16 %v134
    %v462 = vunpack.c.l.b16 %v135
    %v463 = vunpack.c.h.b16 %v135
    %v464 = vunpack.c.l.b16 %v136
    %v465 = vunpack.c.h.b16 %v136
    %v466 = vunpack.c.l.b16 %v137
    %v467 = vunpack.c.h.b16 %v137
    %v468 = vunpack.c.l.b16 %v138
    %v469 = vunpack.c.h.b16 %v138
    %v470 = vunpack.c.l.b16 %v139
    %v471 = vunpack.c.h.b16 %v139
    %v472 = vunpack.c.l.b16 %v140
    %v473 = vunpack.c.h.b16 %v140
    %v474 = vunpack.c.l.b16 %v141
    %v475 = vunpack.c.h.b16 %v141
    %v476 = vunpack.c.l.b16 %v142
    %v477 = vunpack.c.h.b16 %v142
    %v478 = vunpack.c.l.b16 %v143
    %v479 = vunpack.c.h.b16 %v143
    %v480 = vunpack.c.l.b16 %v144
    %v481 = vunpack.c.h.b16 %v144
    %v482 = vunpack.c.l.b16 %v145
    %v483 = vunpack.c.h.b16 %v145
    %v484 = vunpack.c.l.b16 %v146
    %v485 = vunpack.c.h.b16 %v146
    %v486 = vunpack.c.l.b16 %v147
    %v487 = vunpack.c.h.b16 %v147
    %v488 = vunpack.c.l.b16 %v148
    %v489 = vunpack.c.h.b16 %v148
    %v490 = vunpack.c.l.b16 %v149
    %v491 = vunpack.c.h.b16 %v149
    %v492 = vunpack.c.l.b16 %v150
    %v493 = vunpack.c.h.b16 %v150
    %v494 = vunpack.c.l.b16 %v151
    %v495 = vunpack.c.h.b16 %v151
    %v496 = vunpack.c.l.b16 %v152
    %v497 = vunpack.c.h.b16 %v152
    %v498 = vunpack.c.l.b16 %v153
    %v499 = vunpack.c.h.b16 %v153
    %v500 = vunpack.c.l.b16 %v154
    %v501 = vunpack.c.h.b16 %v154
    %v502 = vunpack.c.l.b16 %v155
    %v503 = vunpack.c.h.b16 %v155
    %v504 = vunpack.c.l.b16 %v156
    %v505 = vunpack.c.h.b16 %v156
    %v506 = vunpack.c.l.b16 %v157
    %v507 = vunpack.c.h.b16 %v157
    %v508 = vunpack.c.l.b16 %v158
    %v509 = vunpack.c.h.b16 %v158
    %v510 = vunpack.c.l.b16 %v159
    %v511 = vunpack.c.h.b16 %v159
    %v512 = vunpack.c.l.b16 %v160
    %v513 = vunpack.c.h.b16 %v160
    %v514 = vunpack.c.l.b16 %v161
    %v515 = vunpack.c.h.b16 %v161
    %v516 = vunpack.c.l.b16 %v162
    %v517 = vunpack.c.h.b16 %v162
    %v518 = vunpack.c.l.b16 %v163
    %v519 = vunpack.c.h.b16 %v163
    %v520 = vunpack.c.l.b16 %v164
    %v521 = vunpack.c.h.b16 %v164
    %v522 = vunpack.c.l.b16 %v165
    %v523 = vunpack.c.h.b16 %v165
    %v524 = vunpack.c.l.b16 %v166
    %v525 = vunpack.c.h.b16 %v166
    %v526 = vunpack.c.l.b16 %v167
    %v527 = vunpack.c.h.b16 %v167
    %v528 = vunpack.c.l.b16 %v168
    %v529 = vunpack.c.h.b16 %v168
    %v530 = vunpack.c.l.b16 %v169
    %v531 = vunpack.c.h.b16 %v169
    %v532 = vunpack.c.l.b16 %v170
    %v533 = vunpack.c.h.b16 %v170
    %v534 = vunpack.c.l.b16 %v171
    %v535 = vunpack.c.h.b16 %v171
    %v536 = vunpack.c.l.b16 %v172
    %v537 = vunpack.c.h.b16 %v172
    %v538 = vunpack.c.l.b16 %v173
    %v539 = vunpack.c.h.b16 %v173
    %v540 = vunpack.c.l.b16 %v174
    %v541 = vunpack.c.h.b16 %v174
    %v542 = vunpack.c.l.b16 %v175
    %v543 = vunpack.c.h.b16 %v175
    %v544 = vunpack.c.l.b16 %v176
    %v545 = vunpack.c.h.b16 %v176
    %v546 = vunpack.c.l.b16 %v177
    %v547 = vunpack.c.h.b16 %v177
    %v548 = vunpack.c.l.b16 %v178
    %v549 = vunpack.c.h.b16 %v178
    %v550 = vunpack.c.l.b16 %v179
    %v551 = vunpack.c.h.b16 %v179
    %v552 = vunpack.c.l.b16 %v180
    %v553 = vunpack.c.h.b16 %v180
    %v554 = vunpack.c.l.b16 %v181
    %v555 = vunpack.c.h.b16 %v181
    %v556 = vunpack.c.l.b16 %v182
    %v557 = vunpack.c.h.b16 %v182
    %v558 = vunpack.c.l.b16 %v183
    %v559 = vunpack.c.h.b16 %v183
    %v560 = vunpack.c.l.b16 %v184
    %v561 = vunpack.c.h.b16 %v184
    %v562 = vunpack.c.l.b16 %v185
    %v563 = vunpack.c.h.b16 %v185
    %v564 = vunpack.c.l.b16 %v186
    %v565 = vunpack.c.h.b16 %v186
    %v566 = vunpack.c.l.b16 %v187
    %v567 = vunpack.c.h.b16 %v187
    %v568 = vunpack.c.l.b16 %v188
    %v569 = vunpack.c.h.b16 %v188
    %v570 = vunpack.c.l.b16 %v189
    %v571 = vunpack.c.h.b16 %v189
    %v572 = vunpack.c.l.b16 %v190
    %v573 = vunpack.c.h.b16 %v190
    %v574 = vunpack.c.l.b16 %v191
    %v575 = vunpack.c.h.b16 %v191
    %v576 = vunpack.c.l.b16 %v192
    %v577 = vunpack.c.h.b16 %v192
    %v578 = vunpack.c.l.b16 %v193
    %v579 = vunpack.c.h.b16 %v193
    %v580 = vunpack.c.l.b16 %v194
    %v581 = vunpack.c.h.b16 %v194
    %v582 = vunpack.c.l.b16 %v195
    %v583 = vunpack.c.h.b16 %v195
    %v584 = vunpack.c.l.b16 %v196
    %v585 = vunpack.c.h.b16 %v196
    %v586 = vunpack.c.l.b16 %v197
    %v587 = vunpack.c.h.b16 %v197
    %v588 = vunpack.c.l.b16 %v198
    %v589 = vunpack.c.h.b16 %v198
    %v590 = vunpack.c.l.b16 %v199
    %v591 = vunpack.c.h.b16 %v199
    %v592 = vunpack.c.l.b16 %v200
    %v593 = vunpack.c.h.b16 %v200
    %v594 = vunpack.c.l.b16 %v201
    %v595 = vunpack.c.h.b16 %v201
    %v596 = vunpack.c.l.b16 %v202
    %v597 = vunpack.c.h.b16 %v202
    %v598 = vunpack.c.l.b16 %v203
    %v599 = vunpack.c.h.b16 %v203
    %v600 = vpack.c.b16 %v346, %v344
    %v601 = vpack.c.b16 %v347, %v345
    %v602 = vpack.c.b16 %v350, %v348
    %v603 = vpack.c.b16 %v351, %v349
    %v604 = vpack.c.b16 %v354, %v352
    %v605 = vpack.c.b16 %v355, %v353
    %v606 = vpack.c.b16 %v358, %v356
    %v607 = vpack.c.b16 %v359, %v357
    %v608 = vpack.c.b16 %v362, %v360
    %v609 = vpack.c.b16 %v363, %v361
    %v610 = vpack.c.b16 %v366, %v364
    %v611 = vpack.c.b16 %v367, %v365
    %v612 = vpack.c.b16 %v370, %v368
    %v613 = vpack.c.b16 %v371, %v369
    %v614 = vpack.c.b16 %v374, %v372
    %v615 = vpack.c.b16 %v375, %v373
    %v616 = vpack.c.b16 %v378, %v376
    %v617 = vpack.c.b16 %v379, %v377
    %v618 = vpack.c.b16 %v382, %v380
    %v619 = vpack.c.b16 %v383, %v381
    %v620 = vpack.c.b16 %v386, %v384
    %v621 = vpack.c.b16 %v387, %v385
    %v622 = vpack.c.b16 %v390, %v388
    %v623 = vpack.c.b16 %v391, %v389
    %v624 = vpack.c.b16 %v394, %v392
    %v625 = vpack.c.b16 %v395, %v393
    %v626 = vpack.c.b16 %v398, %v396
    %v627 = vpack.c.b16 %v399, %v397
    %v628 = vpack.c.b16 %v402, %v400
    %v629 = vpack.c.b16 %v403, %v401
    %v630 = vpack.c.b16 %v406, %v404
    %v631 = vpack.c.b16 %v407, %v405
    %v632 = vpack.c.b16 %v410, %v408
    %v633 = vpack.c.b16 %v411, %v409
    %v634 = vpack.c.b16 %v414, %v412
    %v635 = vpack.c.b16 %v415, %v413
    %v636 = vpack.c.b16 %v418, %v416
    %v637 = vpack.c.b16 %v419, %v417
    %v638 = vpack.c.b16 %v422, %v420
    %v639 = vpack.c.b16 %v423, %v421
    %v640 = vpack.c.b16 %v426, %v424
    %v641 = vpack.c.b16 %v427, %v425
    %v642 = vpack.c.b16 %v430, %v428
    %v643 = vpack.c.b16 %v431, %v429
    %v644 = vpack.c.b16 %v434, %v432
    %v645 = vpack.c.b16 %v435, %v433
    %v646 = vpack.c.b16 %v438, %v436
    %v647 = vpack.c.b16 %v439, %v437
    %v648 = vpack.c.b16 %v442, %v440
    %v649 = vpack.c.b16 %v443, %v441
    %v650 = vpack.c.b16 %v446, %v444
    %v651 = vpack.c.b16 %v447, %v445
    %v652 = vpack.c.b16 %v450, %v448
    %v653 = vpack.c.b16 %v451, %v449
    %v654 = vpack.c.b16 %v454, %v452
    %v655 = vpack.c.b16 %v455, %v453
    %v656 = vpack.c.b16 %v458, %v456
    %v657 = vpack.c.b16 %v459, %v457
    %v658 = vpack.c.b16 %v462, %v460
    %v659 = vpack.c.b16 %v463, %v461
    %v660 = vpack.c.b16 %v466, %v464
    %v661 = vpack.c.b16 %v467, %v465
    %v662 = vpack.c.b16 %v470, %v468
    %v663 = vpack.c.b16 %v471, %v469
    %v664 = vpack.c.b16 %v474, %v472
    %v665 = vpack.c.b16 %v475, %v473
    %v666 = vpack.c.b16 %v478, %v476
    %v667 = vpack.c.b16 %v479, %v477
    %v668 = vpack.c.b16 %v482, %v480
    %v669 = vpack.c.b16 %v483, %v481
    %v670 = vpack.c.b16 %v486, %v484
    %v671 = vpack.c.b16 %v487, %v485
    %v672 = vpack.c.b16 %v490, %v488
    %v673 = vpack.c.b16 %v491, %v489
    %v674 = vpack.c.b16 %v494, %v492
    %v675 = vpack.c.b16 %v495, %v493
    %v676 = vpack.c.b16 %v498, %v496
    %v677 = vpack.c.b16 %v499, %v497
    %v678 = vpack.c.b16 %v502, %v500
    %v679 = vpack.c.b16 %v503, %v501
    %v680 = vpack.c.b16 %v506, %v504
    %v681 = vpack.c.b16 %v507, %v505
    %v682 = vpack.c.b16 %v510, %v508
    %v683 = vpack.c.b16 %v511, %v509
    %v684 = vpack.c.b16 %v514, %v512
    %v685 = vpack.c.b16 %v515, %v513
    %v686 = vpack.c.b16 %v518, %v516
    %v687 = vpack.c.b16 %v519, %v517
    %v688 = vpack.c.b16 %v522, %v520
    %v689 = vpack.c.b16 %v523, %v521
    %v690 = vpack.c.b16 %v526, %v524
    %v691 = vpack.c.b16 %v527, %v525
    %v692 = vpack.c.b16 %v530, %v528
    %v693 = vpack.c.b16 %v531, %v529
    %v694 = vpack.c.b16 %v534, %v532
    %v695 = vpack.c.b16 %v535, %v533
    %v696 = vpack.c.b16 %v538, %v536
    %v697 = vpack.c.b16 %v539, %v537
    %v698 = vpack.c.b16 %v542, %v540
    %v699 = vpack.c.b16 %v543, %v541
    %v700 = vpack.c.b16 %v546, %v544
    %v701 = vpack.c.b16 %v547, %v545
    %v702 = vpack.c.b16 %v550, %v548
    %v703 = vpack.c.b16 %v551, %v549
    %v704 = vpack.c.b16 %v554, %v552
    %v705 = vpack.c.b16 %v555, %v553
    %v706 = vpack.c.b16 %v558, %v556
    %v707 = vpack.c.b16 %v559, %v557
    %v708 = vpack.c.b16 %v562, %v560
    %v709 = vpack.c.b16 %v563, %v561
    %v710 = vpack.c.b16 %v566, %v564
    %v711 = vpack.c.b16 %v567, %v565
    %v712 = vpack.c.b16 %v570, %v568
    %v713 = vpack.c.b16 %v571, %v569
    %v714 = vpack.c.b16 %v574, %v572
    %v715 = vpack.c.b16 %v575, %v573
    %v716 = vpack.c.b16 %v578, %v576
    %v717 = vpack.c.b16 %v579, %v577
    %v718 = vpack.c.b16 %v582, %v580
    %v719 = vpack.c.b16 %v583, %v581
    %v720 = vpack.c.b16 %v586, %v584
    %v721 = vpack.c.b16 %v587, %v585
    %v722 = vpack.c.b16 %v590, %v588
    %v723 = vpack.c.b16 %v591, %v589
    %v724 = vpack.c.b16 %v594, %v592
    %v725 = vpack.c.b16 %v595, %v593
    %v726 = vpack.c.b16 %v598, %v596
    %v727 = vpack.c.b16 %v599, %v597
    %856 = vmatprep.subr.bf16.mxu0 %v615
    %857 = vmatpush1.bf16.msra.mxu0 %v614
    %858 = vmatprep.subr.bf16.mxu0 %v613
    %859 = vmatpush1.bf16.msra.mxu0 %v612
    %860 = vmatprep.subr.bf16.mxu0 %v611
    %861 = vmatpush1.bf16.msra.mxu0 %v610
    %862 = vmatprep.subr.bf16.mxu0 %v609
    %863 = vmatpush1.bf16.msra.mxu0 %v608
    %864 = vmatprep.subr.bf16.mxu0 %v607
    %865 = vmatpush1.bf16.msra.mxu0 %v606
    %866 = vmatprep.subr.bf16.mxu0 %v605
    %867 = vmatpush1.bf16.msra.mxu0 %v604
    %868 = vmatprep.subr.bf16.mxu0 %v603
    %869 = vmatpush1.bf16.msra.mxu0 %v602
    %870 = vmatprep.subr.bf16.mxu0 %v601
    %871 = vmatpush1.bf16.msra.mxu0 %v600
    %872 = vmatprep.subr.bf16.mxu0 %v631
    %873 = vmatpush2.bf16.msra.mxu0 %v630
    %874 = vmatprep.subr.bf16.mxu0 %v629
    %875 = vmatpush2.bf16.msra.mxu0 %v628
    %876 = vmatprep.subr.bf16.mxu0 %v627
    %877 = vmatpush2.bf16.msra.mxu0 %v626
    %878 = vmatprep.subr.bf16.mxu0 %v625
    %879 = vmatpush2.bf16.msra.mxu0 %v624
    %880 = vmatprep.subr.bf16.mxu0 %v623
    %881 = vmatpush2.bf16.msra.mxu0 %v622
    %882 = vmatprep.subr.bf16.mxu0 %v621
    %883 = vmatpush2.bf16.msra.mxu0 %v620
    %884 = vmatprep.subr.bf16.mxu0 %v619
    %885 = vmatpush2.bf16.msra.mxu0 %v618
    %886 = vmatprep.subr.bf16.mxu0 %v617
    %887 = vmatpush2.bf16.msra.mxu0 %v616
    %888 = vmatprep.mubr.bf16.mxu0 %v69
    %889 = vmatmul.mubr.bf16.gmra.mxu0 %v68
    %v890 = vpop.f32.mrf.mxu0
    %v891 = vadd.f32 %v209, %v890
    %v892 = vpop.f32.mrf.mxu0
    %v893 = vadd.f32 %v213, %v892
    %v894 = vpop.f32.mrf.mxu0
    %v895 = vpop.f32.mrf.mxu0
    %896 = vdwg.mxu0
    %897 = vmatprep.subr.bf16.mxu0 %v647
    %898 = vmatpush1.bf16.msra.mxu0 %v646
    %899 = vmatprep.subr.bf16.mxu0 %v645
    %900 = vmatpush1.bf16.msra.mxu0 %v644
    %901 = vmatprep.subr.bf16.mxu0 %v643
    %902 = vmatpush1.bf16.msra.mxu0 %v642
    %903 = vmatprep.subr.bf16.mxu0 %v641
    %904 = vmatpush1.bf16.msra.mxu0 %v640
    %905 = vmatprep.subr.bf16.mxu0 %v639
    %906 = vmatpush1.bf16.msra.mxu0 %v638
    %907 = vmatprep.subr.bf16.mxu0 %v637
    %908 = vmatpush1.bf16.msra.mxu0 %v636
    %909 = vmatprep.subr.bf16.mxu0 %v635
    %910 = vmatpush1.bf16.msra.mxu0 %v634
    %911 = vmatprep.subr.bf16.mxu0 %v633
    %912 = vmatpush1.bf16.msra.mxu0 %v632
    %913 = vmatprep.subr.bf16.mxu0 %v663
    %914 = vmatpush2.bf16.msra.mxu0 %v662
    %915 = vmatprep.subr.bf16.mxu0 %v661
    %916 = vmatpush2.bf16.msra.mxu0 %v660
    %917 = vmatprep.subr.bf16.mxu0 %v659
    %918 = vmatpush2.bf16.msra.mxu0 %v658
    %919 = vmatprep.subr.bf16.mxu0 %v657
    %920 = vmatpush2.bf16.msra.mxu0 %v656
    %921 = vmatprep.subr.bf16.mxu0 %v655
    %922 = vmatpush2.bf16.msra.mxu0 %v654
    %923 = vmatprep.subr.bf16.mxu0 %v653
    %924 = vmatpush2.bf16.msra.mxu0 %v652
    %925 = vmatprep.subr.bf16.mxu0 %v651
    %926 = vmatpush2.bf16.msra.mxu0 %v650
    %927 = vmatprep.subr.bf16.mxu0 %v649
    %928 = vmatpush2.bf16.msra.mxu0 %v648
    %929 = vmatprep.mubr.bf16.mxu0 %v71
    %930 = vmatmul.mubr.bf16.gmra.mxu0 %v70
    %v931 = vpop.f32.mrf.mxu0
    %v932 = vadd.f32 %v891, %v931
    %v933 = vpop.f32.mrf.mxu0
    %v934 = vadd.f32 %v893, %v933
    %v935 = vpop.f32.mrf.mxu0
    %v936 = vpop.f32.mrf.mxu0
    %937 = vdwg.mxu0
    %938 = vmatprep.subr.bf16.mxu0 %v679
    %939 = vmatpush1.bf16.msra.mxu0 %v678
    %940 = vmatprep.subr.bf16.mxu0 %v677
    %941 = vmatpush1.bf16.msra.mxu0 %v676
    %942 = vmatprep.subr.bf16.mxu0 %v675
    %943 = vmatpush1.bf16.msra.mxu0 %v674
    %944 = vmatprep.subr.bf16.mxu0 %v673
    %945 = vmatpush1.bf16.msra.mxu0 %v672
    %946 = vmatprep.subr.bf16.mxu0 %v671
    %947 = vmatpush1.bf16.msra.mxu0 %v670
    %948 = vmatprep.subr.bf16.mxu0 %v669
    %949 = vmatpush1.bf16.msra.mxu0 %v668
    %950 = vmatprep.subr.bf16.mxu0 %v667
    %951 = vmatpush1.bf16.msra.mxu0 %v666
    %952 = vmatprep.subr.bf16.mxu0 %v665
    %953 = vmatpush1.bf16.msra.mxu0 %v664
    %954 = vmatprep.subr.bf16.mxu0 %v695
    %955 = vmatpush2.bf16.msra.mxu0 %v694
    %956 = vmatprep.subr.bf16.mxu0 %v693
    %957 = vmatpush2.bf16.msra.mxu0 %v692
    %958 = vmatprep.subr.bf16.mxu0 %v691
    %959 = vmatpush2.bf16.msra.mxu0 %v690
    %960 = vmatprep.subr.bf16.mxu0 %v689
    %961 = vmatpush2.bf16.msra.mxu0 %v688
    %962 = vmatprep.subr.bf16.mxu0 %v687
    %963 = vmatpush2.bf16.msra.mxu0 %v686
    %964 = vmatprep.subr.bf16.mxu0 %v685
    %965 = vmatpush2.bf16.msra.mxu0 %v684
    %966 = vmatprep.subr.bf16.mxu0 %v683
    %967 = vmatpush2.bf16.msra.mxu0 %v682
    %968 = vmatprep.subr.bf16.mxu0 %v681
    %969 = vmatpush2.bf16.msra.mxu0 %v680
    %970 = vmatprep.mubr.bf16.mxu0 %v73
    %971 = vmatmul.mubr.bf16.gmra.mxu0 %v72
    %v972 = vpop.f32.mrf.mxu0
    %v973 = vadd.f32 %v932, %v972
    %v974 = vpop.f32.mrf.mxu0
    %v975 = vadd.f32 %v934, %v974
    %v976 = vpop.f32.mrf.mxu0
    %v977 = vpop.f32.mrf.mxu0
    %978 = vdwg.mxu0
    %979 = vmatprep.subr.bf16.mxu0 %v711
    %980 = vmatpush1.bf16.msra.mxu0 %v710
    %981 = vmatprep.subr.bf16.mxu0 %v709
    %982 = vmatpush1.bf16.msra.mxu0 %v708
    %983 = vmatprep.subr.bf16.mxu0 %v707
    %984 = vmatpush1.bf16.msra.mxu0 %v706
    %985 = vmatprep.subr.bf16.mxu0 %v705
    %986 = vmatpush1.bf16.msra.mxu0 %v704
    %987 = vmatprep.subr.bf16.mxu0 %v703
    %988 = vmatpush1.bf16.msra.mxu0 %v702
    %989 = vmatprep.subr.bf16.mxu0 %v701
    %990 = vmatpush1.bf16.msra.mxu0 %v700
    %991 = vmatprep.subr.bf16.mxu0 %v699
    %992 = vmatpush1.bf16.msra.mxu0 %v698
    %993 = vmatprep.subr.bf16.mxu0 %v697
    %994 = vmatpush1.bf16.msra.mxu0 %v696
    %995 = vmatprep.subr.bf16.mxu0 %v727
    %996 = vmatpush2.bf16.msra.mxu0 %v726
    %997 = vmatprep.subr.bf16.mxu0 %v725
    %998 = vmatpush2.bf16.msra.mxu0 %v724
    %999 = vmatprep.subr.bf16.mxu0 %v723
    %1000 = vmatpush2.bf16.msra.mxu0 %v722
    %1001 = vmatprep.subr.bf16.mxu0 %v721
    %1002 = vmatpush2.bf16.msra.mxu0 %v720
    %1003 = vmatprep.subr.bf16.mxu0 %v719
    %1004 = vmatpush2.bf16.msra.mxu0 %v718
    %1005 = vmatprep.subr.bf16.mxu0 %v717
    %1006 = vmatpush2.bf16.msra.mxu0 %v716
    %1007 = vmatprep.subr.bf16.mxu0 %v715
    %1008 = vmatpush2.bf16.msra.mxu0 %v714
    %1009 = vmatprep.subr.bf16.mxu0 %v713
    %1010 = vmatpush2.bf16.msra.mxu0 %v712
    %1011 = vmatprep.mubr.bf16.mxu0 %v75
    %1012 = vmatmul.mubr.bf16.gmra.mxu0 %v74
    %v1013 = vpop.f32.mrf.mxu0
    %v1014 = vadd.f32 %v973, %v1013
    %v1015 = vpop.f32.mrf.mxu0
    %v1016 = vadd.f32 %v975, %v1015
    %v1017 = vpop.f32.mrf.mxu0
    %v1018 = vpop.f32.mrf.mxu0
    %1019 = vdwg.mxu0
    %v1020 = vmax.f32 %v1014, 0.0
    %v1021 = vmax.f32 %v1016, 0.0
    %v1022 = vpack.c.bf16 %v1020, %v1020
    %v1023 = vpack.c.bf16 %v1021, %v1021
    %v1024 = vld [vmem:[%s3] sm:$0xf]
    %v1025 = vld [vmem:[%s3 + $0x4] sm:$0xf]
    %v1026 = vld [vmem:[%s3 + $0x8] sm:$0xf]
    %v1027 = vld [vmem:[%s3 + $0xc] sm:$0xf]
    %v1028 = vld [vmem:[%s3 + $0x10] sm:$0xf]
    %v1029 = vld [vmem:[%s3 + $0x14] sm:$0xf]
    %v1030 = vld [vmem:[%s3 + $0x18] sm:$0xf]
    %v1031 = vld [vmem:[%s3 + $0x1c] sm:$0xf]
    %v1032 = vld [vmem:[%s3 + $0x20] sm:$0xf]
    %v1033 = vld [vmem:[%s3 + $0x24] sm:$0xf]
    %v1034 = vld [vmem:[%s3 + $0x28] sm:$0xf]
    %v1035 = vld [vmem:[%s3 + $0x2c] sm:$0xf]
    %v1036 = vld [vmem:[%s3 + $0x30] sm:$0xf]
    %v1037 = vld [vmem:[%s3 + $0x34] sm:$0xf]
    %v1038 = vld [vmem:[%s3 + $0x38] sm:$0xf]
    %v1039 = vld [vmem:[%s3 + $0x3c] sm:$0xf]
    %v1040 = vld [vmem:[%s3 + $0x40] sm:$0xf]
    %v1041 = vld [vmem:[%s3 + $0x44] sm:$0xf]
    %v1042 = vld [vmem:[%s3 + $0x48] sm:$0xf]
    %v1043 = vld [vmem:[%s3 + $0x4c] sm:$0xf]
    %v1044 = vld [vmem:[%s3 + $0x50] sm:$0xf]
    %v1045 = vld [vmem:[%s3 + $0x54] sm:$0xf]
    %v1046 = vld [vmem:[%s3 + $0x58] sm:$0xf]
    %v1047 = vld [vmem:[%s3 + $0x5c] sm:$0xf]
    %v1048 = vld [vmem:[%s3 + $0x60] sm:$0xf]
    %v1049 = vld [vmem:[%s3 + $0x64] sm:$0xf]
    %v1050 = vld [vmem:[%s3 + $0x68] sm:$0xf]
    %v1051 = vld [vmem:[%s3 + $0x6c] sm:$0xf]
    %v1052 = vld [vmem:[%s3 + $0x70] sm:$0xf]
    %v1053 = vld [vmem:[%s3 + $0x74] sm:$0xf]
    %v1054 = vld [vmem:[%s3 + $0x78] sm:$0xf]
    %v1055 = vld [vmem:[%s3 + $0x7c] sm:$0xf]
    %v1056 = vld [vmem:[%s4] sm:$0x1]
    %v1058 = vlaneseq
    %v1059 = vshrl.u32 %v1058, 7
    %v1060 = vsub.s32 0, %v1059
    %v1061 = vrot.slane %v1056, %v1060
    %v1095 = vunpack.c.l.b16 %v1024
    %v1096 = vunpack.c.l.b16 %v1025
    %v1097 = vunpack.c.l.b16 %v1026
    %v1098 = vunpack.c.l.b16 %v1027
    %v1099 = vunpack.c.l.b16 %v1028
    %v1100 = vunpack.c.l.b16 %v1029
    %v1101 = vunpack.c.l.b16 %v1030
    %v1102 = vunpack.c.l.b16 %v1031
    %v1103 = vunpack.c.l.b16 %v1032
    %v1104 = vunpack.c.l.b16 %v1033
    %v1105 = vunpack.c.l.b16 %v1034
    %v1106 = vunpack.c.l.b16 %v1035
    %v1107 = vunpack.c.l.b16 %v1036
    %v1108 = vunpack.c.l.b16 %v1037
    %v1109 = vunpack.c.l.b16 %v1038
    %v1110 = vunpack.c.l.b16 %v1039
    %v1111 = vunpack.c.l.b16 %v1040
    %v1112 = vunpack.c.l.b16 %v1041
    %v1113 = vunpack.c.l.b16 %v1042
    %v1114 = vunpack.c.l.b16 %v1043
    %v1115 = vunpack.c.l.b16 %v1044
    %v1116 = vunpack.c.l.b16 %v1045
    %v1117 = vunpack.c.l.b16 %v1046
    %v1118 = vunpack.c.l.b16 %v1047
    %v1119 = vunpack.c.l.b16 %v1048
    %v1120 = vunpack.c.l.b16 %v1049
    %v1121 = vunpack.c.l.b16 %v1050
    %v1122 = vunpack.c.l.b16 %v1051
    %v1123 = vunpack.c.l.b16 %v1052
    %v1124 = vunpack.c.l.b16 %v1053
    %v1125 = vunpack.c.l.b16 %v1054
    %v1126 = vunpack.c.l.b16 %v1055
    %v1127 = vpack.c.b16 %v1096, %v1095
    %v1128 = vpack.c.b16 %v1098, %v1097
    %v1129 = vpack.c.b16 %v1100, %v1099
    %v1130 = vpack.c.b16 %v1102, %v1101
    %v1131 = vpack.c.b16 %v1104, %v1103
    %v1132 = vpack.c.b16 %v1106, %v1105
    %v1133 = vpack.c.b16 %v1108, %v1107
    %v1134 = vpack.c.b16 %v1110, %v1109
    %v1135 = vpack.c.b16 %v1112, %v1111
    %v1136 = vpack.c.b16 %v1114, %v1113
    %v1137 = vpack.c.b16 %v1116, %v1115
    %v1138 = vpack.c.b16 %v1118, %v1117
    %v1139 = vpack.c.b16 %v1120, %v1119
    %v1140 = vpack.c.b16 %v1122, %v1121
    %v1141 = vpack.c.b16 %v1124, %v1123
    %v1142 = vpack.c.b16 %v1126, %v1125
    %1159 = vmatprep.subr.bf16.mxu0 0
    %1160 = vmatpush1.bf16.msra.mxu0 %v1134
    %1161 = vmatprep.subr.bf16.mxu0 0
    %1162 = vmatpush1.bf16.msra.mxu0 %v1133
    %1163 = vmatprep.subr.bf16.mxu0 0
    %1164 = vmatpush1.bf16.msra.mxu0 %v1132
    %1165 = vmatprep.subr.bf16.mxu0 0
    %1166 = vmatpush1.bf16.msra.mxu0 %v1131
    %1167 = vmatprep.subr.bf16.mxu0 0
    %1168 = vmatpush1.bf16.msra.mxu0 %v1130
    %1169 = vmatprep.subr.bf16.mxu0 0
    %1170 = vmatpush1.bf16.msra.mxu0 %v1129
    %1171 = vmatprep.subr.bf16.mxu0 0
    %1172 = vmatpush1.bf16.msra.mxu0 %v1128
    %1173 = vmatprep.subr.bf16.mxu0 0
    %1174 = vmatpush1.bf16.msra.mxu0 %v1127
    %1175 = vmatprep.subr.bf16.mxu0 0
    %1176 = vmatpush2.bf16.msra.mxu0 %v1142
    %1177 = vmatprep.subr.bf16.mxu0 0
    %1178 = vmatpush2.bf16.msra.mxu0 %v1141
    %1179 = vmatprep.subr.bf16.mxu0 0
    %1180 = vmatpush2.bf16.msra.mxu0 %v1140
    %1181 = vmatprep.subr.bf16.mxu0 0
    %1182 = vmatpush2.bf16.msra.mxu0 %v1139
    %1183 = vmatprep.subr.bf16.mxu0 0
    %1184 = vmatpush2.bf16.msra.mxu0 %v1138
    %1185 = vmatprep.subr.bf16.mxu0 0
    %1186 = vmatpush2.bf16.msra.mxu0 %v1137
    %1187 = vmatprep.subr.bf16.mxu0 0
    %1188 = vmatpush2.bf16.msra.mxu0 %v1136
    %1189 = vmatprep.subr.bf16.mxu0 0
    %1190 = vmatpush2.bf16.msra.mxu0 %v1135
    %1191 = vmatprep.mubr.bf16.mxu0 %v1023
    %1192 = vmatmul.mubr.bf16.gmra.mxu0 %v1022
    %v1193 = vpop.f32.mrf.mxu0
    %v1194 = vadd.f32 %v1061, %v1193
    %v1195 = vpop.f32.mrf.mxu0
    %v1196 = vpop.f32.mrf.mxu0
    %v1197 = vpop.f32.mrf.mxu0
    %1198 = vdwg.mxu0
    %1199 = vst [vmem:[#allocation2] sm:$0x3] %v1194
    // Predicated region
    $region22: #{simple_cnn_forward.5} parent=1 // pred_check
      _
    $region23: #{simple_cnn_forward.5} parent=1 // pred_check_branch
      %1201 = sbr.rel (0) target = $region25
    $region24: #{simple_cnn_forward.5} parent=1 // pred_region
      %s1203 = ssub.s32 32, 32
      %1204 = vsyncadd [#allocation3], %s1203
      %s1206 = sshll.u32 [#allocation2], 4
      %s1207 = int_to_ptr.vmem [resolvable:$true] %s1206
      %1209 = dma.vmem_to_hbm [thread:$0]  %s1207, 32, %s5, [#allocation3]
    $region25: #{simple_cnn_forward.5} parent=1 // pred_fallthru
      _
    // Predicated region
    $region26: #{simple_cnn_forward.5} parent=1 // pred_check
      _
    $region27: #{simple_cnn_forward.5} parent=1 // pred_check_branch
      %1211 = sbr.rel (0) target = $region29
    $region28: #{simple_cnn_forward.5} parent=1 // pred_region
      %1212 = dma.done [#allocation3], 32
    $region29: #{simple_cnn_forward.5} parent=1 // pred_fallthru
      _
    %1213 = vsyncpa [#allocation3], 1

// kernel: simple_cnn_forward.4
$region0: #{simple_cnn_forward.4}
  #allocation0 [shape = 'u32[]', space=smem, size = 0x4, offset = 0x4, fixed_abs, tag = 'smem constant byte address 0x4 - core index']
  #allocation1 [shape = 'u32[144,128]{1,0:T(1,128)}', space=vmem, size = 0x12000, scoped, tag = 'internal scratch']
  %s0 = inlined_call_operand.vmem [shape: bf16[2,10,10,256], index: 0, kind: input, shape index: {}]
  %s1 = inlined_call_operand.hbm [shape: bf16[2304,1024], index: 1, kind: input, shape index: {}]
  %s2 = inlined_call_operand.hbm [shape: f32[1,1024], index: 2, kind: input, shape index: {}]
  %s3 = inlined_call_operand.vmem [shape: f32[2,1024], index: 3, kind: output, shape index: {}]
  %s4 = sld [smem:[#allocation0]]
  $region53: #{simple_cnn_forward.4} parent=0
    _
  %s6 = ssub.s32 1, %s4
  %s7 = scalar_select 0, %s6, %s4
  $region1: #{simple_cnn_forward.4} parent=0
    #allocation2 [shape = 'u8[4718592]{0}', space=vmem, size = 0x480000, scoped, tag = 'input window, operand 1']
    #allocation3 [shape = 's32[2]{0}', space=sflag, size = 0x8, scoped, tag = 'scoped memory for simple_cnn_forward.4']
    #allocation4 [shape = 'u8[4096]{0}', space=vmem, size = 0x1000, scoped, tag = 'input window, operand 2']
    #allocation5 [shape = 's32[2]{0}', space=sflag, size = 0x8, scoped, tag = 'scoped memory for simple_cnn_forward.4']
    %8 = vsyncpa [#allocation3], 0
    %s9 = scalar_lea.sflag [#allocation3], 1
    %10 = vsyncpa %s9, 0
    %11 = vsyncpa [#allocation5], 0
    %s12 = scalar_lea.sflag [#allocation5], 1
    %13 = vsyncpa %s12, 0
    loop: start=0, step=1, limit=4
    $region2: #{simple_cnn_forward.4} parent=1 // loop_pre_header
      _
    $region3: #{simple_cnn_forward.4} parent=1 // loop_header
      %s15 = sphi 0, %s19
      %p16 = scmp.ge.s32.totalorder %s15, 4
      %s23 = sphi 0, %s23
      %s25 = sphi 0, %s23
      %s26 = sphi 0, %s25
      %s40 = sphi 0, %s26
      %s46 = sphi 0, %s48
      %s49 = sphi 0, %s46
      %s50 = sphi 0, %s49
      %s66 = sphi 0, %s50
      %s72 = sphi 0, %s74
      %s75 = sphi 0, %s72
      %s76 = sphi 0, %s75
      %s92 = sphi 0, %s76
      %s98 = sphi 0, %s100
      %s101 = sphi 0, %s98
      %s102 = sphi 0, %s101
      %s118 = sphi 0, %s102
    $region4: #{simple_cnn_forward.4} parent=1 // loop_header_branch
      %18 = sbr.rel (%p16) target = $region8
    $region5: #{simple_cnn_forward.4} parent=1 // loop_body
      %s20 = ssub.s32 %s15, 1
      %s21 = ssub.s32 %s15, 2
      %s22 = sadd.s32 %s15, 1
      %s24 = sadd.s32 %s23, 1
      %p27 = scmp.eq.s32.totalorder %s15, 1
      %p28 = scmp.ne.s32.totalorder %s23, %s25
      %p29 = scmp.eq.s32.totalorder %s15, 0
      %p30 = por %p28, %p29
      %p31 = scmp.ne.s32.totalorder %s23, %s25
      %p32 = scmp.eq.s32.totalorder %s20, 1
      %p33 = por %p31, %p32
      %p34 = scmp.ne.s32.totalorder %s25, %s26
      %p35 = scmp.eq.s32.totalorder %s20, 0
      %p36 = por %p34, %p35
      %p37 = scmp.ne.s32.totalorder %s25, %s26
      %p38 = scmp.eq.s32.totalorder %s21, 1
      %p39 = por %p37, %p38
      %p41 = scmp.ne.s32.totalorder %s26, %s40
      %p42 = scmp.eq.s32.totalorder %s21, 0
      %p43 = por %p41, %p42
      %s44 = ssub.s32 %s15, %s22
      %p45 = scmp.eq.s32.totalorder %s44, 0
      %s47 = sadd.s32 %s46, 1
      %s48 = scalar_select %p45, %s46, %s47
      %p51 = pneg %p45
      %p52 = scmp.eq.s32.totalorder %s15, 1
      %p53 = por %p51, %p52
      %p54 = scmp.ne.s32.totalorder %s46, %s49
      %p55 = scmp.eq.s32.totalorder %s15, 0
      %p56 = por %p54, %p55
      %p57 = scmp.ne.s32.totalorder %s46, %s49
      %p58 = scmp.eq.s32.totalorder %s20, 1
      %p59 = por %p57, %p58
      %p60 = scmp.ne.s32.totalorder %s49, %s50
      %p61 = scmp.eq.s32.totalorder %s20, 0
      %p62 = por %p60, %p61
      %p63 = scmp.ne.s32.totalorder %s49, %s50
      %p64 = scmp.eq.s32.totalorder %s21, 1
      %p65 = por %p63, %p64
      %p67 = scmp.ne.s32.totalorder %s50, %s66
      %p68 = scmp.eq.s32.totalorder %s21, 0
      %p69 = por %p67, %p68
      %s70 = ssub.s32 %s15, %s22
      %p71 = scmp.eq.s32.totalorder %s70, 0
      %s73 = sadd.s32 %s72, 1
      %s74 = scalar_select %p71, %s72, %s73
      %p77 = pneg %p71
      %p78 = scmp.eq.s32.totalorder %s15, 1
      %p79 = por %p77, %p78
      %p80 = scmp.ne.s32.totalorder %s72, %s75
      %p81 = scmp.eq.s32.totalorder %s15, 0
      %p82 = por %p80, %p81
      %p83 = scmp.ne.s32.totalorder %s72, %s75
      %p84 = scmp.eq.s32.totalorder %s20, 1
      %p85 = por %p83, %p84
      %p86 = scmp.ne.s32.totalorder %s75, %s76
      %p87 = scmp.eq.s32.totalorder %s20, 0
      %p88 = por %p86, %p87
      %p89 = scmp.ne.s32.totalorder %s75, %s76
      %p90 = scmp.eq.s32.totalorder %s21, 1
      %p91 = por %p89, %p90
      %p93 = scmp.ne.s32.totalorder %s76, %s92
      %p94 = scmp.eq.s32.totalorder %s21, 0
      %p95 = por %p93, %p94
      %s96 = ssub.s32 %s15, %s22
      %p97 = scmp.eq.s32.totalorder %s96, 0
      %s99 = sadd.s32 %s98, 1
      %s100 = scalar_select %p97, %s98, %s99
      %p103 = pneg %p97
      %p104 = scmp.eq.s32.totalorder %s15, 1
      %p105 = por %p103, %p104
      %p106 = scmp.ne.s32.totalorder %s98, %s101
      %p107 = scmp.eq.s32.totalorder %s15, 0
      %p108 = por %p106, %p107
      %p109 = scmp.ne.s32.totalorder %s98, %s101
      %p110 = scmp.eq.s32.totalorder %s20, 1
      %p111 = por %p109, %p110
      %p112 = scmp.ne.s32.totalorder %s101, %s102
      %p113 = scmp.eq.s32.totalorder %s20, 0
      %p114 = por %p112, %p113
      %p115 = scmp.ne.s32.totalorder %s101, %s102
      %p116 = scmp.eq.s32.totalorder %s21, 1
      %p117 = por %p115, %p116
      %p119 = scmp.ne.s32.totalorder %s102, %s118
      %p120 = scmp.eq.s32.totalorder %s21, 0
      %p121 = por %p119, %p120
      %p122 = scmp.le.s32.totalorder 1, %s15
      %p123 = scmp.lt.s32.totalorder %s15, 3
      %p124 = pnand %p122, %p123
      %p125 = pneg %p124
      // Predicated region
      $region9: #{simple_cnn_forward.4} parent=5 // pred_check
        _
      $region10: #{simple_cnn_forward.4} parent=5 // pred_check_branch
        %127 = sbr.rel (%p124) target = $region12
      $region11: #{simple_cnn_forward.4} parent=5 // pred_region
        %s128 = ssub.s32 %s15, 1
        // Predicated region
        $region13: #{simple_cnn_forward.4} parent=11 // pred_check
          %p129 = pneg %p36
        $region14: #{simple_cnn_forward.4} parent=11 // pred_check_branch
          %131 = sbr.rel (%p129) target = $region16
        $region15: #{simple_cnn_forward.4} parent=11 // pred_region
          _
        $region16: #{simple_cnn_forward.4} parent=11 // pred_fallthru
          _
      $region12: #{simple_cnn_forward.4} parent=5 // pred_fallthru
        _
      %p132 = scmp.lt.s32.totalorder %s15, 2
      // Predicated region
      $region17: #{simple_cnn_forward.4} parent=5 // pred_check
        %p133 = pneg %p132
      $region18: #{simple_cnn_forward.4} parent=5 // pred_check_branch
        %135 = sbr.rel (%p133) target = $region20
      $region19: #{simple_cnn_forward.4} parent=5 // pred_region
        // Predicated region
        $region21: #{simple_cnn_forward.4} parent=19 // pred_check
          %p136 = pneg %p56
        $region22: #{simple_cnn_forward.4} parent=19 // pred_check_branch
          %138 = sbr.rel (%p136) target = $region24
        $region23: #{simple_cnn_forward.4} parent=19 // pred_region
          %s139 = sand.u32 %s46, 1
          %s140 = scalar_lea.sflag [#allocation3], %s139
          %s141 = sand.u32 %s46, 1
          %s142 = smul.addr %s141, 4608
          %s143 = scalar_lea.vmem [#allocation2], %s142
          %s144 = smul.u32 4, %s15
          %s146 = ssub.s32 73728, 73728
          %147 = vsyncadd %s140, %s146
          %s148 = smul.addr %s144, 64
          %s149 = scalar_lea.hbm %s1, %s148
          %s150 = sshll.u32 %s143, 4
          %s151 = int_to_ptr.vmem [resolvable:$true] %s150
          %156 = dma.hbm_to_vmem [thread:$0]  %s149, 73728, %s151, %s140, 512, 256, 16
        $region24: #{simple_cnn_forward.4} parent=19 // pred_fallthru
          _
        // Predicated region
        $region25: #{simple_cnn_forward.4} parent=19 // pred_check
          %p157 = pneg %p82
        $region26: #{simple_cnn_forward.4} parent=19 // pred_check_branch
          %159 = sbr.rel (%p157) target = $region28
        $region27: #{simple_cnn_forward.4} parent=19 // pred_region
          %s160 = sand.u32 %s72, 1
          %s161 = scalar_lea.sflag [#allocation5], %s160
          %s162 = sand.u32 %s72, 1
          %s163 = smul.addr %s162, 4
          %s164 = scalar_lea.vmem [#allocation4], %s163
          %s165 = smul.u32 4, %s15
          %s167 = ssub.s32 64, 64
          %168 = vsyncadd %s161, %s167
          %s169 = smul.addr %s165, 16
          %s170 = scalar_lea.hbm %s2, %s169
          %s172 = sshll.u32 %s164, 4
          %s173 = int_to_ptr.vmem [resolvable:$true] %s172
          %175 = dma.hbm_to_vmem [thread:$0]  %s170, 64, %s173, %s161
        $region28: #{simple_cnn_forward.4} parent=19 // pred_fallthru
          _
      $region20: #{simple_cnn_forward.4} parent=5 // pred_fallthru
        _
      %p176 = scmp.le.s32.totalorder 1, %s15
      %p177 = scmp.lt.s32.totalorder %s15, 3
      %p178 = pnand %p176, %p177
      %p179 = pneg %p178
      // Predicated region
      $region29: #{simple_cnn_forward.4} parent=5 // pred_check
        _
      $region30: #{simple_cnn_forward.4} parent=5 // pred_check_branch
        %181 = sbr.rel (%p178) target = $region32
      $region31: #{simple_cnn_forward.4} parent=5 // pred_region
        %s182 = ssub.s32 %s15, 1
        %s183 = sand.u32 %s49, 1
        %s184 = scalar_lea.sflag [#allocation3], %s183
        %s185 = sand.u32 %s49, 1
        %s186 = smul.addr %s185, 4608
        %s187 = scalar_lea.vmem [#allocation2], %s186
        // Predicated region
        $region33: #{simple_cnn_forward.4} parent=31 // pred_check
          %p188 = pneg %p62
        $region34: #{simple_cnn_forward.4} parent=31 // pred_check_branch
          %190 = sbr.rel (%p188) target = $region36
        $region35: #{simple_cnn_forward.4} parent=31 // pred_region
          %191 = dma.done %s184, 73728
        $region36: #{simple_cnn_forward.4} parent=31 // pred_fallthru
          _
        %s192 = sand.u32 %s75, 1
        %s193 = scalar_lea.sflag [#allocation5], %s192
        %s194 = sand.u32 %s75, 1
        %s195 = smul.addr %s194, 4
        %s196 = scalar_lea.vmem [#allocation4], %s195
        // Predicated region
        $region37: #{simple_cnn_forward.4} parent=31 // pred_check
          %p197 = pneg %p88
        $region38: #{simple_cnn_forward.4} parent=31 // pred_check_branch
          %199 = sbr.rel (%p197) target = $region40
        $region39: #{simple_cnn_forward.4} parent=31 // pred_region
          %200 = dma.done %s193, 64
        $region40: #{simple_cnn_forward.4} parent=31 // pred_fallthru
          _
        %p201 = pneg %p36
        %p202 = pneg %p33
        %s203 = sand.u32 %s49, 1
        %s204 = scalar_lea.sflag [#allocation3], %s203
        %s205 = sand.u32 %s49, 1
        %s206 = smul.addr %s205, 4608
        %s207 = scalar_lea.vmem [#allocation2], %s206
        %p208 = pneg %p62
        %p209 = pneg %p59
        %s210 = sand.u32 %s75, 1
        %s211 = scalar_lea.sflag [#allocation5], %s210
        %s212 = sand.u32 %s75, 1
        %s213 = smul.addr %s212, 4
        %s214 = scalar_lea.vmem [#allocation4], %s213
        %p215 = pneg %p88
        %p216 = pneg %p85
        %p217 = pneg %p114
        %p218 = pneg %p111
        %s219 = smul.u32 4, %s20
        %p220 = scmp.lt.s32.totalorder %s219, 7
        %s221 = scalar_select %p220, %s219, 7
        %s222 = smul.addr %s221, 2
        %s223 = scalar_lea.vmem %s3, %s222
        %s224 = smul.u32 4, %s20
        %s225 = smul.u32 4, %s20
        %s226 = smul.u32 4, %s20
        %p227 = scmp.lt.s32.totalorder %s226, 7
        %s228 = scalar_select %p227, %s226, 7
        %s229 = smul.addr %s228, 2
        %s230 = scalar_lea.vmem %s3, %s229
        %s231 = smul.u32 4, %s20
        %v232 = vld [vmem:[%s0] sm:$0xff]
        %v233 = vld [vmem:[%s0 + $0x10] sm:$0xff]
        %v234 = vld [vmem:[%s0 + $0x20] sm:$0xff]
        %v235 = vld [vmem:[%s0 + $0x30] sm:$0xff]
        %v236 = vld [vmem:[%s0 + $0x40] sm:$0xff]
        %v237 = vld [vmem:[%s0 + $0x50] sm:$0xff]
        %v238 = vld [vmem:[%s0 + $0x60] sm:$0xff]
        %v239 = vld [vmem:[%s0 + $0x70] sm:$0xff]
        %v240 = vld [vmem:[%s0 + $0xa0] sm:$0xff]
        %v241 = vld [vmem:[%s0 + $0xb0] sm:$0xff]
        %v242 = vld [vmem:[%s0 + $0xc0] sm:$0xff]
        %v243 = vld [vmem:[%s0 + $0xd0] sm:$0xff]
        %v244 = vld [vmem:[%s0 + $0xe0] sm:$0xff]
        %v245 = vld [vmem:[%s0 + $0xf0] sm:$0xff]
        %v246 = vld [vmem:[%s0 + $0x100] sm:$0xff]
        %v247 = vld [vmem:[%s0 + $0x110] sm:$0xff]
        %v248 = vld [vmem:[%s0 + $0x8] sm:$0x11]
        %v249 = vld [vmem:[%s0 + $0x18] sm:$0x11]
        %v250 = vld [vmem:[%s0 + $0x28] sm:$0x11]
        %v251 = vld [vmem:[%s0 + $0x38] sm:$0x11]
        %v252 = vld [vmem:[%s0 + $0x48] sm:$0x11]
        %v253 = vld [vmem:[%s0 + $0x58] sm:$0x11]
        %v254 = vld [vmem:[%s0 + $0x68] sm:$0x11]
        %v255 = vld [vmem:[%s0 + $0x78] sm:$0x11]
        %v256 = vld [vmem:[%s0 + $0xa8] sm:$0x11]
        %v257 = vld [vmem:[%s0 + $0xb8] sm:$0x11]
        %v258 = vld [vmem:[%s0 + $0xc8] sm:$0x11]
        %v259 = vld [vmem:[%s0 + $0xd8] sm:$0x11]
        %v260 = vld [vmem:[%s0 + $0xe8] sm:$0x11]
        %v261 = vld [vmem:[%s0 + $0xf8] sm:$0x11]
        %v262 = vld [vmem:[%s0 + $0x108] sm:$0x11]
        %v263 = vld [vmem:[%s0 + $0x118] sm:$0x11]
        %vm264 = vsmask.f32 3328
        %vm265 = vsmask.f32 7440
        %vm266 = vmor %vm264, %vm265
        %v268 = vshrl.u32 %v232, 16
        %v270 = vrot.slane %v268, 4
        %v271 = vshll.u32 %v232, 16
        %v273 = vrot.slane %v271, 5
        %v274 = vor.u32 %v270, %v273
        %v275 = vrot.slane %v274, 4
        %v277 = vshll.u32 %v248, 16
        %v279 = vrot.slane %v277, 5
        %v280 = vsel %vm266, %v275, %v279
        %v282 = vshrl.u32 %v233, 16
        %v284 = vrot.slane %v282, 4
        %v285 = vshll.u32 %v233, 16
        %v287 = vrot.slane %v285, 5
        %v288 = vor.u32 %v284, %v287
        %v289 = vrot.slane %v288, 4
        %v291 = vshll.u32 %v249, 16
        %v293 = vrot.slane %v291, 5
        %v294 = vsel %vm266, %v289, %v293
        %v296 = vshrl.u32 %v234, 16
        %v298 = vrot.slane %v296, 4
        %v299 = vshll.u32 %v234, 16
        %v301 = vrot.slane %v299, 5
        %v302 = vor.u32 %v298, %v301
        %v303 = vrot.slane %v302, 4
        %v305 = vshll.u32 %v250, 16
        %v307 = vrot.slane %v305, 5
        %v308 = vsel %vm266, %v303, %v307
        %v310 = vshrl.u32 %v235, 16
        %v312 = vrot.slane %v310, 4
        %v313 = vshll.u32 %v235, 16
        %v315 = vrot.slane %v313, 5
        %v316 = vor.u32 %v312, %v315
        %v317 = vrot.slane %v316, 4
        %v319 = vshll.u32 %v251, 16
        %v321 = vrot.slane %v319, 5
        %v322 = vsel %vm266, %v317, %v321
        %v324 = vshrl.u32 %v236, 16
        %v326 = vrot.slane %v324, 4
        %v327 = vshll.u32 %v236, 16
        %v329 = vrot.slane %v327, 5
        %v330 = vor.u32 %v326, %v329
        %v331 = vrot.slane %v330, 4
        %v333 = vshll.u32 %v252, 16
        %v335 = vrot.slane %v333, 5
        %v336 = vsel %vm266, %v331, %v335
        %v338 = vshrl.u32 %v237, 16
        %v340 = vrot.slane %v338, 4
        %v341 = vshll.u32 %v237, 16
        %v343 = vrot.slane %v341, 5
        %v344 = vor.u32 %v340, %v343
        %v345 = vrot.slane %v344, 4
        %v347 = vshll.u32 %v253, 16
        %v349 = vrot.slane %v347, 5
        %v350 = vsel %vm266, %v345, %v349
        %v352 = vshrl.u32 %v238, 16
        %v354 = vrot.slane %v352, 4
        %v355 = vshll.u32 %v238, 16
        %v357 = vrot.slane %v355, 5
        %v358 = vor.u32 %v354, %v357
        %v359 = vrot.slane %v358, 4
        %v361 = vshll.u32 %v254, 16
        %v363 = vrot.slane %v361, 5
        %v364 = vsel %vm266, %v359, %v363
        %v366 = vshrl.u32 %v239, 16
        %v368 = vrot.slane %v366, 4
        %v369 = vshll.u32 %v239, 16
        %v371 = vrot.slane %v369, 5
        %v372 = vor.u32 %v368, %v371
        %v373 = vrot.slane %v372, 4
        %v375 = vshll.u32 %v255, 16
        %v377 = vrot.slane %v375, 5
        %v378 = vsel %vm266, %v373, %v377
        %v380 = vshrl.u32 %v240, 16
        %v382 = vrot.slane %v380, 4
        %v383 = vshll.u32 %v240, 16
        %v385 = vrot.slane %v383, 5
        %v386 = vor.u32 %v382, %v385
        %v387 = vrot.slane %v386, 4
        %v389 = vshll.u32 %v256, 16
        %v391 = vrot.slane %v389, 5
        %v392 = vsel %vm266, %v387, %v391
        %v394 = vshrl.u32 %v241, 16
        %v396 = vrot.slane %v394, 4
        %v397 = vshll.u32 %v241, 16
        %v399 = vrot.slane %v397, 5
        %v400 = vor.u32 %v396, %v399
        %v401 = vrot.slane %v400, 4
        %v403 = vshll.u32 %v257, 16
        %v405 = vrot.slane %v403, 5
        %v406 = vsel %vm266, %v401, %v405
        %v408 = vshrl.u32 %v242, 16
        %v410 = vrot.slane %v408, 4
        %v411 = vshll.u32 %v242, 16
        %v413 = vrot.slane %v411, 5
        %v414 = vor.u32 %v410, %v413
        %v415 = vrot.slane %v414, 4
        %v417 = vshll.u32 %v258, 16
        %v419 = vrot.slane %v417, 5
        %v420 = vsel %vm266, %v415, %v419
        %v422 = vshrl.u32 %v243, 16
        %v424 = vrot.slane %v422, 4
        %v425 = vshll.u32 %v243, 16
        %v427 = vrot.slane %v425, 5
        %v428 = vor.u32 %v424, %v427
        %v429 = vrot.slane %v428, 4
        %v431 = vshll.u32 %v259, 16
        %v433 = vrot.slane %v431, 5
        %v434 = vsel %vm266, %v429, %v433
        %v436 = vshrl.u32 %v244, 16
        %v438 = vrot.slane %v436, 4
        %v439 = vshll.u32 %v244, 16
        %v441 = vrot.slane %v439, 5
        %v442 = vor.u32 %v438, %v441
        %v443 = vrot.slane %v442, 4
        %v445 = vshll.u32 %v260, 16
        %v447 = vrot.slane %v445, 5
        %v448 = vsel %vm266, %v443, %v447
        %v450 = vshrl.u32 %v245, 16
        %v452 = vrot.slane %v450, 4
        %v453 = vshll.u32 %v245, 16
        %v455 = vrot.slane %v453, 5
        %v456 = vor.u32 %v452, %v455
        %v457 = vrot.slane %v456, 4
        %v459 = vshll.u32 %v261, 16
        %v461 = vrot.slane %v459, 5
        %v462 = vsel %vm266, %v457, %v461
        %v464 = vshrl.u32 %v246, 16
        %v466 = vrot.slane %v464, 4
        %v467 = vshll.u32 %v246, 16
        %v469 = vrot.slane %v467, 5
        %v470 = vor.u32 %v466, %v469
        %v471 = vrot.slane %v470, 4
        %v473 = vshll.u32 %v262, 16
        %v475 = vrot.slane %v473, 5
        %v476 = vsel %vm266, %v471, %v475
        %v478 = vshrl.u32 %v247, 16
        %v480 = vrot.slane %v478, 4
        %v481 = vshll.u32 %v247, 16
        %v483 = vrot.slane %v481, 5
        %v484 = vor.u32 %v480, %v483
        %v485 = vrot.slane %v484, 4
        %v487 = vshll.u32 %v263, 16
        %v489 = vrot.slane %v487, 5
        %v490 = vsel %vm266, %v485, %v489
        %v491 = vld [vmem:[%s0] sm:$0xee]
        %v492 = vld [vmem:[%s0 + $0x10] sm:$0xee]
        %v493 = vld [vmem:[%s0 + $0x20] sm:$0xee]
        %v494 = vld [vmem:[%s0 + $0x30] sm:$0xee]
        %v495 = vld [vmem:[%s0 + $0x40] sm:$0xee]
        %v496 = vld [vmem:[%s0 + $0x50] sm:$0xee]
        %v497 = vld [vmem:[%s0 + $0x60] sm:$0xee]
        %v498 = vld [vmem:[%s0 + $0x70] sm:$0xee]
        %v499 = vld [vmem:[%s0 + $0xa0] sm:$0xee]
        %v500 = vld [vmem:[%s0 + $0xb0] sm:$0xee]
        %v501 = vld [vmem:[%s0 + $0xc0] sm:$0xee]
        %v502 = vld [vmem:[%s0 + $0xd0] sm:$0xee]
        %v503 = vld [vmem:[%s0 + $0xe0] sm:$0xee]
        %v504 = vld [vmem:[%s0 + $0xf0] sm:$0xee]
        %v505 = vld [vmem:[%s0 + $0x100] sm:$0xee]
        %v506 = vld [vmem:[%s0 + $0x110] sm:$0xee]
        %vm539 = vcmask 1042432
        %vm540 = vcmask 1046532
        %vm541 = vmor %vm539, %vm540
        %v542 = vrot.slane %v491, 5
        %v543 = vrot.slane %v542, 4
        %v544 = vrot.slane %v248, 5
        %v545 = vsel %vm541, %v543, %v544
        %v546 = vrot.slane %v492, 5
        %v547 = vrot.slane %v546, 4
        %v548 = vrot.slane %v249, 5
        %v549 = vsel %vm541, %v547, %v548
        %v550 = vrot.slane %v493, 5
        %v551 = vrot.slane %v550, 4
        %v552 = vrot.slane %v250, 5
        %v553 = vsel %vm541, %v551, %v552
        %v554 = vrot.slane %v494, 5
        %v555 = vrot.slane %v554, 4
        %v556 = vrot.slane %v251, 5
        %v557 = vsel %vm541, %v555, %v556
        %v558 = vrot.slane %v495, 5
        %v559 = vrot.slane %v558, 4
        %v560 = vrot.slane %v252, 5
        %v561 = vsel %vm541, %v559, %v560
        %v562 = vrot.slane %v496, 5
        %v563 = vrot.slane %v562, 4
        %v564 = vrot.slane %v253, 5
        %v565 = vsel %vm541, %v563, %v564
        %v566 = vrot.slane %v497, 5
        %v567 = vrot.slane %v566, 4
        %v568 = vrot.slane %v254, 5
        %v569 = vsel %vm541, %v567, %v568
        %v570 = vrot.slane %v498, 5
        %v571 = vrot.slane %v570, 4
        %v572 = vrot.slane %v255, 5
        %v573 = vsel %vm541, %v571, %v572
        %v574 = vrot.slane %v499, 5
        %v575 = vrot.slane %v574, 4
        %v576 = vrot.slane %v256, 5
        %v577 = vsel %vm541, %v575, %v576
        %v578 = vrot.slane %v500, 5
        %v579 = vrot.slane %v578, 4
        %v580 = vrot.slane %v257, 5
        %v581 = vsel %vm541, %v579, %v580
        %v582 = vrot.slane %v501, 5
        %v583 = vrot.slane %v582, 4
        %v584 = vrot.slane %v258, 5
        %v585 = vsel %vm541, %v583, %v584
        %v586 = vrot.slane %v502, 5
        %v587 = vrot.slane %v586, 4
        %v588 = vrot.slane %v259, 5
        %v589 = vsel %vm541, %v587, %v588
        %v590 = vrot.slane %v503, 5
        %v591 = vrot.slane %v590, 4
        %v592 = vrot.slane %v260, 5
        %v593 = vsel %vm541, %v591, %v592
        %v594 = vrot.slane %v504, 5
        %v595 = vrot.slane %v594, 4
        %v596 = vrot.slane %v261, 5
        %v597 = vsel %vm541, %v595, %v596
        %v598 = vrot.slane %v505, 5
        %v599 = vrot.slane %v598, 4
        %v600 = vrot.slane %v262, 5
        %v601 = vsel %vm541, %v599, %v600
        %v602 = vrot.slane %v506, 5
        %v603 = vrot.slane %v602, 4
        %v604 = vrot.slane %v263, 5
        %v605 = vsel %vm541, %v603, %v604
        %s606 = scalar_lea.vmem %s0, 16
        %v607 = vld [vmem:[%s606] sm:$0xff]
        %v608 = vld [vmem:[%s606 + $0x10] sm:$0xff]
        %v609 = vld [vmem:[%s606 + $0x20] sm:$0xff]
        %v610 = vld [vmem:[%s606 + $0x30] sm:$0xff]
        %v611 = vld [vmem:[%s606 + $0x40] sm:$0xff]
        %v612 = vld [vmem:[%s606 + $0x50] sm:$0xff]
        %v613 = vld [vmem:[%s606 + $0x60] sm:$0xff]
        %v614 = vld [vmem:[%s606 + $0x70] sm:$0xff]
        %v615 = vld [vmem:[%s606 + $0xa0] sm:$0xff]
        %v616 = vld [vmem:[%s606 + $0xb0] sm:$0xff]
        %v617 = vld [vmem:[%s606 + $0xc0] sm:$0xff]
        %v618 = vld [vmem:[%s606 + $0xd0] sm:$0xff]
        %v619 = vld [vmem:[%s606 + $0xe0] sm:$0xff]
        %v620 = vld [vmem:[%s606 + $0xf0] sm:$0xff]
        %v621 = vld [vmem:[%s606 + $0x100] sm:$0xff]
        %v622 = vld [vmem:[%s606 + $0x110] sm:$0xff]
        %v623 = vld [vmem:[%s606 + $0x8] sm:$0x11]
        %v624 = vld [vmem:[%s606 + $0x18] sm:$0x11]
        %v625 = vld [vmem:[%s606 + $0x28] sm:$0x11]
        %v626 = vld [vmem:[%s606 + $0x38] sm:$0x11]
        %v627 = vld [vmem:[%s606 + $0x48] sm:$0x11]
        %v628 = vld [vmem:[%s606 + $0x58] sm:$0x11]
        %v629 = vld [vmem:[%s606 + $0x68] sm:$0x11]
        %v630 = vld [vmem:[%s606 + $0x78] sm:$0x11]
        %v631 = vld [vmem:[%s606 + $0xa8] sm:$0x11]
        %v632 = vld [vmem:[%s606 + $0xb8] sm:$0x11]
        %v633 = vld [vmem:[%s606 + $0xc8] sm:$0x11]
        %v634 = vld [vmem:[%s606 + $0xd8] sm:$0x11]
        %v635 = vld [vmem:[%s606 + $0xe8] sm:$0x11]
        %v636 = vld [vmem:[%s606 + $0xf8] sm:$0x11]
        %v637 = vld [vmem:[%s606 + $0x108] sm:$0x11]
        %v638 = vld [vmem:[%s606 + $0x118] sm:$0x11]
        %v640 = vshrl.u32 %v607, 16
        %v642 = vrot.slane %v640, 4
        %v643 = vshll.u32 %v607, 16
        %v645 = vrot.slane %v643, 5
        %v646 = vor.u32 %v642, %v645
        %v647 = vrot.slane %v646, 4
        %v649 = vshll.u32 %v623, 16
        %v651 = vrot.slane %v649, 5
        %v652 = vsel %vm266, %v647, %v651
        %v654 = vshrl.u32 %v608, 16
        %v656 = vrot.slane %v654, 4
        %v657 = vshll.u32 %v608, 16
        %v659 = vrot.slane %v657, 5
        %v660 = vor.u32 %v656, %v659
        %v661 = vrot.slane %v660, 4
        %v663 = vshll.u32 %v624, 16
        %v665 = vrot.slane %v663, 5
        %v666 = vsel %vm266, %v661, %v665
        %v668 = vshrl.u32 %v609, 16
        %v670 = vrot.slane %v668, 4
        %v671 = vshll.u32 %v609, 16
        %v673 = vrot.slane %v671, 5
        %v674 = vor.u32 %v670, %v673
        %v675 = vrot.slane %v674, 4
        %v677 = vshll.u32 %v625, 16
        %v679 = vrot.slane %v677, 5
        %v680 = vsel %vm266, %v675, %v679
        %v682 = vshrl.u32 %v610, 16
        %v684 = vrot.slane %v682, 4
        %v685 = vshll.u32 %v610, 16
        %v687 = vrot.slane %v685, 5
        %v688 = vor.u32 %v684, %v687
        %v689 = vrot.slane %v688, 4
        %v691 = vshll.u32 %v626, 16
        %v693 = vrot.slane %v691, 5
        %v694 = vsel %vm266, %v689, %v693
        %v696 = vshrl.u32 %v611, 16
        %v698 = vrot.slane %v696, 4
        %v699 = vshll.u32 %v611, 16
        %v701 = vrot.slane %v699, 5
        %v702 = vor.u32 %v698, %v701
        %v703 = vrot.slane %v702, 4
        %v705 = vshll.u32 %v627, 16
        %v707 = vrot.slane %v705, 5
        %v708 = vsel %vm266, %v703, %v707
        %v710 = vshrl.u32 %v612, 16
        %v712 = vrot.slane %v710, 4
        %v713 = vshll.u32 %v612, 16
        %v715 = vrot.slane %v713, 5
        %v716 = vor.u32 %v712, %v715
        %v717 = vrot.slane %v716, 4
        %v719 = vshll.u32 %v628, 16
        %v721 = vrot.slane %v719, 5
        %v722 = vsel %vm266, %v717, %v721
        %v724 = vshrl.u32 %v613, 16
        %v726 = vrot.slane %v724, 4
        %v727 = vshll.u32 %v613, 16
        %v729 = vrot.slane %v727, 5
        %v730 = vor.u32 %v726, %v729
        %v731 = vrot.slane %v730, 4
        %v733 = vshll.u32 %v629, 16
        %v735 = vrot.slane %v733, 5
        %v736 = vsel %vm266, %v731, %v735
        %v738 = vshrl.u32 %v614, 16
        %v740 = vrot.slane %v738, 4
        %v741 = vshll.u32 %v614, 16
        %v743 = vrot.slane %v741, 5
        %v744 = vor.u32 %v740, %v743
        %v745 = vrot.slane %v744, 4
        %v747 = vshll.u32 %v630, 16
        %v749 = vrot.slane %v747, 5
        %v750 = vsel %vm266, %v745, %v749
        %v752 = vshrl.u32 %v615, 16
        %v754 = vrot.slane %v752, 4
        %v755 = vshll.u32 %v615, 16
        %v757 = vrot.slane %v755, 5
        %v758 = vor.u32 %v754, %v757
        %v759 = vrot.slane %v758, 4
        %v761 = vshll.u32 %v631, 16
        %v763 = vrot.slane %v761, 5
        %v764 = vsel %vm266, %v759, %v763
        %v766 = vshrl.u32 %v616, 16
        %v768 = vrot.slane %v766, 4
        %v769 = vshll.u32 %v616, 16
        %v771 = vrot.slane %v769, 5
        %v772 = vor.u32 %v768, %v771
        %v773 = vrot.slane %v772, 4
        %v775 = vshll.u32 %v632, 16
        %v777 = vrot.slane %v775, 5
        %v778 = vsel %vm266, %v773, %v777
        %v780 = vshrl.u32 %v617, 16
        %v782 = vrot.slane %v780, 4
        %v783 = vshll.u32 %v617, 16
        %v785 = vrot.slane %v783, 5
        %v786 = vor.u32 %v782, %v785
        %v787 = vrot.slane %v786, 4
        %v789 = vshll.u32 %v633, 16
        %v791 = vrot.slane %v789, 5
        %v792 = vsel %vm266, %v787, %v791
        %v794 = vshrl.u32 %v618, 16
        %v796 = vrot.slane %v794, 4
        %v797 = vshll.u32 %v618, 16
        %v799 = vrot.slane %v797, 5
        %v800 = vor.u32 %v796, %v799
        %v801 = vrot.slane %v800, 4
        %v803 = vshll.u32 %v634, 16
        %v805 = vrot.slane %v803, 5
        %v806 = vsel %vm266, %v801, %v805
        %v808 = vshrl.u32 %v619, 16
        %v810 = vrot.slane %v808, 4
        %v811 = vshll.u32 %v619, 16
        %v813 = vrot.slane %v811, 5
        %v814 = vor.u32 %v810, %v813
        %v815 = vrot.slane %v814, 4
        %v817 = vshll.u32 %v635, 16
        %v819 = vrot.slane %v817, 5
        %v820 = vsel %vm266, %v815, %v819
        %v822 = vshrl.u32 %v620, 16
        %v824 = vrot.slane %v822, 4
        %v825 = vshll.u32 %v620, 16
        %v827 = vrot.slane %v825, 5
        %v828 = vor.u32 %v824, %v827
        %v829 = vrot.slane %v828, 4
        %v831 = vshll.u32 %v636, 16
        %v833 = vrot.slane %v831, 5
        %v834 = vsel %vm266, %v829, %v833
        %v836 = vshrl.u32 %v621, 16
        %v838 = vrot.slane %v836, 4
        %v839 = vshll.u32 %v621, 16
        %v841 = vrot.slane %v839, 5
        %v842 = vor.u32 %v838, %v841
        %v843 = vrot.slane %v842, 4
        %v845 = vshll.u32 %v637, 16
        %v847 = vrot.slane %v845, 5
        %v848 = vsel %vm266, %v843, %v847
        %v850 = vshrl.u32 %v622, 16
        %v852 = vrot.slane %v850, 4
        %v853 = vshll.u32 %v622, 16
        %v855 = vrot.slane %v853, 5
        %v856 = vor.u32 %v852, %v855
        %v857 = vrot.slane %v856, 4
        %v859 = vshll.u32 %v638, 16
        %v861 = vrot.slane %v859, 5
        %v862 = vsel %vm266, %v857, %v861
        %v863 = vld [vmem:[%s606] sm:$0xee]
        %v864 = vld [vmem:[%s606 + $0x10] sm:$0xee]
        %v865 = vld [vmem:[%s606 + $0x20] sm:$0xee]
        %v866 = vld [vmem:[%s606 + $0x30] sm:$0xee]
        %v867 = vld [vmem:[%s606 + $0x40] sm:$0xee]
        %v868 = vld [vmem:[%s606 + $0x50] sm:$0xee]
        %v869 = vld [vmem:[%s606 + $0x60] sm:$0xee]
        %v870 = vld [vmem:[%s606 + $0x70] sm:$0xee]
        %v871 = vld [vmem:[%s606 + $0xa0] sm:$0xee]
        %v872 = vld [vmem:[%s606 + $0xb0] sm:$0xee]
        %v873 = vld [vmem:[%s606 + $0xc0] sm:$0xee]
        %v874 = vld [vmem:[%s606 + $0xd0] sm:$0xee]
        %v875 = vld [vmem:[%s606 + $0xe0] sm:$0xee]
        %v876 = vld [vmem:[%s606 + $0xf0] sm:$0xee]
        %v877 = vld [vmem:[%s606 + $0x100] sm:$0xee]
        %v878 = vld [vmem:[%s606 + $0x110] sm:$0xee]
        %v911 = vrot.slane %v863, 5
        %v912 = vrot.slane %v911, 4
        %v913 = vrot.slane %v623, 5
        %v914 = vsel %vm541, %v912, %v913
        %v915 = vrot.slane %v864, 5
        %v916 = vrot.slane %v915, 4
        %v917 = vrot.slane %v624, 5
        %v918 = vsel %vm541, %v916, %v917
        %v919 = vrot.slane %v865, 5
        %v920 = vrot.slane %v919, 4
        %v921 = vrot.slane %v625, 5
        %v922 = vsel %vm541, %v920, %v921
        %v923 = vrot.slane %v866, 5
        %v924 = vrot.slane %v923, 4
        %v925 = vrot.slane %v626, 5
        %v926 = vsel %vm541, %v924, %v925
        %v927 = vrot.slane %v867, 5
        %v928 = vrot.slane %v927, 4
        %v929 = vrot.slane %v627, 5
        %v930 = vsel %vm541, %v928, %v929
        %v931 = vrot.slane %v868, 5
        %v932 = vrot.slane %v931, 4
        %v933 = vrot.slane %v628, 5
        %v934 = vsel %vm541, %v932, %v933
        %v935 = vrot.slane %v869, 5
        %v936 = vrot.slane %v935, 4
        %v937 = vrot.slane %v629, 5
        %v938 = vsel %vm541, %v936, %v937
        %v939 = vrot.slane %v870, 5
        %v940 = vrot.slane %v939, 4
        %v941 = vrot.slane %v630, 5
        %v942 = vsel %vm541, %v940, %v941
        %v943 = vrot.slane %v871, 5
        %v944 = vrot.slane %v943, 4
        %v945 = vrot.slane %v631, 5
        %v946 = vsel %vm541, %v944, %v945
        %v947 = vrot.slane %v872, 5
        %v948 = vrot.slane %v947, 4
        %v949 = vrot.slane %v632, 5
        %v950 = vsel %vm541, %v948, %v949
        %v951 = vrot.slane %v873, 5
        %v952 = vrot.slane %v951, 4
        %v953 = vrot.slane %v633, 5
        %v954 = vsel %vm541, %v952, %v953
        %v955 = vrot.slane %v874, 5
        %v956 = vrot.slane %v955, 4
        %v957 = vrot.slane %v634, 5
        %v958 = vsel %vm541, %v956, %v957
        %v959 = vrot.slane %v875, 5
        %v960 = vrot.slane %v959, 4
        %v961 = vrot.slane %v635, 5
        %v962 = vsel %vm541, %v960, %v961
        %v963 = vrot.slane %v876, 5
        %v964 = vrot.slane %v963, 4
        %v965 = vrot.slane %v636, 5
        %v966 = vsel %vm541, %v964, %v965
        %v967 = vrot.slane %v877, 5
        %v968 = vrot.slane %v967, 4
        %v969 = vrot.slane %v637, 5
        %v970 = vsel %vm541, %v968, %v969
        %v971 = vrot.slane %v878, 5
        %v972 = vrot.slane %v971, 4
        %v973 = vrot.slane %v638, 5
        %v974 = vsel %vm541, %v972, %v973
        %s975 = scalar_lea.vmem %s0, 32
        %v976 = vld [vmem:[%s975] sm:$0xff]
        %v977 = vld [vmem:[%s975 + $0x10] sm:$0xff]
        %v978 = vld [vmem:[%s975 + $0x20] sm:$0xff]
        %v979 = vld [vmem:[%s975 + $0x30] sm:$0xff]
        %v980 = vld [vmem:[%s975 + $0x40] sm:$0xff]
        %v981 = vld [vmem:[%s975 + $0x50] sm:$0xff]
        %v982 = vld [vmem:[%s975 + $0x60] sm:$0xff]
        %v983 = vld [vmem:[%s975 + $0x70] sm:$0xff]
        %v984 = vld [vmem:[%s975 + $0xa0] sm:$0xff]
        %v985 = vld [vmem:[%s975 + $0xb0] sm:$0xff]
        %v986 = vld [vmem:[%s975 + $0xc0] sm:$0xff]
        %v987 = vld [vmem:[%s975 + $0xd0] sm:$0xff]
        %v988 = vld [vmem:[%s975 + $0xe0] sm:$0xff]
        %v989 = vld [vmem:[%s975 + $0xf0] sm:$0xff]
        %v990 = vld [vmem:[%s975 + $0x100] sm:$0xff]
        %v991 = vld [vmem:[%s975 + $0x110] sm:$0xff]
        %v992 = vld [vmem:[%s975 + $0x8] sm:$0x11]
        %v993 = vld [vmem:[%s975 + $0x18] sm:$0x11]
        %v994 = vld [vmem:[%s975 + $0x28] sm:$0x11]
        %v995 = vld [vmem:[%s975 + $0x38] sm:$0x11]
        %v996 = vld [vmem:[%s975 + $0x48] sm:$0x11]
        %v997 = vld [vmem:[%s975 + $0x58] sm:$0x11]
        %v998 = vld [vmem:[%s975 + $0x68] sm:$0x11]
        %v999 = vld [vmem:[%s975 + $0x78] sm:$0x11]
        %v1000 = vld [vmem:[%s975 + $0xa8] sm:$0x11]
        %v1001 = vld [vmem:[%s975 + $0xb8] sm:$0x11]
        %v1002 = vld [vmem:[%s975 + $0xc8] sm:$0x11]
        %v1003 = vld [vmem:[%s975 + $0xd8] sm:$0x11]
        %v1004 = vld [vmem:[%s975 + $0xe8] sm:$0x11]
        %v1005 = vld [vmem:[%s975 + $0xf8] sm:$0x11]
        %v1006 = vld [vmem:[%s975 + $0x108] sm:$0x11]
        %v1007 = vld [vmem:[%s975 + $0x118] sm:$0x11]
        %v1009 = vshrl.u32 %v976, 16
        %v1011 = vrot.slane %v1009, 4
        %v1012 = vshll.u32 %v976, 16
        %v1014 = vrot.slane %v1012, 5
        %v1015 = vor.u32 %v1011, %v1014
        %v1016 = vrot.slane %v1015, 4
        %v1018 = vshll.u32 %v992, 16
        %v1020 = vrot.slane %v1018, 5
        %v1021 = vsel %vm266, %v1016, %v1020
        %v1023 = vshrl.u32 %v977, 16
        %v1025 = vrot.slane %v1023, 4
        %v1026 = vshll.u32 %v977, 16
        %v1028 = vrot.slane %v1026, 5
        %v1029 = vor.u32 %v1025, %v1028
        %v1030 = vrot.slane %v1029, 4
        %v1032 = vshll.u32 %v993, 16
        %v1034 = vrot.slane %v1032, 5
        %v1035 = vsel %vm266, %v1030, %v1034
        %v1037 = vshrl.u32 %v978, 16
        %v1039 = vrot.slane %v1037, 4
        %v1040 = vshll.u32 %v978, 16
        %v1042 = vrot.slane %v1040, 5
        %v1043 = vor.u32 %v1039, %v1042
        %v1044 = vrot.slane %v1043, 4
        %v1046 = vshll.u32 %v994, 16
        %v1048 = vrot.slane %v1046, 5
        %v1049 = vsel %vm266, %v1044, %v1048
        %v1051 = vshrl.u32 %v979, 16
        %v1053 = vrot.slane %v1051, 4
        %v1054 = vshll.u32 %v979, 16
        %v1056 = vrot.slane %v1054, 5
        %v1057 = vor.u32 %v1053, %v1056
        %v1058 = vrot.slane %v1057, 4
        %v1060 = vshll.u32 %v995, 16
        %v1062 = vrot.slane %v1060, 5
        %v1063 = vsel %vm266, %v1058, %v1062
        %v1065 = vshrl.u32 %v980, 16
        %v1067 = vrot.slane %v1065, 4
        %v1068 = vshll.u32 %v980, 16
        %v1070 = vrot.slane %v1068, 5
        %v1071 = vor.u32 %v1067, %v1070
        %v1072 = vrot.slane %v1071, 4
        %v1074 = vshll.u32 %v996, 16
        %v1076 = vrot.slane %v1074, 5
        %v1077 = vsel %vm266, %v1072, %v1076
        %v1079 = vshrl.u32 %v981, 16
        %v1081 = vrot.slane %v1079, 4
        %v1082 = vshll.u32 %v981, 16
        %v1084 = vrot.slane %v1082, 5
        %v1085 = vor.u32 %v1081, %v1084
        %v1086 = vrot.slane %v1085, 4
        %v1088 = vshll.u32 %v997, 16
        %v1090 = vrot.slane %v1088, 5
        %v1091 = vsel %vm266, %v1086, %v1090
        %v1093 = vshrl.u32 %v982, 16
        %v1095 = vrot.slane %v1093, 4
        %v1096 = vshll.u32 %v982, 16
        %v1098 = vrot.slane %v1096, 5
        %v1099 = vor.u32 %v1095, %v1098
        %v1100 = vrot.slane %v1099, 4
        %v1102 = vshll.u32 %v998, 16
        %v1104 = vrot.slane %v1102, 5
        %v1105 = vsel %vm266, %v1100, %v1104
        %v1107 = vshrl.u32 %v983, 16
        %v1109 = vrot.slane %v1107, 4
        %v1110 = vshll.u32 %v983, 16
        %v1112 = vrot.slane %v1110, 5
        %v1113 = vor.u32 %v1109, %v1112
        %v1114 = vrot.slane %v1113, 4
        %v1116 = vshll.u32 %v999, 16
        %v1118 = vrot.slane %v1116, 5
        %v1119 = vsel %vm266, %v1114, %v1118
        %v1121 = vshrl.u32 %v984, 16
        %v1123 = vrot.slane %v1121, 4
        %v1124 = vshll.u32 %v984, 16
        %v1126 = vrot.slane %v1124, 5
        %v1127 = vor.u32 %v1123, %v1126
        %v1128 = vrot.slane %v1127, 4
        %v1130 = vshll.u32 %v1000, 16
        %v1132 = vrot.slane %v1130, 5
        %v1133 = vsel %vm266, %v1128, %v1132
        %v1135 = vshrl.u32 %v985, 16
        %v1137 = vrot.slane %v1135, 4
        %v1138 = vshll.u32 %v985, 16
        %v1140 = vrot.slane %v1138, 5
        %v1141 = vor.u32 %v1137, %v1140
        %v1142 = vrot.slane %v1141, 4
        %v1144 = vshll.u32 %v1001, 16
        %v1146 = vrot.slane %v1144, 5
        %v1147 = vsel %vm266, %v1142, %v1146
        %v1149 = vshrl.u32 %v986, 16
        %v1151 = vrot.slane %v1149, 4
        %v1152 = vshll.u32 %v986, 16
        %v1154 = vrot.slane %v1152, 5
        %v1155 = vor.u32 %v1151, %v1154
        %v1156 = vrot.slane %v1155, 4
        %v1158 = vshll.u32 %v1002, 16
        %v1160 = vrot.slane %v1158, 5
        %v1161 = vsel %vm266, %v1156, %v1160
        %v1163 = vshrl.u32 %v987, 16
        %v1165 = vrot.slane %v1163, 4
        %v1166 = vshll.u32 %v987, 16
        %v1168 = vrot.slane %v1166, 5
        %v1169 = vor.u32 %v1165, %v1168
        %v1170 = vrot.slane %v1169, 4
        %v1172 = vshll.u32 %v1003, 16
        %v1174 = vrot.slane %v1172, 5
        %v1175 = vsel %vm266, %v1170, %v1174
        %v1177 = vshrl.u32 %v988, 16
        %v1179 = vrot.slane %v1177, 4
        %v1180 = vshll.u32 %v988, 16
        %v1182 = vrot.slane %v1180, 5
        %v1183 = vor.u32 %v1179, %v1182
        %v1184 = vrot.slane %v1183, 4
        %v1186 = vshll.u32 %v1004, 16
        %v1188 = vrot.slane %v1186, 5
        %v1189 = vsel %vm266, %v1184, %v1188
        %v1191 = vshrl.u32 %v989, 16
        %v1193 = vrot.slane %v1191, 4
        %v1194 = vshll.u32 %v989, 16
        %v1196 = vrot.slane %v1194, 5
        %v1197 = vor.u32 %v1193, %v1196
        %v1198 = vrot.slane %v1197, 4
        %v1200 = vshll.u32 %v1005, 16
        %v1202 = vrot.slane %v1200, 5
        %v1203 = vsel %vm266, %v1198, %v1202
        %v1205 = vshrl.u32 %v990, 16
        %v1207 = vrot.slane %v1205, 4
        %v1208 = vshll.u32 %v990, 16
        %v1210 = vrot.slane %v1208, 5
        %v1211 = vor.u32 %v1207, %v1210
        %v1212 = vrot.slane %v1211, 4
        %v1214 = vshll.u32 %v1006, 16
        %v1216 = vrot.slane %v1214, 5
        %v1217 = vsel %vm266, %v1212, %v1216
        %v1219 = vshrl.u32 %v991, 16
        %v1221 = vrot.slane %v1219, 4
        %v1222 = vshll.u32 %v991, 16
        %v1224 = vrot.slane %v1222, 5
        %v1225 = vor.u32 %v1221, %v1224
        %v1226 = vrot.slane %v1225, 4
        %v1228 = vshll.u32 %v1007, 16
        %v1230 = vrot.slane %v1228, 5
        %v1231 = vsel %vm266, %v1226, %v1230
        %v1232 = vld [vmem:[%s975] sm:$0xee]
        %v1233 = vld [vmem:[%s975 + $0x10] sm:$0xee]
        %v1234 = vld [vmem:[%s975 + $0x20] sm:$0xee]
        %v1235 = vld [vmem:[%s975 + $0x30] sm:$0xee]
        %v1236 = vld [vmem:[%s975 + $0x40] sm:$0xee]
        %v1237 = vld [vmem:[%s975 + $0x50] sm:$0xee]
        %v1238 = vld [vmem:[%s975 + $0x60] sm:$0xee]
        %v1239 = vld [vmem:[%s975 + $0x70] sm:$0xee]
        %v1240 = vld [vmem:[%s975 + $0xa0] sm:$0xee]
        %v1241 = vld [vmem:[%s975 + $0xb0] sm:$0xee]
        %v1242 = vld [vmem:[%s975 + $0xc0] sm:$0xee]
        %v1243 = vld [vmem:[%s975 + $0xd0] sm:$0xee]
        %v1244 = vld [vmem:[%s975 + $0xe0] sm:$0xee]
        %v1245 = vld [vmem:[%s975 + $0xf0] sm:$0xee]
        %v1246 = vld [vmem:[%s975 + $0x100] sm:$0xee]
        %v1247 = vld [vmem:[%s975 + $0x110] sm:$0xee]
        %v1280 = vrot.slane %v1232, 5
        %v1281 = vrot.slane %v1280, 4
        %v1282 = vrot.slane %v992, 5
        %v1283 = vsel %vm541, %v1281, %v1282
        %v1284 = vrot.slane %v1233, 5
        %v1285 = vrot.slane %v1284, 4
        %v1286 = vrot.slane %v993, 5
        %v1287 = vsel %vm541, %v1285, %v1286
        %v1288 = vrot.slane %v1234, 5
        %v1289 = vrot.slane %v1288, 4
        %v1290 = vrot.slane %v994, 5
        %v1291 = vsel %vm541, %v1289, %v1290
        %v1292 = vrot.slane %v1235, 5
        %v1293 = vrot.slane %v1292, 4
        %v1294 = vrot.slane %v995, 5
        %v1295 = vsel %vm541, %v1293, %v1294
        %v1296 = vrot.slane %v1236, 5
        %v1297 = vrot.slane %v1296, 4
        %v1298 = vrot.slane %v996, 5
        %v1299 = vsel %vm541, %v1297, %v1298
        %v1300 = vrot.slane %v1237, 5
        %v1301 = vrot.slane %v1300, 4
        %v1302 = vrot.slane %v997, 5
        %v1303 = vsel %vm541, %v1301, %v1302
        %v1304 = vrot.slane %v1238, 5
        %v1305 = vrot.slane %v1304, 4
        %v1306 = vrot.slane %v998, 5
        %v1307 = vsel %vm541, %v1305, %v1306
        %v1308 = vrot.slane %v1239, 5
        %v1309 = vrot.slane %v1308, 4
        %v1310 = vrot.slane %v999, 5
        %v1311 = vsel %vm541, %v1309, %v1310
        %v1312 = vrot.slane %v1240, 5
        %v1313 = vrot.slane %v1312, 4
        %v1314 = vrot.slane %v1000, 5
        %v1315 = vsel %vm541, %v1313, %v1314
        %v1316 = vrot.slane %v1241, 5
        %v1317 = vrot.slane %v1316, 4
        %v1318 = vrot.slane %v1001, 5
        %v1319 = vsel %vm541, %v1317, %v1318
        %v1320 = vrot.slane %v1242, 5
        %v1321 = vrot.slane %v1320, 4
        %v1322 = vrot.slane %v1002, 5
        %v1323 = vsel %vm541, %v1321, %v1322
        %v1324 = vrot.slane %v1243, 5
        %v1325 = vrot.slane %v1324, 4
        %v1326 = vrot.slane %v1003, 5
        %v1327 = vsel %vm541, %v1325, %v1326
        %v1328 = vrot.slane %v1244, 5
        %v1329 = vrot.slane %v1328, 4
        %v1330 = vrot.slane %v1004, 5
        %v1331 = vsel %vm541, %v1329, %v1330
        %v1332 = vrot.slane %v1245, 5
        %v1333 = vrot.slane %v1332, 4
        %v1334 = vrot.slane %v1005, 5
        %v1335 = vsel %vm541, %v1333, %v1334
        %v1336 = vrot.slane %v1246, 5
        %v1337 = vrot.slane %v1336, 4
        %v1338 = vrot.slane %v1006, 5
        %v1339 = vsel %vm541, %v1337, %v1338
        %v1340 = vrot.slane %v1247, 5
        %v1341 = vrot.slane %v1340, 4
        %v1342 = vrot.slane %v1007, 5
        %v1343 = vsel %vm541, %v1341, %v1342
        %v1360 = vunpack.c.l.b16 %v232
        %v1361 = vunpack.c.h.b16 %v232
        %v1362 = vunpack.c.l.b16 %v233
        %v1363 = vunpack.c.h.b16 %v233
        %v1364 = vunpack.c.l.b16 %v234
        %v1365 = vunpack.c.h.b16 %v234
        %v1366 = vunpack.c.l.b16 %v235
        %v1367 = vunpack.c.h.b16 %v235
        %v1368 = vunpack.c.l.b16 %v236
        %v1369 = vunpack.c.h.b16 %v236
        %v1370 = vunpack.c.l.b16 %v237
        %v1371 = vunpack.c.h.b16 %v237
        %v1372 = vunpack.c.l.b16 %v238
        %v1373 = vunpack.c.h.b16 %v238
        %v1374 = vunpack.c.l.b16 %v239
        %v1375 = vunpack.c.h.b16 %v239
        %v1376 = vunpack.c.l.b16 %v240
        %v1377 = vunpack.c.h.b16 %v240
        %v1378 = vunpack.c.l.b16 %v241
        %v1379 = vunpack.c.h.b16 %v241
        %v1380 = vunpack.c.l.b16 %v242
        %v1381 = vunpack.c.h.b16 %v242
        %v1382 = vunpack.c.l.b16 %v243
        %v1383 = vunpack.c.h.b16 %v243
        %v1384 = vunpack.c.l.b16 %v244
        %v1385 = vunpack.c.h.b16 %v244
        %v1386 = vunpack.c.l.b16 %v245
        %v1387 = vunpack.c.h.b16 %v245
        %v1388 = vunpack.c.l.b16 %v246
        %v1389 = vunpack.c.h.b16 %v246
        %v1390 = vunpack.c.l.b16 %v247
        %v1391 = vunpack.c.h.b16 %v247
        %v1392 = vpack.c.b16 %v1362, %v1360
        %v1393 = vpack.c.b16 %v1363, %v1361
        %v1394 = vpack.c.b16 %v1366, %v1364
        %v1395 = vpack.c.b16 %v1367, %v1365
        %v1396 = vpack.c.b16 %v1370, %v1368
        %v1397 = vpack.c.b16 %v1371, %v1369
        %v1398 = vpack.c.b16 %v1374, %v1372
        %v1399 = vpack.c.b16 %v1375, %v1373
        %v1400 = vpack.c.b16 %v1378, %v1376
        %v1401 = vpack.c.b16 %v1379, %v1377
        %v1402 = vpack.c.b16 %v1382, %v1380
        %v1403 = vpack.c.b16 %v1383, %v1381
        %v1404 = vpack.c.b16 %v1386, %v1384
        %v1405 = vpack.c.b16 %v1387, %v1385
        %v1406 = vpack.c.b16 %v1390, %v1388
        %v1407 = vpack.c.b16 %v1391, %v1389
        %v1424 = vunpack.c.l.b16 %v280
        %v1425 = vunpack.c.h.b16 %v280
        %v1426 = vunpack.c.l.b16 %v294
        %v1427 = vunpack.c.h.b16 %v294
        %v1428 = vunpack.c.l.b16 %v308
        %v1429 = vunpack.c.h.b16 %v308
        %v1430 = vunpack.c.l.b16 %v322
        %v1431 = vunpack.c.h.b16 %v322
        %v1432 = vunpack.c.l.b16 %v336
        %v1433 = vunpack.c.h.b16 %v336
        %v1434 = vunpack.c.l.b16 %v350
        %v1435 = vunpack.c.h.b16 %v350
        %v1436 = vunpack.c.l.b16 %v364
        %v1437 = vunpack.c.h.b16 %v364
        %v1438 = vunpack.c.l.b16 %v378
        %v1439 = vunpack.c.h.b16 %v378
        %v1440 = vunpack.c.l.b16 %v392
        %v1441 = vunpack.c.h.b16 %v392
        %v1442 = vunpack.c.l.b16 %v406
        %v1443 = vunpack.c.h.b16 %v406
        %v1444 = vunpack.c.l.b16 %v420
        %v1445 = vunpack.c.h.b16 %v420
        %v1446 = vunpack.c.l.b16 %v434
        %v1447 = vunpack.c.h.b16 %v434
        %v1448 = vunpack.c.l.b16 %v448
        %v1449 = vunpack.c.h.b16 %v448
        %v1450 = vunpack.c.l.b16 %v462
        %v1451 = vunpack.c.h.b16 %v462
        %v1452 = vunpack.c.l.b16 %v476
        %v1453 = vunpack.c.h.b16 %v476
        %v1454 = vunpack.c.l.b16 %v490
        %v1455 = vunpack.c.h.b16 %v490
        %v1456 = vpack.c.b16 %v1426, %v1424
        %v1457 = vpack.c.b16 %v1427, %v1425
        %v1458 = vpack.c.b16 %v1430, %v1428
        %v1459 = vpack.c.b16 %v1431, %v1429
        %v1460 = vpack.c.b16 %v1434, %v1432
        %v1461 = vpack.c.b16 %v1435, %v1433
        %v1462 = vpack.c.b16 %v1438, %v1436
        %v1463 = vpack.c.b16 %v1439, %v1437
        %v1464 = vpack.c.b16 %v1442, %v1440
        %v1465 = vpack.c.b16 %v1443, %v1441
        %v1466 = vpack.c.b16 %v1446, %v1444
        %v1467 = vpack.c.b16 %v1447, %v1445
        %v1468 = vpack.c.b16 %v1450, %v1448
        %v1469 = vpack.c.b16 %v1451, %v1449
        %v1470 = vpack.c.b16 %v1454, %v1452
        %v1471 = vpack.c.b16 %v1455, %v1453
        %v1488 = vunpack.c.l.b16 %v545
        %v1489 = vunpack.c.h.b16 %v545
        %v1490 = vunpack.c.l.b16 %v549
        %v1491 = vunpack.c.h.b16 %v549
        %v1492 = vunpack.c.l.b16 %v553
        %v1493 = vunpack.c.h.b16 %v553
        %v1494 = vunpack.c.l.b16 %v557
        %v1495 = vunpack.c.h.b16 %v557
        %v1496 = vunpack.c.l.b16 %v561
        %v1497 = vunpack.c.h.b16 %v561
        %v1498 = vunpack.c.l.b16 %v565
        %v1499 = vunpack.c.h.b16 %v565
        %v1500 = vunpack.c.l.b16 %v569
        %v1501 = vunpack.c.h.b16 %v569
        %v1502 = vunpack.c.l.b16 %v573
        %v1503 = vunpack.c.h.b16 %v573
        %v1504 = vunpack.c.l.b16 %v577
        %v1505 = vunpack.c.h.b16 %v577
        %v1506 = vunpack.c.l.b16 %v581
        %v1507 = vunpack.c.h.b16 %v581
        %v1508 = vunpack.c.l.b16 %v585
        %v1509 = vunpack.c.h.b16 %v585
        %v1510 = vunpack.c.l.b16 %v589
        %v1511 = vunpack.c.h.b16 %v589
        %v1512 = vunpack.c.l.b16 %v593
        %v1513 = vunpack.c.h.b16 %v593
        %v1514 = vunpack.c.l.b16 %v597
        %v1515 = vunpack.c.h.b16 %v597
        %v1516 = vunpack.c.l.b16 %v601
        %v1517 = vunpack.c.h.b16 %v601
        %v1518 = vunpack.c.l.b16 %v605
        %v1519 = vunpack.c.h.b16 %v605
        %v1520 = vpack.c.b16 %v1490, %v1488
        %v1521 = vpack.c.b16 %v1491, %v1489
        %v1522 = vpack.c.b16 %v1494, %v1492
        %v1523 = vpack.c.b16 %v1495, %v1493
        %v1524 = vpack.c.b16 %v1498, %v1496
        %v1525 = vpack.c.b16 %v1499, %v1497
        %v1526 = vpack.c.b16 %v1502, %v1500
        %v1527 = vpack.c.b16 %v1503, %v1501
        %v1528 = vpack.c.b16 %v1506, %v1504
        %v1529 = vpack.c.b16 %v1507, %v1505
        %v1530 = vpack.c.b16 %v1510, %v1508
        %v1531 = vpack.c.b16 %v1511, %v1509
        %v1532 = vpack.c.b16 %v1514, %v1512
        %v1533 = vpack.c.b16 %v1515, %v1513
        %v1534 = vpack.c.b16 %v1518, %v1516
        %v1535 = vpack.c.b16 %v1519, %v1517
        %v1568 = vunpack.c.l.b16 %v607
        %v1569 = vunpack.c.h.b16 %v607
        %v1570 = vunpack.c.l.b16 %v608
        %v1571 = vunpack.c.h.b16 %v608
        %v1572 = vunpack.c.l.b16 %v609
        %v1573 = vunpack.c.h.b16 %v609
        %v1574 = vunpack.c.l.b16 %v610
        %v1575 = vunpack.c.h.b16 %v610
        %v1576 = vunpack.c.l.b16 %v611
        %v1577 = vunpack.c.h.b16 %v611
        %v1578 = vunpack.c.l.b16 %v612
        %v1579 = vunpack.c.h.b16 %v612
        %v1580 = vunpack.c.l.b16 %v613
        %v1581 = vunpack.c.h.b16 %v613
        %v1582 = vunpack.c.l.b16 %v614
        %v1583 = vunpack.c.h.b16 %v614
        %v1584 = vunpack.c.l.b16 %v615
        %v1585 = vunpack.c.h.b16 %v615
        %v1586 = vunpack.c.l.b16 %v616
        %v1587 = vunpack.c.h.b16 %v616
        %v1588 = vunpack.c.l.b16 %v617
        %v1589 = vunpack.c.h.b16 %v617
        %v1590 = vunpack.c.l.b16 %v618
        %v1591 = vunpack.c.h.b16 %v618
        %v1592 = vunpack.c.l.b16 %v619
        %v1593 = vunpack.c.h.b16 %v619
        %v1594 = vunpack.c.l.b16 %v620
        %v1595 = vunpack.c.h.b16 %v620
        %v1596 = vunpack.c.l.b16 %v621
        %v1597 = vunpack.c.h.b16 %v621
        %v1598 = vunpack.c.l.b16 %v622
        %v1599 = vunpack.c.h.b16 %v622
        %v1600 = vpack.c.b16 %v1570, %v1568
        %v1601 = vpack.c.b16 %v1571, %v1569
        %v1602 = vpack.c.b16 %v1574, %v1572
        %v1603 = vpack.c.b16 %v1575, %v1573
        %v1604 = vpack.c.b16 %v1578, %v1576
        %v1605 = vpack.c.b16 %v1579, %v1577
        %v1606 = vpack.c.b16 %v1582, %v1580
        %v1607 = vpack.c.b16 %v1583, %v1581
        %v1608 = vpack.c.b16 %v1586, %v1584
        %v1609 = vpack.c.b16 %v1587, %v1585
        %v1610 = vpack.c.b16 %v1590, %v1588
        %v1611 = vpack.c.b16 %v1591, %v1589
        %v1612 = vpack.c.b16 %v1594, %v1592
        %v1613 = vpack.c.b16 %v1595, %v1593
        %v1614 = vpack.c.b16 %v1598, %v1596
        %v1615 = vpack.c.b16 %v1599, %v1597
        %v1632 = vunpack.c.l.b16 %v652
        %v1633 = vunpack.c.h.b16 %v652
        %v1634 = vunpack.c.l.b16 %v666
        %v1635 = vunpack.c.h.b16 %v666
        %v1636 = vunpack.c.l.b16 %v680
        %v1637 = vunpack.c.h.b16 %v680
        %v1638 = vunpack.c.l.b16 %v694
        %v1639 = vunpack.c.h.b16 %v694
        %v1640 = vunpack.c.l.b16 %v708
        %v1641 = vunpack.c.h.b16 %v708
        %v1642 = vunpack.c.l.b16 %v722
        %v1643 = vunpack.c.h.b16 %v722
        %v1644 = vunpack.c.l.b16 %v736
        %v1645 = vunpack.c.h.b16 %v736
        %v1646 = vunpack.c.l.b16 %v750
        %v1647 = vunpack.c.h.b16 %v750
        %v1648 = vunpack.c.l.b16 %v764
        %v1649 = vunpack.c.h.b16 %v764
        %v1650 = vunpack.c.l.b16 %v778
        %v1651 = vunpack.c.h.b16 %v778
        %v1652 = vunpack.c.l.b16 %v792
        %v1653 = vunpack.c.h.b16 %v792
        %v1654 = vunpack.c.l.b16 %v806
        %v1655 = vunpack.c.h.b16 %v806
        %v1656 = vunpack.c.l.b16 %v820
        %v1657 = vunpack.c.h.b16 %v820
        %v1658 = vunpack.c.l.b16 %v834
        %v1659 = vunpack.c.h.b16 %v834
        %v1660 = vunpack.c.l.b16 %v848
        %v1661 = vunpack.c.h.b16 %v848
        %v1662 = vunpack.c.l.b16 %v862
        %v1663 = vunpack.c.h.b16 %v862
        %v1664 = vpack.c.b16 %v1634, %v1632
        %v1665 = vpack.c.b16 %v1635, %v1633
        %v1666 = vpack.c.b16 %v1638, %v1636
        %v1667 = vpack.c.b16 %v1639, %v1637
        %v1668 = vpack.c.b16 %v1642, %v1640
        %v1669 = vpack.c.b16 %v1643, %v1641
        %v1670 = vpack.c.b16 %v1646, %v1644
        %v1671 = vpack.c.b16 %v1647, %v1645
        %v1672 = vpack.c.b16 %v1650, %v1648
        %v1673 = vpack.c.b16 %v1651, %v1649
        %v1674 = vpack.c.b16 %v1654, %v1652
        %v1675 = vpack.c.b16 %v1655, %v1653
        %v1676 = vpack.c.b16 %v1658, %v1656
        %v1677 = vpack.c.b16 %v1659, %v1657
        %v1678 = vpack.c.b16 %v1662, %v1660
        %v1679 = vpack.c.b16 %v1663, %v1661
        %v1696 = vunpack.c.l.b16 %v914
        %v1697 = vunpack.c.h.b16 %v914
        %v1698 = vunpack.c.l.b16 %v918
        %v1699 = vunpack.c.h.b16 %v918
        %v1700 = vunpack.c.l.b16 %v922
        %v1701 = vunpack.c.h.b16 %v922
        %v1702 = vunpack.c.l.b16 %v926
        %v1703 = vunpack.c.h.b16 %v926
        %v1704 = vunpack.c.l.b16 %v930
        %v1705 = vunpack.c.h.b16 %v930
        %v1706 = vunpack.c.l.b16 %v934
        %v1707 = vunpack.c.h.b16 %v934
        %v1708 = vunpack.c.l.b16 %v938
        %v1709 = vunpack.c.h.b16 %v938
        %v1710 = vunpack.c.l.b16 %v942
        %v1711 = vunpack.c.h.b16 %v942
        %v1712 = vunpack.c.l.b16 %v946
        %v1713 = vunpack.c.h.b16 %v946
        %v1714 = vunpack.c.l.b16 %v950
        %v1715 = vunpack.c.h.b16 %v950
        %v1716 = vunpack.c.l.b16 %v954
        %v1717 = vunpack.c.h.b16 %v954
        %v1718 = vunpack.c.l.b16 %v958
        %v1719 = vunpack.c.h.b16 %v958
        %v1720 = vunpack.c.l.b16 %v962
        %v1721 = vunpack.c.h.b16 %v962
        %v1722 = vunpack.c.l.b16 %v966
        %v1723 = vunpack.c.h.b16 %v966
        %v1724 = vunpack.c.l.b16 %v970
        %v1725 = vunpack.c.h.b16 %v970
        %v1726 = vunpack.c.l.b16 %v974
        %v1727 = vunpack.c.h.b16 %v974
        %v1728 = vpack.c.b16 %v1698, %v1696
        %v1729 = vpack.c.b16 %v1699, %v1697
        %v1730 = vpack.c.b16 %v1702, %v1700
        %v1731 = vpack.c.b16 %v1703, %v1701
        %v1732 = vpack.c.b16 %v1706, %v1704
        %v1733 = vpack.c.b16 %v1707, %v1705
        %v1734 = vpack.c.b16 %v1710, %v1708
        %v1735 = vpack.c.b16 %v1711, %v1709
        %v1736 = vpack.c.b16 %v1714, %v1712
        %v1737 = vpack.c.b16 %v1715, %v1713
        %v1738 = vpack.c.b16 %v1718, %v1716
        %v1739 = vpack.c.b16 %v1719, %v1717
        %v1740 = vpack.c.b16 %v1722, %v1720
        %v1741 = vpack.c.b16 %v1723, %v1721
        %v1742 = vpack.c.b16 %v1726, %v1724
        %v1743 = vpack.c.b16 %v1727, %v1725
        %v1776 = vunpack.c.l.b16 %v976
        %v1777 = vunpack.c.h.b16 %v976
        %v1778 = vunpack.c.l.b16 %v977
        %v1779 = vunpack.c.h.b16 %v977
        %v1780 = vunpack.c.l.b16 %v978
        %v1781 = vunpack.c.h.b16 %v978
        %v1782 = vunpack.c.l.b16 %v979
        %v1783 = vunpack.c.h.b16 %v979
        %v1784 = vunpack.c.l.b16 %v980
        %v1785 = vunpack.c.h.b16 %v980
        %v1786 = vunpack.c.l.b16 %v981
        %v1787 = vunpack.c.h.b16 %v981
        %v1788 = vunpack.c.l.b16 %v982
        %v1789 = vunpack.c.h.b16 %v982
        %v1790 = vunpack.c.l.b16 %v983
        %v1791 = vunpack.c.h.b16 %v983
        %v1792 = vunpack.c.l.b16 %v984
        %v1793 = vunpack.c.h.b16 %v984
        %v1794 = vunpack.c.l.b16 %v985
        %v1795 = vunpack.c.h.b16 %v985
        %v1796 = vunpack.c.l.b16 %v986
        %v1797 = vunpack.c.h.b16 %v986
        %v1798 = vunpack.c.l.b16 %v987
        %v1799 = vunpack.c.h.b16 %v987
        %v1800 = vunpack.c.l.b16 %v988
        %v1801 = vunpack.c.h.b16 %v988
        %v1802 = vunpack.c.l.b16 %v989
        %v1803 = vunpack.c.h.b16 %v989
        %v1804 = vunpack.c.l.b16 %v990
        %v1805 = vunpack.c.h.b16 %v990
        %v1806 = vunpack.c.l.b16 %v991
        %v1807 = vunpack.c.h.b16 %v991
        %v1808 = vpack.c.b16 %v1778, %v1776
        %v1809 = vpack.c.b16 %v1779, %v1777
        %v1810 = vpack.c.b16 %v1782, %v1780
        %v1811 = vpack.c.b16 %v1783, %v1781
        %v1812 = vpack.c.b16 %v1786, %v1784
        %v1813 = vpack.c.b16 %v1787, %v1785
        %v1814 = vpack.c.b16 %v1790, %v1788
        %v1815 = vpack.c.b16 %v1791, %v1789
        %v1816 = vpack.c.b16 %v1794, %v1792
        %v1817 = vpack.c.b16 %v1795, %v1793
        %v1818 = vpack.c.b16 %v1798, %v1796
        %v1819 = vpack.c.b16 %v1799, %v1797
        %v1820 = vpack.c.b16 %v1802, %v1800
        %v1821 = vpack.c.b16 %v1803, %v1801
        %v1822 = vpack.c.b16 %v1806, %v1804
        %v1823 = vpack.c.b16 %v1807, %v1805
        %v1840 = vunpack.c.l.b16 %v1021
        %v1841 = vunpack.c.h.b16 %v1021
        %v1842 = vunpack.c.l.b16 %v1035
        %v1843 = vunpack.c.h.b16 %v1035
        %v1844 = vunpack.c.l.b16 %v1049
        %v1845 = vunpack.c.h.b16 %v1049
        %v1846 = vunpack.c.l.b16 %v1063
        %v1847 = vunpack.c.h.b16 %v1063
        %v1848 = vunpack.c.l.b16 %v1077
        %v1849 = vunpack.c.h.b16 %v1077
        %v1850 = vunpack.c.l.b16 %v1091
        %v1851 = vunpack.c.h.b16 %v1091
        %v1852 = vunpack.c.l.b16 %v1105
        %v1853 = vunpack.c.h.b16 %v1105
        %v1854 = vunpack.c.l.b16 %v1119
        %v1855 = vunpack.c.h.b16 %v1119
        %v1856 = vunpack.c.l.b16 %v1133
        %v1857 = vunpack.c.h.b16 %v1133
        %v1858 = vunpack.c.l.b16 %v1147
        %v1859 = vunpack.c.h.b16 %v1147
        %v1860 = vunpack.c.l.b16 %v1161
        %v1861 = vunpack.c.h.b16 %v1161
        %v1862 = vunpack.c.l.b16 %v1175
        %v1863 = vunpack.c.h.b16 %v1175
        %v1864 = vunpack.c.l.b16 %v1189
        %v1865 = vunpack.c.h.b16 %v1189
        %v1866 = vunpack.c.l.b16 %v1203
        %v1867 = vunpack.c.h.b16 %v1203
        %v1868 = vunpack.c.l.b16 %v1217
        %v1869 = vunpack.c.h.b16 %v1217
        %v1870 = vunpack.c.l.b16 %v1231
        %v1871 = vunpack.c.h.b16 %v1231
        %v1872 = vpack.c.b16 %v1842, %v1840
        %v1873 = vpack.c.b16 %v1843, %v1841
        %v1874 = vpack.c.b16 %v1846, %v1844
        %v1875 = vpack.c.b16 %v1847, %v1845
        %v1876 = vpack.c.b16 %v1850, %v1848
        %v1877 = vpack.c.b16 %v1851, %v1849
        %v1878 = vpack.c.b16 %v1854, %v1852
        %v1879 = vpack.c.b16 %v1855, %v1853
        %v1880 = vpack.c.b16 %v1858, %v1856
        %v1881 = vpack.c.b16 %v1859, %v1857
        %v1882 = vpack.c.b16 %v1862, %v1860
        %v1883 = vpack.c.b16 %v1863, %v1861
        %v1884 = vpack.c.b16 %v1866, %v1864
        %v1885 = vpack.c.b16 %v1867, %v1865
        %v1886 = vpack.c.b16 %v1870, %v1868
        %v1887 = vpack.c.b16 %v1871, %v1869
        %v1904 = vunpack.c.l.b16 %v1283
        %v1905 = vunpack.c.h.b16 %v1283
        %v1906 = vunpack.c.l.b16 %v1287
        %v1907 = vunpack.c.h.b16 %v1287
        %v1908 = vunpack.c.l.b16 %v1291
        %v1909 = vunpack.c.h.b16 %v1291
        %v1910 = vunpack.c.l.b16 %v1295
        %v1911 = vunpack.c.h.b16 %v1295
        %v1912 = vunpack.c.l.b16 %v1299
        %v1913 = vunpack.c.h.b16 %v1299
        %v1914 = vunpack.c.l.b16 %v1303
        %v1915 = vunpack.c.h.b16 %v1303
        %v1916 = vunpack.c.l.b16 %v1307
        %v1917 = vunpack.c.h.b16 %v1307
        %v1918 = vunpack.c.l.b16 %v1311
        %v1919 = vunpack.c.h.b16 %v1311
        %v1920 = vunpack.c.l.b16 %v1315
        %v1921 = vunpack.c.h.b16 %v1315
        %v1922 = vunpack.c.l.b16 %v1319
        %v1923 = vunpack.c.h.b16 %v1319
        %v1924 = vunpack.c.l.b16 %v1323
        %v1925 = vunpack.c.h.b16 %v1323
        %v1926 = vunpack.c.l.b16 %v1327
        %v1927 = vunpack.c.h.b16 %v1327
        %v1928 = vunpack.c.l.b16 %v1331
        %v1929 = vunpack.c.h.b16 %v1331
        %v1930 = vunpack.c.l.b16 %v1335
        %v1931 = vunpack.c.h.b16 %v1335
        %v1932 = vunpack.c.l.b16 %v1339
        %v1933 = vunpack.c.h.b16 %v1339
        %v1934 = vunpack.c.l.b16 %v1343
        %v1935 = vunpack.c.h.b16 %v1343
        %v1936 = vpack.c.b16 %v1906, %v1904
        %v1937 = vpack.c.b16 %v1907, %v1905
        %v1938 = vpack.c.b16 %v1910, %v1908
        %v1939 = vpack.c.b16 %v1911, %v1909
        %v1940 = vpack.c.b16 %v1914, %v1912
        %v1941 = vpack.c.b16 %v1915, %v1913
        %v1942 = vpack.c.b16 %v1918, %v1916
        %v1943 = vpack.c.b16 %v1919, %v1917
        %v1944 = vpack.c.b16 %v1922, %v1920
        %v1945 = vpack.c.b16 %v1923, %v1921
        %v1946 = vpack.c.b16 %v1926, %v1924
        %v1947 = vpack.c.b16 %v1927, %v1925
        %v1948 = vpack.c.b16 %v1930, %v1928
        %v1949 = vpack.c.b16 %v1931, %v1929
        %v1950 = vpack.c.b16 %v1934, %v1932
        %v1951 = vpack.c.b16 %v1935, %v1933
        %v1968 = vld [vmem:[%s187] sm:$0xff]
        %v1969 = vld [vmem:[%s187 + $0x8] sm:$0xff]
        %v1970 = vld [vmem:[%s187 + $0x10] sm:$0xff]
        %v1971 = vld [vmem:[%s187 + $0x18] sm:$0xff]
        %v1972 = vld [vmem:[%s187 + $0x20] sm:$0xff]
        %v1973 = vld [vmem:[%s187 + $0x28] sm:$0xff]
        %v1974 = vld [vmem:[%s187 + $0x30] sm:$0xff]
        %v1975 = vld [vmem:[%s187 + $0x38] sm:$0xff]
        %v1976 = vld [vmem:[%s187 + $0x40] sm:$0xff]
        %v1977 = vld [vmem:[%s187 + $0x48] sm:$0xff]
        %v1978 = vld [vmem:[%s187 + $0x50] sm:$0xff]
        %v1979 = vld [vmem:[%s187 + $0x58] sm:$0xff]
        %v1980 = vld [vmem:[%s187 + $0x60] sm:$0xff]
        %v1981 = vld [vmem:[%s187 + $0x68] sm:$0xff]
        %v1982 = vld [vmem:[%s187 + $0x70] sm:$0xff]
        %v1983 = vld [vmem:[%s187 + $0x78] sm:$0xff]
        %v1984 = vld [vmem:[%s187 + $0x80] sm:$0xff]
        %v1985 = vld [vmem:[%s187 + $0x88] sm:$0xff]
        %v1986 = vld [vmem:[%s187 + $0x90] sm:$0xff]
        %v1987 = vld [vmem:[%s187 + $0x98] sm:$0xff]
        %v1988 = vld [vmem:[%s187 + $0xa0] sm:$0xff]
        %v1989 = vld [vmem:[%s187 + $0xa8] sm:$0xff]
        %v1990 = vld [vmem:[%s187 + $0xb0] sm:$0xff]
        %v1991 = vld [vmem:[%s187 + $0xb8] sm:$0xff]
        %v1992 = vld [vmem:[%s187 + $0xc0] sm:$0xff]
        %v1993 = vld [vmem:[%s187 + $0xc8] sm:$0xff]
        %v1994 = vld [vmem:[%s187 + $0xd0] sm:$0xff]
        %v1995 = vld [vmem:[%s187 + $0xd8] sm:$0xff]
        %v1996 = vld [vmem:[%s187 + $0xe0] sm:$0xff]
        %v1997 = vld [vmem:[%s187 + $0xe8] sm:$0xff]
        %v1998 = vld [vmem:[%s187 + $0xf0] sm:$0xff]
        %v1999 = vld [vmem:[%s187 + $0xf8] sm:$0xff]
        %v2000 = vld [vmem:[%s187 + $0x100] sm:$0xff]
        %v2001 = vld [vmem:[%s187 + $0x108] sm:$0xff]
        %v2002 = vld [vmem:[%s187 + $0x110] sm:$0xff]
        %v2003 = vld [vmem:[%s187 + $0x118] sm:$0xff]
        %v2004 = vld [vmem:[%s187 + $0x120] sm:$0xff]
        %v2005 = vld [vmem:[%s187 + $0x128] sm:$0xff]
        %v2006 = vld [vmem:[%s187 + $0x130] sm:$0xff]
        %v2007 = vld [vmem:[%s187 + $0x138] sm:$0xff]
        %v2008 = vld [vmem:[%s187 + $0x140] sm:$0xff]
        %v2009 = vld [vmem:[%s187 + $0x148] sm:$0xff]
        %v2010 = vld [vmem:[%s187 + $0x150] sm:$0xff]
        %v2011 = vld [vmem:[%s187 + $0x158] sm:$0xff]
        %v2012 = vld [vmem:[%s187 + $0x160] sm:$0xff]
        %v2013 = vld [vmem:[%s187 + $0x168] sm:$0xff]
        %v2014 = vld [vmem:[%s187 + $0x170] sm:$0xff]
        %v2015 = vld [vmem:[%s187 + $0x178] sm:$0xff]
        %v2016 = vld [vmem:[%s187 + $0x180] sm:$0xff]
        %v2017 = vld [vmem:[%s187 + $0x188] sm:$0xff]
        %v2018 = vld [vmem:[%s187 + $0x190] sm:$0xff]
        %v2019 = vld [vmem:[%s187 + $0x198] sm:$0xff]
        %v2020 = vld [vmem:[%s187 + $0x1a0] sm:$0xff]
        %v2021 = vld [vmem:[%s187 + $0x1a8] sm:$0xff]
        %v2022 = vld [vmem:[%s187 + $0x1b0] sm:$0xff]
        %v2023 = vld [vmem:[%s187 + $0x1b8] sm:$0xff]
        %v2024 = vld [vmem:[%s187 + $0x1c0] sm:$0xff]
        %v2025 = vld [vmem:[%s187 + $0x1c8] sm:$0xff]
        %v2026 = vld [vmem:[%s187 + $0x1d0] sm:$0xff]
        %v2027 = vld [vmem:[%s187 + $0x1d8] sm:$0xff]
        %v2028 = vld [vmem:[%s187 + $0x1e0] sm:$0xff]
        %v2029 = vld [vmem:[%s187 + $0x1e8] sm:$0xff]
        %v2030 = vld [vmem:[%s187 + $0x1f0] sm:$0xff]
        %v2031 = vld [vmem:[%s187 + $0x1f8] sm:$0xff]
        %v2032 = vld [vmem:[%s187 + $0x200] sm:$0xff]
        %v2033 = vld [vmem:[%s187 + $0x208] sm:$0xff]
        %v2034 = vld [vmem:[%s187 + $0x210] sm:$0xff]
        %v2035 = vld [vmem:[%s187 + $0x218] sm:$0xff]
        %v2036 = vld [vmem:[%s187 + $0x220] sm:$0xff]
        %v2037 = vld [vmem:[%s187 + $0x228] sm:$0xff]
        %v2038 = vld [vmem:[%s187 + $0x230] sm:$0xff]
        %v2039 = vld [vmem:[%s187 + $0x238] sm:$0xff]
        %v2040 = vld [vmem:[%s187 + $0x240] sm:$0xff]
        %v2041 = vld [vmem:[%s187 + $0x248] sm:$0xff]
        %v2042 = vld [vmem:[%s187 + $0x250] sm:$0xff]
        %v2043 = vld [vmem:[%s187 + $0x258] sm:$0xff]
        %v2044 = vld [vmem:[%s187 + $0x260] sm:$0xff]
        %v2045 = vld [vmem:[%s187 + $0x268] sm:$0xff]
        %v2046 = vld [vmem:[%s187 + $0x270] sm:$0xff]
        %v2047 = vld [vmem:[%s187 + $0x278] sm:$0xff]
        %v2048 = vld [vmem:[%s187 + $0x280] sm:$0xff]
        %v2049 = vld [vmem:[%s187 + $0x288] sm:$0xff]
        %v2050 = vld [vmem:[%s187 + $0x290] sm:$0xff]
        %v2051 = vld [vmem:[%s187 + $0x298] sm:$0xff]
        %v2052 = vld [vmem:[%s187 + $0x2a0] sm:$0xff]
        %v2053 = vld [vmem:[%s187 + $0x2a8] sm:$0xff]
        %v2054 = vld [vmem:[%s187 + $0x2b0] sm:$0xff]
        %v2055 = vld [vmem:[%s187 + $0x2b8] sm:$0xff]
        %v2056 = vld [vmem:[%s187 + $0x2c0] sm:$0xff]
        %v2057 = vld [vmem:[%s187 + $0x2c8] sm:$0xff]
        %v2058 = vld [vmem:[%s187 + $0x2d0] sm:$0xff]
        %v2059 = vld [vmem:[%s187 + $0x2d8] sm:$0xff]
        %v2060 = vld [vmem:[%s187 + $0x2e0] sm:$0xff]
        %v2061 = vld [vmem:[%s187 + $0x2e8] sm:$0xff]
        %v2062 = vld [vmem:[%s187 + $0x2f0] sm:$0xff]
        %v2063 = vld [vmem:[%s187 + $0x2f8] sm:$0xff]
        %v2064 = vld [vmem:[%s187 + $0x300] sm:$0xff]
        %v2065 = vld [vmem:[%s187 + $0x308] sm:$0xff]
        %v2066 = vld [vmem:[%s187 + $0x310] sm:$0xff]
        %v2067 = vld [vmem:[%s187 + $0x318] sm:$0xff]
        %v2068 = vld [vmem:[%s187 + $0x320] sm:$0xff]
        %v2069 = vld [vmem:[%s187 + $0x328] sm:$0xff]
        %v2070 = vld [vmem:[%s187 + $0x330] sm:$0xff]
        %v2071 = vld [vmem:[%s187 + $0x338] sm:$0xff]
        %v2072 = vld [vmem:[%s187 + $0x340] sm:$0xff]
        %v2073 = vld [vmem:[%s187 + $0x348] sm:$0xff]
        %v2074 = vld [vmem:[%s187 + $0x350] sm:$0xff]
        %v2075 = vld [vmem:[%s187 + $0x358] sm:$0xff]
        %v2076 = vld [vmem:[%s187 + $0x360] sm:$0xff]
        %v2077 = vld [vmem:[%s187 + $0x368] sm:$0xff]
        %v2078 = vld [vmem:[%s187 + $0x370] sm:$0xff]
        %v2079 = vld [vmem:[%s187 + $0x378] sm:$0xff]
        %v2080 = vld [vmem:[%s187 + $0x380] sm:$0xff]
        %v2081 = vld [vmem:[%s187 + $0x388] sm:$0xff]
        %v2082 = vld [vmem:[%s187 + $0x390] sm:$0xff]
        %v2083 = vld [vmem:[%s187 + $0x398] sm:$0xff]
        %v2084 = vld [vmem:[%s187 + $0x3a0] sm:$0xff]
        %v2085 = vld [vmem:[%s187 + $0x3a8] sm:$0xff]
        %v2086 = vld [vmem:[%s187 + $0x3b0] sm:$0xff]
        %v2087 = vld [vmem:[%s187 + $0x3b8] sm:$0xff]
        %v2088 = vld [vmem:[%s187 + $0x3c0] sm:$0xff]
        %v2089 = vld [vmem:[%s187 + $0x3c8] sm:$0xff]
        %v2090 = vld [vmem:[%s187 + $0x3d0] sm:$0xff]
        %v2091 = vld [vmem:[%s187 + $0x3d8] sm:$0xff]
        %v2092 = vld [vmem:[%s187 + $0x3e0] sm:$0xff]
        %v2093 = vld [vmem:[%s187 + $0x3e8] sm:$0xff]
        %v2094 = vld [vmem:[%s187 + $0x3f0] sm:$0xff]
        %v2095 = vld [vmem:[%s187 + $0x3f8] sm:$0xff]
        %v2096 = vld [vmem:[%s187 + $0x400] sm:$0xff]
        %v2097 = vld [vmem:[%s187 + $0x408] sm:$0xff]
        %v2098 = vld [vmem:[%s187 + $0x410] sm:$0xff]
        %v2099 = vld [vmem:[%s187 + $0x418] sm:$0xff]
        %v2100 = vld [vmem:[%s187 + $0x420] sm:$0xff]
        %v2101 = vld [vmem:[%s187 + $0x428] sm:$0xff]
        %v2102 = vld [vmem:[%s187 + $0x430] sm:$0xff]
        %v2103 = vld [vmem:[%s187 + $0x438] sm:$0xff]
        %v2104 = vld [vmem:[%s187 + $0x440] sm:$0xff]
        %v2105 = vld [vmem:[%s187 + $0x448] sm:$0xff]
        %v2106 = vld [vmem:[%s187 + $0x450] sm:$0xff]
        %v2107 = vld [vmem:[%s187 + $0x458] sm:$0xff]
        %v2108 = vld [vmem:[%s187 + $0x460] sm:$0xff]
        %v2109 = vld [vmem:[%s187 + $0x468] sm:$0xff]
        %v2110 = vld [vmem:[%s187 + $0x470] sm:$0xff]
        %v2111 = vld [vmem:[%s187 + $0x478] sm:$0xff]
        %v2112 = vld [vmem:[%s187 + $0x480] sm:$0xff]
        %v2113 = vld [vmem:[%s187 + $0x488] sm:$0xff]
        %v2114 = vld [vmem:[%s187 + $0x490] sm:$0xff]
        %v2115 = vld [vmem:[%s187 + $0x498] sm:$0xff]
        %v2116 = vld [vmem:[%s187 + $0x4a0] sm:$0xff]
        %v2117 = vld [vmem:[%s187 + $0x4a8] sm:$0xff]
        %v2118 = vld [vmem:[%s187 + $0x4b0] sm:$0xff]
        %v2119 = vld [vmem:[%s187 + $0x4b8] sm:$0xff]
        %v2120 = vld [vmem:[%s187 + $0x4c0] sm:$0xff]
        %v2121 = vld [vmem:[%s187 + $0x4c8] sm:$0xff]
        %v2122 = vld [vmem:[%s187 + $0x4d0] sm:$0xff]
        %v2123 = vld [vmem:[%s187 + $0x4d8] sm:$0xff]
        %v2124 = vld [vmem:[%s187 + $0x4e0] sm:$0xff]
        %v2125 = vld [vmem:[%s187 + $0x4e8] sm:$0xff]
        %v2126 = vld [vmem:[%s187 + $0x4f0] sm:$0xff]
        %v2127 = vld [vmem:[%s187 + $0x4f8] sm:$0xff]
        %v2128 = vld [vmem:[%s187 + $0x500] sm:$0xff]
        %v2129 = vld [vmem:[%s187 + $0x508] sm:$0xff]
        %v2130 = vld [vmem:[%s187 + $0x510] sm:$0xff]
        %v2131 = vld [vmem:[%s187 + $0x518] sm:$0xff]
        %v2132 = vld [vmem:[%s187 + $0x520] sm:$0xff]
        %v2133 = vld [vmem:[%s187 + $0x528] sm:$0xff]
        %v2134 = vld [vmem:[%s187 + $0x530] sm:$0xff]
        %v2135 = vld [vmem:[%s187 + $0x538] sm:$0xff]
        %v2136 = vld [vmem:[%s187 + $0x540] sm:$0xff]
        %v2137 = vld [vmem:[%s187 + $0x548] sm:$0xff]
        %v2138 = vld [vmem:[%s187 + $0x550] sm:$0xff]
        %v2139 = vld [vmem:[%s187 + $0x558] sm:$0xff]
        %v2140 = vld [vmem:[%s187 + $0x560] sm:$0xff]
        %v2141 = vld [vmem:[%s187 + $0x568] sm:$0xff]
        %v2142 = vld [vmem:[%s187 + $0x570] sm:$0xff]
        %v2143 = vld [vmem:[%s187 + $0x578] sm:$0xff]
        %v2144 = vld [vmem:[%s187 + $0x580] sm:$0xff]
        %v2145 = vld [vmem:[%s187 + $0x588] sm:$0xff]
        %v2146 = vld [vmem:[%s187 + $0x590] sm:$0xff]
        %v2147 = vld [vmem:[%s187 + $0x598] sm:$0xff]
        %v2148 = vld [vmem:[%s187 + $0x5a0] sm:$0xff]
        %v2149 = vld [vmem:[%s187 + $0x5a8] sm:$0xff]
        %v2150 = vld [vmem:[%s187 + $0x5b0] sm:$0xff]
        %v2151 = vld [vmem:[%s187 + $0x5b8] sm:$0xff]
        %v2152 = vld [vmem:[%s187 + $0x5c0] sm:$0xff]
        %v2153 = vld [vmem:[%s187 + $0x5c8] sm:$0xff]
        %v2154 = vld [vmem:[%s187 + $0x5d0] sm:$0xff]
        %v2155 = vld [vmem:[%s187 + $0x5d8] sm:$0xff]
        %v2156 = vld [vmem:[%s187 + $0x5e0] sm:$0xff]
        %v2157 = vld [vmem:[%s187 + $0x5e8] sm:$0xff]
        %v2158 = vld [vmem:[%s187 + $0x5f0] sm:$0xff]
        %v2159 = vld [vmem:[%s187 + $0x5f8] sm:$0xff]
        %v2160 = vld [vmem:[%s187 + $0x600] sm:$0xff]
        %v2161 = vld [vmem:[%s187 + $0x608] sm:$0xff]
        %v2162 = vld [vmem:[%s187 + $0x610] sm:$0xff]
        %v2163 = vld [vmem:[%s187 + $0x618] sm:$0xff]
        %v2164 = vld [vmem:[%s187 + $0x620] sm:$0xff]
        %v2165 = vld [vmem:[%s187 + $0x628] sm:$0xff]
        %v2166 = vld [vmem:[%s187 + $0x630] sm:$0xff]
        %v2167 = vld [vmem:[%s187 + $0x638] sm:$0xff]
        %v2168 = vld [vmem:[%s187 + $0x640] sm:$0xff]
        %v2169 = vld [vmem:[%s187 + $0x648] sm:$0xff]
        %v2170 = vld [vmem:[%s187 + $0x650] sm:$0xff]
        %v2171 = vld [vmem:[%s187 + $0x658] sm:$0xff]
        %v2172 = vld [vmem:[%s187 + $0x660] sm:$0xff]
        %v2173 = vld [vmem:[%s187 + $0x668] sm:$0xff]
        %v2174 = vld [vmem:[%s187 + $0x670] sm:$0xff]
        %v2175 = vld [vmem:[%s187 + $0x678] sm:$0xff]
        %v2176 = vld [vmem:[%s187 + $0x680] sm:$0xff]
        %v2177 = vld [vmem:[%s187 + $0x688] sm:$0xff]
        %v2178 = vld [vmem:[%s187 + $0x690] sm:$0xff]
        %v2179 = vld [vmem:[%s187 + $0x698] sm:$0xff]
        %v2180 = vld [vmem:[%s187 + $0x6a0] sm:$0xff]
        %v2181 = vld [vmem:[%s187 + $0x6a8] sm:$0xff]
        %v2182 = vld [vmem:[%s187 + $0x6b0] sm:$0xff]
        %v2183 = vld [vmem:[%s187 + $0x6b8] sm:$0xff]
        %v2184 = vld [vmem:[%s187 + $0x6c0] sm:$0xff]
        %v2185 = vld [vmem:[%s187 + $0x6c8] sm:$0xff]
        %v2186 = vld [vmem:[%s187 + $0x6d0] sm:$0xff]
        %v2187 = vld [vmem:[%s187 + $0x6d8] sm:$0xff]
        %v2188 = vld [vmem:[%s187 + $0x6e0] sm:$0xff]
        %v2189 = vld [vmem:[%s187 + $0x6e8] sm:$0xff]
        %v2190 = vld [vmem:[%s187 + $0x6f0] sm:$0xff]
        %v2191 = vld [vmem:[%s187 + $0x6f8] sm:$0xff]
        %v2192 = vld [vmem:[%s187 + $0x700] sm:$0xff]
        %v2193 = vld [vmem:[%s187 + $0x708] sm:$0xff]
        %v2194 = vld [vmem:[%s187 + $0x710] sm:$0xff]
        %v2195 = vld [vmem:[%s187 + $0x718] sm:$0xff]
        %v2196 = vld [vmem:[%s187 + $0x720] sm:$0xff]
        %v2197 = vld [vmem:[%s187 + $0x728] sm:$0xff]
        %v2198 = vld [vmem:[%s187 + $0x730] sm:$0xff]
        %v2199 = vld [vmem:[%s187 + $0x738] sm:$0xff]
        %v2200 = vld [vmem:[%s187 + $0x740] sm:$0xff]
        %v2201 = vld [vmem:[%s187 + $0x748] sm:$0xff]
        %v2202 = vld [vmem:[%s187 + $0x750] sm:$0xff]
        %v2203 = vld [vmem:[%s187 + $0x758] sm:$0xff]
        %v2204 = vld [vmem:[%s187 + $0x760] sm:$0xff]
        %v2205 = vld [vmem:[%s187 + $0x768] sm:$0xff]
        %v2206 = vld [vmem:[%s187 + $0x770] sm:$0xff]
        %v2207 = vld [vmem:[%s187 + $0x778] sm:$0xff]
        %v2208 = vld [vmem:[%s187 + $0x780] sm:$0xff]
        %v2209 = vld [vmem:[%s187 + $0x788] sm:$0xff]
        %v2210 = vld [vmem:[%s187 + $0x790] sm:$0xff]
        %v2211 = vld [vmem:[%s187 + $0x798] sm:$0xff]
        %v2212 = vld [vmem:[%s187 + $0x7a0] sm:$0xff]
        %v2213 = vld [vmem:[%s187 + $0x7a8] sm:$0xff]
        %v2214 = vld [vmem:[%s187 + $0x7b0] sm:$0xff]
        %v2215 = vld [vmem:[%s187 + $0x7b8] sm:$0xff]
        %v2216 = vld [vmem:[%s187 + $0x7c0] sm:$0xff]
        %v2217 = vld [vmem:[%s187 + $0x7c8] sm:$0xff]
        %v2218 = vld [vmem:[%s187 + $0x7d0] sm:$0xff]
        %v2219 = vld [vmem:[%s187 + $0x7d8] sm:$0xff]
        %v2220 = vld [vmem:[%s187 + $0x7e0] sm:$0xff]
        %v2221 = vld [vmem:[%s187 + $0x7e8] sm:$0xff]
        %v2222 = vld [vmem:[%s187 + $0x7f0] sm:$0xff]
        %v2223 = vld [vmem:[%s187 + $0x7f8] sm:$0xff]
        %v2224 = vld [vmem:[%s187 + $0x800] sm:$0xff]
        %v2225 = vld [vmem:[%s187 + $0x808] sm:$0xff]
        %v2226 = vld [vmem:[%s187 + $0x810] sm:$0xff]
        %v2227 = vld [vmem:[%s187 + $0x818] sm:$0xff]
        %v2228 = vld [vmem:[%s187 + $0x820] sm:$0xff]
        %v2229 = vld [vmem:[%s187 + $0x828] sm:$0xff]
        %v2230 = vld [vmem:[%s187 + $0x830] sm:$0xff]
        %v2231 = vld [vmem:[%s187 + $0x838] sm:$0xff]
        %v2232 = vld [vmem:[%s187 + $0x840] sm:$0xff]
        %v2233 = vld [vmem:[%s187 + $0x848] sm:$0xff]
        %v2234 = vld [vmem:[%s187 + $0x850] sm:$0xff]
        %v2235 = vld [vmem:[%s187 + $0x858] sm:$0xff]
        %v2236 = vld [vmem:[%s187 + $0x860] sm:$0xff]
        %v2237 = vld [vmem:[%s187 + $0x868] sm:$0xff]
        %v2238 = vld [vmem:[%s187 + $0x870] sm:$0xff]
        %v2239 = vld [vmem:[%s187 + $0x878] sm:$0xff]
        %v2240 = vld [vmem:[%s187 + $0x880] sm:$0xff]
        %v2241 = vld [vmem:[%s187 + $0x888] sm:$0xff]
        %v2242 = vld [vmem:[%s187 + $0x890] sm:$0xff]
        %v2243 = vld [vmem:[%s187 + $0x898] sm:$0xff]
        %v2244 = vld [vmem:[%s187 + $0x8a0] sm:$0xff]
        %v2245 = vld [vmem:[%s187 + $0x8a8] sm:$0xff]
        %v2246 = vld [vmem:[%s187 + $0x8b0] sm:$0xff]
        %v2247 = vld [vmem:[%s187 + $0x8b8] sm:$0xff]
        %v2248 = vld [vmem:[%s187 + $0x8c0] sm:$0xff]
        %v2249 = vld [vmem:[%s187 + $0x8c8] sm:$0xff]
        %v2250 = vld [vmem:[%s187 + $0x8d0] sm:$0xff]
        %v2251 = vld [vmem:[%s187 + $0x8d8] sm:$0xff]
        %v2252 = vld [vmem:[%s187 + $0x8e0] sm:$0xff]
        %v2253 = vld [vmem:[%s187 + $0x8e8] sm:$0xff]
        %v2254 = vld [vmem:[%s187 + $0x8f0] sm:$0xff]
        %v2255 = vld [vmem:[%s187 + $0x8f8] sm:$0xff]
        %v2256 = vld [vmem:[%s187 + $0x900] sm:$0xff]
        %v2257 = vld [vmem:[%s187 + $0x908] sm:$0xff]
        %v2258 = vld [vmem:[%s187 + $0x910] sm:$0xff]
        %v2259 = vld [vmem:[%s187 + $0x918] sm:$0xff]
        %v2260 = vld [vmem:[%s187 + $0x920] sm:$0xff]
        %v2261 = vld [vmem:[%s187 + $0x928] sm:$0xff]
        %v2262 = vld [vmem:[%s187 + $0x930] sm:$0xff]
        %v2263 = vld [vmem:[%s187 + $0x938] sm:$0xff]
        %v2264 = vld [vmem:[%s187 + $0x940] sm:$0xff]
        %v2265 = vld [vmem:[%s187 + $0x948] sm:$0xff]
        %v2266 = vld [vmem:[%s187 + $0x950] sm:$0xff]
        %v2267 = vld [vmem:[%s187 + $0x958] sm:$0xff]
        %v2268 = vld [vmem:[%s187 + $0x960] sm:$0xff]
        %v2269 = vld [vmem:[%s187 + $0x968] sm:$0xff]
        %v2270 = vld [vmem:[%s187 + $0x970] sm:$0xff]
        %v2271 = vld [vmem:[%s187 + $0x978] sm:$0xff]
        %v2272 = vld [vmem:[%s187 + $0x980] sm:$0xff]
        %v2273 = vld [vmem:[%s187 + $0x988] sm:$0xff]
        %v2274 = vld [vmem:[%s187 + $0x990] sm:$0xff]
        %v2275 = vld [vmem:[%s187 + $0x998] sm:$0xff]
        %v2276 = vld [vmem:[%s187 + $0x9a0] sm:$0xff]
        %v2277 = vld [vmem:[%s187 + $0x9a8] sm:$0xff]
        %v2278 = vld [vmem:[%s187 + $0x9b0] sm:$0xff]
        %v2279 = vld [vmem:[%s187 + $0x9b8] sm:$0xff]
        %v2280 = vld [vmem:[%s187 + $0x9c0] sm:$0xff]
        %v2281 = vld [vmem:[%s187 + $0x9c8] sm:$0xff]
        %v2282 = vld [vmem:[%s187 + $0x9d0] sm:$0xff]
        %v2283 = vld [vmem:[%s187 + $0x9d8] sm:$0xff]
        %v2284 = vld [vmem:[%s187 + $0x9e0] sm:$0xff]
        %v2285 = vld [vmem:[%s187 + $0x9e8] sm:$0xff]
        %v2286 = vld [vmem:[%s187 + $0x9f0] sm:$0xff]
        %v2287 = vld [vmem:[%s187 + $0x9f8] sm:$0xff]
        %v2288 = vld [vmem:[%s187 + $0xa00] sm:$0xff]
        %v2289 = vld [vmem:[%s187 + $0xa08] sm:$0xff]
        %v2290 = vld [vmem:[%s187 + $0xa10] sm:$0xff]
        %v2291 = vld [vmem:[%s187 + $0xa18] sm:$0xff]
        %v2292 = vld [vmem:[%s187 + $0xa20] sm:$0xff]
        %v2293 = vld [vmem:[%s187 + $0xa28] sm:$0xff]
        %v2294 = vld [vmem:[%s187 + $0xa30] sm:$0xff]
        %v2295 = vld [vmem:[%s187 + $0xa38] sm:$0xff]
        %v2296 = vld [vmem:[%s187 + $0xa40] sm:$0xff]
        %v2297 = vld [vmem:[%s187 + $0xa48] sm:$0xff]
        %v2298 = vld [vmem:[%s187 + $0xa50] sm:$0xff]
        %v2299 = vld [vmem:[%s187 + $0xa58] sm:$0xff]
        %v2300 = vld [vmem:[%s187 + $0xa60] sm:$0xff]
        %v2301 = vld [vmem:[%s187 + $0xa68] sm:$0xff]
        %v2302 = vld [vmem:[%s187 + $0xa70] sm:$0xff]
        %v2303 = vld [vmem:[%s187 + $0xa78] sm:$0xff]
        %v2304 = vld [vmem:[%s187 + $0xa80] sm:$0xff]
        %v2305 = vld [vmem:[%s187 + $0xa88] sm:$0xff]
        %v2306 = vld [vmem:[%s187 + $0xa90] sm:$0xff]
        %v2307 = vld [vmem:[%s187 + $0xa98] sm:$0xff]
        %v2308 = vld [vmem:[%s187 + $0xaa0] sm:$0xff]
        %v2309 = vld [vmem:[%s187 + $0xaa8] sm:$0xff]
        %v2310 = vld [vmem:[%s187 + $0xab0] sm:$0xff]
        %v2311 = vld [vmem:[%s187 + $0xab8] sm:$0xff]
        %v2312 = vld [vmem:[%s187 + $0xac0] sm:$0xff]
        %v2313 = vld [vmem:[%s187 + $0xac8] sm:$0xff]
        %v2314 = vld [vmem:[%s187 + $0xad0] sm:$0xff]
        %v2315 = vld [vmem:[%s187 + $0xad8] sm:$0xff]
        %v2316 = vld [vmem:[%s187 + $0xae0] sm:$0xff]
        %v2317 = vld [vmem:[%s187 + $0xae8] sm:$0xff]
        %v2318 = vld [vmem:[%s187 + $0xaf0] sm:$0xff]
        %v2319 = vld [vmem:[%s187 + $0xaf8] sm:$0xff]
        %v2320 = vld [vmem:[%s187 + $0xb00] sm:$0xff]
        %v2321 = vld [vmem:[%s187 + $0xb08] sm:$0xff]
        %v2322 = vld [vmem:[%s187 + $0xb10] sm:$0xff]
        %v2323 = vld [vmem:[%s187 + $0xb18] sm:$0xff]
        %v2324 = vld [vmem:[%s187 + $0xb20] sm:$0xff]
        %v2325 = vld [vmem:[%s187 + $0xb28] sm:$0xff]
        %v2326 = vld [vmem:[%s187 + $0xb30] sm:$0xff]
        %v2327 = vld [vmem:[%s187 + $0xb38] sm:$0xff]
        %v2328 = vld [vmem:[%s187 + $0xb40] sm:$0xff]
        %v2329 = vld [vmem:[%s187 + $0xb48] sm:$0xff]
        %v2330 = vld [vmem:[%s187 + $0xb50] sm:$0xff]
        %v2331 = vld [vmem:[%s187 + $0xb58] sm:$0xff]
        %v2332 = vld [vmem:[%s187 + $0xb60] sm:$0xff]
        %v2333 = vld [vmem:[%s187 + $0xb68] sm:$0xff]
        %v2334 = vld [vmem:[%s187 + $0xb70] sm:$0xff]
        %v2335 = vld [vmem:[%s187 + $0xb78] sm:$0xff]
        %v2336 = vld [vmem:[%s187 + $0xb80] sm:$0xff]
        %v2337 = vld [vmem:[%s187 + $0xb88] sm:$0xff]
        %v2338 = vld [vmem:[%s187 + $0xb90] sm:$0xff]
        %v2339 = vld [vmem:[%s187 + $0xb98] sm:$0xff]
        %v2340 = vld [vmem:[%s187 + $0xba0] sm:$0xff]
        %v2341 = vld [vmem:[%s187 + $0xba8] sm:$0xff]
        %v2342 = vld [vmem:[%s187 + $0xbb0] sm:$0xff]
        %v2343 = vld [vmem:[%s187 + $0xbb8] sm:$0xff]
        %v2344 = vld [vmem:[%s187 + $0xbc0] sm:$0xff]
        %v2345 = vld [vmem:[%s187 + $0xbc8] sm:$0xff]
        %v2346 = vld [vmem:[%s187 + $0xbd0] sm:$0xff]
        %v2347 = vld [vmem:[%s187 + $0xbd8] sm:$0xff]
        %v2348 = vld [vmem:[%s187 + $0xbe0] sm:$0xff]
        %v2349 = vld [vmem:[%s187 + $0xbe8] sm:$0xff]
        %v2350 = vld [vmem:[%s187 + $0xbf0] sm:$0xff]
        %v2351 = vld [vmem:[%s187 + $0xbf8] sm:$0xff]
        %v2352 = vld [vmem:[%s187 + $0xc00] sm:$0xff]
        %v2353 = vld [vmem:[%s187 + $0xc08] sm:$0xff]
        %v2354 = vld [vmem:[%s187 + $0xc10] sm:$0xff]
        %v2355 = vld [vmem:[%s187 + $0xc18] sm:$0xff]
        %v2356 = vld [vmem:[%s187 + $0xc20] sm:$0xff]
        %v2357 = vld [vmem:[%s187 + $0xc28] sm:$0xff]
        %v2358 = vld [vmem:[%s187 + $0xc30] sm:$0xff]
        %v2359 = vld [vmem:[%s187 + $0xc38] sm:$0xff]
        %v2360 = vld [vmem:[%s187 + $0xc40] sm:$0xff]
        %v2361 = vld [vmem:[%s187 + $0xc48] sm:$0xff]
        %v2362 = vld [vmem:[%s187 + $0xc50] sm:$0xff]
        %v2363 = vld [vmem:[%s187 + $0xc58] sm:$0xff]
        %v2364 = vld [vmem:[%s187 + $0xc60] sm:$0xff]
        %v2365 = vld [vmem:[%s187 + $0xc68] sm:$0xff]
        %v2366 = vld [vmem:[%s187 + $0xc70] sm:$0xff]
        %v2367 = vld [vmem:[%s187 + $0xc78] sm:$0xff]
        %v2368 = vld [vmem:[%s187 + $0xc80] sm:$0xff]
        %v2369 = vld [vmem:[%s187 + $0xc88] sm:$0xff]
        %v2370 = vld [vmem:[%s187 + $0xc90] sm:$0xff]
        %v2371 = vld [vmem:[%s187 + $0xc98] sm:$0xff]
        %v2372 = vld [vmem:[%s187 + $0xca0] sm:$0xff]
        %v2373 = vld [vmem:[%s187 + $0xca8] sm:$0xff]
        %v2374 = vld [vmem:[%s187 + $0xcb0] sm:$0xff]
        %v2375 = vld [vmem:[%s187 + $0xcb8] sm:$0xff]
        %v2376 = vld [vmem:[%s187 + $0xcc0] sm:$0xff]
        %v2377 = vld [vmem:[%s187 + $0xcc8] sm:$0xff]
        %v2378 = vld [vmem:[%s187 + $0xcd0] sm:$0xff]
        %v2379 = vld [vmem:[%s187 + $0xcd8] sm:$0xff]
        %v2380 = vld [vmem:[%s187 + $0xce0] sm:$0xff]
        %v2381 = vld [vmem:[%s187 + $0xce8] sm:$0xff]
        %v2382 = vld [vmem:[%s187 + $0xcf0] sm:$0xff]
        %v2383 = vld [vmem:[%s187 + $0xcf8] sm:$0xff]
        %v2384 = vld [vmem:[%s187 + $0xd00] sm:$0xff]
        %v2385 = vld [vmem:[%s187 + $0xd08] sm:$0xff]
        %v2386 = vld [vmem:[%s187 + $0xd10] sm:$0xff]
        %v2387 = vld [vmem:[%s187 + $0xd18] sm:$0xff]
        %v2388 = vld [vmem:[%s187 + $0xd20] sm:$0xff]
        %v2389 = vld [vmem:[%s187 + $0xd28] sm:$0xff]
        %v2390 = vld [vmem:[%s187 + $0xd30] sm:$0xff]
        %v2391 = vld [vmem:[%s187 + $0xd38] sm:$0xff]
        %v2392 = vld [vmem:[%s187 + $0xd40] sm:$0xff]
        %v2393 = vld [vmem:[%s187 + $0xd48] sm:$0xff]
        %v2394 = vld [vmem:[%s187 + $0xd50] sm:$0xff]
        %v2395 = vld [vmem:[%s187 + $0xd58] sm:$0xff]
        %v2396 = vld [vmem:[%s187 + $0xd60] sm:$0xff]
        %v2397 = vld [vmem:[%s187 + $0xd68] sm:$0xff]
        %v2398 = vld [vmem:[%s187 + $0xd70] sm:$0xff]
        %v2399 = vld [vmem:[%s187 + $0xd78] sm:$0xff]
        %v2400 = vld [vmem:[%s187 + $0xd80] sm:$0xff]
        %v2401 = vld [vmem:[%s187 + $0xd88] sm:$0xff]
        %v2402 = vld [vmem:[%s187 + $0xd90] sm:$0xff]
        %v2403 = vld [vmem:[%s187 + $0xd98] sm:$0xff]
        %v2404 = vld [vmem:[%s187 + $0xda0] sm:$0xff]
        %v2405 = vld [vmem:[%s187 + $0xda8] sm:$0xff]
        %v2406 = vld [vmem:[%s187 + $0xdb0] sm:$0xff]
        %v2407 = vld [vmem:[%s187 + $0xdb8] sm:$0xff]
        %v2408 = vld [vmem:[%s187 + $0xdc0] sm:$0xff]
        %v2409 = vld [vmem:[%s187 + $0xdc8] sm:$0xff]
        %v2410 = vld [vmem:[%s187 + $0xdd0] sm:$0xff]
        %v2411 = vld [vmem:[%s187 + $0xdd8] sm:$0xff]
        %v2412 = vld [vmem:[%s187 + $0xde0] sm:$0xff]
        %v2413 = vld [vmem:[%s187 + $0xde8] sm:$0xff]
        %v2414 = vld [vmem:[%s187 + $0xdf0] sm:$0xff]
        %v2415 = vld [vmem:[%s187 + $0xdf8] sm:$0xff]
        %v2416 = vld [vmem:[%s187 + $0xe00] sm:$0xff]
        %v2417 = vld [vmem:[%s187 + $0xe08] sm:$0xff]
        %v2418 = vld [vmem:[%s187 + $0xe10] sm:$0xff]
        %v2419 = vld [vmem:[%s187 + $0xe18] sm:$0xff]
        %v2420 = vld [vmem:[%s187 + $0xe20] sm:$0xff]
        %v2421 = vld [vmem:[%s187 + $0xe28] sm:$0xff]
        %v2422 = vld [vmem:[%s187 + $0xe30] sm:$0xff]
        %v2423 = vld [vmem:[%s187 + $0xe38] sm:$0xff]
        %v2424 = vld [vmem:[%s187 + $0xe40] sm:$0xff]
        %v2425 = vld [vmem:[%s187 + $0xe48] sm:$0xff]
        %v2426 = vld [vmem:[%s187 + $0xe50] sm:$0xff]
        %v2427 = vld [vmem:[%s187 + $0xe58] sm:$0xff]
        %v2428 = vld [vmem:[%s187 + $0xe60] sm:$0xff]
        %v2429 = vld [vmem:[%s187 + $0xe68] sm:$0xff]
        %v2430 = vld [vmem:[%s187 + $0xe70] sm:$0xff]
        %v2431 = vld [vmem:[%s187 + $0xe78] sm:$0xff]
        %v2432 = vld [vmem:[%s187 + $0xe80] sm:$0xff]
        %v2433 = vld [vmem:[%s187 + $0xe88] sm:$0xff]
        %v2434 = vld [vmem:[%s187 + $0xe90] sm:$0xff]
        %v2435 = vld [vmem:[%s187 + $0xe98] sm:$0xff]
        %v2436 = vld [vmem:[%s187 + $0xea0] sm:$0xff]
        %v2437 = vld [vmem:[%s187 + $0xea8] sm:$0xff]
        %v2438 = vld [vmem:[%s187 + $0xeb0] sm:$0xff]
        %v2439 = vld [vmem:[%s187 + $0xeb8] sm:$0xff]
        %v2440 = vld [vmem:[%s187 + $0xec0] sm:$0xff]
        %v2441 = vld [vmem:[%s187 + $0xec8] sm:$0xff]
        %v2442 = vld [vmem:[%s187 + $0xed0] sm:$0xff]
        %v2443 = vld [vmem:[%s187 + $0xed8] sm:$0xff]
        %v2444 = vld [vmem:[%s187 + $0xee0] sm:$0xff]
        %v2445 = vld [vmem:[%s187 + $0xee8] sm:$0xff]
        %v2446 = vld [vmem:[%s187 + $0xef0] sm:$0xff]
        %v2447 = vld [vmem:[%s187 + $0xef8] sm:$0xff]
        %v2448 = vld [vmem:[%s187 + $0xf00] sm:$0xff]
        %v2449 = vld [vmem:[%s187 + $0xf08] sm:$0xff]
        %v2450 = vld [vmem:[%s187 + $0xf10] sm:$0xff]
        %v2451 = vld [vmem:[%s187 + $0xf18] sm:$0xff]
        %v2452 = vld [vmem:[%s187 + $0xf20] sm:$0xff]
        %v2453 = vld [vmem:[%s187 + $0xf28] sm:$0xff]
        %v2454 = vld [vmem:[%s187 + $0xf30] sm:$0xff]
        %v2455 = vld [vmem:[%s187 + $0xf38] sm:$0xff]
        %v2456 = vld [vmem:[%s187 + $0xf40] sm:$0xff]
        %v2457 = vld [vmem:[%s187 + $0xf48] sm:$0xff]
        %v2458 = vld [vmem:[%s187 + $0xf50] sm:$0xff]
        %v2459 = vld [vmem:[%s187 + $0xf58] sm:$0xff]
        %v2460 = vld [vmem:[%s187 + $0xf60] sm:$0xff]
        %v2461 = vld [vmem:[%s187 + $0xf68] sm:$0xff]
        %v2462 = vld [vmem:[%s187 + $0xf70] sm:$0xff]
        %v2463 = vld [vmem:[%s187 + $0xf78] sm:$0xff]
        %v2464 = vld [vmem:[%s187 + $0xf80] sm:$0xff]
        %v2465 = vld [vmem:[%s187 + $0xf88] sm:$0xff]
        %v2466 = vld [vmem:[%s187 + $0xf90] sm:$0xff]
        %v2467 = vld [vmem:[%s187 + $0xf98] sm:$0xff]
        %v2468 = vld [vmem:[%s187 + $0xfa0] sm:$0xff]
        %v2469 = vld [vmem:[%s187 + $0xfa8] sm:$0xff]
        %v2470 = vld [vmem:[%s187 + $0xfb0] sm:$0xff]
        %v2471 = vld [vmem:[%s187 + $0xfb8] sm:$0xff]
        %v2472 = vld [vmem:[%s187 + $0xfc0] sm:$0xff]
        %v2473 = vld [vmem:[%s187 + $0xfc8] sm:$0xff]
        %v2474 = vld [vmem:[%s187 + $0xfd0] sm:$0xff]
        %v2475 = vld [vmem:[%s187 + $0xfd8] sm:$0xff]
        %v2476 = vld [vmem:[%s187 + $0xfe0] sm:$0xff]
        %v2477 = vld [vmem:[%s187 + $0xfe8] sm:$0xff]
        %v2478 = vld [vmem:[%s187 + $0xff0] sm:$0xff]
        %v2479 = vld [vmem:[%s187 + $0xff8] sm:$0xff]
        %v2480 = vld [vmem:[%s187 + $0x1000] sm:$0xff]
        %v2481 = vld [vmem:[%s187 + $0x1008] sm:$0xff]
        %v2482 = vld [vmem:[%s187 + $0x1010] sm:$0xff]
        %v2483 = vld [vmem:[%s187 + $0x1018] sm:$0xff]
        %v2484 = vld [vmem:[%s187 + $0x1020] sm:$0xff]
        %v2485 = vld [vmem:[%s187 + $0x1028] sm:$0xff]
        %v2486 = vld [vmem:[%s187 + $0x1030] sm:$0xff]
        %v2487 = vld [vmem:[%s187 + $0x1038] sm:$0xff]
        %v2488 = vld [vmem:[%s187 + $0x1040] sm:$0xff]
        %v2489 = vld [vmem:[%s187 + $0x1048] sm:$0xff]
        %v2490 = vld [vmem:[%s187 + $0x1050] sm:$0xff]
        %v2491 = vld [vmem:[%s187 + $0x1058] sm:$0xff]
        %v2492 = vld [vmem:[%s187 + $0x1060] sm:$0xff]
        %v2493 = vld [vmem:[%s187 + $0x1068] sm:$0xff]
        %v2494 = vld [vmem:[%s187 + $0x1070] sm:$0xff]
        %v2495 = vld [vmem:[%s187 + $0x1078] sm:$0xff]
        %v2496 = vld [vmem:[%s187 + $0x1080] sm:$0xff]
        %v2497 = vld [vmem:[%s187 + $0x1088] sm:$0xff]
        %v2498 = vld [vmem:[%s187 + $0x1090] sm:$0xff]
        %v2499 = vld [vmem:[%s187 + $0x1098] sm:$0xff]
        %v2500 = vld [vmem:[%s187 + $0x10a0] sm:$0xff]
        %v2501 = vld [vmem:[%s187 + $0x10a8] sm:$0xff]
        %v2502 = vld [vmem:[%s187 + $0x10b0] sm:$0xff]
        %v2503 = vld [vmem:[%s187 + $0x10b8] sm:$0xff]
        %v2504 = vld [vmem:[%s187 + $0x10c0] sm:$0xff]
        %v2505 = vld [vmem:[%s187 + $0x10c8] sm:$0xff]
        %v2506 = vld [vmem:[%s187 + $0x10d0] sm:$0xff]
        %v2507 = vld [vmem:[%s187 + $0x10d8] sm:$0xff]
        %v2508 = vld [vmem:[%s187 + $0x10e0] sm:$0xff]
        %v2509 = vld [vmem:[%s187 + $0x10e8] sm:$0xff]
        %v2510 = vld [vmem:[%s187 + $0x10f0] sm:$0xff]
        %v2511 = vld [vmem:[%s187 + $0x10f8] sm:$0xff]
        %v2512 = vld [vmem:[%s187 + $0x1100] sm:$0xff]
        %v2513 = vld [vmem:[%s187 + $0x1108] sm:$0xff]
        %v2514 = vld [vmem:[%s187 + $0x1110] sm:$0xff]
        %v2515 = vld [vmem:[%s187 + $0x1118] sm:$0xff]
        %v2516 = vld [vmem:[%s187 + $0x1120] sm:$0xff]
        %v2517 = vld [vmem:[%s187 + $0x1128] sm:$0xff]
        %v2518 = vld [vmem:[%s187 + $0x1130] sm:$0xff]
        %v2519 = vld [vmem:[%s187 + $0x1138] sm:$0xff]
        %v2520 = vld [vmem:[%s187 + $0x1140] sm:$0xff]
        %v2521 = vld [vmem:[%s187 + $0x1148] sm:$0xff]
        %v2522 = vld [vmem:[%s187 + $0x1150] sm:$0xff]
        %v2523 = vld [vmem:[%s187 + $0x1158] sm:$0xff]
        %v2524 = vld [vmem:[%s187 + $0x1160] sm:$0xff]
        %v2525 = vld [vmem:[%s187 + $0x1168] sm:$0xff]
        %v2526 = vld [vmem:[%s187 + $0x1170] sm:$0xff]
        %v2527 = vld [vmem:[%s187 + $0x1178] sm:$0xff]
        %v2528 = vld [vmem:[%s187 + $0x1180] sm:$0xff]
        %v2529 = vld [vmem:[%s187 + $0x1188] sm:$0xff]
        %v2530 = vld [vmem:[%s187 + $0x1190] sm:$0xff]
        %v2531 = vld [vmem:[%s187 + $0x1198] sm:$0xff]
        %v2532 = vld [vmem:[%s187 + $0x11a0] sm:$0xff]
        %v2533 = vld [vmem:[%s187 + $0x11a8] sm:$0xff]
        %v2534 = vld [vmem:[%s187 + $0x11b0] sm:$0xff]
        %v2535 = vld [vmem:[%s187 + $0x11b8] sm:$0xff]
        %v2536 = vld [vmem:[%s187 + $0x11c0] sm:$0xff]
        %v2537 = vld [vmem:[%s187 + $0x11c8] sm:$0xff]
        %v2538 = vld [vmem:[%s187 + $0x11d0] sm:$0xff]
        %v2539 = vld [vmem:[%s187 + $0x11d8] sm:$0xff]
        %v2540 = vld [vmem:[%s187 + $0x11e0] sm:$0xff]
        %v2541 = vld [vmem:[%s187 + $0x11e8] sm:$0xff]
        %v2542 = vld [vmem:[%s187 + $0x11f0] sm:$0xff]
        %v2543 = vld [vmem:[%s187 + $0x11f8] sm:$0xff]
        %v2544 = vld [vmem:[%s196] sm:$0xf]
        %v2546 = vlaneseq
        %v2547 = vshrl.u32 %v2546, 7
        %v2548 = vsub.s32 0, %v2547
        %v2549 = vrot.slane %v2544, %v2548
        %v2550 = vlaneseq
        %v2551 = vshrl.u32 %v2550, 7
        %v2552 = vsub.s32 1, %v2551
        %v2553 = vrot.slane %v2544, %v2552
        %v2554 = vlaneseq
        %v2555 = vshrl.u32 %v2554, 7
        %v2556 = vsub.s32 2, %v2555
        %v2557 = vrot.slane %v2544, %v2556
        %v2558 = vlaneseq
        %v2559 = vshrl.u32 %v2558, 7
        %v2560 = vsub.s32 3, %v2559
        %v2561 = vrot.slane %v2544, %v2560
        %v3142 = vunpack.c.l.b16 %v1968
        %v3143 = vunpack.c.h.b16 %v1968
        %v3144 = vunpack.c.l.b16 %v1969
        %v3145 = vunpack.c.h.b16 %v1969
        %v3146 = vunpack.c.l.b16 %v1970
        %v3147 = vunpack.c.h.b16 %v1970
        %v3148 = vunpack.c.l.b16 %v1971
        %v3149 = vunpack.c.h.b16 %v1971
        %v3150 = vunpack.c.l.b16 %v1972
        %v3151 = vunpack.c.h.b16 %v1972
        %v3152 = vunpack.c.l.b16 %v1973
        %v3153 = vunpack.c.h.b16 %v1973
        %v3154 = vunpack.c.l.b16 %v1974
        %v3155 = vunpack.c.h.b16 %v1974
        %v3156 = vunpack.c.l.b16 %v1975
        %v3157 = vunpack.c.h.b16 %v1975
        %v3158 = vunpack.c.l.b16 %v1976
        %v3159 = vunpack.c.h.b16 %v1976
        %v3160 = vunpack.c.l.b16 %v1977
        %v3161 = vunpack.c.h.b16 %v1977
        %v3162 = vunpack.c.l.b16 %v1978
        %v3163 = vunpack.c.h.b16 %v1978
        %v3164 = vunpack.c.l.b16 %v1979
        %v3165 = vunpack.c.h.b16 %v1979
        %v3166 = vunpack.c.l.b16 %v1980
        %v3167 = vunpack.c.h.b16 %v1980
        %v3168 = vunpack.c.l.b16 %v1981
        %v3169 = vunpack.c.h.b16 %v1981
        %v3170 = vunpack.c.l.b16 %v1982
        %v3171 = vunpack.c.h.b16 %v1982
        %v3172 = vunpack.c.l.b16 %v1983
        %v3173 = vunpack.c.h.b16 %v1983
        %v3174 = vunpack.c.l.b16 %v1984
        %v3175 = vunpack.c.h.b16 %v1984
        %v3176 = vunpack.c.l.b16 %v1985
        %v3177 = vunpack.c.h.b16 %v1985
        %v3178 = vunpack.c.l.b16 %v1986
        %v3179 = vunpack.c.h.b16 %v1986
        %v3180 = vunpack.c.l.b16 %v1987
        %v3181 = vunpack.c.h.b16 %v1987
        %v3182 = vunpack.c.l.b16 %v1988
        %v3183 = vunpack.c.h.b16 %v1988
        %v3184 = vunpack.c.l.b16 %v1989
        %v3185 = vunpack.c.h.b16 %v1989
        %v3186 = vunpack.c.l.b16 %v1990
        %v3187 = vunpack.c.h.b16 %v1990
        %v3188 = vunpack.c.l.b16 %v1991
        %v3189 = vunpack.c.h.b16 %v1991
        %v3190 = vunpack.c.l.b16 %v1992
        %v3191 = vunpack.c.h.b16 %v1992
        %v3192 = vunpack.c.l.b16 %v1993
        %v3193 = vunpack.c.h.b16 %v1993
        %v3194 = vunpack.c.l.b16 %v1994
        %v3195 = vunpack.c.h.b16 %v1994
        %v3196 = vunpack.c.l.b16 %v1995
        %v3197 = vunpack.c.h.b16 %v1995
        %v3198 = vunpack.c.l.b16 %v1996
        %v3199 = vunpack.c.h.b16 %v1996
        %v3200 = vunpack.c.l.b16 %v1997
        %v3201 = vunpack.c.h.b16 %v1997
        %v3202 = vunpack.c.l.b16 %v1998
        %v3203 = vunpack.c.h.b16 %v1998
        %v3204 = vunpack.c.l.b16 %v1999
        %v3205 = vunpack.c.h.b16 %v1999
        %v3206 = vunpack.c.l.b16 %v2000
        %v3207 = vunpack.c.h.b16 %v2000
        %v3208 = vunpack.c.l.b16 %v2001
        %v3209 = vunpack.c.h.b16 %v2001
        %v3210 = vunpack.c.l.b16 %v2002
        %v3211 = vunpack.c.h.b16 %v2002
        %v3212 = vunpack.c.l.b16 %v2003
        %v3213 = vunpack.c.h.b16 %v2003
        %v3214 = vunpack.c.l.b16 %v2004
        %v3215 = vunpack.c.h.b16 %v2004
        %v3216 = vunpack.c.l.b16 %v2005
        %v3217 = vunpack.c.h.b16 %v2005
        %v3218 = vunpack.c.l.b16 %v2006
        %v3219 = vunpack.c.h.b16 %v2006
        %v3220 = vunpack.c.l.b16 %v2007
        %v3221 = vunpack.c.h.b16 %v2007
        %v3222 = vunpack.c.l.b16 %v2008
        %v3223 = vunpack.c.h.b16 %v2008
        %v3224 = vunpack.c.l.b16 %v2009
        %v3225 = vunpack.c.h.b16 %v2009
        %v3226 = vunpack.c.l.b16 %v2010
        %v3227 = vunpack.c.h.b16 %v2010
        %v3228 = vunpack.c.l.b16 %v2011
        %v3229 = vunpack.c.h.b16 %v2011
        %v3230 = vunpack.c.l.b16 %v2012
        %v3231 = vunpack.c.h.b16 %v2012
        %v3232 = vunpack.c.l.b16 %v2013
        %v3233 = vunpack.c.h.b16 %v2013
        %v3234 = vunpack.c.l.b16 %v2014
        %v3235 = vunpack.c.h.b16 %v2014
        %v3236 = vunpack.c.l.b16 %v2015
        %v3237 = vunpack.c.h.b16 %v2015
        %v3238 = vunpack.c.l.b16 %v2016
        %v3239 = vunpack.c.h.b16 %v2016
        %v3240 = vunpack.c.l.b16 %v2017
        %v3241 = vunpack.c.h.b16 %v2017
        %v3242 = vunpack.c.l.b16 %v2018
        %v3243 = vunpack.c.h.b16 %v2018
        %v3244 = vunpack.c.l.b16 %v2019
        %v3245 = vunpack.c.h.b16 %v2019
        %v3246 = vunpack.c.l.b16 %v2020
        %v3247 = vunpack.c.h.b16 %v2020
        %v3248 = vunpack.c.l.b16 %v2021
        %v3249 = vunpack.c.h.b16 %v2021
        %v3250 = vunpack.c.l.b16 %v2022
        %v3251 = vunpack.c.h.b16 %v2022
        %v3252 = vunpack.c.l.b16 %v2023
        %v3253 = vunpack.c.h.b16 %v2023
        %v3254 = vunpack.c.l.b16 %v2024
        %v3255 = vunpack.c.h.b16 %v2024
        %v3256 = vunpack.c.l.b16 %v2025
        %v3257 = vunpack.c.h.b16 %v2025
        %v3258 = vunpack.c.l.b16 %v2026
        %v3259 = vunpack.c.h.b16 %v2026
        %v3260 = vunpack.c.l.b16 %v2027
        %v3261 = vunpack.c.h.b16 %v2027
        %v3262 = vunpack.c.l.b16 %v2028
        %v3263 = vunpack.c.h.b16 %v2028
        %v3264 = vunpack.c.l.b16 %v2029
        %v3265 = vunpack.c.h.b16 %v2029
        %v3266 = vunpack.c.l.b16 %v2030
        %v3267 = vunpack.c.h.b16 %v2030
        %v3268 = vunpack.c.l.b16 %v2031
        %v3269 = vunpack.c.h.b16 %v2031
        %v3270 = vunpack.c.l.b16 %v2032
        %v3271 = vunpack.c.h.b16 %v2032
        %v3272 = vunpack.c.l.b16 %v2033
        %v3273 = vunpack.c.h.b16 %v2033
        %v3274 = vunpack.c.l.b16 %v2034
        %v3275 = vunpack.c.h.b16 %v2034
        %v3276 = vunpack.c.l.b16 %v2035
        %v3277 = vunpack.c.h.b16 %v2035
        %v3278 = vunpack.c.l.b16 %v2036
        %v3279 = vunpack.c.h.b16 %v2036
        %v3280 = vunpack.c.l.b16 %v2037
        %v3281 = vunpack.c.h.b16 %v2037
        %v3282 = vunpack.c.l.b16 %v2038
        %v3283 = vunpack.c.h.b16 %v2038
        %v3284 = vunpack.c.l.b16 %v2039
        %v3285 = vunpack.c.h.b16 %v2039
        %v3286 = vunpack.c.l.b16 %v2040
        %v3287 = vunpack.c.h.b16 %v2040
        %v3288 = vunpack.c.l.b16 %v2041
        %v3289 = vunpack.c.h.b16 %v2041
        %v3290 = vunpack.c.l.b16 %v2042
        %v3291 = vunpack.c.h.b16 %v2042
        %v3292 = vunpack.c.l.b16 %v2043
        %v3293 = vunpack.c.h.b16 %v2043
        %v3294 = vunpack.c.l.b16 %v2044
        %v3295 = vunpack.c.h.b16 %v2044
        %v3296 = vunpack.c.l.b16 %v2045
        %v3297 = vunpack.c.h.b16 %v2045
        %v3298 = vunpack.c.l.b16 %v2046
        %v3299 = vunpack.c.h.b16 %v2046
        %v3300 = vunpack.c.l.b16 %v2047
        %v3301 = vunpack.c.h.b16 %v2047
        %v3302 = vunpack.c.l.b16 %v2048
        %v3303 = vunpack.c.h.b16 %v2048
        %v3304 = vunpack.c.l.b16 %v2049
        %v3305 = vunpack.c.h.b16 %v2049
        %v3306 = vunpack.c.l.b16 %v2050
        %v3307 = vunpack.c.h.b16 %v2050
        %v3308 = vunpack.c.l.b16 %v2051
        %v3309 = vunpack.c.h.b16 %v2051
        %v3310 = vunpack.c.l.b16 %v2052
        %v3311 = vunpack.c.h.b16 %v2052
        %v3312 = vunpack.c.l.b16 %v2053
        %v3313 = vunpack.c.h.b16 %v2053
        %v3314 = vunpack.c.l.b16 %v2054
        %v3315 = vunpack.c.h.b16 %v2054
        %v3316 = vunpack.c.l.b16 %v2055
        %v3317 = vunpack.c.h.b16 %v2055
        %v3318 = vunpack.c.l.b16 %v2056
        %v3319 = vunpack.c.h.b16 %v2056
        %v3320 = vunpack.c.l.b16 %v2057
        %v3321 = vunpack.c.h.b16 %v2057
        %v3322 = vunpack.c.l.b16 %v2058
        %v3323 = vunpack.c.h.b16 %v2058
        %v3324 = vunpack.c.l.b16 %v2059
        %v3325 = vunpack.c.h.b16 %v2059
        %v3326 = vunpack.c.l.b16 %v2060
        %v3327 = vunpack.c.h.b16 %v2060
        %v3328 = vunpack.c.l.b16 %v2061
        %v3329 = vunpack.c.h.b16 %v2061
        %v3330 = vunpack.c.l.b16 %v2062
        %v3331 = vunpack.c.h.b16 %v2062
        %v3332 = vunpack.c.l.b16 %v2063
        %v3333 = vunpack.c.h.b16 %v2063
        %v3334 = vunpack.c.l.b16 %v2064
        %v3335 = vunpack.c.h.b16 %v2064
        %v3336 = vunpack.c.l.b16 %v2065
        %v3337 = vunpack.c.h.b16 %v2065
        %v3338 = vunpack.c.l.b16 %v2066
        %v3339 = vunpack.c.h.b16 %v2066
        %v3340 = vunpack.c.l.b16 %v2067
        %v3341 = vunpack.c.h.b16 %v2067
        %v3342 = vunpack.c.l.b16 %v2068
        %v3343 = vunpack.c.h.b16 %v2068
        %v3344 = vunpack.c.l.b16 %v2069
        %v3345 = vunpack.c.h.b16 %v2069
        %v3346 = vunpack.c.l.b16 %v2070
        %v3347 = vunpack.c.h.b16 %v2070
        %v3348 = vunpack.c.l.b16 %v2071
        %v3349 = vunpack.c.h.b16 %v2071
        %v3350 = vunpack.c.l.b16 %v2072
        %v3351 = vunpack.c.h.b16 %v2072
        %v3352 = vunpack.c.l.b16 %v2073
        %v3353 = vunpack.c.h.b16 %v2073
        %v3354 = vunpack.c.l.b16 %v2074
        %v3355 = vunpack.c.h.b16 %v2074
        %v3356 = vunpack.c.l.b16 %v2075
        %v3357 = vunpack.c.h.b16 %v2075
        %v3358 = vunpack.c.l.b16 %v2076
        %v3359 = vunpack.c.h.b16 %v2076
        %v3360 = vunpack.c.l.b16 %v2077
        %v3361 = vunpack.c.h.b16 %v2077
        %v3362 = vunpack.c.l.b16 %v2078
        %v3363 = vunpack.c.h.b16 %v2078
        %v3364 = vunpack.c.l.b16 %v2079
        %v3365 = vunpack.c.h.b16 %v2079
        %v3366 = vunpack.c.l.b16 %v2080
        %v3367 = vunpack.c.h.b16 %v2080
        %v3368 = vunpack.c.l.b16 %v2081
        %v3369 = vunpack.c.h.b16 %v2081
        %v3370 = vunpack.c.l.b16 %v2082
        %v3371 = vunpack.c.h.b16 %v2082
        %v3372 = vunpack.c.l.b16 %v2083
        %v3373 = vunpack.c.h.b16 %v2083
        %v3374 = vunpack.c.l.b16 %v2084
        %v3375 = vunpack.c.h.b16 %v2084
        %v3376 = vunpack.c.l.b16 %v2085
        %v3377 = vunpack.c.h.b16 %v2085
        %v3378 = vunpack.c.l.b16 %v2086
        %v3379 = vunpack.c.h.b16 %v2086
        %v3380 = vunpack.c.l.b16 %v2087
        %v3381 = vunpack.c.h.b16 %v2087
        %v3382 = vunpack.c.l.b16 %v2088
        %v3383 = vunpack.c.h.b16 %v2088
        %v3384 = vunpack.c.l.b16 %v2089
        %v3385 = vunpack.c.h.b16 %v2089
        %v3386 = vunpack.c.l.b16 %v2090
        %v3387 = vunpack.c.h.b16 %v2090
        %v3388 = vunpack.c.l.b16 %v2091
        %v3389 = vunpack.c.h.b16 %v2091
        %v3390 = vunpack.c.l.b16 %v2092
        %v3391 = vunpack.c.h.b16 %v2092
        %v3392 = vunpack.c.l.b16 %v2093
        %v3393 = vunpack.c.h.b16 %v2093
        %v3394 = vunpack.c.l.b16 %v2094
        %v3395 = vunpack.c.h.b16 %v2094
        %v3396 = vunpack.c.l.b16 %v2095
        %v3397 = vunpack.c.h.b16 %v2095
        %v3398 = vunpack.c.l.b16 %v2096
        %v3399 = vunpack.c.h.b16 %v2096
        %v3400 = vunpack.c.l.b16 %v2097
        %v3401 = vunpack.c.h.b16 %v2097
        %v3402 = vunpack.c.l.b16 %v2098
        %v3403 = vunpack.c.h.b16 %v2098
        %v3404 = vunpack.c.l.b16 %v2099
        %v3405 = vunpack.c.h.b16 %v2099
        %v3406 = vunpack.c.l.b16 %v2100
        %v3407 = vunpack.c.h.b16 %v2100
        %v3408 = vunpack.c.l.b16 %v2101
        %v3409 = vunpack.c.h.b16 %v2101
        %v3410 = vunpack.c.l.b16 %v2102
        %v3411 = vunpack.c.h.b16 %v2102
        %v3412 = vunpack.c.l.b16 %v2103
        %v3413 = vunpack.c.h.b16 %v2103
        %v3414 = vunpack.c.l.b16 %v2104
        %v3415 = vunpack.c.h.b16 %v2104
        %v3416 = vunpack.c.l.b16 %v2105
        %v3417 = vunpack.c.h.b16 %v2105
        %v3418 = vunpack.c.l.b16 %v2106
        %v3419 = vunpack.c.h.b16 %v2106
        %v3420 = vunpack.c.l.b16 %v2107
        %v3421 = vunpack.c.h.b16 %v2107
        %v3422 = vunpack.c.l.b16 %v2108
        %v3423 = vunpack.c.h.b16 %v2108
        %v3424 = vunpack.c.l.b16 %v2109
        %v3425 = vunpack.c.h.b16 %v2109
        %v3426 = vunpack.c.l.b16 %v2110
        %v3427 = vunpack.c.h.b16 %v2110
        %v3428 = vunpack.c.l.b16 %v2111
        %v3429 = vunpack.c.h.b16 %v2111
        %v3430 = vunpack.c.l.b16 %v2112
        %v3431 = vunpack.c.h.b16 %v2112
        %v3432 = vunpack.c.l.b16 %v2113
        %v3433 = vunpack.c.h.b16 %v2113
        %v3434 = vunpack.c.l.b16 %v2114
        %v3435 = vunpack.c.h.b16 %v2114
        %v3436 = vunpack.c.l.b16 %v2115
        %v3437 = vunpack.c.h.b16 %v2115
        %v3438 = vunpack.c.l.b16 %v2116
        %v3439 = vunpack.c.h.b16 %v2116
        %v3440 = vunpack.c.l.b16 %v2117
        %v3441 = vunpack.c.h.b16 %v2117
        %v3442 = vunpack.c.l.b16 %v2118
        %v3443 = vunpack.c.h.b16 %v2118
        %v3444 = vunpack.c.l.b16 %v2119
        %v3445 = vunpack.c.h.b16 %v2119
        %v3446 = vunpack.c.l.b16 %v2120
        %v3447 = vunpack.c.h.b16 %v2120
        %v3448 = vunpack.c.l.b16 %v2121
        %v3449 = vunpack.c.h.b16 %v2121
        %v3450 = vunpack.c.l.b16 %v2122
        %v3451 = vunpack.c.h.b16 %v2122
        %v3452 = vunpack.c.l.b16 %v2123
        %v3453 = vunpack.c.h.b16 %v2123
        %v3454 = vunpack.c.l.b16 %v2124
        %v3455 = vunpack.c.h.b16 %v2124
        %v3456 = vunpack.c.l.b16 %v2125
        %v3457 = vunpack.c.h.b16 %v2125
        %v3458 = vunpack.c.l.b16 %v2126
        %v3459 = vunpack.c.h.b16 %v2126
        %v3460 = vunpack.c.l.b16 %v2127
        %v3461 = vunpack.c.h.b16 %v2127
        %v3462 = vunpack.c.l.b16 %v2128
        %v3463 = vunpack.c.h.b16 %v2128
        %v3464 = vunpack.c.l.b16 %v2129
        %v3465 = vunpack.c.h.b16 %v2129
        %v3466 = vunpack.c.l.b16 %v2130
        %v3467 = vunpack.c.h.b16 %v2130
        %v3468 = vunpack.c.l.b16 %v2131
        %v3469 = vunpack.c.h.b16 %v2131
        %v3470 = vunpack.c.l.b16 %v2132
        %v3471 = vunpack.c.h.b16 %v2132
        %v3472 = vunpack.c.l.b16 %v2133
        %v3473 = vunpack.c.h.b16 %v2133
        %v3474 = vunpack.c.l.b16 %v2134
        %v3475 = vunpack.c.h.b16 %v2134
        %v3476 = vunpack.c.l.b16 %v2135
        %v3477 = vunpack.c.h.b16 %v2135
        %v3478 = vunpack.c.l.b16 %v2136
        %v3479 = vunpack.c.h.b16 %v2136
        %v3480 = vunpack.c.l.b16 %v2137
        %v3481 = vunpack.c.h.b16 %v2137
        %v3482 = vunpack.c.l.b16 %v2138
        %v3483 = vunpack.c.h.b16 %v2138
        %v3484 = vunpack.c.l.b16 %v2139
        %v3485 = vunpack.c.h.b16 %v2139
        %v3486 = vunpack.c.l.b16 %v2140
        %v3487 = vunpack.c.h.b16 %v2140
        %v3488 = vunpack.c.l.b16 %v2141
        %v3489 = vunpack.c.h.b16 %v2141
        %v3490 = vunpack.c.l.b16 %v2142
        %v3491 = vunpack.c.h.b16 %v2142
        %v3492 = vunpack.c.l.b16 %v2143
        %v3493 = vunpack.c.h.b16 %v2143
        %v3494 = vunpack.c.l.b16 %v2144
        %v3495 = vunpack.c.h.b16 %v2144
        %v3496 = vunpack.c.l.b16 %v2145
        %v3497 = vunpack.c.h.b16 %v2145
        %v3498 = vunpack.c.l.b16 %v2146
        %v3499 = vunpack.c.h.b16 %v2146
        %v3500 = vunpack.c.l.b16 %v2147
        %v3501 = vunpack.c.h.b16 %v2147
        %v3502 = vunpack.c.l.b16 %v2148
        %v3503 = vunpack.c.h.b16 %v2148
        %v3504 = vunpack.c.l.b16 %v2149
        %v3505 = vunpack.c.h.b16 %v2149
        %v3506 = vunpack.c.l.b16 %v2150
        %v3507 = vunpack.c.h.b16 %v2150
        %v3508 = vunpack.c.l.b16 %v2151
        %v3509 = vunpack.c.h.b16 %v2151
        %v3510 = vunpack.c.l.b16 %v2152
        %v3511 = vunpack.c.h.b16 %v2152
        %v3512 = vunpack.c.l.b16 %v2153
        %v3513 = vunpack.c.h.b16 %v2153
        %v3514 = vunpack.c.l.b16 %v2154
        %v3515 = vunpack.c.h.b16 %v2154
        %v3516 = vunpack.c.l.b16 %v2155
        %v3517 = vunpack.c.h.b16 %v2155
        %v3518 = vunpack.c.l.b16 %v2156
        %v3519 = vunpack.c.h.b16 %v2156
        %v3520 = vunpack.c.l.b16 %v2157
        %v3521 = vunpack.c.h.b16 %v2157
        %v3522 = vunpack.c.l.b16 %v2158
        %v3523 = vunpack.c.h.b16 %v2158
        %v3524 = vunpack.c.l.b16 %v2159
        %v3525 = vunpack.c.h.b16 %v2159
        %v3526 = vunpack.c.l.b16 %v2160
        %v3527 = vunpack.c.h.b16 %v2160
        %v3528 = vunpack.c.l.b16 %v2161
        %v3529 = vunpack.c.h.b16 %v2161
        %v3530 = vunpack.c.l.b16 %v2162
        %v3531 = vunpack.c.h.b16 %v2162
        %v3532 = vunpack.c.l.b16 %v2163
        %v3533 = vunpack.c.h.b16 %v2163
        %v3534 = vunpack.c.l.b16 %v2164
        %v3535 = vunpack.c.h.b16 %v2164
        %v3536 = vunpack.c.l.b16 %v2165
        %v3537 = vunpack.c.h.b16 %v2165
        %v3538 = vunpack.c.l.b16 %v2166
        %v3539 = vunpack.c.h.b16 %v2166
        %v3540 = vunpack.c.l.b16 %v2167
        %v3541 = vunpack.c.h.b16 %v2167
        %v3542 = vunpack.c.l.b16 %v2168
        %v3543 = vunpack.c.h.b16 %v2168
        %v3544 = vunpack.c.l.b16 %v2169
        %v3545 = vunpack.c.h.b16 %v2169
        %v3546 = vunpack.c.l.b16 %v2170
        %v3547 = vunpack.c.h.b16 %v2170
        %v3548 = vunpack.c.l.b16 %v2171
        %v3549 = vunpack.c.h.b16 %v2171
        %v3550 = vunpack.c.l.b16 %v2172
        %v3551 = vunpack.c.h.b16 %v2172
        %v3552 = vunpack.c.l.b16 %v2173
        %v3553 = vunpack.c.h.b16 %v2173
        %v3554 = vunpack.c.l.b16 %v2174
        %v3555 = vunpack.c.h.b16 %v2174
        %v3556 = vunpack.c.l.b16 %v2175
        %v3557 = vunpack.c.h.b16 %v2175
        %v3558 = vunpack.c.l.b16 %v2176
        %v3559 = vunpack.c.h.b16 %v2176
        %v3560 = vunpack.c.l.b16 %v2177
        %v3561 = vunpack.c.h.b16 %v2177
        %v3562 = vunpack.c.l.b16 %v2178
        %v3563 = vunpack.c.h.b16 %v2178
        %v3564 = vunpack.c.l.b16 %v2179
        %v3565 = vunpack.c.h.b16 %v2179
        %v3566 = vunpack.c.l.b16 %v2180
        %v3567 = vunpack.c.h.b16 %v2180
        %v3568 = vunpack.c.l.b16 %v2181
        %v3569 = vunpack.c.h.b16 %v2181
        %v3570 = vunpack.c.l.b16 %v2182
        %v3571 = vunpack.c.h.b16 %v2182
        %v3572 = vunpack.c.l.b16 %v2183
        %v3573 = vunpack.c.h.b16 %v2183
        %v3574 = vunpack.c.l.b16 %v2184
        %v3575 = vunpack.c.h.b16 %v2184
        %v3576 = vunpack.c.l.b16 %v2185
        %v3577 = vunpack.c.h.b16 %v2185
        %v3578 = vunpack.c.l.b16 %v2186
        %v3579 = vunpack.c.h.b16 %v2186
        %v3580 = vunpack.c.l.b16 %v2187
        %v3581 = vunpack.c.h.b16 %v2187
        %v3582 = vunpack.c.l.b16 %v2188
        %v3583 = vunpack.c.h.b16 %v2188
        %v3584 = vunpack.c.l.b16 %v2189
        %v3585 = vunpack.c.h.b16 %v2189
        %v3586 = vunpack.c.l.b16 %v2190
        %v3587 = vunpack.c.h.b16 %v2190
        %v3588 = vunpack.c.l.b16 %v2191
        %v3589 = vunpack.c.h.b16 %v2191
        %v3590 = vunpack.c.l.b16 %v2192
        %v3591 = vunpack.c.h.b16 %v2192
        %v3592 = vunpack.c.l.b16 %v2193
        %v3593 = vunpack.c.h.b16 %v2193
        %v3594 = vunpack.c.l.b16 %v2194
        %v3595 = vunpack.c.h.b16 %v2194
        %v3596 = vunpack.c.l.b16 %v2195
        %v3597 = vunpack.c.h.b16 %v2195
        %v3598 = vunpack.c.l.b16 %v2196
        %v3599 = vunpack.c.h.b16 %v2196
        %v3600 = vunpack.c.l.b16 %v2197
        %v3601 = vunpack.c.h.b16 %v2197
        %v3602 = vunpack.c.l.b16 %v2198
        %v3603 = vunpack.c.h.b16 %v2198
        %v3604 = vunpack.c.l.b16 %v2199
        %v3605 = vunpack.c.h.b16 %v2199
        %v3606 = vunpack.c.l.b16 %v2200
        %v3607 = vunpack.c.h.b16 %v2200
        %v3608 = vunpack.c.l.b16 %v2201
        %v3609 = vunpack.c.h.b16 %v2201
        %v3610 = vunpack.c.l.b16 %v2202
        %v3611 = vunpack.c.h.b16 %v2202
        %v3612 = vunpack.c.l.b16 %v2203
        %v3613 = vunpack.c.h.b16 %v2203
        %v3614 = vunpack.c.l.b16 %v2204
        %v3615 = vunpack.c.h.b16 %v2204
        %v3616 = vunpack.c.l.b16 %v2205
        %v3617 = vunpack.c.h.b16 %v2205
        %v3618 = vunpack.c.l.b16 %v2206
        %v3619 = vunpack.c.h.b16 %v2206
        %v3620 = vunpack.c.l.b16 %v2207
        %v3621 = vunpack.c.h.b16 %v2207
        %v3622 = vunpack.c.l.b16 %v2208
        %v3623 = vunpack.c.h.b16 %v2208
        %v3624 = vunpack.c.l.b16 %v2209
        %v3625 = vunpack.c.h.b16 %v2209
        %v3626 = vunpack.c.l.b16 %v2210
        %v3627 = vunpack.c.h.b16 %v2210
        %v3628 = vunpack.c.l.b16 %v2211
        %v3629 = vunpack.c.h.b16 %v2211
        %v3630 = vunpack.c.l.b16 %v2212
        %v3631 = vunpack.c.h.b16 %v2212
        %v3632 = vunpack.c.l.b16 %v2213
        %v3633 = vunpack.c.h.b16 %v2213
        %v3634 = vunpack.c.l.b16 %v2214
        %v3635 = vunpack.c.h.b16 %v2214
        %v3636 = vunpack.c.l.b16 %v2215
        %v3637 = vunpack.c.h.b16 %v2215
        %v3638 = vunpack.c.l.b16 %v2216
        %v3639 = vunpack.c.h.b16 %v2216
        %v3640 = vunpack.c.l.b16 %v2217
        %v3641 = vunpack.c.h.b16 %v2217
        %v3642 = vunpack.c.l.b16 %v2218
        %v3643 = vunpack.c.h.b16 %v2218
        %v3644 = vunpack.c.l.b16 %v2219
        %v3645 = vunpack.c.h.b16 %v2219
        %v3646 = vunpack.c.l.b16 %v2220
        %v3647 = vunpack.c.h.b16 %v2220
        %v3648 = vunpack.c.l.b16 %v2221
        %v3649 = vunpack.c.h.b16 %v2221
        %v3650 = vunpack.c.l.b16 %v2222
        %v3651 = vunpack.c.h.b16 %v2222
        %v3652 = vunpack.c.l.b16 %v2223
        %v3653 = vunpack.c.h.b16 %v2223
        %v3654 = vunpack.c.l.b16 %v2224
        %v3655 = vunpack.c.h.b16 %v2224
        %v3656 = vunpack.c.l.b16 %v2225
        %v3657 = vunpack.c.h.b16 %v2225
        %v3658 = vunpack.c.l.b16 %v2226
        %v3659 = vunpack.c.h.b16 %v2226
        %v3660 = vunpack.c.l.b16 %v2227
        %v3661 = vunpack.c.h.b16 %v2227
        %v3662 = vunpack.c.l.b16 %v2228
        %v3663 = vunpack.c.h.b16 %v2228
        %v3664 = vunpack.c.l.b16 %v2229
        %v3665 = vunpack.c.h.b16 %v2229
        %v3666 = vunpack.c.l.b16 %v2230
        %v3667 = vunpack.c.h.b16 %v2230
        %v3668 = vunpack.c.l.b16 %v2231
        %v3669 = vunpack.c.h.b16 %v2231
        %v3670 = vunpack.c.l.b16 %v2232
        %v3671 = vunpack.c.h.b16 %v2232
        %v3672 = vunpack.c.l.b16 %v2233
        %v3673 = vunpack.c.h.b16 %v2233
        %v3674 = vunpack.c.l.b16 %v2234
        %v3675 = vunpack.c.h.b16 %v2234
        %v3676 = vunpack.c.l.b16 %v2235
        %v3677 = vunpack.c.h.b16 %v2235
        %v3678 = vunpack.c.l.b16 %v2236
        %v3679 = vunpack.c.h.b16 %v2236
        %v3680 = vunpack.c.l.b16 %v2237
        %v3681 = vunpack.c.h.b16 %v2237
        %v3682 = vunpack.c.l.b16 %v2238
        %v3683 = vunpack.c.h.b16 %v2238
        %v3684 = vunpack.c.l.b16 %v2239
        %v3685 = vunpack.c.h.b16 %v2239
        %v3686 = vunpack.c.l.b16 %v2240
        %v3687 = vunpack.c.h.b16 %v2240
        %v3688 = vunpack.c.l.b16 %v2241
        %v3689 = vunpack.c.h.b16 %v2241
        %v3690 = vunpack.c.l.b16 %v2242
        %v3691 = vunpack.c.h.b16 %v2242
        %v3692 = vunpack.c.l.b16 %v2243
        %v3693 = vunpack.c.h.b16 %v2243
        %v3694 = vunpack.c.l.b16 %v2244
        %v3695 = vunpack.c.h.b16 %v2244
        %v3696 = vunpack.c.l.b16 %v2245
        %v3697 = vunpack.c.h.b16 %v2245
        %v3698 = vunpack.c.l.b16 %v2246
        %v3699 = vunpack.c.h.b16 %v2246
        %v3700 = vunpack.c.l.b16 %v2247
        %v3701 = vunpack.c.h.b16 %v2247
        %v3702 = vunpack.c.l.b16 %v2248
        %v3703 = vunpack.c.h.b16 %v2248
        %v3704 = vunpack.c.l.b16 %v2249
        %v3705 = vunpack.c.h.b16 %v2249
        %v3706 = vunpack.c.l.b16 %v2250
        %v3707 = vunpack.c.h.b16 %v2250
        %v3708 = vunpack.c.l.b16 %v2251
        %v3709 = vunpack.c.h.b16 %v2251
        %v3710 = vunpack.c.l.b16 %v2252
        %v3711 = vunpack.c.h.b16 %v2252
        %v3712 = vunpack.c.l.b16 %v2253
        %v3713 = vunpack.c.h.b16 %v2253
        %v3714 = vunpack.c.l.b16 %v2254
        %v3715 = vunpack.c.h.b16 %v2254
        %v3716 = vunpack.c.l.b16 %v2255
        %v3717 = vunpack.c.h.b16 %v2255
        %v3718 = vunpack.c.l.b16 %v2256
        %v3719 = vunpack.c.h.b16 %v2256
        %v3720 = vunpack.c.l.b16 %v2257
        %v3721 = vunpack.c.h.b16 %v2257
        %v3722 = vunpack.c.l.b16 %v2258
        %v3723 = vunpack.c.h.b16 %v2258
        %v3724 = vunpack.c.l.b16 %v2259
        %v3725 = vunpack.c.h.b16 %v2259
        %v3726 = vunpack.c.l.b16 %v2260
        %v3727 = vunpack.c.h.b16 %v2260
        %v3728 = vunpack.c.l.b16 %v2261
        %v3729 = vunpack.c.h.b16 %v2261
        %v3730 = vunpack.c.l.b16 %v2262
        %v3731 = vunpack.c.h.b16 %v2262
        %v3732 = vunpack.c.l.b16 %v2263
        %v3733 = vunpack.c.h.b16 %v2263
        %v3734 = vunpack.c.l.b16 %v2264
        %v3735 = vunpack.c.h.b16 %v2264
        %v3736 = vunpack.c.l.b16 %v2265
        %v3737 = vunpack.c.h.b16 %v2265
        %v3738 = vunpack.c.l.b16 %v2266
        %v3739 = vunpack.c.h.b16 %v2266
        %v3740 = vunpack.c.l.b16 %v2267
        %v3741 = vunpack.c.h.b16 %v2267
        %v3742 = vunpack.c.l.b16 %v2268
        %v3743 = vunpack.c.h.b16 %v2268
        %v3744 = vunpack.c.l.b16 %v2269
        %v3745 = vunpack.c.h.b16 %v2269
        %v3746 = vunpack.c.l.b16 %v2270
        %v3747 = vunpack.c.h.b16 %v2270
        %v3748 = vunpack.c.l.b16 %v2271
        %v3749 = vunpack.c.h.b16 %v2271
        %v3750 = vunpack.c.l.b16 %v2272
        %v3751 = vunpack.c.h.b16 %v2272
        %v3752 = vunpack.c.l.b16 %v2273
        %v3753 = vunpack.c.h.b16 %v2273
        %v3754 = vunpack.c.l.b16 %v2274
        %v3755 = vunpack.c.h.b16 %v2274
        %v3756 = vunpack.c.l.b16 %v2275
        %v3757 = vunpack.c.h.b16 %v2275
        %v3758 = vunpack.c.l.b16 %v2276
        %v3759 = vunpack.c.h.b16 %v2276
        %v3760 = vunpack.c.l.b16 %v2277
        %v3761 = vunpack.c.h.b16 %v2277
        %v3762 = vunpack.c.l.b16 %v2278
        %v3763 = vunpack.c.h.b16 %v2278
        %v3764 = vunpack.c.l.b16 %v2279
        %v3765 = vunpack.c.h.b16 %v2279
        %v3766 = vunpack.c.l.b16 %v2280
        %v3767 = vunpack.c.h.b16 %v2280
        %v3768 = vunpack.c.l.b16 %v2281
        %v3769 = vunpack.c.h.b16 %v2281
        %v3770 = vunpack.c.l.b16 %v2282
        %v3771 = vunpack.c.h.b16 %v2282
        %v3772 = vunpack.c.l.b16 %v2283
        %v3773 = vunpack.c.h.b16 %v2283
        %v3774 = vunpack.c.l.b16 %v2284
        %v3775 = vunpack.c.h.b16 %v2284
        %v3776 = vunpack.c.l.b16 %v2285
        %v3777 = vunpack.c.h.b16 %v2285
        %v3778 = vunpack.c.l.b16 %v2286
        %v3779 = vunpack.c.h.b16 %v2286
        %v3780 = vunpack.c.l.b16 %v2287
        %v3781 = vunpack.c.h.b16 %v2287
        %v3782 = vunpack.c.l.b16 %v2288
        %v3783 = vunpack.c.h.b16 %v2288
        %v3784 = vunpack.c.l.b16 %v2289
        %v3785 = vunpack.c.h.b16 %v2289
        %v3786 = vunpack.c.l.b16 %v2290
        %v3787 = vunpack.c.h.b16 %v2290
        %v3788 = vunpack.c.l.b16 %v2291
        %v3789 = vunpack.c.h.b16 %v2291
        %v3790 = vunpack.c.l.b16 %v2292
        %v3791 = vunpack.c.h.b16 %v2292
        %v3792 = vunpack.c.l.b16 %v2293
        %v3793 = vunpack.c.h.b16 %v2293
        %v3794 = vunpack.c.l.b16 %v2294
        %v3795 = vunpack.c.h.b16 %v2294
        %v3796 = vunpack.c.l.b16 %v2295
        %v3797 = vunpack.c.h.b16 %v2295
        %v3798 = vunpack.c.l.b16 %v2296
        %v3799 = vunpack.c.h.b16 %v2296
        %v3800 = vunpack.c.l.b16 %v2297
        %v3801 = vunpack.c.h.b16 %v2297
        %v3802 = vunpack.c.l.b16 %v2298
        %v3803 = vunpack.c.h.b16 %v2298
        %v3804 = vunpack.c.l.b16 %v2299
        %v3805 = vunpack.c.h.b16 %v2299
        %v3806 = vunpack.c.l.b16 %v2300
        %v3807 = vunpack.c.h.b16 %v2300
        %v3808 = vunpack.c.l.b16 %v2301
        %v3809 = vunpack.c.h.b16 %v2301
        %v3810 = vunpack.c.l.b16 %v2302
        %v3811 = vunpack.c.h.b16 %v2302
        %v3812 = vunpack.c.l.b16 %v2303
        %v3813 = vunpack.c.h.b16 %v2303
        %v3814 = vunpack.c.l.b16 %v2304
        %v3815 = vunpack.c.h.b16 %v2304
        %v3816 = vunpack.c.l.b16 %v2305
        %v3817 = vunpack.c.h.b16 %v2305
        %v3818 = vunpack.c.l.b16 %v2306
        %v3819 = vunpack.c.h.b16 %v2306
        %v3820 = vunpack.c.l.b16 %v2307
        %v3821 = vunpack.c.h.b16 %v2307
        %v3822 = vunpack.c.l.b16 %v2308
        %v3823 = vunpack.c.h.b16 %v2308
        %v3824 = vunpack.c.l.b16 %v2309
        %v3825 = vunpack.c.h.b16 %v2309
        %v3826 = vunpack.c.l.b16 %v2310
        %v3827 = vunpack.c.h.b16 %v2310
        %v3828 = vunpack.c.l.b16 %v2311
        %v3829 = vunpack.c.h.b16 %v2311
        %v3830 = vunpack.c.l.b16 %v2312
        %v3831 = vunpack.c.h.b16 %v2312
        %v3832 = vunpack.c.l.b16 %v2313
        %v3833 = vunpack.c.h.b16 %v2313
        %v3834 = vunpack.c.l.b16 %v2314
        %v3835 = vunpack.c.h.b16 %v2314
        %v3836 = vunpack.c.l.b16 %v2315
        %v3837 = vunpack.c.h.b16 %v2315
        %v3838 = vunpack.c.l.b16 %v2316
        %v3839 = vunpack.c.h.b16 %v2316
        %v3840 = vunpack.c.l.b16 %v2317
        %v3841 = vunpack.c.h.b16 %v2317
        %v3842 = vunpack.c.l.b16 %v2318
        %v3843 = vunpack.c.h.b16 %v2318
        %v3844 = vunpack.c.l.b16 %v2319
        %v3845 = vunpack.c.h.b16 %v2319
        %v3846 = vunpack.c.l.b16 %v2320
        %v3847 = vunpack.c.h.b16 %v2320
        %v3848 = vunpack.c.l.b16 %v2321
        %v3849 = vunpack.c.h.b16 %v2321
        %v3850 = vunpack.c.l.b16 %v2322
        %v3851 = vunpack.c.h.b16 %v2322
        %v3852 = vunpack.c.l.b16 %v2323
        %v3853 = vunpack.c.h.b16 %v2323
        %v3854 = vunpack.c.l.b16 %v2324
        %v3855 = vunpack.c.h.b16 %v2324
        %v3856 = vunpack.c.l.b16 %v2325
        %v3857 = vunpack.c.h.b16 %v2325
        %v3858 = vunpack.c.l.b16 %v2326
        %v3859 = vunpack.c.h.b16 %v2326
        %v3860 = vunpack.c.l.b16 %v2327
        %v3861 = vunpack.c.h.b16 %v2327
        %v3862 = vunpack.c.l.b16 %v2328
        %v3863 = vunpack.c.h.b16 %v2328
        %v3864 = vunpack.c.l.b16 %v2329
        %v3865 = vunpack.c.h.b16 %v2329
        %v3866 = vunpack.c.l.b16 %v2330
        %v3867 = vunpack.c.h.b16 %v2330
        %v3868 = vunpack.c.l.b16 %v2331
        %v3869 = vunpack.c.h.b16 %v2331
        %v3870 = vunpack.c.l.b16 %v2332
        %v3871 = vunpack.c.h.b16 %v2332
        %v3872 = vunpack.c.l.b16 %v2333
        %v3873 = vunpack.c.h.b16 %v2333
        %v3874 = vunpack.c.l.b16 %v2334
        %v3875 = vunpack.c.h.b16 %v2334
        %v3876 = vunpack.c.l.b16 %v2335
        %v3877 = vunpack.c.h.b16 %v2335
        %v3878 = vunpack.c.l.b16 %v2336
        %v3879 = vunpack.c.h.b16 %v2336
        %v3880 = vunpack.c.l.b16 %v2337
        %v3881 = vunpack.c.h.b16 %v2337
        %v3882 = vunpack.c.l.b16 %v2338
        %v3883 = vunpack.c.h.b16 %v2338
        %v3884 = vunpack.c.l.b16 %v2339
        %v3885 = vunpack.c.h.b16 %v2339
        %v3886 = vunpack.c.l.b16 %v2340
        %v3887 = vunpack.c.h.b16 %v2340
        %v3888 = vunpack.c.l.b16 %v2341
        %v3889 = vunpack.c.h.b16 %v2341
        %v3890 = vunpack.c.l.b16 %v2342
        %v3891 = vunpack.c.h.b16 %v2342
        %v3892 = vunpack.c.l.b16 %v2343
        %v3893 = vunpack.c.h.b16 %v2343
        %v3894 = vunpack.c.l.b16 %v2344
        %v3895 = vunpack.c.h.b16 %v2344
        %v3896 = vunpack.c.l.b16 %v2345
        %v3897 = vunpack.c.h.b16 %v2345
        %v3898 = vunpack.c.l.b16 %v2346
        %v3899 = vunpack.c.h.b16 %v2346
        %v3900 = vunpack.c.l.b16 %v2347
        %v3901 = vunpack.c.h.b16 %v2347
        %v3902 = vunpack.c.l.b16 %v2348
        %v3903 = vunpack.c.h.b16 %v2348
        %v3904 = vunpack.c.l.b16 %v2349
        %v3905 = vunpack.c.h.b16 %v2349
        %v3906 = vunpack.c.l.b16 %v2350
        %v3907 = vunpack.c.h.b16 %v2350
        %v3908 = vunpack.c.l.b16 %v2351
        %v3909 = vunpack.c.h.b16 %v2351
        %v3910 = vunpack.c.l.b16 %v2352
        %v3911 = vunpack.c.h.b16 %v2352
        %v3912 = vunpack.c.l.b16 %v2353
        %v3913 = vunpack.c.h.b16 %v2353
        %v3914 = vunpack.c.l.b16 %v2354
        %v3915 = vunpack.c.h.b16 %v2354
        %v3916 = vunpack.c.l.b16 %v2355
        %v3917 = vunpack.c.h.b16 %v2355
        %v3918 = vunpack.c.l.b16 %v2356
        %v3919 = vunpack.c.h.b16 %v2356
        %v3920 = vunpack.c.l.b16 %v2357
        %v3921 = vunpack.c.h.b16 %v2357
        %v3922 = vunpack.c.l.b16 %v2358
        %v3923 = vunpack.c.h.b16 %v2358
        %v3924 = vunpack.c.l.b16 %v2359
        %v3925 = vunpack.c.h.b16 %v2359
        %v3926 = vunpack.c.l.b16 %v2360
        %v3927 = vunpack.c.h.b16 %v2360
        %v3928 = vunpack.c.l.b16 %v2361
        %v3929 = vunpack.c.h.b16 %v2361
        %v3930 = vunpack.c.l.b16 %v2362
        %v3931 = vunpack.c.h.b16 %v2362
        %v3932 = vunpack.c.l.b16 %v2363
        %v3933 = vunpack.c.h.b16 %v2363
        %v3934 = vunpack.c.l.b16 %v2364
        %v3935 = vunpack.c.h.b16 %v2364
        %v3936 = vunpack.c.l.b16 %v2365
        %v3937 = vunpack.c.h.b16 %v2365
        %v3938 = vunpack.c.l.b16 %v2366
        %v3939 = vunpack.c.h.b16 %v2366
        %v3940 = vunpack.c.l.b16 %v2367
        %v3941 = vunpack.c.h.b16 %v2367
        %v3942 = vunpack.c.l.b16 %v2368
        %v3943 = vunpack.c.h.b16 %v2368
        %v3944 = vunpack.c.l.b16 %v2369
        %v3945 = vunpack.c.h.b16 %v2369
        %v3946 = vunpack.c.l.b16 %v2370
        %v3947 = vunpack.c.h.b16 %v2370
        %v3948 = vunpack.c.l.b16 %v2371
        %v3949 = vunpack.c.h.b16 %v2371
        %v3950 = vunpack.c.l.b16 %v2372
        %v3951 = vunpack.c.h.b16 %v2372
        %v3952 = vunpack.c.l.b16 %v2373
        %v3953 = vunpack.c.h.b16 %v2373
        %v3954 = vunpack.c.l.b16 %v2374
        %v3955 = vunpack.c.h.b16 %v2374
        %v3956 = vunpack.c.l.b16 %v2375
        %v3957 = vunpack.c.h.b16 %v2375
        %v3958 = vunpack.c.l.b16 %v2376
        %v3959 = vunpack.c.h.b16 %v2376
        %v3960 = vunpack.c.l.b16 %v2377
        %v3961 = vunpack.c.h.b16 %v2377
        %v3962 = vunpack.c.l.b16 %v2378
        %v3963 = vunpack.c.h.b16 %v2378
        %v3964 = vunpack.c.l.b16 %v2379
        %v3965 = vunpack.c.h.b16 %v2379
        %v3966 = vunpack.c.l.b16 %v2380
        %v3967 = vunpack.c.h.b16 %v2380
        %v3968 = vunpack.c.l.b16 %v2381
        %v3969 = vunpack.c.h.b16 %v2381
        %v3970 = vunpack.c.l.b16 %v2382
        %v3971 = vunpack.c.h.b16 %v2382
        %v3972 = vunpack.c.l.b16 %v2383
        %v3973 = vunpack.c.h.b16 %v2383
        %v3974 = vunpack.c.l.b16 %v2384
        %v3975 = vunpack.c.h.b16 %v2384
        %v3976 = vunpack.c.l.b16 %v2385
        %v3977 = vunpack.c.h.b16 %v2385
        %v3978 = vunpack.c.l.b16 %v2386
        %v3979 = vunpack.c.h.b16 %v2386
        %v3980 = vunpack.c.l.b16 %v2387
        %v3981 = vunpack.c.h.b16 %v2387
        %v3982 = vunpack.c.l.b16 %v2388
        %v3983 = vunpack.c.h.b16 %v2388
        %v3984 = vunpack.c.l.b16 %v2389
        %v3985 = vunpack.c.h.b16 %v2389
        %v3986 = vunpack.c.l.b16 %v2390
        %v3987 = vunpack.c.h.b16 %v2390
        %v3988 = vunpack.c.l.b16 %v2391
        %v3989 = vunpack.c.h.b16 %v2391
        %v3990 = vunpack.c.l.b16 %v2392
        %v3991 = vunpack.c.h.b16 %v2392
        %v3992 = vunpack.c.l.b16 %v2393
        %v3993 = vunpack.c.h.b16 %v2393
        %v3994 = vunpack.c.l.b16 %v2394
        %v3995 = vunpack.c.h.b16 %v2394
        %v3996 = vunpack.c.l.b16 %v2395
        %v3997 = vunpack.c.h.b16 %v2395
        %v3998 = vunpack.c.l.b16 %v2396
        %v3999 = vunpack.c.h.b16 %v2396
        %v4000 = vunpack.c.l.b16 %v2397
        %v4001 = vunpack.c.h.b16 %v2397
        %v4002 = vunpack.c.l.b16 %v2398
        %v4003 = vunpack.c.h.b16 %v2398
        %v4004 = vunpack.c.l.b16 %v2399
        %v4005 = vunpack.c.h.b16 %v2399
        %v4006 = vunpack.c.l.b16 %v2400
        %v4007 = vunpack.c.h.b16 %v2400
        %v4008 = vunpack.c.l.b16 %v2401
        %v4009 = vunpack.c.h.b16 %v2401
        %v4010 = vunpack.c.l.b16 %v2402
        %v4011 = vunpack.c.h.b16 %v2402
        %v4012 = vunpack.c.l.b16 %v2403
        %v4013 = vunpack.c.h.b16 %v2403
        %v4014 = vunpack.c.l.b16 %v2404
        %v4015 = vunpack.c.h.b16 %v2404
        %v4016 = vunpack.c.l.b16 %v2405
        %v4017 = vunpack.c.h.b16 %v2405
        %v4018 = vunpack.c.l.b16 %v2406
        %v4019 = vunpack.c.h.b16 %v2406
        %v4020 = vunpack.c.l.b16 %v2407
        %v4021 = vunpack.c.h.b16 %v2407
        %v4022 = vunpack.c.l.b16 %v2408
        %v4023 = vunpack.c.h.b16 %v2408
        %v4024 = vunpack.c.l.b16 %v2409
        %v4025 = vunpack.c.h.b16 %v2409
        %v4026 = vunpack.c.l.b16 %v2410
        %v4027 = vunpack.c.h.b16 %v2410
        %v4028 = vunpack.c.l.b16 %v2411
        %v4029 = vunpack.c.h.b16 %v2411
        %v4030 = vunpack.c.l.b16 %v2412
        %v4031 = vunpack.c.h.b16 %v2412
        %v4032 = vunpack.c.l.b16 %v2413
        %v4033 = vunpack.c.h.b16 %v2413
        %v4034 = vunpack.c.l.b16 %v2414
        %v4035 = vunpack.c.h.b16 %v2414
        %v4036 = vunpack.c.l.b16 %v2415
        %v4037 = vunpack.c.h.b16 %v2415
        %v4038 = vunpack.c.l.b16 %v2416
        %v4039 = vunpack.c.h.b16 %v2416
        %v4040 = vunpack.c.l.b16 %v2417
        %v4041 = vunpack.c.h.b16 %v2417
        %v4042 = vunpack.c.l.b16 %v2418
        %v4043 = vunpack.c.h.b16 %v2418
        %v4044 = vunpack.c.l.b16 %v2419
        %v4045 = vunpack.c.h.b16 %v2419
        %v4046 = vunpack.c.l.b16 %v2420
        %v4047 = vunpack.c.h.b16 %v2420
        %v4048 = vunpack.c.l.b16 %v2421
        %v4049 = vunpack.c.h.b16 %v2421
        %v4050 = vunpack.c.l.b16 %v2422
        %v4051 = vunpack.c.h.b16 %v2422
        %v4052 = vunpack.c.l.b16 %v2423
        %v4053 = vunpack.c.h.b16 %v2423
        %v4054 = vunpack.c.l.b16 %v2424
        %v4055 = vunpack.c.h.b16 %v2424
        %v4056 = vunpack.c.l.b16 %v2425
        %v4057 = vunpack.c.h.b16 %v2425
        %v4058 = vunpack.c.l.b16 %v2426
        %v4059 = vunpack.c.h.b16 %v2426
        %v4060 = vunpack.c.l.b16 %v2427
        %v4061 = vunpack.c.h.b16 %v2427
        %v4062 = vunpack.c.l.b16 %v2428
        %v4063 = vunpack.c.h.b16 %v2428
        %v4064 = vunpack.c.l.b16 %v2429
        %v4065 = vunpack.c.h.b16 %v2429
        %v4066 = vunpack.c.l.b16 %v2430
        %v4067 = vunpack.c.h.b16 %v2430
        %v4068 = vunpack.c.l.b16 %v2431
        %v4069 = vunpack.c.h.b16 %v2431
        %v4070 = vunpack.c.l.b16 %v2432
        %v4071 = vunpack.c.h.b16 %v2432
        %v4072 = vunpack.c.l.b16 %v2433
        %v4073 = vunpack.c.h.b16 %v2433
        %v4074 = vunpack.c.l.b16 %v2434
        %v4075 = vunpack.c.h.b16 %v2434
        %v4076 = vunpack.c.l.b16 %v2435
        %v4077 = vunpack.c.h.b16 %v2435
        %v4078 = vunpack.c.l.b16 %v2436
        %v4079 = vunpack.c.h.b16 %v2436
        %v4080 = vunpack.c.l.b16 %v2437
        %v4081 = vunpack.c.h.b16 %v2437
        %v4082 = vunpack.c.l.b16 %v2438
        %v4083 = vunpack.c.h.b16 %v2438
        %v4084 = vunpack.c.l.b16 %v2439
        %v4085 = vunpack.c.h.b16 %v2439
        %v4086 = vunpack.c.l.b16 %v2440
        %v4087 = vunpack.c.h.b16 %v2440
        %v4088 = vunpack.c.l.b16 %v2441
        %v4089 = vunpack.c.h.b16 %v2441
        %v4090 = vunpack.c.l.b16 %v2442
        %v4091 = vunpack.c.h.b16 %v2442
        %v4092 = vunpack.c.l.b16 %v2443
        %v4093 = vunpack.c.h.b16 %v2443
        %v4094 = vunpack.c.l.b16 %v2444
        %v4095 = vunpack.c.h.b16 %v2444
        %v4096 = vunpack.c.l.b16 %v2445
        %v4097 = vunpack.c.h.b16 %v2445
        %v4098 = vunpack.c.l.b16 %v2446
        %v4099 = vunpack.c.h.b16 %v2446
        %v4100 = vunpack.c.l.b16 %v2447
        %v4101 = vunpack.c.h.b16 %v2447
        %v4102 = vunpack.c.l.b16 %v2448
        %v4103 = vunpack.c.h.b16 %v2448
        %v4104 = vunpack.c.l.b16 %v2449
        %v4105 = vunpack.c.h.b16 %v2449
        %v4106 = vunpack.c.l.b16 %v2450
        %v4107 = vunpack.c.h.b16 %v2450
        %v4108 = vunpack.c.l.b16 %v2451
        %v4109 = vunpack.c.h.b16 %v2451
        %v4110 = vunpack.c.l.b16 %v2452
        %v4111 = vunpack.c.h.b16 %v2452
        %v4112 = vunpack.c.l.b16 %v2453
        %v4113 = vunpack.c.h.b16 %v2453
        %v4114 = vunpack.c.l.b16 %v2454
        %v4115 = vunpack.c.h.b16 %v2454
        %v4116 = vunpack.c.l.b16 %v2455
        %v4117 = vunpack.c.h.b16 %v2455
        %v4118 = vunpack.c.l.b16 %v2456
        %v4119 = vunpack.c.h.b16 %v2456
        %v4120 = vunpack.c.l.b16 %v2457
        %v4121 = vunpack.c.h.b16 %v2457
        %v4122 = vunpack.c.l.b16 %v2458
        %v4123 = vunpack.c.h.b16 %v2458
        %v4124 = vunpack.c.l.b16 %v2459
        %v4125 = vunpack.c.h.b16 %v2459
        %v4126 = vunpack.c.l.b16 %v2460
        %v4127 = vunpack.c.h.b16 %v2460
        %v4128 = vunpack.c.l.b16 %v2461
        %v4129 = vunpack.c.h.b16 %v2461
        %v4130 = vunpack.c.l.b16 %v2462
        %v4131 = vunpack.c.h.b16 %v2462
        %v4132 = vunpack.c.l.b16 %v2463
        %v4133 = vunpack.c.h.b16 %v2463
        %v4134 = vunpack.c.l.b16 %v2464
        %v4135 = vunpack.c.h.b16 %v2464
        %v4136 = vunpack.c.l.b16 %v2465
        %v4137 = vunpack.c.h.b16 %v2465
        %v4138 = vunpack.c.l.b16 %v2466
        %v4139 = vunpack.c.h.b16 %v2466
        %v4140 = vunpack.c.l.b16 %v2467
        %v4141 = vunpack.c.h.b16 %v2467
        %v4142 = vunpack.c.l.b16 %v2468
        %v4143 = vunpack.c.h.b16 %v2468
        %v4144 = vunpack.c.l.b16 %v2469
        %v4145 = vunpack.c.h.b16 %v2469
        %v4146 = vunpack.c.l.b16 %v2470
        %v4147 = vunpack.c.h.b16 %v2470
        %v4148 = vunpack.c.l.b16 %v2471
        %v4149 = vunpack.c.h.b16 %v2471
        %v4150 = vunpack.c.l.b16 %v2472
        %v4151 = vunpack.c.h.b16 %v2472
        %v4152 = vunpack.c.l.b16 %v2473
        %v4153 = vunpack.c.h.b16 %v2473
        %v4154 = vunpack.c.l.b16 %v2474
        %v4155 = vunpack.c.h.b16 %v2474
        %v4156 = vunpack.c.l.b16 %v2475
        %v4157 = vunpack.c.h.b16 %v2475
        %v4158 = vunpack.c.l.b16 %v2476
        %v4159 = vunpack.c.h.b16 %v2476
        %v4160 = vunpack.c.l.b16 %v2477
        %v4161 = vunpack.c.h.b16 %v2477
        %v4162 = vunpack.c.l.b16 %v2478
        %v4163 = vunpack.c.h.b16 %v2478
        %v4164 = vunpack.c.l.b16 %v2479
        %v4165 = vunpack.c.h.b16 %v2479
        %v4166 = vunpack.c.l.b16 %v2480
        %v4167 = vunpack.c.h.b16 %v2480
        %v4168 = vunpack.c.l.b16 %v2481
        %v4169 = vunpack.c.h.b16 %v2481
        %v4170 = vunpack.c.l.b16 %v2482
        %v4171 = vunpack.c.h.b16 %v2482
        %v4172 = vunpack.c.l.b16 %v2483
        %v4173 = vunpack.c.h.b16 %v2483
        %v4174 = vunpack.c.l.b16 %v2484
        %v4175 = vunpack.c.h.b16 %v2484
        %v4176 = vunpack.c.l.b16 %v2485
        %v4177 = vunpack.c.h.b16 %v2485
        %v4178 = vunpack.c.l.b16 %v2486
        %v4179 = vunpack.c.h.b16 %v2486
        %v4180 = vunpack.c.l.b16 %v2487
        %v4181 = vunpack.c.h.b16 %v2487
        %v4182 = vunpack.c.l.b16 %v2488
        %v4183 = vunpack.c.h.b16 %v2488
        %v4184 = vunpack.c.l.b16 %v2489
        %v4185 = vunpack.c.h.b16 %v2489
        %v4186 = vunpack.c.l.b16 %v2490
        %v4187 = vunpack.c.h.b16 %v2490
        %v4188 = vunpack.c.l.b16 %v2491
        %v4189 = vunpack.c.h.b16 %v2491
        %v4190 = vunpack.c.l.b16 %v2492
        %v4191 = vunpack.c.h.b16 %v2492
        %v4192 = vunpack.c.l.b16 %v2493
        %v4193 = vunpack.c.h.b16 %v2493
        %v4194 = vunpack.c.l.b16 %v2494
        %v4195 = vunpack.c.h.b16 %v2494
        %v4196 = vunpack.c.l.b16 %v2495
        %v4197 = vunpack.c.h.b16 %v2495
        %v4198 = vunpack.c.l.b16 %v2496
        %v4199 = vunpack.c.h.b16 %v2496
        %v4200 = vunpack.c.l.b16 %v2497
        %v4201 = vunpack.c.h.b16 %v2497
        %v4202 = vunpack.c.l.b16 %v2498
        %v4203 = vunpack.c.h.b16 %v2498
        %v4204 = vunpack.c.l.b16 %v2499
        %v4205 = vunpack.c.h.b16 %v2499
        %v4206 = vunpack.c.l.b16 %v2500
        %v4207 = vunpack.c.h.b16 %v2500
        %v4208 = vunpack.c.l.b16 %v2501
        %v4209 = vunpack.c.h.b16 %v2501
        %v4210 = vunpack.c.l.b16 %v2502
        %v4211 = vunpack.c.h.b16 %v2502
        %v4212 = vunpack.c.l.b16 %v2503
        %v4213 = vunpack.c.h.b16 %v2503
        %v4214 = vunpack.c.l.b16 %v2504
        %v4215 = vunpack.c.h.b16 %v2504
        %v4216 = vunpack.c.l.b16 %v2505
        %v4217 = vunpack.c.h.b16 %v2505
        %v4218 = vunpack.c.l.b16 %v2506
        %v4219 = vunpack.c.h.b16 %v2506
        %v4220 = vunpack.c.l.b16 %v2507
        %v4221 = vunpack.c.h.b16 %v2507
        %v4222 = vunpack.c.l.b16 %v2508
        %v4223 = vunpack.c.h.b16 %v2508
        %v4224 = vunpack.c.l.b16 %v2509
        %v4225 = vunpack.c.h.b16 %v2509
        %v4226 = vunpack.c.l.b16 %v2510
        %v4227 = vunpack.c.h.b16 %v2510
        %v4228 = vunpack.c.l.b16 %v2511
        %v4229 = vunpack.c.h.b16 %v2511
        %v4230 = vunpack.c.l.b16 %v2512
        %v4231 = vunpack.c.h.b16 %v2512
        %v4232 = vunpack.c.l.b16 %v2513
        %v4233 = vunpack.c.h.b16 %v2513
        %v4234 = vunpack.c.l.b16 %v2514
        %v4235 = vunpack.c.h.b16 %v2514
        %v4236 = vunpack.c.l.b16 %v2515
        %v4237 = vunpack.c.h.b16 %v2515
        %v4238 = vunpack.c.l.b16 %v2516
        %v4239 = vunpack.c.h.b16 %v2516
        %v4240 = vunpack.c.l.b16 %v2517
        %v4241 = vunpack.c.h.b16 %v2517
        %v4242 = vunpack.c.l.b16 %v2518
        %v4243 = vunpack.c.h.b16 %v2518
        %v4244 = vunpack.c.l.b16 %v2519
        %v4245 = vunpack.c.h.b16 %v2519
        %v4246 = vunpack.c.l.b16 %v2520
        %v4247 = vunpack.c.h.b16 %v2520
        %v4248 = vunpack.c.l.b16 %v2521
        %v4249 = vunpack.c.h.b16 %v2521
        %v4250 = vunpack.c.l.b16 %v2522
        %v4251 = vunpack.c.h.b16 %v2522
        %v4252 = vunpack.c.l.b16 %v2523
        %v4253 = vunpack.c.h.b16 %v2523
        %v4254 = vunpack.c.l.b16 %v2524
        %v4255 = vunpack.c.h.b16 %v2524
        %v4256 = vunpack.c.l.b16 %v2525
        %v4257 = vunpack.c.h.b16 %v2525
        %v4258 = vunpack.c.l.b16 %v2526
        %v4259 = vunpack.c.h.b16 %v2526
        %v4260 = vunpack.c.l.b16 %v2527
        %v4261 = vunpack.c.h.b16 %v2527
        %v4262 = vunpack.c.l.b16 %v2528
        %v4263 = vunpack.c.h.b16 %v2528
        %v4264 = vunpack.c.l.b16 %v2529
        %v4265 = vunpack.c.h.b16 %v2529
        %v4266 = vunpack.c.l.b16 %v2530
        %v4267 = vunpack.c.h.b16 %v2530
        %v4268 = vunpack.c.l.b16 %v2531
        %v4269 = vunpack.c.h.b16 %v2531
        %v4270 = vunpack.c.l.b16 %v2532
        %v4271 = vunpack.c.h.b16 %v2532
        %v4272 = vunpack.c.l.b16 %v2533
        %v4273 = vunpack.c.h.b16 %v2533
        %v4274 = vunpack.c.l.b16 %v2534
        %v4275 = vunpack.c.h.b16 %v2534
        %v4276 = vunpack.c.l.b16 %v2535
        %v4277 = vunpack.c.h.b16 %v2535
        %v4278 = vunpack.c.l.b16 %v2536
        %v4279 = vunpack.c.h.b16 %v2536
        %v4280 = vunpack.c.l.b16 %v2537
        %v4281 = vunpack.c.h.b16 %v2537
        %v4282 = vunpack.c.l.b16 %v2538
        %v4283 = vunpack.c.h.b16 %v2538
        %v4284 = vunpack.c.l.b16 %v2539
        %v4285 = vunpack.c.h.b16 %v2539
        %v4286 = vunpack.c.l.b16 %v2540
        %v4287 = vunpack.c.h.b16 %v2540
        %v4288 = vunpack.c.l.b16 %v2541
        %v4289 = vunpack.c.h.b16 %v2541
        %v4290 = vunpack.c.l.b16 %v2542
        %v4291 = vunpack.c.h.b16 %v2542
        %v4292 = vunpack.c.l.b16 %v2543
        %v4293 = vunpack.c.h.b16 %v2543
        %v4294 = vpack.c.b16 %v3146, %v3142
        %v4295 = vpack.c.b16 %v3147, %v3143
        %v4296 = vpack.c.b16 %v3148, %v3144
        %v4297 = vpack.c.b16 %v3149, %v3145
        %v4298 = vpack.c.b16 %v3154, %v3150
        %v4299 = vpack.c.b16 %v3155, %v3151
        %v4300 = vpack.c.b16 %v3156, %v3152
        %v4301 = vpack.c.b16 %v3157, %v3153
        %v4302 = vpack.c.b16 %v3162, %v3158
        %v4303 = vpack.c.b16 %v3163, %v3159
        %v4304 = vpack.c.b16 %v3164, %v3160
        %v4305 = vpack.c.b16 %v3165, %v3161
        %v4306 = vpack.c.b16 %v3170, %v3166
        %v4307 = vpack.c.b16 %v3171, %v3167
        %v4308 = vpack.c.b16 %v3172, %v3168
        %v4309 = vpack.c.b16 %v3173, %v3169
        %v4310 = vpack.c.b16 %v3178, %v3174
        %v4311 = vpack.c.b16 %v3179, %v3175
        %v4312 = vpack.c.b16 %v3180, %v3176
        %v4313 = vpack.c.b16 %v3181, %v3177
        %v4314 = vpack.c.b16 %v3186, %v3182
        %v4315 = vpack.c.b16 %v3187, %v3183
        %v4316 = vpack.c.b16 %v3188, %v3184
        %v4317 = vpack.c.b16 %v3189, %v3185
        %v4318 = vpack.c.b16 %v3194, %v3190
        %v4319 = vpack.c.b16 %v3195, %v3191
        %v4320 = vpack.c.b16 %v3196, %v3192
        %v4321 = vpack.c.b16 %v3197, %v3193
        %v4322 = vpack.c.b16 %v3202, %v3198
        %v4323 = vpack.c.b16 %v3203, %v3199
        %v4324 = vpack.c.b16 %v3204, %v3200
        %v4325 = vpack.c.b16 %v3205, %v3201
        %v4326 = vpack.c.b16 %v3210, %v3206
        %v4327 = vpack.c.b16 %v3211, %v3207
        %v4328 = vpack.c.b16 %v3212, %v3208
        %v4329 = vpack.c.b16 %v3213, %v3209
        %v4330 = vpack.c.b16 %v3218, %v3214
        %v4331 = vpack.c.b16 %v3219, %v3215
        %v4332 = vpack.c.b16 %v3220, %v3216
        %v4333 = vpack.c.b16 %v3221, %v3217
        %v4334 = vpack.c.b16 %v3226, %v3222
        %v4335 = vpack.c.b16 %v3227, %v3223
        %v4336 = vpack.c.b16 %v3228, %v3224
        %v4337 = vpack.c.b16 %v3229, %v3225
        %v4338 = vpack.c.b16 %v3234, %v3230
        %v4339 = vpack.c.b16 %v3235, %v3231
        %v4340 = vpack.c.b16 %v3236, %v3232
        %v4341 = vpack.c.b16 %v3237, %v3233
        %v4342 = vpack.c.b16 %v3242, %v3238
        %v4343 = vpack.c.b16 %v3243, %v3239
        %v4344 = vpack.c.b16 %v3244, %v3240
        %v4345 = vpack.c.b16 %v3245, %v3241
        %v4346 = vpack.c.b16 %v3250, %v3246
        %v4347 = vpack.c.b16 %v3251, %v3247
        %v4348 = vpack.c.b16 %v3252, %v3248
        %v4349 = vpack.c.b16 %v3253, %v3249
        %v4350 = vpack.c.b16 %v3258, %v3254
        %v4351 = vpack.c.b16 %v3259, %v3255
        %v4352 = vpack.c.b16 %v3260, %v3256
        %v4353 = vpack.c.b16 %v3261, %v3257
        %v4354 = vpack.c.b16 %v3266, %v3262
        %v4355 = vpack.c.b16 %v3267, %v3263
        %v4356 = vpack.c.b16 %v3268, %v3264
        %v4357 = vpack.c.b16 %v3269, %v3265
        %v4358 = vpack.c.b16 %v3274, %v3270
        %v4359 = vpack.c.b16 %v3275, %v3271
        %v4360 = vpack.c.b16 %v3276, %v3272
        %v4361 = vpack.c.b16 %v3277, %v3273
        %v4362 = vpack.c.b16 %v3282, %v3278
        %v4363 = vpack.c.b16 %v3283, %v3279
        %v4364 = vpack.c.b16 %v3284, %v3280
        %v4365 = vpack.c.b16 %v3285, %v3281
        %v4366 = vpack.c.b16 %v3290, %v3286
        %v4367 = vpack.c.b16 %v3291, %v3287
        %v4368 = vpack.c.b16 %v3292, %v3288
        %v4369 = vpack.c.b16 %v3293, %v3289
        %v4370 = vpack.c.b16 %v3298, %v3294
        %v4371 = vpack.c.b16 %v3299, %v3295
        %v4372 = vpack.c.b16 %v3300, %v3296
        %v4373 = vpack.c.b16 %v3301, %v3297
        %v4374 = vpack.c.b16 %v3306, %v3302
        %v4375 = vpack.c.b16 %v3307, %v3303
        %v4376 = vpack.c.b16 %v3308, %v3304
        %v4377 = vpack.c.b16 %v3309, %v3305
        %v4378 = vpack.c.b16 %v3314, %v3310
        %v4379 = vpack.c.b16 %v3315, %v3311
        %v4380 = vpack.c.b16 %v3316, %v3312
        %v4381 = vpack.c.b16 %v3317, %v3313
        %v4382 = vpack.c.b16 %v3322, %v3318
        %v4383 = vpack.c.b16 %v3323, %v3319
        %v4384 = vpack.c.b16 %v3324, %v3320
        %v4385 = vpack.c.b16 %v3325, %v3321
        %v4386 = vpack.c.b16 %v3330, %v3326
        %v4387 = vpack.c.b16 %v3331, %v3327
        %v4388 = vpack.c.b16 %v3332, %v3328
        %v4389 = vpack.c.b16 %v3333, %v3329
        %v4390 = vpack.c.b16 %v3338, %v3334
        %v4391 = vpack.c.b16 %v3339, %v3335
        %v4392 = vpack.c.b16 %v3340, %v3336
        %v4393 = vpack.c.b16 %v3341, %v3337
        %v4394 = vpack.c.b16 %v3346, %v3342
        %v4395 = vpack.c.b16 %v3347, %v3343
        %v4396 = vpack.c.b16 %v3348, %v3344
        %v4397 = vpack.c.b16 %v3349, %v3345
        %v4398 = vpack.c.b16 %v3354, %v3350
        %v4399 = vpack.c.b16 %v3355, %v3351
        %v4400 = vpack.c.b16 %v3356, %v3352
        %v4401 = vpack.c.b16 %v3357, %v3353
        %v4402 = vpack.c.b16 %v3362, %v3358
        %v4403 = vpack.c.b16 %v3363, %v3359
        %v4404 = vpack.c.b16 %v3364, %v3360
        %v4405 = vpack.c.b16 %v3365, %v3361
        %v4406 = vpack.c.b16 %v3370, %v3366
        %v4407 = vpack.c.b16 %v3371, %v3367
        %v4408 = vpack.c.b16 %v3372, %v3368
        %v4409 = vpack.c.b16 %v3373, %v3369
        %v4410 = vpack.c.b16 %v3378, %v3374
        %v4411 = vpack.c.b16 %v3379, %v3375
        %v4412 = vpack.c.b16 %v3380, %v3376
        %v4413 = vpack.c.b16 %v3381, %v3377
        %v4414 = vpack.c.b16 %v3386, %v3382
        %v4415 = vpack.c.b16 %v3387, %v3383
        %v4416 = vpack.c.b16 %v3388, %v3384
        %v4417 = vpack.c.b16 %v3389, %v3385
        %v4418 = vpack.c.b16 %v3394, %v3390
        %v4419 = vpack.c.b16 %v3395, %v3391
        %v4420 = vpack.c.b16 %v3396, %v3392
        %v4421 = vpack.c.b16 %v3397, %v3393
        %v4422 = vpack.c.b16 %v3402, %v3398
        %v4423 = vpack.c.b16 %v3403, %v3399
        %v4424 = vpack.c.b16 %v3404, %v3400
        %v4425 = vpack.c.b16 %v3405, %v3401
        %v4426 = vpack.c.b16 %v3410, %v3406
        %v4427 = vpack.c.b16 %v3411, %v3407
        %v4428 = vpack.c.b16 %v3412, %v3408
        %v4429 = vpack.c.b16 %v3413, %v3409
        %v4430 = vpack.c.b16 %v3418, %v3414
        %v4431 = vpack.c.b16 %v3419, %v3415
        %v4432 = vpack.c.b16 %v3420, %v3416
        %v4433 = vpack.c.b16 %v3421, %v3417
        %v4434 = vpack.c.b16 %v3426, %v3422
        %v4435 = vpack.c.b16 %v3427, %v3423
        %v4436 = vpack.c.b16 %v3428, %v3424
        %v4437 = vpack.c.b16 %v3429, %v3425
        %v4438 = vpack.c.b16 %v3434, %v3430
        %v4439 = vpack.c.b16 %v3435, %v3431
        %v4440 = vpack.c.b16 %v3436, %v3432
        %v4441 = vpack.c.b16 %v3437, %v3433
        %v4442 = vpack.c.b16 %v3442, %v3438
        %v4443 = vpack.c.b16 %v3443, %v3439
        %v4444 = vpack.c.b16 %v3444, %v3440
        %v4445 = vpack.c.b16 %v3445, %v3441
        %v4446 = vpack.c.b16 %v3450, %v3446
        %v4447 = vpack.c.b16 %v3451, %v3447
        %v4448 = vpack.c.b16 %v3452, %v3448
        %v4449 = vpack.c.b16 %v3453, %v3449
        %v4450 = vpack.c.b16 %v3458, %v3454
        %v4451 = vpack.c.b16 %v3459, %v3455
        %v4452 = vpack.c.b16 %v3460, %v3456
        %v4453 = vpack.c.b16 %v3461, %v3457
        %v4454 = vpack.c.b16 %v3466, %v3462
        %v4455 = vpack.c.b16 %v3467, %v3463
        %v4456 = vpack.c.b16 %v3468, %v3464
        %v4457 = vpack.c.b16 %v3469, %v3465
        %v4458 = vpack.c.b16 %v3474, %v3470
        %v4459 = vpack.c.b16 %v3475, %v3471
        %v4460 = vpack.c.b16 %v3476, %v3472
        %v4461 = vpack.c.b16 %v3477, %v3473
        %v4462 = vpack.c.b16 %v3482, %v3478
        %v4463 = vpack.c.b16 %v3483, %v3479
        %v4464 = vpack.c.b16 %v3484, %v3480
        %v4465 = vpack.c.b16 %v3485, %v3481
        %v4466 = vpack.c.b16 %v3490, %v3486
        %v4467 = vpack.c.b16 %v3491, %v3487
        %v4468 = vpack.c.b16 %v3492, %v3488
        %v4469 = vpack.c.b16 %v3493, %v3489
        %v4470 = vpack.c.b16 %v3498, %v3494
        %v4471 = vpack.c.b16 %v3499, %v3495
        %v4472 = vpack.c.b16 %v3500, %v3496
        %v4473 = vpack.c.b16 %v3501, %v3497
        %v4474 = vpack.c.b16 %v3506, %v3502
        %v4475 = vpack.c.b16 %v3507, %v3503
        %v4476 = vpack.c.b16 %v3508, %v3504
        %v4477 = vpack.c.b16 %v3509, %v3505
        %v4478 = vpack.c.b16 %v3514, %v3510
        %v4479 = vpack.c.b16 %v3515, %v3511
        %v4480 = vpack.c.b16 %v3516, %v3512
        %v4481 = vpack.c.b16 %v3517, %v3513
        %v4482 = vpack.c.b16 %v3522, %v3518
        %v4483 = vpack.c.b16 %v3523, %v3519
        %v4484 = vpack.c.b16 %v3524, %v3520
        %v4485 = vpack.c.b16 %v3525, %v3521
        %v4486 = vpack.c.b16 %v3530, %v3526
        %v4487 = vpack.c.b16 %v3531, %v3527
        %v4488 = vpack.c.b16 %v3532, %v3528
        %v4489 = vpack.c.b16 %v3533, %v3529
        %v4490 = vpack.c.b16 %v3538, %v3534
        %v4491 = vpack.c.b16 %v3539, %v3535
        %v4492 = vpack.c.b16 %v3540, %v3536
        %v4493 = vpack.c.b16 %v3541, %v3537
        %v4494 = vpack.c.b16 %v3546, %v3542
        %v4495 = vpack.c.b16 %v3547, %v3543
        %v4496 = vpack.c.b16 %v3548, %v3544
        %v4497 = vpack.c.b16 %v3549, %v3545
        %v4498 = vpack.c.b16 %v3554, %v3550
        %v4499 = vpack.c.b16 %v3555, %v3551
        %v4500 = vpack.c.b16 %v3556, %v3552
        %v4501 = vpack.c.b16 %v3557, %v3553
        %v4502 = vpack.c.b16 %v3562, %v3558
        %v4503 = vpack.c.b16 %v3563, %v3559
        %v4504 = vpack.c.b16 %v3564, %v3560
        %v4505 = vpack.c.b16 %v3565, %v3561
        %v4506 = vpack.c.b16 %v3570, %v3566
        %v4507 = vpack.c.b16 %v3571, %v3567
        %v4508 = vpack.c.b16 %v3572, %v3568
        %v4509 = vpack.c.b16 %v3573, %v3569
        %v4510 = vpack.c.b16 %v3578, %v3574
        %v4511 = vpack.c.b16 %v3579, %v3575
        %v4512 = vpack.c.b16 %v3580, %v3576
        %v4513 = vpack.c.b16 %v3581, %v3577
        %v4514 = vpack.c.b16 %v3586, %v3582
        %v4515 = vpack.c.b16 %v3587, %v3583
        %v4516 = vpack.c.b16 %v3588, %v3584
        %v4517 = vpack.c.b16 %v3589, %v3585
        %v4518 = vpack.c.b16 %v3594, %v3590
        %v4519 = vpack.c.b16 %v3595, %v3591
        %v4520 = vpack.c.b16 %v3596, %v3592
        %v4521 = vpack.c.b16 %v3597, %v3593
        %v4522 = vpack.c.b16 %v3602, %v3598
        %v4523 = vpack.c.b16 %v3603, %v3599
        %v4524 = vpack.c.b16 %v3604, %v3600
        %v4525 = vpack.c.b16 %v3605, %v3601
        %v4526 = vpack.c.b16 %v3610, %v3606
        %v4527 = vpack.c.b16 %v3611, %v3607
        %v4528 = vpack.c.b16 %v3612, %v3608
        %v4529 = vpack.c.b16 %v3613, %v3609
        %v4530 = vpack.c.b16 %v3618, %v3614
        %v4531 = vpack.c.b16 %v3619, %v3615
        %v4532 = vpack.c.b16 %v3620, %v3616
        %v4533 = vpack.c.b16 %v3621, %v3617
        %v4534 = vpack.c.b16 %v3626, %v3622
        %v4535 = vpack.c.b16 %v3627, %v3623
        %v4536 = vpack.c.b16 %v3628, %v3624
        %v4537 = vpack.c.b16 %v3629, %v3625
        %v4538 = vpack.c.b16 %v3634, %v3630
        %v4539 = vpack.c.b16 %v3635, %v3631
        %v4540 = vpack.c.b16 %v3636, %v3632
        %v4541 = vpack.c.b16 %v3637, %v3633
        %v4542 = vpack.c.b16 %v3642, %v3638
        %v4543 = vpack.c.b16 %v3643, %v3639
        %v4544 = vpack.c.b16 %v3644, %v3640
        %v4545 = vpack.c.b16 %v3645, %v3641
        %v4546 = vpack.c.b16 %v3650, %v3646
        %v4547 = vpack.c.b16 %v3651, %v3647
        %v4548 = vpack.c.b16 %v3652, %v3648
        %v4549 = vpack.c.b16 %v3653, %v3649
        %v4550 = vpack.c.b16 %v3658, %v3654
        %v4551 = vpack.c.b16 %v3659, %v3655
        %v4552 = vpack.c.b16 %v3660, %v3656
        %v4553 = vpack.c.b16 %v3661, %v3657
        %v4554 = vpack.c.b16 %v3666, %v3662
        %v4555 = vpack.c.b16 %v3667, %v3663
        %v4556 = vpack.c.b16 %v3668, %v3664
        %v4557 = vpack.c.b16 %v3669, %v3665
        %v4558 = vpack.c.b16 %v3674, %v3670
        %v4559 = vpack.c.b16 %v3675, %v3671
        %v4560 = vpack.c.b16 %v3676, %v3672
        %v4561 = vpack.c.b16 %v3677, %v3673
        %v4562 = vpack.c.b16 %v3682, %v3678
        %v4563 = vpack.c.b16 %v3683, %v3679
        %v4564 = vpack.c.b16 %v3684, %v3680
        %v4565 = vpack.c.b16 %v3685, %v3681
        %v4566 = vpack.c.b16 %v3690, %v3686
        %v4567 = vpack.c.b16 %v3691, %v3687
        %v4568 = vpack.c.b16 %v3692, %v3688
        %v4569 = vpack.c.b16 %v3693, %v3689
        %v4570 = vpack.c.b16 %v3698, %v3694
        %v4571 = vpack.c.b16 %v3699, %v3695
        %v4572 = vpack.c.b16 %v3700, %v3696
        %v4573 = vpack.c.b16 %v3701, %v3697
        %v4574 = vpack.c.b16 %v3706, %v3702
        %v4575 = vpack.c.b16 %v3707, %v3703
        %v4576 = vpack.c.b16 %v3708, %v3704
        %v4577 = vpack.c.b16 %v3709, %v3705
        %v4578 = vpack.c.b16 %v3714, %v3710
        %v4579 = vpack.c.b16 %v3715, %v3711
        %v4580 = vpack.c.b16 %v3716, %v3712
        %v4581 = vpack.c.b16 %v3717, %v3713
        %v4582 = vpack.c.b16 %v3722, %v3718
        %v4583 = vpack.c.b16 %v3723, %v3719
        %v4584 = vpack.c.b16 %v3724, %v3720
        %v4585 = vpack.c.b16 %v3725, %v3721
        %v4586 = vpack.c.b16 %v3730, %v3726
        %v4587 = vpack.c.b16 %v3731, %v3727
        %v4588 = vpack.c.b16 %v3732, %v3728
        %v4589 = vpack.c.b16 %v3733, %v3729
        %v4590 = vpack.c.b16 %v3738, %v3734
        %v4591 = vpack.c.b16 %v3739, %v3735
        %v4592 = vpack.c.b16 %v3740, %v3736
        %v4593 = vpack.c.b16 %v3741, %v3737
        %v4594 = vpack.c.b16 %v3746, %v3742
        %v4595 = vpack.c.b16 %v3747, %v3743
        %v4596 = vpack.c.b16 %v3748, %v3744
        %v4597 = vpack.c.b16 %v3749, %v3745
        %v4598 = vpack.c.b16 %v3754, %v3750
        %v4599 = vpack.c.b16 %v3755, %v3751
        %v4600 = vpack.c.b16 %v3756, %v3752
        %v4601 = vpack.c.b16 %v3757, %v3753
        %v4602 = vpack.c.b16 %v3762, %v3758
        %v4603 = vpack.c.b16 %v3763, %v3759
        %v4604 = vpack.c.b16 %v3764, %v3760
        %v4605 = vpack.c.b16 %v3765, %v3761
        %v4606 = vpack.c.b16 %v3770, %v3766
        %v4607 = vpack.c.b16 %v3771, %v3767
        %v4608 = vpack.c.b16 %v3772, %v3768
        %v4609 = vpack.c.b16 %v3773, %v3769
        %v4610 = vpack.c.b16 %v3778, %v3774
        %v4611 = vpack.c.b16 %v3779, %v3775
        %v4612 = vpack.c.b16 %v3780, %v3776
        %v4613 = vpack.c.b16 %v3781, %v3777
        %v4614 = vpack.c.b16 %v3786, %v3782
        %v4615 = vpack.c.b16 %v3787, %v3783
        %v4616 = vpack.c.b16 %v3788, %v3784
        %v4617 = vpack.c.b16 %v3789, %v3785
        %v4618 = vpack.c.b16 %v3794, %v3790
        %v4619 = vpack.c.b16 %v3795, %v3791
        %v4620 = vpack.c.b16 %v3796, %v3792
        %v4621 = vpack.c.b16 %v3797, %v3793
        %v4622 = vpack.c.b16 %v3802, %v3798
        %v4623 = vpack.c.b16 %v3803, %v3799
        %v4624 = vpack.c.b16 %v3804, %v3800
        %v4625 = vpack.c.b16 %v3805, %v3801
        %v4626 = vpack.c.b16 %v3810, %v3806
        %v4627 = vpack.c.b16 %v3811, %v3807
        %v4628 = vpack.c.b16 %v3812, %v3808
        %v4629 = vpack.c.b16 %v3813, %v3809
        %v4630 = vpack.c.b16 %v3818, %v3814
        %v4631 = vpack.c.b16 %v3819, %v3815
        %v4632 = vpack.c.b16 %v3820, %v3816
        %v4633 = vpack.c.b16 %v3821, %v3817
        %v4634 = vpack.c.b16 %v3826, %v3822
        %v4635 = vpack.c.b16 %v3827, %v3823
        %v4636 = vpack.c.b16 %v3828, %v3824
        %v4637 = vpack.c.b16 %v3829, %v3825
        %v4638 = vpack.c.b16 %v3834, %v3830
        %v4639 = vpack.c.b16 %v3835, %v3831
        %v4640 = vpack.c.b16 %v3836, %v3832
        %v4641 = vpack.c.b16 %v3837, %v3833
        %v4642 = vpack.c.b16 %v3842, %v3838
        %v4643 = vpack.c.b16 %v3843, %v3839
        %v4644 = vpack.c.b16 %v3844, %v3840
        %v4645 = vpack.c.b16 %v3845, %v3841
        %v4646 = vpack.c.b16 %v3850, %v3846
        %v4647 = vpack.c.b16 %v3851, %v3847
        %v4648 = vpack.c.b16 %v3852, %v3848
        %v4649 = vpack.c.b16 %v3853, %v3849
        %v4650 = vpack.c.b16 %v3858, %v3854
        %v4651 = vpack.c.b16 %v3859, %v3855
        %v4652 = vpack.c.b16 %v3860, %v3856
        %v4653 = vpack.c.b16 %v3861, %v3857
        %v4654 = vpack.c.b16 %v3866, %v3862
        %v4655 = vpack.c.b16 %v3867, %v3863
        %v4656 = vpack.c.b16 %v3868, %v3864
        %v4657 = vpack.c.b16 %v3869, %v3865
        %v4658 = vpack.c.b16 %v3874, %v3870
        %v4659 = vpack.c.b16 %v3875, %v3871
        %v4660 = vpack.c.b16 %v3876, %v3872
        %v4661 = vpack.c.b16 %v3877, %v3873
        %v4662 = vpack.c.b16 %v3882, %v3878
        %v4663 = vpack.c.b16 %v3883, %v3879
        %v4664 = vpack.c.b16 %v3884, %v3880
        %v4665 = vpack.c.b16 %v3885, %v3881
        %v4666 = vpack.c.b16 %v3890, %v3886
        %v4667 = vpack.c.b16 %v3891, %v3887
        %v4668 = vpack.c.b16 %v3892, %v3888
        %v4669 = vpack.c.b16 %v3893, %v3889
        %v4670 = vpack.c.b16 %v3898, %v3894
        %v4671 = vpack.c.b16 %v3899, %v3895
        %v4672 = vpack.c.b16 %v3900, %v3896
        %v4673 = vpack.c.b16 %v3901, %v3897
        %v4674 = vpack.c.b16 %v3906, %v3902
        %v4675 = vpack.c.b16 %v3907, %v3903
        %v4676 = vpack.c.b16 %v3908, %v3904
        %v4677 = vpack.c.b16 %v3909, %v3905
        %v4678 = vpack.c.b16 %v3914, %v3910
        %v4679 = vpack.c.b16 %v3915, %v3911
        %v4680 = vpack.c.b16 %v3916, %v3912
        %v4681 = vpack.c.b16 %v3917, %v3913
        %v4682 = vpack.c.b16 %v3922, %v3918
        %v4683 = vpack.c.b16 %v3923, %v3919
        %v4684 = vpack.c.b16 %v3924, %v3920
        %v4685 = vpack.c.b16 %v3925, %v3921
        %v4686 = vpack.c.b16 %v3930, %v3926
        %v4687 = vpack.c.b16 %v3931, %v3927
        %v4688 = vpack.c.b16 %v3932, %v3928
        %v4689 = vpack.c.b16 %v3933, %v3929
        %v4690 = vpack.c.b16 %v3938, %v3934
        %v4691 = vpack.c.b16 %v3939, %v3935
        %v4692 = vpack.c.b16 %v3940, %v3936
        %v4693 = vpack.c.b16 %v3941, %v3937
        %v4694 = vpack.c.b16 %v3946, %v3942
        %v4695 = vpack.c.b16 %v3947, %v3943
        %v4696 = vpack.c.b16 %v3948, %v3944
        %v4697 = vpack.c.b16 %v3949, %v3945
        %v4698 = vpack.c.b16 %v3954, %v3950
        %v4699 = vpack.c.b16 %v3955, %v3951
        %v4700 = vpack.c.b16 %v3956, %v3952
        %v4701 = vpack.c.b16 %v3957, %v3953
        %v4702 = vpack.c.b16 %v3962, %v3958
        %v4703 = vpack.c.b16 %v3963, %v3959
        %v4704 = vpack.c.b16 %v3964, %v3960
        %v4705 = vpack.c.b16 %v3965, %v3961
        %v4706 = vpack.c.b16 %v3970, %v3966
        %v4707 = vpack.c.b16 %v3971, %v3967
        %v4708 = vpack.c.b16 %v3972, %v3968
        %v4709 = vpack.c.b16 %v3973, %v3969
        %v4710 = vpack.c.b16 %v3978, %v3974
        %v4711 = vpack.c.b16 %v3979, %v3975
        %v4712 = vpack.c.b16 %v3980, %v3976
        %v4713 = vpack.c.b16 %v3981, %v3977
        %v4714 = vpack.c.b16 %v3986, %v3982
        %v4715 = vpack.c.b16 %v3987, %v3983
        %v4716 = vpack.c.b16 %v3988, %v3984
        %v4717 = vpack.c.b16 %v3989, %v3985
        %v4718 = vpack.c.b16 %v3994, %v3990
        %v4719 = vpack.c.b16 %v3995, %v3991
        %v4720 = vpack.c.b16 %v3996, %v3992
        %v4721 = vpack.c.b16 %v3997, %v3993
        %v4722 = vpack.c.b16 %v4002, %v3998
        %v4723 = vpack.c.b16 %v4003, %v3999
        %v4724 = vpack.c.b16 %v4004, %v4000
        %v4725 = vpack.c.b16 %v4005, %v4001
        %v4726 = vpack.c.b16 %v4010, %v4006
        %v4727 = vpack.c.b16 %v4011, %v4007
        %v4728 = vpack.c.b16 %v4012, %v4008
        %v4729 = vpack.c.b16 %v4013, %v4009
        %v4730 = vpack.c.b16 %v4018, %v4014
        %v4731 = vpack.c.b16 %v4019, %v4015
        %v4732 = vpack.c.b16 %v4020, %v4016
        %v4733 = vpack.c.b16 %v4021, %v4017
        %v4734 = vpack.c.b16 %v4026, %v4022
        %v4735 = vpack.c.b16 %v4027, %v4023
        %v4736 = vpack.c.b16 %v4028, %v4024
        %v4737 = vpack.c.b16 %v4029, %v4025
        %v4738 = vpack.c.b16 %v4034, %v4030
        %v4739 = vpack.c.b16 %v4035, %v4031
        %v4740 = vpack.c.b16 %v4036, %v4032
        %v4741 = vpack.c.b16 %v4037, %v4033
        %v4742 = vpack.c.b16 %v4042, %v4038
        %v4743 = vpack.c.b16 %v4043, %v4039
        %v4744 = vpack.c.b16 %v4044, %v4040
        %v4745 = vpack.c.b16 %v4045, %v4041
        %v4746 = vpack.c.b16 %v4050, %v4046
        %v4747 = vpack.c.b16 %v4051, %v4047
        %v4748 = vpack.c.b16 %v4052, %v4048
        %v4749 = vpack.c.b16 %v4053, %v4049
        %v4750 = vpack.c.b16 %v4058, %v4054
        %v4751 = vpack.c.b16 %v4059, %v4055
        %v4752 = vpack.c.b16 %v4060, %v4056
        %v4753 = vpack.c.b16 %v4061, %v4057
        %v4754 = vpack.c.b16 %v4066, %v4062
        %v4755 = vpack.c.b16 %v4067, %v4063
        %v4756 = vpack.c.b16 %v4068, %v4064
        %v4757 = vpack.c.b16 %v4069, %v4065
        %v4758 = vpack.c.b16 %v4074, %v4070
        %v4759 = vpack.c.b16 %v4075, %v4071
        %v4760 = vpack.c.b16 %v4076, %v4072
        %v4761 = vpack.c.b16 %v4077, %v4073
        %v4762 = vpack.c.b16 %v4082, %v4078
        %v4763 = vpack.c.b16 %v4083, %v4079
        %v4764 = vpack.c.b16 %v4084, %v4080
        %v4765 = vpack.c.b16 %v4085, %v4081
        %v4766 = vpack.c.b16 %v4090, %v4086
        %v4767 = vpack.c.b16 %v4091, %v4087
        %v4768 = vpack.c.b16 %v4092, %v4088
        %v4769 = vpack.c.b16 %v4093, %v4089
        %v4770 = vpack.c.b16 %v4098, %v4094
        %v4771 = vpack.c.b16 %v4099, %v4095
        %v4772 = vpack.c.b16 %v4100, %v4096
        %v4773 = vpack.c.b16 %v4101, %v4097
        %v4774 = vpack.c.b16 %v4106, %v4102
        %v4775 = vpack.c.b16 %v4107, %v4103
        %v4776 = vpack.c.b16 %v4108, %v4104
        %v4777 = vpack.c.b16 %v4109, %v4105
        %v4778 = vpack.c.b16 %v4114, %v4110
        %v4779 = vpack.c.b16 %v4115, %v4111
        %v4780 = vpack.c.b16 %v4116, %v4112
        %v4781 = vpack.c.b16 %v4117, %v4113
        %v4782 = vpack.c.b16 %v4122, %v4118
        %v4783 = vpack.c.b16 %v4123, %v4119
        %v4784 = vpack.c.b16 %v4124, %v4120
        %v4785 = vpack.c.b16 %v4125, %v4121
        %v4786 = vpack.c.b16 %v4130, %v4126
        %v4787 = vpack.c.b16 %v4131, %v4127
        %v4788 = vpack.c.b16 %v4132, %v4128
        %v4789 = vpack.c.b16 %v4133, %v4129
        %v4790 = vpack.c.b16 %v4138, %v4134
        %v4791 = vpack.c.b16 %v4139, %v4135
        %v4792 = vpack.c.b16 %v4140, %v4136
        %v4793 = vpack.c.b16 %v4141, %v4137
        %v4794 = vpack.c.b16 %v4146, %v4142
        %v4795 = vpack.c.b16 %v4147, %v4143
        %v4796 = vpack.c.b16 %v4148, %v4144
        %v4797 = vpack.c.b16 %v4149, %v4145
        %v4798 = vpack.c.b16 %v4154, %v4150
        %v4799 = vpack.c.b16 %v4155, %v4151
        %v4800 = vpack.c.b16 %v4156, %v4152
        %v4801 = vpack.c.b16 %v4157, %v4153
        %v4802 = vpack.c.b16 %v4162, %v4158
        %v4803 = vpack.c.b16 %v4163, %v4159
        %v4804 = vpack.c.b16 %v4164, %v4160
        %v4805 = vpack.c.b16 %v4165, %v4161
        %v4806 = vpack.c.b16 %v4170, %v4166
        %v4807 = vpack.c.b16 %v4171, %v4167
        %v4808 = vpack.c.b16 %v4172, %v4168
        %v4809 = vpack.c.b16 %v4173, %v4169
        %v4810 = vpack.c.b16 %v4178, %v4174
        %v4811 = vpack.c.b16 %v4179, %v4175
        %v4812 = vpack.c.b16 %v4180, %v4176
        %v4813 = vpack.c.b16 %v4181, %v4177
        %v4814 = vpack.c.b16 %v4186, %v4182
        %v4815 = vpack.c.b16 %v4187, %v4183
        %v4816 = vpack.c.b16 %v4188, %v4184
        %v4817 = vpack.c.b16 %v4189, %v4185
        %v4818 = vpack.c.b16 %v4194, %v4190
        %v4819 = vpack.c.b16 %v4195, %v4191
        %v4820 = vpack.c.b16 %v4196, %v4192
        %v4821 = vpack.c.b16 %v4197, %v4193
        %v4822 = vpack.c.b16 %v4202, %v4198
        %v4823 = vpack.c.b16 %v4203, %v4199
        %v4824 = vpack.c.b16 %v4204, %v4200
        %v4825 = vpack.c.b16 %v4205, %v4201
        %v4826 = vpack.c.b16 %v4210, %v4206
        %v4827 = vpack.c.b16 %v4211, %v4207
        %v4828 = vpack.c.b16 %v4212, %v4208
        %v4829 = vpack.c.b16 %v4213, %v4209
        %v4830 = vpack.c.b16 %v4218, %v4214
        %v4831 = vpack.c.b16 %v4219, %v4215
        %v4832 = vpack.c.b16 %v4220, %v4216
        %v4833 = vpack.c.b16 %v4221, %v4217
        %v4834 = vpack.c.b16 %v4226, %v4222
        %v4835 = vpack.c.b16 %v4227, %v4223
        %v4836 = vpack.c.b16 %v4228, %v4224
        %v4837 = vpack.c.b16 %v4229, %v4225
        %v4838 = vpack.c.b16 %v4234, %v4230
        %v4839 = vpack.c.b16 %v4235, %v4231
        %v4840 = vpack.c.b16 %v4236, %v4232
        %v4841 = vpack.c.b16 %v4237, %v4233
        %v4842 = vpack.c.b16 %v4242, %v4238
        %v4843 = vpack.c.b16 %v4243, %v4239
        %v4844 = vpack.c.b16 %v4244, %v4240
        %v4845 = vpack.c.b16 %v4245, %v4241
        %v4846 = vpack.c.b16 %v4250, %v4246
        %v4847 = vpack.c.b16 %v4251, %v4247
        %v4848 = vpack.c.b16 %v4252, %v4248
        %v4849 = vpack.c.b16 %v4253, %v4249
        %v4850 = vpack.c.b16 %v4258, %v4254
        %v4851 = vpack.c.b16 %v4259, %v4255
        %v4852 = vpack.c.b16 %v4260, %v4256
        %v4853 = vpack.c.b16 %v4261, %v4257
        %v4854 = vpack.c.b16 %v4266, %v4262
        %v4855 = vpack.c.b16 %v4267, %v4263
        %v4856 = vpack.c.b16 %v4268, %v4264
        %v4857 = vpack.c.b16 %v4269, %v4265
        %v4858 = vpack.c.b16 %v4274, %v4270
        %v4859 = vpack.c.b16 %v4275, %v4271
        %v4860 = vpack.c.b16 %v4276, %v4272
        %v4861 = vpack.c.b16 %v4277, %v4273
        %v4862 = vpack.c.b16 %v4282, %v4278
        %v4863 = vpack.c.b16 %v4283, %v4279
        %v4864 = vpack.c.b16 %v4284, %v4280
        %v4865 = vpack.c.b16 %v4285, %v4281
        %v4866 = vpack.c.b16 %v4290, %v4286
        %v4867 = vpack.c.b16 %v4291, %v4287
        %v4868 = vpack.c.b16 %v4292, %v4288
        %v4869 = vpack.c.b16 %v4293, %v4289
        %5446 = vmatprep.subr.bf16.mxu0 %v4323
        %5447 = vmatpush1.bf16.msra.mxu0 %v4322
        %5448 = vmatprep.subr.bf16.mxu0 %v4319
        %5449 = vmatpush1.bf16.msra.mxu0 %v4318
        %5450 = vmatprep.subr.bf16.mxu0 %v4315
        %5451 = vmatpush1.bf16.msra.mxu0 %v4314
        %5452 = vmatprep.subr.bf16.mxu0 %v4311
        %5453 = vmatpush1.bf16.msra.mxu0 %v4310
        %5454 = vmatprep.subr.bf16.mxu0 %v4307
        %5455 = vmatpush1.bf16.msra.mxu0 %v4306
        %5456 = vmatprep.subr.bf16.mxu0 %v4303
        %5457 = vmatpush1.bf16.msra.mxu0 %v4302
        %5458 = vmatprep.subr.bf16.mxu0 %v4299
        %5459 = vmatpush1.bf16.msra.mxu0 %v4298
        %5460 = vmatprep.subr.bf16.mxu0 %v4295
        %5461 = vmatpush1.bf16.msra.mxu0 %v4294
        %5462 = vmatprep.subr.bf16.mxu0 %v4355
        %5463 = vmatpush2.bf16.msra.mxu0 %v4354
        %5464 = vmatprep.subr.bf16.mxu0 %v4351
        %5465 = vmatpush2.bf16.msra.mxu0 %v4350
        %5466 = vmatprep.subr.bf16.mxu0 %v4347
        %5467 = vmatpush2.bf16.msra.mxu0 %v4346
        %5468 = vmatprep.subr.bf16.mxu0 %v4343
        %5469 = vmatpush2.bf16.msra.mxu0 %v4342
        %5470 = vmatprep.subr.bf16.mxu0 %v4339
        %5471 = vmatpush2.bf16.msra.mxu0 %v4338
        %5472 = vmatprep.subr.bf16.mxu0 %v4335
        %5473 = vmatpush2.bf16.msra.mxu0 %v4334
        %5474 = vmatprep.subr.bf16.mxu0 %v4331
        %5475 = vmatpush2.bf16.msra.mxu0 %v4330
        %5476 = vmatprep.subr.bf16.mxu0 %v4327
        %5477 = vmatpush2.bf16.msra.mxu0 %v4326
        %5478 = vmatprep.mubr.bf16.mxu0 %v1393
        %5479 = vmatmul.mubr.bf16.gmra.mxu0 %v1392
        %v5480 = vpop.f32.mrf.mxu0
        %v5481 = vadd.f32 %v2549, %v5480
        %v5482 = vpop.f32.mrf.mxu0
        %v5483 = vadd.f32 %v2553, %v5482
        %v5484 = vpop.f32.mrf.mxu0
        %v5485 = vadd.f32 %v2549, %v5484
        %v5486 = vpop.f32.mrf.mxu0
        %v5487 = vadd.f32 %v2553, %v5486
        %5488 = vmatprep.mubr.bf16.mxu0 %v1395
        %5489 = vmatmul.mubr.bf16.gmra.mxu0 %v1394
        %v5490 = vpop.f32.mrf.mxu0
        %v5491 = vadd.f32 %v2549, %v5490
        %v5492 = vpop.f32.mrf.mxu0
        %v5493 = vadd.f32 %v2553, %v5492
        %v5494 = vpop.f32.mrf.mxu0
        %v5495 = vadd.f32 %v2549, %v5494
        %v5496 = vpop.f32.mrf.mxu0
        %v5497 = vadd.f32 %v2553, %v5496
        %5498 = vmatprep.mubr.bf16.mxu0 %v1397
        %5499 = vmatmul.mubr.bf16.gmra.mxu0 %v1396
        %v5500 = vpop.f32.mrf.mxu0
        %v5501 = vadd.f32 %v2549, %v5500
        %v5502 = vpop.f32.mrf.mxu0
        %v5503 = vadd.f32 %v2553, %v5502
        %v5504 = vpop.f32.mrf.mxu0
        %v5505 = vadd.f32 %v2549, %v5504
        %v5506 = vpop.f32.mrf.mxu0
        %v5507 = vadd.f32 %v2553, %v5506
        %5508 = vmatprep.mubr.bf16.mxu0 %v1399
        %5509 = vmatmul.mubr.bf16.gmra.mxu0 %v1398
        %v5510 = vpop.f32.mrf.mxu0
        %v5511 = vadd.f32 %v2549, %v5510
        %v5512 = vpop.f32.mrf.mxu0
        %v5513 = vadd.f32 %v2553, %v5512
        %v5514 = vpop.f32.mrf.mxu0
        %v5515 = vadd.f32 %v2549, %v5514
        %v5516 = vpop.f32.mrf.mxu0
        %v5517 = vadd.f32 %v2553, %v5516
        %5518 = vmatprep.mubr.bf16.mxu0 %v1401
        %5519 = vmatmul.mubr.bf16.gmra.mxu0 %v1400
        %v5520 = vpop.f32.mrf.mxu0
        %v5521 = vadd.f32 %v2549, %v5520
        %v5522 = vpop.f32.mrf.mxu0
        %v5523 = vadd.f32 %v2553, %v5522
        %v5524 = vpop.f32.mrf.mxu0
        %v5525 = vadd.f32 %v2549, %v5524
        %v5526 = vpop.f32.mrf.mxu0
        %v5527 = vadd.f32 %v2553, %v5526
        %5528 = vmatprep.mubr.bf16.mxu0 %v1403
        %5529 = vmatmul.mubr.bf16.gmra.mxu0 %v1402
        %v5530 = vpop.f32.mrf.mxu0
        %v5531 = vadd.f32 %v2549, %v5530
        %v5532 = vpop.f32.mrf.mxu0
        %v5533 = vadd.f32 %v2553, %v5532
        %v5534 = vpop.f32.mrf.mxu0
        %v5535 = vadd.f32 %v2549, %v5534
        %v5536 = vpop.f32.mrf.mxu0
        %v5537 = vadd.f32 %v2553, %v5536
        %5538 = vmatprep.mubr.bf16.mxu0 %v1405
        %5539 = vmatmul.mubr.bf16.gmra.mxu0 %v1404
        %v5540 = vpop.f32.mrf.mxu0
        %v5541 = vadd.f32 %v2549, %v5540
        %v5542 = vpop.f32.mrf.mxu0
        %v5543 = vadd.f32 %v2553, %v5542
        %v5544 = vpop.f32.mrf.mxu0
        %v5545 = vadd.f32 %v2549, %v5544
        %v5546 = vpop.f32.mrf.mxu0
        %v5547 = vadd.f32 %v2553, %v5546
        %5548 = vmatprep.mubr.bf16.mxu0 %v1407
        %5549 = vmatmul.mubr.bf16.gmra.mxu0 %v1406
        %v5550 = vpop.f32.mrf.mxu0
        %v5551 = vadd.f32 %v2549, %v5550
        %v5552 = vpop.f32.mrf.mxu0
        %v5553 = vadd.f32 %v2553, %v5552
        %v5554 = vpop.f32.mrf.mxu0
        %v5555 = vadd.f32 %v2549, %v5554
        %v5556 = vpop.f32.mrf.mxu0
        %v5557 = vadd.f32 %v2553, %v5556
        %5558 = vdwg.mxu0
        %5559 = vmatprep.subr.bf16.mxu0 %v4387
        %5560 = vmatpush1.bf16.msra.mxu0 %v4386
        %5561 = vmatprep.subr.bf16.mxu0 %v4383
        %5562 = vmatpush1.bf16.msra.mxu0 %v4382
        %5563 = vmatprep.subr.bf16.mxu0 %v4379
        %5564 = vmatpush1.bf16.msra.mxu0 %v4378
        %5565 = vmatprep.subr.bf16.mxu0 %v4375
        %5566 = vmatpush1.bf16.msra.mxu0 %v4374
        %5567 = vmatprep.subr.bf16.mxu0 %v4371
        %5568 = vmatpush1.bf16.msra.mxu0 %v4370
        %5569 = vmatprep.subr.bf16.mxu0 %v4367
        %5570 = vmatpush1.bf16.msra.mxu0 %v4366
        %5571 = vmatprep.subr.bf16.mxu0 %v4363
        %5572 = vmatpush1.bf16.msra.mxu0 %v4362
        %5573 = vmatprep.subr.bf16.mxu0 %v4359
        %5574 = vmatpush1.bf16.msra.mxu0 %v4358
        %5575 = vmatprep.subr.bf16.mxu0 %v4419
        %5576 = vmatpush2.bf16.msra.mxu0 %v4418
        %5577 = vmatprep.subr.bf16.mxu0 %v4415
        %5578 = vmatpush2.bf16.msra.mxu0 %v4414
        %5579 = vmatprep.subr.bf16.mxu0 %v4411
        %5580 = vmatpush2.bf16.msra.mxu0 %v4410
        %5581 = vmatprep.subr.bf16.mxu0 %v4407
        %5582 = vmatpush2.bf16.msra.mxu0 %v4406
        %5583 = vmatprep.subr.bf16.mxu0 %v4403
        %5584 = vmatpush2.bf16.msra.mxu0 %v4402
        %5585 = vmatprep.subr.bf16.mxu0 %v4399
        %5586 = vmatpush2.bf16.msra.mxu0 %v4398
        %5587 = vmatprep.subr.bf16.mxu0 %v4395
        %5588 = vmatpush2.bf16.msra.mxu0 %v4394
        %5589 = vmatprep.subr.bf16.mxu0 %v4391
        %5590 = vmatpush2.bf16.msra.mxu0 %v4390
        %5591 = vmatprep.mubr.bf16.mxu0 %v1457
        %5592 = vmatmul.mubr.bf16.gmra.mxu0 %v1456
        %v5593 = vpop.f32.mrf.mxu0
        %v5594 = vadd.f32 %v5481, %v5593
        %v5595 = vpop.f32.mrf.mxu0
        %v5596 = vadd.f32 %v5483, %v5595
        %v5597 = vpop.f32.mrf.mxu0
        %v5598 = vadd.f32 %v5485, %v5597
        %v5599 = vpop.f32.mrf.mxu0
        %v5600 = vadd.f32 %v5487, %v5599
        %5601 = vmatprep.mubr.bf16.mxu0 %v1459
        %5602 = vmatmul.mubr.bf16.gmra.mxu0 %v1458
        %v5603 = vpop.f32.mrf.mxu0
        %v5604 = vadd.f32 %v5491, %v5603
        %v5605 = vpop.f32.mrf.mxu0
        %v5606 = vadd.f32 %v5493, %v5605
        %v5607 = vpop.f32.mrf.mxu0
        %v5608 = vadd.f32 %v5495, %v5607
        %v5609 = vpop.f32.mrf.mxu0
        %v5610 = vadd.f32 %v5497, %v5609
        %5611 = vmatprep.mubr.bf16.mxu0 %v1461
        %5612 = vmatmul.mubr.bf16.gmra.mxu0 %v1460
        %v5613 = vpop.f32.mrf.mxu0
        %v5614 = vadd.f32 %v5501, %v5613
        %v5615 = vpop.f32.mrf.mxu0
        %v5616 = vadd.f32 %v5503, %v5615
        %v5617 = vpop.f32.mrf.mxu0
        %v5618 = vadd.f32 %v5505, %v5617
        %v5619 = vpop.f32.mrf.mxu0
        %v5620 = vadd.f32 %v5507, %v5619
        %5621 = vmatprep.mubr.bf16.mxu0 %v1463
        %5622 = vmatmul.mubr.bf16.gmra.mxu0 %v1462
        %v5623 = vpop.f32.mrf.mxu0
        %v5624 = vadd.f32 %v5511, %v5623
        %v5625 = vpop.f32.mrf.mxu0
        %v5626 = vadd.f32 %v5513, %v5625
        %v5627 = vpop.f32.mrf.mxu0
        %v5628 = vadd.f32 %v5515, %v5627
        %v5629 = vpop.f32.mrf.mxu0
        %v5630 = vadd.f32 %v5517, %v5629
        %5631 = vmatprep.mubr.bf16.mxu0 %v1465
        %5632 = vmatmul.mubr.bf16.gmra.mxu0 %v1464
        %v5633 = vpop.f32.mrf.mxu0
        %v5634 = vadd.f32 %v5521, %v5633
        %v5635 = vpop.f32.mrf.mxu0
        %v5636 = vadd.f32 %v5523, %v5635
        %v5637 = vpop.f32.mrf.mxu0
        %v5638 = vadd.f32 %v5525, %v5637
        %v5639 = vpop.f32.mrf.mxu0
        %v5640 = vadd.f32 %v5527, %v5639
        %5641 = vmatprep.mubr.bf16.mxu0 %v1467
        %5642 = vmatmul.mubr.bf16.gmra.mxu0 %v1466
        %v5643 = vpop.f32.mrf.mxu0
        %v5644 = vadd.f32 %v5531, %v5643
        %v5645 = vpop.f32.mrf.mxu0
        %v5646 = vadd.f32 %v5533, %v5645
        %v5647 = vpop.f32.mrf.mxu0
        %v5648 = vadd.f32 %v5535, %v5647
        %v5649 = vpop.f32.mrf.mxu0
        %v5650 = vadd.f32 %v5537, %v5649
        %5651 = vmatprep.mubr.bf16.mxu0 %v1469
        %5652 = vmatmul.mubr.bf16.gmra.mxu0 %v1468
        %v5653 = vpop.f32.mrf.mxu0
        %v5654 = vadd.f32 %v5541, %v5653
        %v5655 = vpop.f32.mrf.mxu0
        %v5656 = vadd.f32 %v5543, %v5655
        %v5657 = vpop.f32.mrf.mxu0
        %v5658 = vadd.f32 %v5545, %v5657
        %v5659 = vpop.f32.mrf.mxu0
        %v5660 = vadd.f32 %v5547, %v5659
        %5661 = vmatprep.mubr.bf16.mxu0 %v1471
        %5662 = vmatmul.mubr.bf16.gmra.mxu0 %v1470
        %v5663 = vpop.f32.mrf.mxu0
        %v5664 = vadd.f32 %v5551, %v5663
        %v5665 = vpop.f32.mrf.mxu0
        %v5666 = vadd.f32 %v5553, %v5665
        %v5667 = vpop.f32.mrf.mxu0
        %v5668 = vadd.f32 %v5555, %v5667
        %v5669 = vpop.f32.mrf.mxu0
        %v5670 = vadd.f32 %v5557, %v5669
        %5671 = vdwg.mxu0
        %5672 = vmatprep.subr.bf16.mxu0 %v4451
        %5673 = vmatpush1.bf16.msra.mxu0 %v4450
        %5674 = vmatprep.subr.bf16.mxu0 %v4447
        %5675 = vmatpush1.bf16.msra.mxu0 %v4446
        %5676 = vmatprep.subr.bf16.mxu0 %v4443
        %5677 = vmatpush1.bf16.msra.mxu0 %v4442
        %5678 = vmatprep.subr.bf16.mxu0 %v4439
        %5679 = vmatpush1.bf16.msra.mxu0 %v4438
        %5680 = vmatprep.subr.bf16.mxu0 %v4435
        %5681 = vmatpush1.bf16.msra.mxu0 %v4434
        %5682 = vmatprep.subr.bf16.mxu0 %v4431
        %5683 = vmatpush1.bf16.msra.mxu0 %v4430
        %5684 = vmatprep.subr.bf16.mxu0 %v4427
        %5685 = vmatpush1.bf16.msra.mxu0 %v4426
        %5686 = vmatprep.subr.bf16.mxu0 %v4423
        %5687 = vmatpush1.bf16.msra.mxu0 %v4422
        %5688 = vmatprep.subr.bf16.mxu0 %v4483
        %5689 = vmatpush2.bf16.msra.mxu0 %v4482
        %5690 = vmatprep.subr.bf16.mxu0 %v4479
        %5691 = vmatpush2.bf16.msra.mxu0 %v4478
        %5692 = vmatprep.subr.bf16.mxu0 %v4475
        %5693 = vmatpush2.bf16.msra.mxu0 %v4474
        %5694 = vmatprep.subr.bf16.mxu0 %v4471
        %5695 = vmatpush2.bf16.msra.mxu0 %v4470
        %5696 = vmatprep.subr.bf16.mxu0 %v4467
        %5697 = vmatpush2.bf16.msra.mxu0 %v4466
        %5698 = vmatprep.subr.bf16.mxu0 %v4463
        %5699 = vmatpush2.bf16.msra.mxu0 %v4462
        %5700 = vmatprep.subr.bf16.mxu0 %v4459
        %5701 = vmatpush2.bf16.msra.mxu0 %v4458
        %5702 = vmatprep.subr.bf16.mxu0 %v4455
        %5703 = vmatpush2.bf16.msra.mxu0 %v4454
        %5704 = vmatprep.mubr.bf16.mxu0 %v1521
        %5705 = vmatmul.mubr.bf16.gmra.mxu0 %v1520
        %v5706 = vpop.f32.mrf.mxu0
        %v5707 = vadd.f32 %v5594, %v5706
        %v5708 = vpop.f32.mrf.mxu0
        %v5709 = vadd.f32 %v5596, %v5708
        %v5710 = vpop.f32.mrf.mxu0
        %v5711 = vadd.f32 %v5598, %v5710
        %v5712 = vpop.f32.mrf.mxu0
        %v5713 = vadd.f32 %v5600, %v5712
        %5714 = vmatprep.mubr.bf16.mxu0 %v1523
        %5715 = vmatmul.mubr.bf16.gmra.mxu0 %v1522
        %v5716 = vpop.f32.mrf.mxu0
        %v5717 = vadd.f32 %v5604, %v5716
        %v5718 = vpop.f32.mrf.mxu0
        %v5719 = vadd.f32 %v5606, %v5718
        %v5720 = vpop.f32.mrf.mxu0
        %v5721 = vadd.f32 %v5608, %v5720
        %v5722 = vpop.f32.mrf.mxu0
        %v5723 = vadd.f32 %v5610, %v5722
        %5724 = vmatprep.mubr.bf16.mxu0 %v1525
        %5725 = vmatmul.mubr.bf16.gmra.mxu0 %v1524
        %v5726 = vpop.f32.mrf.mxu0
        %v5727 = vadd.f32 %v5614, %v5726
        %v5728 = vpop.f32.mrf.mxu0
        %v5729 = vadd.f32 %v5616, %v5728
        %v5730 = vpop.f32.mrf.mxu0
        %v5731 = vadd.f32 %v5618, %v5730
        %v5732 = vpop.f32.mrf.mxu0
        %v5733 = vadd.f32 %v5620, %v5732
        %5734 = vmatprep.mubr.bf16.mxu0 %v1527
        %5735 = vmatmul.mubr.bf16.gmra.mxu0 %v1526
        %v5736 = vpop.f32.mrf.mxu0
        %v5737 = vadd.f32 %v5624, %v5736
        %v5738 = vpop.f32.mrf.mxu0
        %v5739 = vadd.f32 %v5626, %v5738
        %v5740 = vpop.f32.mrf.mxu0
        %v5741 = vadd.f32 %v5628, %v5740
        %v5742 = vpop.f32.mrf.mxu0
        %v5743 = vadd.f32 %v5630, %v5742
        %5744 = vmatprep.mubr.bf16.mxu0 %v1529
        %5745 = vmatmul.mubr.bf16.gmra.mxu0 %v1528
        %v5746 = vpop.f32.mrf.mxu0
        %v5747 = vadd.f32 %v5634, %v5746
        %v5748 = vpop.f32.mrf.mxu0
        %v5749 = vadd.f32 %v5636, %v5748
        %v5750 = vpop.f32.mrf.mxu0
        %v5751 = vadd.f32 %v5638, %v5750
        %v5752 = vpop.f32.mrf.mxu0
        %v5753 = vadd.f32 %v5640, %v5752
        %5754 = vmatprep.mubr.bf16.mxu0 %v1531
        %5755 = vmatmul.mubr.bf16.gmra.mxu0 %v1530
        %v5756 = vpop.f32.mrf.mxu0
        %v5757 = vadd.f32 %v5644, %v5756
        %v5758 = vpop.f32.mrf.mxu0
        %v5759 = vadd.f32 %v5646, %v5758
        %v5760 = vpop.f32.mrf.mxu0
        %v5761 = vadd.f32 %v5648, %v5760
        %v5762 = vpop.f32.mrf.mxu0
        %v5763 = vadd.f32 %v5650, %v5762
        %5764 = vmatprep.mubr.bf16.mxu0 %v1533
        %5765 = vmatmul.mubr.bf16.gmra.mxu0 %v1532
        %v5766 = vpop.f32.mrf.mxu0
        %v5767 = vadd.f32 %v5654, %v5766
        %v5768 = vpop.f32.mrf.mxu0
        %v5769 = vadd.f32 %v5656, %v5768
        %v5770 = vpop.f32.mrf.mxu0
        %v5771 = vadd.f32 %v5658, %v5770
        %v5772 = vpop.f32.mrf.mxu0
        %v5773 = vadd.f32 %v5660, %v5772
        %5774 = vmatprep.mubr.bf16.mxu0 %v1535
        %5775 = vmatmul.mubr.bf16.gmra.mxu0 %v1534
        %v5776 = vpop.f32.mrf.mxu0
        %v5777 = vadd.f32 %v5664, %v5776
        %v5778 = vpop.f32.mrf.mxu0
        %v5779 = vadd.f32 %v5666, %v5778
        %v5780 = vpop.f32.mrf.mxu0
        %v5781 = vadd.f32 %v5668, %v5780
        %v5782 = vpop.f32.mrf.mxu0
        %v5783 = vadd.f32 %v5670, %v5782
        %5784 = vdwg.mxu0
        %5785 = vmatprep.subr.bf16.mxu0 %v4515
        %5786 = vmatpush1.bf16.msra.mxu0 %v4514
        %5787 = vmatprep.subr.bf16.mxu0 %v4511
        %5788 = vmatpush1.bf16.msra.mxu0 %v4510
        %5789 = vmatprep.subr.bf16.mxu0 %v4507
        %5790 = vmatpush1.bf16.msra.mxu0 %v4506
        %5791 = vmatprep.subr.bf16.mxu0 %v4503
        %5792 = vmatpush1.bf16.msra.mxu0 %v4502
        %5793 = vmatprep.subr.bf16.mxu0 %v4499
        %5794 = vmatpush1.bf16.msra.mxu0 %v4498
        %5795 = vmatprep.subr.bf16.mxu0 %v4495
        %5796 = vmatpush1.bf16.msra.mxu0 %v4494
        %5797 = vmatprep.subr.bf16.mxu0 %v4491
        %5798 = vmatpush1.bf16.msra.mxu0 %v4490
        %5799 = vmatprep.subr.bf16.mxu0 %v4487
        %5800 = vmatpush1.bf16.msra.mxu0 %v4486
        %5801 = vmatprep.subr.bf16.mxu0 %v4547
        %5802 = vmatpush2.bf16.msra.mxu0 %v4546
        %5803 = vmatprep.subr.bf16.mxu0 %v4543
        %5804 = vmatpush2.bf16.msra.mxu0 %v4542
        %5805 = vmatprep.subr.bf16.mxu0 %v4539
        %5806 = vmatpush2.bf16.msra.mxu0 %v4538
        %5807 = vmatprep.subr.bf16.mxu0 %v4535
        %5808 = vmatpush2.bf16.msra.mxu0 %v4534
        %5809 = vmatprep.subr.bf16.mxu0 %v4531
        %5810 = vmatpush2.bf16.msra.mxu0 %v4530
        %5811 = vmatprep.subr.bf16.mxu0 %v4527
        %5812 = vmatpush2.bf16.msra.mxu0 %v4526
        %5813 = vmatprep.subr.bf16.mxu0 %v4523
        %5814 = vmatpush2.bf16.msra.mxu0 %v4522
        %5815 = vmatprep.subr.bf16.mxu0 %v4519
        %5816 = vmatpush2.bf16.msra.mxu0 %v4518
        %5817 = vmatprep.mubr.bf16.mxu0 %v1601
        %5818 = vmatmul.mubr.bf16.gmra.mxu0 %v1600
        %v5819 = vpop.f32.mrf.mxu0
        %v5820 = vadd.f32 %v5707, %v5819
        %v5821 = vpop.f32.mrf.mxu0
        %v5822 = vadd.f32 %v5709, %v5821
        %v5823 = vpop.f32.mrf.mxu0
        %v5824 = vadd.f32 %v5711, %v5823
        %v5825 = vpop.f32.mrf.mxu0
        %v5826 = vadd.f32 %v5713, %v5825
        %5827 = vmatprep.mubr.bf16.mxu0 %v1603
        %5828 = vmatmul.mubr.bf16.gmra.mxu0 %v1602
        %v5829 = vpop.f32.mrf.mxu0
        %v5830 = vadd.f32 %v5717, %v5829
        %v5831 = vpop.f32.mrf.mxu0
        %v5832 = vadd.f32 %v5719, %v5831
        %v5833 = vpop.f32.mrf.mxu0
        %v5834 = vadd.f32 %v5721, %v5833
        %v5835 = vpop.f32.mrf.mxu0
        %v5836 = vadd.f32 %v5723, %v5835
        %5837 = vmatprep.mubr.bf16.mxu0 %v1605
        %5838 = vmatmul.mubr.bf16.gmra.mxu0 %v1604
        %v5839 = vpop.f32.mrf.mxu0
        %v5840 = vadd.f32 %v5727, %v5839
        %v5841 = vpop.f32.mrf.mxu0
        %v5842 = vadd.f32 %v5729, %v5841
        %v5843 = vpop.f32.mrf.mxu0
        %v5844 = vadd.f32 %v5731, %v5843
        %v5845 = vpop.f32.mrf.mxu0
        %v5846 = vadd.f32 %v5733, %v5845
        %5847 = vmatprep.mubr.bf16.mxu0 %v1607
        %5848 = vmatmul.mubr.bf16.gmra.mxu0 %v1606
        %v5849 = vpop.f32.mrf.mxu0
        %v5850 = vadd.f32 %v5737, %v5849
        %v5851 = vpop.f32.mrf.mxu0
        %v5852 = vadd.f32 %v5739, %v5851
        %v5853 = vpop.f32.mrf.mxu0
        %v5854 = vadd.f32 %v5741, %v5853
        %v5855 = vpop.f32.mrf.mxu0
        %v5856 = vadd.f32 %v5743, %v5855
        %5857 = vmatprep.mubr.bf16.mxu0 %v1609
        %5858 = vmatmul.mubr.bf16.gmra.mxu0 %v1608
        %v5859 = vpop.f32.mrf.mxu0
        %v5860 = vadd.f32 %v5747, %v5859
        %v5861 = vpop.f32.mrf.mxu0
        %v5862 = vadd.f32 %v5749, %v5861
        %v5863 = vpop.f32.mrf.mxu0
        %v5864 = vadd.f32 %v5751, %v5863
        %v5865 = vpop.f32.mrf.mxu0
        %v5866 = vadd.f32 %v5753, %v5865
        %5867 = vmatprep.mubr.bf16.mxu0 %v1611
        %5868 = vmatmul.mubr.bf16.gmra.mxu0 %v1610
        %v5869 = vpop.f32.mrf.mxu0
        %v5870 = vadd.f32 %v5757, %v5869
        %v5871 = vpop.f32.mrf.mxu0
        %v5872 = vadd.f32 %v5759, %v5871
        %v5873 = vpop.f32.mrf.mxu0
        %v5874 = vadd.f32 %v5761, %v5873
        %v5875 = vpop.f32.mrf.mxu0
        %v5876 = vadd.f32 %v5763, %v5875
        %5877 = vmatprep.mubr.bf16.mxu0 %v1613
        %5878 = vmatmul.mubr.bf16.gmra.mxu0 %v1612
        %v5879 = vpop.f32.mrf.mxu0
        %v5880 = vadd.f32 %v5767, %v5879
        %v5881 = vpop.f32.mrf.mxu0
        %v5882 = vadd.f32 %v5769, %v5881
        %v5883 = vpop.f32.mrf.mxu0
        %v5884 = vadd.f32 %v5771, %v5883
        %v5885 = vpop.f32.mrf.mxu0
        %v5886 = vadd.f32 %v5773, %v5885
        %5887 = vmatprep.mubr.bf16.mxu0 %v1615
        %5888 = vmatmul.mubr.bf16.gmra.mxu0 %v1614
        %v5889 = vpop.f32.mrf.mxu0
        %v5890 = vadd.f32 %v5777, %v5889
        %v5891 = vpop.f32.mrf.mxu0
        %v5892 = vadd.f32 %v5779, %v5891
        %v5893 = vpop.f32.mrf.mxu0
        %v5894 = vadd.f32 %v5781, %v5893
        %v5895 = vpop.f32.mrf.mxu0
        %v5896 = vadd.f32 %v5783, %v5895
        %5897 = vdwg.mxu0
        %5898 = vmatprep.subr.bf16.mxu0 %v4579
        %5899 = vmatpush1.bf16.msra.mxu0 %v4578
        %5900 = vmatprep.subr.bf16.mxu0 %v4575
        %5901 = vmatpush1.bf16.msra.mxu0 %v4574
        %5902 = vmatprep.subr.bf16.mxu0 %v4571
        %5903 = vmatpush1.bf16.msra.mxu0 %v4570
        %5904 = vmatprep.subr.bf16.mxu0 %v4567
        %5905 = vmatpush1.bf16.msra.mxu0 %v4566
        %5906 = vmatprep.subr.bf16.mxu0 %v4563
        %5907 = vmatpush1.bf16.msra.mxu0 %v4562
        %5908 = vmatprep.subr.bf16.mxu0 %v4559
        %5909 = vmatpush1.bf16.msra.mxu0 %v4558
        %5910 = vmatprep.subr.bf16.mxu0 %v4555
        %5911 = vmatpush1.bf16.msra.mxu0 %v4554
        %5912 = vmatprep.subr.bf16.mxu0 %v4551
        %5913 = vmatpush1.bf16.msra.mxu0 %v4550
        %5914 = vmatprep.subr.bf16.mxu0 %v4611
        %5915 = vmatpush2.bf16.msra.mxu0 %v4610
        %5916 = vmatprep.subr.bf16.mxu0 %v4607
        %5917 = vmatpush2.bf16.msra.mxu0 %v4606
        %5918 = vmatprep.subr.bf16.mxu0 %v4603
        %5919 = vmatpush2.bf16.msra.mxu0 %v4602
        %5920 = vmatprep.subr.bf16.mxu0 %v4599
        %5921 = vmatpush2.bf16.msra.mxu0 %v4598
        %5922 = vmatprep.subr.bf16.mxu0 %v4595
        %5923 = vmatpush2.bf16.msra.mxu0 %v4594
        %5924 = vmatprep.subr.bf16.mxu0 %v4591
        %5925 = vmatpush2.bf16.msra.mxu0 %v4590
        %5926 = vmatprep.subr.bf16.mxu0 %v4587
        %5927 = vmatpush2.bf16.msra.mxu0 %v4586
        %5928 = vmatprep.subr.bf16.mxu0 %v4583
        %5929 = vmatpush2.bf16.msra.mxu0 %v4582
        %5930 = vmatprep.mubr.bf16.mxu0 %v1665
        %5931 = vmatmul.mubr.bf16.gmra.mxu0 %v1664
        %v5932 = vpop.f32.mrf.mxu0
        %v5933 = vadd.f32 %v5820, %v5932
        %v5934 = vpop.f32.mrf.mxu0
        %v5935 = vadd.f32 %v5822, %v5934
        %v5936 = vpop.f32.mrf.mxu0
        %v5937 = vadd.f32 %v5824, %v5936
        %v5938 = vpop.f32.mrf.mxu0
        %v5939 = vadd.f32 %v5826, %v5938
        %5940 = vmatprep.mubr.bf16.mxu0 %v1667
        %5941 = vmatmul.mubr.bf16.gmra.mxu0 %v1666
        %v5942 = vpop.f32.mrf.mxu0
        %v5943 = vadd.f32 %v5830, %v5942
        %v5944 = vpop.f32.mrf.mxu0
        %v5945 = vadd.f32 %v5832, %v5944
        %v5946 = vpop.f32.mrf.mxu0
        %v5947 = vadd.f32 %v5834, %v5946
        %v5948 = vpop.f32.mrf.mxu0
        %v5949 = vadd.f32 %v5836, %v5948
        %5950 = vmatprep.mubr.bf16.mxu0 %v1669
        %5951 = vmatmul.mubr.bf16.gmra.mxu0 %v1668
        %v5952 = vpop.f32.mrf.mxu0
        %v5953 = vadd.f32 %v5840, %v5952
        %v5954 = vpop.f32.mrf.mxu0
        %v5955 = vadd.f32 %v5842, %v5954
        %v5956 = vpop.f32.mrf.mxu0
        %v5957 = vadd.f32 %v5844, %v5956
        %v5958 = vpop.f32.mrf.mxu0
        %v5959 = vadd.f32 %v5846, %v5958
        %5960 = vmatprep.mubr.bf16.mxu0 %v1671
        %5961 = vmatmul.mubr.bf16.gmra.mxu0 %v1670
        %v5962 = vpop.f32.mrf.mxu0
        %v5963 = vadd.f32 %v5850, %v5962
        %v5964 = vpop.f32.mrf.mxu0
        %v5965 = vadd.f32 %v5852, %v5964
        %v5966 = vpop.f32.mrf.mxu0
        %v5967 = vadd.f32 %v5854, %v5966
        %v5968 = vpop.f32.mrf.mxu0
        %v5969 = vadd.f32 %v5856, %v5968
        %5970 = vmatprep.mubr.bf16.mxu0 %v1673
        %5971 = vmatmul.mubr.bf16.gmra.mxu0 %v1672
        %v5972 = vpop.f32.mrf.mxu0
        %v5973 = vadd.f32 %v5860, %v5972
        %v5974 = vpop.f32.mrf.mxu0
        %v5975 = vadd.f32 %v5862, %v5974
        %v5976 = vpop.f32.mrf.mxu0
        %v5977 = vadd.f32 %v5864, %v5976
        %v5978 = vpop.f32.mrf.mxu0
        %v5979 = vadd.f32 %v5866, %v5978
        %5980 = vmatprep.mubr.bf16.mxu0 %v1675
        %5981 = vmatmul.mubr.bf16.gmra.mxu0 %v1674
        %v5982 = vpop.f32.mrf.mxu0
        %v5983 = vadd.f32 %v5870, %v5982
        %v5984 = vpop.f32.mrf.mxu0
        %v5985 = vadd.f32 %v5872, %v5984
        %v5986 = vpop.f32.mrf.mxu0
        %v5987 = vadd.f32 %v5874, %v5986
        %v5988 = vpop.f32.mrf.mxu0
        %v5989 = vadd.f32 %v5876, %v5988
        %5990 = vmatprep.mubr.bf16.mxu0 %v1677
        %5991 = vmatmul.mubr.bf16.gmra.mxu0 %v1676
        %v5992 = vpop.f32.mrf.mxu0
        %v5993 = vadd.f32 %v5880, %v5992
        %v5994 = vpop.f32.mrf.mxu0
        %v5995 = vadd.f32 %v5882, %v5994
        %v5996 = vpop.f32.mrf.mxu0
        %v5997 = vadd.f32 %v5884, %v5996
        %v5998 = vpop.f32.mrf.mxu0
        %v5999 = vadd.f32 %v5886, %v5998
        %6000 = vmatprep.mubr.bf16.mxu0 %v1679
        %6001 = vmatmul.mubr.bf16.gmra.mxu0 %v1678
        %v6002 = vpop.f32.mrf.mxu0
        %v6003 = vadd.f32 %v5890, %v6002
        %v6004 = vpop.f32.mrf.mxu0
        %v6005 = vadd.f32 %v5892, %v6004
        %v6006 = vpop.f32.mrf.mxu0
        %v6007 = vadd.f32 %v5894, %v6006
        %v6008 = vpop.f32.mrf.mxu0
        %v6009 = vadd.f32 %v5896, %v6008
        %6010 = vdwg.mxu0
        %6011 = vmatprep.subr.bf16.mxu0 %v4643
        %6012 = vmatpush1.bf16.msra.mxu0 %v4642
        %6013 = vmatprep.subr.bf16.mxu0 %v4639
        %6014 = vmatpush1.bf16.msra.mxu0 %v4638
        %6015 = vmatprep.subr.bf16.mxu0 %v4635
        %6016 = vmatpush1.bf16.msra.mxu0 %v4634
        %6017 = vmatprep.subr.bf16.mxu0 %v4631
        %6018 = vmatpush1.bf16.msra.mxu0 %v4630
        %6019 = vmatprep.subr.bf16.mxu0 %v4627
        %6020 = vmatpush1.bf16.msra.mxu0 %v4626
        %6021 = vmatprep.subr.bf16.mxu0 %v4623
        %6022 = vmatpush1.bf16.msra.mxu0 %v4622
        %6023 = vmatprep.subr.bf16.mxu0 %v4619
        %6024 = vmatpush1.bf16.msra.mxu0 %v4618
        %6025 = vmatprep.subr.bf16.mxu0 %v4615
        %6026 = vmatpush1.bf16.msra.mxu0 %v4614
        %6027 = vmatprep.subr.bf16.mxu0 %v4675
        %6028 = vmatpush2.bf16.msra.mxu0 %v4674
        %6029 = vmatprep.subr.bf16.mxu0 %v4671
        %6030 = vmatpush2.bf16.msra.mxu0 %v4670
        %6031 = vmatprep.subr.bf16.mxu0 %v4667
        %6032 = vmatpush2.bf16.msra.mxu0 %v4666
        %6033 = vmatprep.subr.bf16.mxu0 %v4663
        %6034 = vmatpush2.bf16.msra.mxu0 %v4662
        %6035 = vmatprep.subr.bf16.mxu0 %v4659
        %6036 = vmatpush2.bf16.msra.mxu0 %v4658
        %6037 = vmatprep.subr.bf16.mxu0 %v4655
        %6038 = vmatpush2.bf16.msra.mxu0 %v4654
        %6039 = vmatprep.subr.bf16.mxu0 %v4651
        %6040 = vmatpush2.bf16.msra.mxu0 %v4650
        %6041 = vmatprep.subr.bf16.mxu0 %v4647
        %6042 = vmatpush2.bf16.msra.mxu0 %v4646
        %6043 = vmatprep.mubr.bf16.mxu0 %v1729
        %6044 = vmatmul.mubr.bf16.gmra.mxu0 %v1728
        %v6045 = vpop.f32.mrf.mxu0
        %v6046 = vadd.f32 %v5933, %v6045
        %v6047 = vpop.f32.mrf.mxu0
        %v6048 = vadd.f32 %v5935, %v6047
        %v6049 = vpop.f32.mrf.mxu0
        %v6050 = vadd.f32 %v5937, %v6049
        %v6051 = vpop.f32.mrf.mxu0
        %v6052 = vadd.f32 %v5939, %v6051
        %6053 = vmatprep.mubr.bf16.mxu0 %v1731
        %6054 = vmatmul.mubr.bf16.gmra.mxu0 %v1730
        %v6055 = vpop.f32.mrf.mxu0
        %v6056 = vadd.f32 %v5943, %v6055
        %v6057 = vpop.f32.mrf.mxu0
        %v6058 = vadd.f32 %v5945, %v6057
        %v6059 = vpop.f32.mrf.mxu0
        %v6060 = vadd.f32 %v5947, %v6059
        %v6061 = vpop.f32.mrf.mxu0
        %v6062 = vadd.f32 %v5949, %v6061
        %6063 = vmatprep.mubr.bf16.mxu0 %v1733
        %6064 = vmatmul.mubr.bf16.gmra.mxu0 %v1732
        %v6065 = vpop.f32.mrf.mxu0
        %v6066 = vadd.f32 %v5953, %v6065
        %v6067 = vpop.f32.mrf.mxu0
        %v6068 = vadd.f32 %v5955, %v6067
        %v6069 = vpop.f32.mrf.mxu0
        %v6070 = vadd.f32 %v5957, %v6069
        %v6071 = vpop.f32.mrf.mxu0
        %v6072 = vadd.f32 %v5959, %v6071
        %6073 = vmatprep.mubr.bf16.mxu0 %v1735
        %6074 = vmatmul.mubr.bf16.gmra.mxu0 %v1734
        %v6075 = vpop.f32.mrf.mxu0
        %v6076 = vadd.f32 %v5963, %v6075
        %v6077 = vpop.f32.mrf.mxu0
        %v6078 = vadd.f32 %v5965, %v6077
        %v6079 = vpop.f32.mrf.mxu0
        %v6080 = vadd.f32 %v5967, %v6079
        %v6081 = vpop.f32.mrf.mxu0
        %v6082 = vadd.f32 %v5969, %v6081
        %6083 = vmatprep.mubr.bf16.mxu0 %v1737
        %6084 = vmatmul.mubr.bf16.gmra.mxu0 %v1736
        %v6085 = vpop.f32.mrf.mxu0
        %v6086 = vadd.f32 %v5973, %v6085
        %v6087 = vpop.f32.mrf.mxu0
        %v6088 = vadd.f32 %v5975, %v6087
        %v6089 = vpop.f32.mrf.mxu0
        %v6090 = vadd.f32 %v5977, %v6089
        %v6091 = vpop.f32.mrf.mxu0
        %v6092 = vadd.f32 %v5979, %v6091
        %6093 = vmatprep.mubr.bf16.mxu0 %v1739
        %6094 = vmatmul.mubr.bf16.gmra.mxu0 %v1738
        %v6095 = vpop.f32.mrf.mxu0
        %v6096 = vadd.f32 %v5983, %v6095
        %v6097 = vpop.f32.mrf.mxu0
        %v6098 = vadd.f32 %v5985, %v6097
        %v6099 = vpop.f32.mrf.mxu0
        %v6100 = vadd.f32 %v5987, %v6099
        %v6101 = vpop.f32.mrf.mxu0
        %v6102 = vadd.f32 %v5989, %v6101
        %6103 = vmatprep.mubr.bf16.mxu0 %v1741
        %6104 = vmatmul.mubr.bf16.gmra.mxu0 %v1740
        %v6105 = vpop.f32.mrf.mxu0
        %v6106 = vadd.f32 %v5993, %v6105
        %v6107 = vpop.f32.mrf.mxu0
        %v6108 = vadd.f32 %v5995, %v6107
        %v6109 = vpop.f32.mrf.mxu0
        %v6110 = vadd.f32 %v5997, %v6109
        %v6111 = vpop.f32.mrf.mxu0
        %v6112 = vadd.f32 %v5999, %v6111
        %6113 = vmatprep.mubr.bf16.mxu0 %v1743
        %6114 = vmatmul.mubr.bf16.gmra.mxu0 %v1742
        %v6115 = vpop.f32.mrf.mxu0
        %v6116 = vadd.f32 %v6003, %v6115
        %v6117 = vpop.f32.mrf.mxu0
        %v6118 = vadd.f32 %v6005, %v6117
        %v6119 = vpop.f32.mrf.mxu0
        %v6120 = vadd.f32 %v6007, %v6119
        %v6121 = vpop.f32.mrf.mxu0
        %v6122 = vadd.f32 %v6009, %v6121
        %6123 = vdwg.mxu0
        %6124 = vmatprep.subr.bf16.mxu0 %v4707
        %6125 = vmatpush1.bf16.msra.mxu0 %v4706
        %6126 = vmatprep.subr.bf16.mxu0 %v4703
        %6127 = vmatpush1.bf16.msra.mxu0 %v4702
        %6128 = vmatprep.subr.bf16.mxu0 %v4699
        %6129 = vmatpush1.bf16.msra.mxu0 %v4698
        %6130 = vmatprep.subr.bf16.mxu0 %v4695
        %6131 = vmatpush1.bf16.msra.mxu0 %v4694
        %6132 = vmatprep.subr.bf16.mxu0 %v4691
        %6133 = vmatpush1.bf16.msra.mxu0 %v4690
        %6134 = vmatprep.subr.bf16.mxu0 %v4687
        %6135 = vmatpush1.bf16.msra.mxu0 %v4686
        %6136 = vmatprep.subr.bf16.mxu0 %v4683
        %6137 = vmatpush1.bf16.msra.mxu0 %v4682
        %6138 = vmatprep.subr.bf16.mxu0 %v4679
        %6139 = vmatpush1.bf16.msra.mxu0 %v4678
        %6140 = vmatprep.subr.bf16.mxu0 %v4739
        %6141 = vmatpush2.bf16.msra.mxu0 %v4738
        %6142 = vmatprep.subr.bf16.mxu0 %v4735
        %6143 = vmatpush2.bf16.msra.mxu0 %v4734
        %6144 = vmatprep.subr.bf16.mxu0 %v4731
        %6145 = vmatpush2.bf16.msra.mxu0 %v4730
        %6146 = vmatprep.subr.bf16.mxu0 %v4727
        %6147 = vmatpush2.bf16.msra.mxu0 %v4726
        %6148 = vmatprep.subr.bf16.mxu0 %v4723
        %6149 = vmatpush2.bf16.msra.mxu0 %v4722
        %6150 = vmatprep.subr.bf16.mxu0 %v4719
        %6151 = vmatpush2.bf16.msra.mxu0 %v4718
        %6152 = vmatprep.subr.bf16.mxu0 %v4715
        %6153 = vmatpush2.bf16.msra.mxu0 %v4714
        %6154 = vmatprep.subr.bf16.mxu0 %v4711
        %6155 = vmatpush2.bf16.msra.mxu0 %v4710
        %6156 = vmatprep.mubr.bf16.mxu0 %v1809
        %6157 = vmatmul.mubr.bf16.gmra.mxu0 %v1808
        %v6158 = vpop.f32.mrf.mxu0
        %v6159 = vadd.f32 %v6046, %v6158
        %v6160 = vpop.f32.mrf.mxu0
        %v6161 = vadd.f32 %v6048, %v6160
        %v6162 = vpop.f32.mrf.mxu0
        %v6163 = vadd.f32 %v6050, %v6162
        %v6164 = vpop.f32.mrf.mxu0
        %v6165 = vadd.f32 %v6052, %v6164
        %6166 = vmatprep.mubr.bf16.mxu0 %v1811
        %6167 = vmatmul.mubr.bf16.gmra.mxu0 %v1810
        %v6168 = vpop.f32.mrf.mxu0
        %v6169 = vadd.f32 %v6056, %v6168
        %v6170 = vpop.f32.mrf.mxu0
        %v6171 = vadd.f32 %v6058, %v6170
        %v6172 = vpop.f32.mrf.mxu0
        %v6173 = vadd.f32 %v6060, %v6172
        %v6174 = vpop.f32.mrf.mxu0
        %v6175 = vadd.f32 %v6062, %v6174
        %6176 = vmatprep.mubr.bf16.mxu0 %v1813
        %6177 = vmatmul.mubr.bf16.gmra.mxu0 %v1812
        %v6178 = vpop.f32.mrf.mxu0
        %v6179 = vadd.f32 %v6066, %v6178
        %v6180 = vpop.f32.mrf.mxu0
        %v6181 = vadd.f32 %v6068, %v6180
        %v6182 = vpop.f32.mrf.mxu0
        %v6183 = vadd.f32 %v6070, %v6182
        %v6184 = vpop.f32.mrf.mxu0
        %v6185 = vadd.f32 %v6072, %v6184
        %6186 = vmatprep.mubr.bf16.mxu0 %v1815
        %6187 = vmatmul.mubr.bf16.gmra.mxu0 %v1814
        %v6188 = vpop.f32.mrf.mxu0
        %v6189 = vadd.f32 %v6076, %v6188
        %v6190 = vpop.f32.mrf.mxu0
        %v6191 = vadd.f32 %v6078, %v6190
        %v6192 = vpop.f32.mrf.mxu0
        %v6193 = vadd.f32 %v6080, %v6192
        %v6194 = vpop.f32.mrf.mxu0
        %v6195 = vadd.f32 %v6082, %v6194
        %6196 = vmatprep.mubr.bf16.mxu0 %v1817
        %6197 = vmatmul.mubr.bf16.gmra.mxu0 %v1816
        %v6198 = vpop.f32.mrf.mxu0
        %v6199 = vadd.f32 %v6086, %v6198
        %v6200 = vpop.f32.mrf.mxu0
        %v6201 = vadd.f32 %v6088, %v6200
        %v6202 = vpop.f32.mrf.mxu0
        %v6203 = vadd.f32 %v6090, %v6202
        %v6204 = vpop.f32.mrf.mxu0
        %v6205 = vadd.f32 %v6092, %v6204
        %6206 = vmatprep.mubr.bf16.mxu0 %v1819
        %6207 = vmatmul.mubr.bf16.gmra.mxu0 %v1818
        %v6208 = vpop.f32.mrf.mxu0
        %v6209 = vadd.f32 %v6096, %v6208
        %v6210 = vpop.f32.mrf.mxu0
        %v6211 = vadd.f32 %v6098, %v6210
        %v6212 = vpop.f32.mrf.mxu0
        %v6213 = vadd.f32 %v6100, %v6212
        %v6214 = vpop.f32.mrf.mxu0
        %v6215 = vadd.f32 %v6102, %v6214
        %6216 = vmatprep.mubr.bf16.mxu0 %v1821
        %6217 = vmatmul.mubr.bf16.gmra.mxu0 %v1820
        %v6218 = vpop.f32.mrf.mxu0
        %v6219 = vadd.f32 %v6106, %v6218
        %v6220 = vpop.f32.mrf.mxu0
        %v6221 = vadd.f32 %v6108, %v6220
        %v6222 = vpop.f32.mrf.mxu0
        %v6223 = vadd.f32 %v6110, %v6222
        %v6224 = vpop.f32.mrf.mxu0
        %v6225 = vadd.f32 %v6112, %v6224
        %6226 = vmatprep.mubr.bf16.mxu0 %v1823
        %6227 = vmatmul.mubr.bf16.gmra.mxu0 %v1822
        %v6228 = vpop.f32.mrf.mxu0
        %v6229 = vadd.f32 %v6116, %v6228
        %v6230 = vpop.f32.mrf.mxu0
        %v6231 = vadd.f32 %v6118, %v6230
        %v6232 = vpop.f32.mrf.mxu0
        %v6233 = vadd.f32 %v6120, %v6232
        %v6234 = vpop.f32.mrf.mxu0
        %v6235 = vadd.f32 %v6122, %v6234
        %6236 = vdwg.mxu0
        %6237 = vmatprep.subr.bf16.mxu0 %v4771
        %6238 = vmatpush1.bf16.msra.mxu0 %v4770
        %6239 = vmatprep.subr.bf16.mxu0 %v4767
        %6240 = vmatpush1.bf16.msra.mxu0 %v4766
        %6241 = vmatprep.subr.bf16.mxu0 %v4763
        %6242 = vmatpush1.bf16.msra.mxu0 %v4762
        %6243 = vmatprep.subr.bf16.mxu0 %v4759
        %6244 = vmatpush1.bf16.msra.mxu0 %v4758
        %6245 = vmatprep.subr.bf16.mxu0 %v4755
        %6246 = vmatpush1.bf16.msra.mxu0 %v4754
        %6247 = vmatprep.subr.bf16.mxu0 %v4751
        %6248 = vmatpush1.bf16.msra.mxu0 %v4750
        %6249 = vmatprep.subr.bf16.mxu0 %v4747
        %6250 = vmatpush1.bf16.msra.mxu0 %v4746
        %6251 = vmatprep.subr.bf16.mxu0 %v4743
        %6252 = vmatpush1.bf16.msra.mxu0 %v4742
        %6253 = vmatprep.subr.bf16.mxu0 %v4803
        %6254 = vmatpush2.bf16.msra.mxu0 %v4802
        %6255 = vmatprep.subr.bf16.mxu0 %v4799
        %6256 = vmatpush2.bf16.msra.mxu0 %v4798
        %6257 = vmatprep.subr.bf16.mxu0 %v4795
        %6258 = vmatpush2.bf16.msra.mxu0 %v4794
        %6259 = vmatprep.subr.bf16.mxu0 %v4791
        %6260 = vmatpush2.bf16.msra.mxu0 %v4790
        %6261 = vmatprep.subr.bf16.mxu0 %v4787
        %6262 = vmatpush2.bf16.msra.mxu0 %v4786
        %6263 = vmatprep.subr.bf16.mxu0 %v4783
        %6264 = vmatpush2.bf16.msra.mxu0 %v4782
        %6265 = vmatprep.subr.bf16.mxu0 %v4779
        %6266 = vmatpush2.bf16.msra.mxu0 %v4778
        %6267 = vmatprep.subr.bf16.mxu0 %v4775
        %6268 = vmatpush2.bf16.msra.mxu0 %v4774
        %6269 = vmatprep.mubr.bf16.mxu0 %v1873
        %6270 = vmatmul.mubr.bf16.gmra.mxu0 %v1872
        %v6271 = vpop.f32.mrf.mxu0
        %v6272 = vadd.f32 %v6159, %v6271
        %v6273 = vpop.f32.mrf.mxu0
        %v6274 = vadd.f32 %v6161, %v6273
        %v6275 = vpop.f32.mrf.mxu0
        %v6276 = vadd.f32 %v6163, %v6275
        %v6277 = vpop.f32.mrf.mxu0
        %v6278 = vadd.f32 %v6165, %v6277
        %6279 = vmatprep.mubr.bf16.mxu0 %v1875
        %6280 = vmatmul.mubr.bf16.gmra.mxu0 %v1874
        %v6281 = vpop.f32.mrf.mxu0
        %v6282 = vadd.f32 %v6169, %v6281
        %v6283 = vpop.f32.mrf.mxu0
        %v6284 = vadd.f32 %v6171, %v6283
        %v6285 = vpop.f32.mrf.mxu0
        %v6286 = vadd.f32 %v6173, %v6285
        %v6287 = vpop.f32.mrf.mxu0
        %v6288 = vadd.f32 %v6175, %v6287
        %6289 = vmatprep.mubr.bf16.mxu0 %v1877
        %6290 = vmatmul.mubr.bf16.gmra.mxu0 %v1876
        %v6291 = vpop.f32.mrf.mxu0
        %v6292 = vadd.f32 %v6179, %v6291
        %v6293 = vpop.f32.mrf.mxu0
        %v6294 = vadd.f32 %v6181, %v6293
        %v6295 = vpop.f32.mrf.mxu0
        %v6296 = vadd.f32 %v6183, %v6295
        %v6297 = vpop.f32.mrf.mxu0
        %v6298 = vadd.f32 %v6185, %v6297
        %6299 = vmatprep.mubr.bf16.mxu0 %v1879
        %6300 = vmatmul.mubr.bf16.gmra.mxu0 %v1878
        %v6301 = vpop.f32.mrf.mxu0
        %v6302 = vadd.f32 %v6189, %v6301
        %v6303 = vpop.f32.mrf.mxu0
        %v6304 = vadd.f32 %v6191, %v6303
        %v6305 = vpop.f32.mrf.mxu0
        %v6306 = vadd.f32 %v6193, %v6305
        %v6307 = vpop.f32.mrf.mxu0
        %v6308 = vadd.f32 %v6195, %v6307
        %6309 = vmatprep.mubr.bf16.mxu0 %v1881
        %6310 = vmatmul.mubr.bf16.gmra.mxu0 %v1880
        %v6311 = vpop.f32.mrf.mxu0
        %v6312 = vadd.f32 %v6199, %v6311
        %v6313 = vpop.f32.mrf.mxu0
        %v6314 = vadd.f32 %v6201, %v6313
        %v6315 = vpop.f32.mrf.mxu0
        %v6316 = vadd.f32 %v6203, %v6315
        %v6317 = vpop.f32.mrf.mxu0
        %v6318 = vadd.f32 %v6205, %v6317
        %6319 = vmatprep.mubr.bf16.mxu0 %v1883
        %6320 = vmatmul.mubr.bf16.gmra.mxu0 %v1882
        %v6321 = vpop.f32.mrf.mxu0
        %v6322 = vadd.f32 %v6209, %v6321
        %v6323 = vpop.f32.mrf.mxu0
        %v6324 = vadd.f32 %v6211, %v6323
        %v6325 = vpop.f32.mrf.mxu0
        %v6326 = vadd.f32 %v6213, %v6325
        %v6327 = vpop.f32.mrf.mxu0
        %v6328 = vadd.f32 %v6215, %v6327
        %6329 = vmatprep.mubr.bf16.mxu0 %v1885
        %6330 = vmatmul.mubr.bf16.gmra.mxu0 %v1884
        %v6331 = vpop.f32.mrf.mxu0
        %v6332 = vadd.f32 %v6219, %v6331
        %v6333 = vpop.f32.mrf.mxu0
        %v6334 = vadd.f32 %v6221, %v6333
        %v6335 = vpop.f32.mrf.mxu0
        %v6336 = vadd.f32 %v6223, %v6335
        %v6337 = vpop.f32.mrf.mxu0
        %v6338 = vadd.f32 %v6225, %v6337
        %6339 = vmatprep.mubr.bf16.mxu0 %v1887
        %6340 = vmatmul.mubr.bf16.gmra.mxu0 %v1886
        %v6341 = vpop.f32.mrf.mxu0
        %v6342 = vadd.f32 %v6229, %v6341
        %v6343 = vpop.f32.mrf.mxu0
        %v6344 = vadd.f32 %v6231, %v6343
        %v6345 = vpop.f32.mrf.mxu0
        %v6346 = vadd.f32 %v6233, %v6345
        %v6347 = vpop.f32.mrf.mxu0
        %v6348 = vadd.f32 %v6235, %v6347
        %6349 = vdwg.mxu0
        %6350 = vmatprep.subr.bf16.mxu0 %v4835
        %6351 = vmatpush1.bf16.msra.mxu0 %v4834
        %6352 = vmatprep.subr.bf16.mxu0 %v4831
        %6353 = vmatpush1.bf16.msra.mxu0 %v4830
        %6354 = vmatprep.subr.bf16.mxu0 %v4827
        %6355 = vmatpush1.bf16.msra.mxu0 %v4826
        %6356 = vmatprep.subr.bf16.mxu0 %v4823
        %6357 = vmatpush1.bf16.msra.mxu0 %v4822
        %6358 = vmatprep.subr.bf16.mxu0 %v4819
        %6359 = vmatpush1.bf16.msra.mxu0 %v4818
        %6360 = vmatprep.subr.bf16.mxu0 %v4815
        %6361 = vmatpush1.bf16.msra.mxu0 %v4814
        %6362 = vmatprep.subr.bf16.mxu0 %v4811
        %6363 = vmatpush1.bf16.msra.mxu0 %v4810
        %6364 = vmatprep.subr.bf16.mxu0 %v4807
        %6365 = vmatpush1.bf16.msra.mxu0 %v4806
        %6366 = vmatprep.subr.bf16.mxu0 %v4867
        %6367 = vmatpush2.bf16.msra.mxu0 %v4866
        %6368 = vmatprep.subr.bf16.mxu0 %v4863
        %6369 = vmatpush2.bf16.msra.mxu0 %v4862
        %6370 = vmatprep.subr.bf16.mxu0 %v4859
        %6371 = vmatpush2.bf16.msra.mxu0 %v4858
        %6372 = vmatprep.subr.bf16.mxu0 %v4855
        %6373 = vmatpush2.bf16.msra.mxu0 %v4854
        %6374 = vmatprep.subr.bf16.mxu0 %v4851
        %6375 = vmatpush2.bf16.msra.mxu0 %v4850
        %6376 = vmatprep.subr.bf16.mxu0 %v4847
        %6377 = vmatpush2.bf16.msra.mxu0 %v4846
        %6378 = vmatprep.subr.bf16.mxu0 %v4843
        %6379 = vmatpush2.bf16.msra.mxu0 %v4842
        %6380 = vmatprep.subr.bf16.mxu0 %v4839
        %6381 = vmatpush2.bf16.msra.mxu0 %v4838
        %6382 = vmatprep.mubr.bf16.mxu0 %v1937
        %6383 = vmatmul.mubr.bf16.gmra.mxu0 %v1936
        %v6384 = vpop.f32.mrf.mxu0
        %v6385 = vadd.f32 %v6272, %v6384
        %v6386 = vpop.f32.mrf.mxu0
        %v6387 = vadd.f32 %v6274, %v6386
        %v6388 = vpop.f32.mrf.mxu0
        %v6389 = vadd.f32 %v6276, %v6388
        %v6390 = vpop.f32.mrf.mxu0
        %v6391 = vadd.f32 %v6278, %v6390
        %6392 = vmatprep.mubr.bf16.mxu0 %v1939
        %6393 = vmatmul.mubr.bf16.gmra.mxu0 %v1938
        %v6394 = vpop.f32.mrf.mxu0
        %v6395 = vadd.f32 %v6282, %v6394
        %v6396 = vpop.f32.mrf.mxu0
        %v6397 = vadd.f32 %v6284, %v6396
        %v6398 = vpop.f32.mrf.mxu0
        %v6399 = vadd.f32 %v6286, %v6398
        %v6400 = vpop.f32.mrf.mxu0
        %v6401 = vadd.f32 %v6288, %v6400
        %6402 = vmatprep.mubr.bf16.mxu0 %v1941
        %6403 = vmatmul.mubr.bf16.gmra.mxu0 %v1940
        %v6404 = vpop.f32.mrf.mxu0
        %v6405 = vadd.f32 %v6292, %v6404
        %v6406 = vpop.f32.mrf.mxu0
        %v6407 = vadd.f32 %v6294, %v6406
        %v6408 = vpop.f32.mrf.mxu0
        %v6409 = vadd.f32 %v6296, %v6408
        %v6410 = vpop.f32.mrf.mxu0
        %v6411 = vadd.f32 %v6298, %v6410
        %6412 = vmatprep.mubr.bf16.mxu0 %v1943
        %6413 = vmatmul.mubr.bf16.gmra.mxu0 %v1942
        %v6414 = vpop.f32.mrf.mxu0
        %v6415 = vadd.f32 %v6302, %v6414
        %v6416 = vpop.f32.mrf.mxu0
        %v6417 = vadd.f32 %v6304, %v6416
        %v6418 = vpop.f32.mrf.mxu0
        %v6419 = vadd.f32 %v6306, %v6418
        %v6420 = vpop.f32.mrf.mxu0
        %v6421 = vadd.f32 %v6308, %v6420
        %6422 = vmatprep.mubr.bf16.mxu0 %v1945
        %6423 = vmatmul.mubr.bf16.gmra.mxu0 %v1944
        %v6424 = vpop.f32.mrf.mxu0
        %v6425 = vadd.f32 %v6312, %v6424
        %v6426 = vpop.f32.mrf.mxu0
        %v6427 = vadd.f32 %v6314, %v6426
        %v6428 = vpop.f32.mrf.mxu0
        %v6429 = vadd.f32 %v6316, %v6428
        %v6430 = vpop.f32.mrf.mxu0
        %v6431 = vadd.f32 %v6318, %v6430
        %6432 = vmatprep.mubr.bf16.mxu0 %v1947
        %6433 = vmatmul.mubr.bf16.gmra.mxu0 %v1946
        %v6434 = vpop.f32.mrf.mxu0
        %v6435 = vadd.f32 %v6322, %v6434
        %v6436 = vpop.f32.mrf.mxu0
        %v6437 = vadd.f32 %v6324, %v6436
        %v6438 = vpop.f32.mrf.mxu0
        %v6439 = vadd.f32 %v6326, %v6438
        %v6440 = vpop.f32.mrf.mxu0
        %v6441 = vadd.f32 %v6328, %v6440
        %6442 = vmatprep.mubr.bf16.mxu0 %v1949
        %6443 = vmatmul.mubr.bf16.gmra.mxu0 %v1948
        %v6444 = vpop.f32.mrf.mxu0
        %v6445 = vadd.f32 %v6332, %v6444
        %v6446 = vpop.f32.mrf.mxu0
        %v6447 = vadd.f32 %v6334, %v6446
        %v6448 = vpop.f32.mrf.mxu0
        %v6449 = vadd.f32 %v6336, %v6448
        %v6450 = vpop.f32.mrf.mxu0
        %v6451 = vadd.f32 %v6338, %v6450
        %6452 = vmatprep.mubr.bf16.mxu0 %v1951
        %6453 = vmatmul.mubr.bf16.gmra.mxu0 %v1950
        %v6454 = vpop.f32.mrf.mxu0
        %v6455 = vadd.f32 %v6342, %v6454
        %v6456 = vpop.f32.mrf.mxu0
        %v6457 = vadd.f32 %v6344, %v6456
        %v6458 = vpop.f32.mrf.mxu0
        %v6459 = vadd.f32 %v6346, %v6458
        %v6460 = vpop.f32.mrf.mxu0
        %v6461 = vadd.f32 %v6348, %v6460
        %6462 = vdwg.mxu0
        %6463 = vmatprep.subr.bf16.mxu0 %v4325
        %6464 = vmatpush1.bf16.msra.mxu0 %v4324
        %6465 = vmatprep.subr.bf16.mxu0 %v4321
        %6466 = vmatpush1.bf16.msra.mxu0 %v4320
        %6467 = vmatprep.subr.bf16.mxu0 %v4317
        %6468 = vmatpush1.bf16.msra.mxu0 %v4316
        %6469 = vmatprep.subr.bf16.mxu0 %v4313
        %6470 = vmatpush1.bf16.msra.mxu0 %v4312
        %6471 = vmatprep.subr.bf16.mxu0 %v4309
        %6472 = vmatpush1.bf16.msra.mxu0 %v4308
        %6473 = vmatprep.subr.bf16.mxu0 %v4305
        %6474 = vmatpush1.bf16.msra.mxu0 %v4304
        %6475 = vmatprep.subr.bf16.mxu0 %v4301
        %6476 = vmatpush1.bf16.msra.mxu0 %v4300
        %6477 = vmatprep.subr.bf16.mxu0 %v4297
        %6478 = vmatpush1.bf16.msra.mxu0 %v4296
        %6479 = vmatprep.subr.bf16.mxu0 %v4357
        %6480 = vmatpush2.bf16.msra.mxu0 %v4356
        %6481 = vmatprep.subr.bf16.mxu0 %v4353
        %6482 = vmatpush2.bf16.msra.mxu0 %v4352
        %6483 = vmatprep.subr.bf16.mxu0 %v4349
        %6484 = vmatpush2.bf16.msra.mxu0 %v4348
        %6485 = vmatprep.subr.bf16.mxu0 %v4345
        %6486 = vmatpush2.bf16.msra.mxu0 %v4344
        %6487 = vmatprep.subr.bf16.mxu0 %v4341
        %6488 = vmatpush2.bf16.msra.mxu0 %v4340
        %6489 = vmatprep.subr.bf16.mxu0 %v4337
        %6490 = vmatpush2.bf16.msra.mxu0 %v4336
        %6491 = vmatprep.subr.bf16.mxu0 %v4333
        %6492 = vmatpush2.bf16.msra.mxu0 %v4332
        %6493 = vmatprep.subr.bf16.mxu0 %v4329
        %6494 = vmatpush2.bf16.msra.mxu0 %v4328
        %6495 = vmatprep.mubr.bf16.mxu0 %v1393
        %6496 = vmatmul.mubr.bf16.gmra.mxu0 %v1392
        %v6497 = vpop.f32.mrf.mxu0
        %v6498 = vadd.f32 %v2557, %v6497
        %v6499 = vpop.f32.mrf.mxu0
        %v6500 = vadd.f32 %v2561, %v6499
        %v6501 = vpop.f32.mrf.mxu0
        %v6502 = vadd.f32 %v2557, %v6501
        %v6503 = vpop.f32.mrf.mxu0
        %v6504 = vadd.f32 %v2561, %v6503
        %6505 = vmatprep.mubr.bf16.mxu0 %v1395
        %6506 = vmatmul.mubr.bf16.gmra.mxu0 %v1394
        %v6507 = vpop.f32.mrf.mxu0
        %v6508 = vadd.f32 %v2557, %v6507
        %v6509 = vpop.f32.mrf.mxu0
        %v6510 = vadd.f32 %v2561, %v6509
        %v6511 = vpop.f32.mrf.mxu0
        %v6512 = vadd.f32 %v2557, %v6511
        %v6513 = vpop.f32.mrf.mxu0
        %v6514 = vadd.f32 %v2561, %v6513
        %6515 = vmatprep.mubr.bf16.mxu0 %v1397
        %6516 = vmatmul.mubr.bf16.gmra.mxu0 %v1396
        %v6517 = vpop.f32.mrf.mxu0
        %v6518 = vadd.f32 %v2557, %v6517
        %v6519 = vpop.f32.mrf.mxu0
        %v6520 = vadd.f32 %v2561, %v6519
        %v6521 = vpop.f32.mrf.mxu0
        %v6522 = vadd.f32 %v2557, %v6521
        %v6523 = vpop.f32.mrf.mxu0
        %v6524 = vadd.f32 %v2561, %v6523
        %6525 = vmatprep.mubr.bf16.mxu0 %v1399
        %6526 = vmatmul.mubr.bf16.gmra.mxu0 %v1398
        %v6527 = vpop.f32.mrf.mxu0
        %v6528 = vadd.f32 %v2557, %v6527
        %v6529 = vpop.f32.mrf.mxu0
        %v6530 = vadd.f32 %v2561, %v6529
        %v6531 = vpop.f32.mrf.mxu0
        %v6532 = vadd.f32 %v2557, %v6531
        %v6533 = vpop.f32.mrf.mxu0
        %v6534 = vadd.f32 %v2561, %v6533
        %6535 = vmatprep.mubr.bf16.mxu0 %v1401
        %6536 = vmatmul.mubr.bf16.gmra.mxu0 %v1400
        %v6537 = vpop.f32.mrf.mxu0
        %v6538 = vadd.f32 %v2557, %v6537
        %v6539 = vpop.f32.mrf.mxu0
        %v6540 = vadd.f32 %v2561, %v6539
        %v6541 = vpop.f32.mrf.mxu0
        %v6542 = vadd.f32 %v2557, %v6541
        %v6543 = vpop.f32.mrf.mxu0
        %v6544 = vadd.f32 %v2561, %v6543
        %6545 = vmatprep.mubr.bf16.mxu0 %v1403
        %6546 = vmatmul.mubr.bf16.gmra.mxu0 %v1402
        %v6547 = vpop.f32.mrf.mxu0
        %v6548 = vadd.f32 %v2557, %v6547
        %v6549 = vpop.f32.mrf.mxu0
        %v6550 = vadd.f32 %v2561, %v6549
        %v6551 = vpop.f32.mrf.mxu0
        %v6552 = vadd.f32 %v2557, %v6551
        %v6553 = vpop.f32.mrf.mxu0
        %v6554 = vadd.f32 %v2561, %v6553
        %6555 = vmatprep.mubr.bf16.mxu0 %v1405
        %6556 = vmatmul.mubr.bf16.gmra.mxu0 %v1404
        %v6557 = vpop.f32.mrf.mxu0
        %v6558 = vadd.f32 %v2557, %v6557
        %v6559 = vpop.f32.mrf.mxu0
        %v6560 = vadd.f32 %v2561, %v6559
        %v6561 = vpop.f32.mrf.mxu0
        %v6562 = vadd.f32 %v2557, %v6561
        %v6563 = vpop.f32.mrf.mxu0
        %v6564 = vadd.f32 %v2561, %v6563
        %6565 = vmatprep.mubr.bf16.mxu0 %v1407
        %6566 = vmatmul.mubr.bf16.gmra.mxu0 %v1406
        %v6567 = vpop.f32.mrf.mxu0
        %v6568 = vadd.f32 %v2557, %v6567
        %v6569 = vpop.f32.mrf.mxu0
        %v6570 = vadd.f32 %v2561, %v6569
        %v6571 = vpop.f32.mrf.mxu0
        %v6572 = vadd.f32 %v2557, %v6571
        %v6573 = vpop.f32.mrf.mxu0
        %v6574 = vadd.f32 %v2561, %v6573
        %6575 = vdwg.mxu0
        %6576 = vmatprep.subr.bf16.mxu0 %v4389
        %6577 = vmatpush1.bf16.msra.mxu0 %v4388
        %6578 = vmatprep.subr.bf16.mxu0 %v4385
        %6579 = vmatpush1.bf16.msra.mxu0 %v4384
        %6580 = vmatprep.subr.bf16.mxu0 %v4381
        %6581 = vmatpush1.bf16.msra.mxu0 %v4380
        %6582 = vmatprep.subr.bf16.mxu0 %v4377
        %6583 = vmatpush1.bf16.msra.mxu0 %v4376
        %6584 = vmatprep.subr.bf16.mxu0 %v4373
        %6585 = vmatpush1.bf16.msra.mxu0 %v4372
        %6586 = vmatprep.subr.bf16.mxu0 %v4369
        %6587 = vmatpush1.bf16.msra.mxu0 %v4368
        %6588 = vmatprep.subr.bf16.mxu0 %v4365
        %6589 = vmatpush1.bf16.msra.mxu0 %v4364
        %6590 = vmatprep.subr.bf16.mxu0 %v4361
        %6591 = vmatpush1.bf16.msra.mxu0 %v4360
        %6592 = vmatprep.subr.bf16.mxu0 %v4421
        %6593 = vmatpush2.bf16.msra.mxu0 %v4420
        %6594 = vmatprep.subr.bf16.mxu0 %v4417
        %6595 = vmatpush2.bf16.msra.mxu0 %v4416
        %6596 = vmatprep.subr.bf16.mxu0 %v4413
        %6597 = vmatpush2.bf16.msra.mxu0 %v4412
        %6598 = vmatprep.subr.bf16.mxu0 %v4409
        %6599 = vmatpush2.bf16.msra.mxu0 %v4408
        %6600 = vmatprep.subr.bf16.mxu0 %v4405
        %6601 = vmatpush2.bf16.msra.mxu0 %v4404
        %6602 = vmatprep.subr.bf16.mxu0 %v4401
        %6603 = vmatpush2.bf16.msra.mxu0 %v4400
        %6604 = vmatprep.subr.bf16.mxu0 %v4397
        %6605 = vmatpush2.bf16.msra.mxu0 %v4396
        %6606 = vmatprep.subr.bf16.mxu0 %v4393
        %6607 = vmatpush2.bf16.msra.mxu0 %v4392
        %6608 = vmatprep.mubr.bf16.mxu0 %v1457
        %6609 = vmatmul.mubr.bf16.gmra.mxu0 %v1456
        %v6610 = vpop.f32.mrf.mxu0
        %v6611 = vadd.f32 %v6498, %v6610
        %v6612 = vpop.f32.mrf.mxu0
        %v6613 = vadd.f32 %v6500, %v6612
        %v6614 = vpop.f32.mrf.mxu0
        %v6615 = vadd.f32 %v6502, %v6614
        %v6616 = vpop.f32.mrf.mxu0
        %v6617 = vadd.f32 %v6504, %v6616
        %6618 = vmatprep.mubr.bf16.mxu0 %v1459
        %6619 = vmatmul.mubr.bf16.gmra.mxu0 %v1458
        %v6620 = vpop.f32.mrf.mxu0
        %v6621 = vadd.f32 %v6508, %v6620
        %v6622 = vpop.f32.mrf.mxu0
        %v6623 = vadd.f32 %v6510, %v6622
        %v6624 = vpop.f32.mrf.mxu0
        %v6625 = vadd.f32 %v6512, %v6624
        %v6626 = vpop.f32.mrf.mxu0
        %v6627 = vadd.f32 %v6514, %v6626
        %6628 = vmatprep.mubr.bf16.mxu0 %v1461
        %6629 = vmatmul.mubr.bf16.gmra.mxu0 %v1460
        %v6630 = vpop.f32.mrf.mxu0
        %v6631 = vadd.f32 %v6518, %v6630
        %v6632 = vpop.f32.mrf.mxu0
        %v6633 = vadd.f32 %v6520, %v6632
        %v6634 = vpop.f32.mrf.mxu0
        %v6635 = vadd.f32 %v6522, %v6634
        %v6636 = vpop.f32.mrf.mxu0
        %v6637 = vadd.f32 %v6524, %v6636
        %6638 = vmatprep.mubr.bf16.mxu0 %v1463
        %6639 = vmatmul.mubr.bf16.gmra.mxu0 %v1462
        %v6640 = vpop.f32.mrf.mxu0
        %v6641 = vadd.f32 %v6528, %v6640
        %v6642 = vpop.f32.mrf.mxu0
        %v6643 = vadd.f32 %v6530, %v6642
        %v6644 = vpop.f32.mrf.mxu0
        %v6645 = vadd.f32 %v6532, %v6644
        %v6646 = vpop.f32.mrf.mxu0
        %v6647 = vadd.f32 %v6534, %v6646
        %6648 = vmatprep.mubr.bf16.mxu0 %v1465
        %6649 = vmatmul.mubr.bf16.gmra.mxu0 %v1464
        %v6650 = vpop.f32.mrf.mxu0
        %v6651 = vadd.f32 %v6538, %v6650
        %v6652 = vpop.f32.mrf.mxu0
        %v6653 = vadd.f32 %v6540, %v6652
        %v6654 = vpop.f32.mrf.mxu0
        %v6655 = vadd.f32 %v6542, %v6654
        %v6656 = vpop.f32.mrf.mxu0
        %v6657 = vadd.f32 %v6544, %v6656
        %6658 = vmatprep.mubr.bf16.mxu0 %v1467
        %6659 = vmatmul.mubr.bf16.gmra.mxu0 %v1466
        %v6660 = vpop.f32.mrf.mxu0
        %v6661 = vadd.f32 %v6548, %v6660
        %v6662 = vpop.f32.mrf.mxu0
        %v6663 = vadd.f32 %v6550, %v6662
        %v6664 = vpop.f32.mrf.mxu0
        %v6665 = vadd.f32 %v6552, %v6664
        %v6666 = vpop.f32.mrf.mxu0
        %v6667 = vadd.f32 %v6554, %v6666
        %6668 = vmatprep.mubr.bf16.mxu0 %v1469
        %6669 = vmatmul.mubr.bf16.gmra.mxu0 %v1468
        %v6670 = vpop.f32.mrf.mxu0
        %v6671 = vadd.f32 %v6558, %v6670
        %v6672 = vpop.f32.mrf.mxu0
        %v6673 = vadd.f32 %v6560, %v6672
        %v6674 = vpop.f32.mrf.mxu0
        %v6675 = vadd.f32 %v6562, %v6674
        %v6676 = vpop.f32.mrf.mxu0
        %v6677 = vadd.f32 %v6564, %v6676
        %6678 = vmatprep.mubr.bf16.mxu0 %v1471
        %6679 = vmatmul.mubr.bf16.gmra.mxu0 %v1470
        %v6680 = vpop.f32.mrf.mxu0
        %v6681 = vadd.f32 %v6568, %v6680
        %v6682 = vpop.f32.mrf.mxu0
        %v6683 = vadd.f32 %v6570, %v6682
        %v6684 = vpop.f32.mrf.mxu0
        %v6685 = vadd.f32 %v6572, %v6684
        %v6686 = vpop.f32.mrf.mxu0
        %v6687 = vadd.f32 %v6574, %v6686
        %6688 = vdwg.mxu0
        %6689 = vmatprep.subr.bf16.mxu0 %v4453
        %6690 = vmatpush1.bf16.msra.mxu0 %v4452
        %6691 = vmatprep.subr.bf16.mxu0 %v4449
        %6692 = vmatpush1.bf16.msra.mxu0 %v4448
        %6693 = vmatprep.subr.bf16.mxu0 %v4445
        %6694 = vmatpush1.bf16.msra.mxu0 %v4444
        %6695 = vmatprep.subr.bf16.mxu0 %v4441
        %6696 = vmatpush1.bf16.msra.mxu0 %v4440
        %6697 = vmatprep.subr.bf16.mxu0 %v4437
        %6698 = vmatpush1.bf16.msra.mxu0 %v4436
        %6699 = vmatprep.subr.bf16.mxu0 %v4433
        %6700 = vmatpush1.bf16.msra.mxu0 %v4432
        %6701 = vmatprep.subr.bf16.mxu0 %v4429
        %6702 = vmatpush1.bf16.msra.mxu0 %v4428
        %6703 = vmatprep.subr.bf16.mxu0 %v4425
        %6704 = vmatpush1.bf16.msra.mxu0 %v4424
        %6705 = vmatprep.subr.bf16.mxu0 %v4485
        %6706 = vmatpush2.bf16.msra.mxu0 %v4484
        %6707 = vmatprep.subr.bf16.mxu0 %v4481
        %6708 = vmatpush2.bf16.msra.mxu0 %v4480
        %6709 = vmatprep.subr.bf16.mxu0 %v4477
        %6710 = vmatpush2.bf16.msra.mxu0 %v4476
        %6711 = vmatprep.subr.bf16.mxu0 %v4473
        %6712 = vmatpush2.bf16.msra.mxu0 %v4472
        %6713 = vmatprep.subr.bf16.mxu0 %v4469
        %6714 = vmatpush2.bf16.msra.mxu0 %v4468
        %6715 = vmatprep.subr.bf16.mxu0 %v4465
        %6716 = vmatpush2.bf16.msra.mxu0 %v4464
        %6717 = vmatprep.subr.bf16.mxu0 %v4461
        %6718 = vmatpush2.bf16.msra.mxu0 %v4460
        %6719 = vmatprep.subr.bf16.mxu0 %v4457
        %6720 = vmatpush2.bf16.msra.mxu0 %v4456
        %6721 = vmatprep.mubr.bf16.mxu0 %v1521
        %6722 = vmatmul.mubr.bf16.gmra.mxu0 %v1520
        %v6723 = vpop.f32.mrf.mxu0
        %v6724 = vadd.f32 %v6611, %v6723
        %v6725 = vpop.f32.mrf.mxu0
        %v6726 = vadd.f32 %v6613, %v6725
        %v6727 = vpop.f32.mrf.mxu0
        %v6728 = vadd.f32 %v6615, %v6727
        %v6729 = vpop.f32.mrf.mxu0
        %v6730 = vadd.f32 %v6617, %v6729
        %6731 = vmatprep.mubr.bf16.mxu0 %v1523
        %6732 = vmatmul.mubr.bf16.gmra.mxu0 %v1522
        %v6733 = vpop.f32.mrf.mxu0
        %v6734 = vadd.f32 %v6621, %v6733
        %v6735 = vpop.f32.mrf.mxu0
        %v6736 = vadd.f32 %v6623, %v6735
        %v6737 = vpop.f32.mrf.mxu0
        %v6738 = vadd.f32 %v6625, %v6737
        %v6739 = vpop.f32.mrf.mxu0
        %v6740 = vadd.f32 %v6627, %v6739
        %6741 = vmatprep.mubr.bf16.mxu0 %v1525
        %6742 = vmatmul.mubr.bf16.gmra.mxu0 %v1524
        %v6743 = vpop.f32.mrf.mxu0
        %v6744 = vadd.f32 %v6631, %v6743
        %v6745 = vpop.f32.mrf.mxu0
        %v6746 = vadd.f32 %v6633, %v6745
        %v6747 = vpop.f32.mrf.mxu0
        %v6748 = vadd.f32 %v6635, %v6747
        %v6749 = vpop.f32.mrf.mxu0
        %v6750 = vadd.f32 %v6637, %v6749
        %6751 = vmatprep.mubr.bf16.mxu0 %v1527
        %6752 = vmatmul.mubr.bf16.gmra.mxu0 %v1526
        %v6753 = vpop.f32.mrf.mxu0
        %v6754 = vadd.f32 %v6641, %v6753
        %v6755 = vpop.f32.mrf.mxu0
        %v6756 = vadd.f32 %v6643, %v6755
        %v6757 = vpop.f32.mrf.mxu0
        %v6758 = vadd.f32 %v6645, %v6757
        %v6759 = vpop.f32.mrf.mxu0
        %v6760 = vadd.f32 %v6647, %v6759
        %6761 = vmatprep.mubr.bf16.mxu0 %v1529
        %6762 = vmatmul.mubr.bf16.gmra.mxu0 %v1528
        %v6763 = vpop.f32.mrf.mxu0
        %v6764 = vadd.f32 %v6651, %v6763
        %v6765 = vpop.f32.mrf.mxu0
        %v6766 = vadd.f32 %v6653, %v6765
        %v6767 = vpop.f32.mrf.mxu0
        %v6768 = vadd.f32 %v6655, %v6767
        %v6769 = vpop.f32.mrf.mxu0
        %v6770 = vadd.f32 %v6657, %v6769
        %6771 = vmatprep.mubr.bf16.mxu0 %v1531
        %6772 = vmatmul.mubr.bf16.gmra.mxu0 %v1530
        %v6773 = vpop.f32.mrf.mxu0
        %v6774 = vadd.f32 %v6661, %v6773
        %v6775 = vpop.f32.mrf.mxu0
        %v6776 = vadd.f32 %v6663, %v6775
        %v6777 = vpop.f32.mrf.mxu0
        %v6778 = vadd.f32 %v6665, %v6777
        %v6779 = vpop.f32.mrf.mxu0
        %v6780 = vadd.f32 %v6667, %v6779
        %6781 = vmatprep.mubr.bf16.mxu0 %v1533
        %6782 = vmatmul.mubr.bf16.gmra.mxu0 %v1532
        %v6783 = vpop.f32.mrf.mxu0
        %v6784 = vadd.f32 %v6671, %v6783
        %v6785 = vpop.f32.mrf.mxu0
        %v6786 = vadd.f32 %v6673, %v6785
        %v6787 = vpop.f32.mrf.mxu0
        %v6788 = vadd.f32 %v6675, %v6787
        %v6789 = vpop.f32.mrf.mxu0
        %v6790 = vadd.f32 %v6677, %v6789
        %6791 = vmatprep.mubr.bf16.mxu0 %v1535
        %6792 = vmatmul.mubr.bf16.gmra.mxu0 %v1534
        %v6793 = vpop.f32.mrf.mxu0
        %v6794 = vadd.f32 %v6681, %v6793
        %v6795 = vpop.f32.mrf.mxu0
        %v6796 = vadd.f32 %v6683, %v6795
        %v6797 = vpop.f32.mrf.mxu0
        %v6798 = vadd.f32 %v6685, %v6797
        %v6799 = vpop.f32.mrf.mxu0
        %v6800 = vadd.f32 %v6687, %v6799
        %6801 = vdwg.mxu0
        %6802 = vmatprep.subr.bf16.mxu0 %v4517
        %6803 = vmatpush1.bf16.msra.mxu0 %v4516
        %6804 = vmatprep.subr.bf16.mxu0 %v4513
        %6805 = vmatpush1.bf16.msra.mxu0 %v4512
        %6806 = vmatprep.subr.bf16.mxu0 %v4509
        %6807 = vmatpush1.bf16.msra.mxu0 %v4508
        %6808 = vmatprep.subr.bf16.mxu0 %v4505
        %6809 = vmatpush1.bf16.msra.mxu0 %v4504
        %6810 = vmatprep.subr.bf16.mxu0 %v4501
        %6811 = vmatpush1.bf16.msra.mxu0 %v4500
        %6812 = vmatprep.subr.bf16.mxu0 %v4497
        %6813 = vmatpush1.bf16.msra.mxu0 %v4496
        %6814 = vmatprep.subr.bf16.mxu0 %v4493
        %6815 = vmatpush1.bf16.msra.mxu0 %v4492
        %6816 = vmatprep.subr.bf16.mxu0 %v4489
        %6817 = vmatpush1.bf16.msra.mxu0 %v4488
        %6818 = vmatprep.subr.bf16.mxu0 %v4549
        %6819 = vmatpush2.bf16.msra.mxu0 %v4548
        %6820 = vmatprep.subr.bf16.mxu0 %v4545
        %6821 = vmatpush2.bf16.msra.mxu0 %v4544
        %6822 = vmatprep.subr.bf16.mxu0 %v4541
        %6823 = vmatpush2.bf16.msra.mxu0 %v4540
        %6824 = vmatprep.subr.bf16.mxu0 %v4537
        %6825 = vmatpush2.bf16.msra.mxu0 %v4536
        %6826 = vmatprep.subr.bf16.mxu0 %v4533
        %6827 = vmatpush2.bf16.msra.mxu0 %v4532
        %6828 = vmatprep.subr.bf16.mxu0 %v4529
        %6829 = vmatpush2.bf16.msra.mxu0 %v4528
        %6830 = vmatprep.subr.bf16.mxu0 %v4525
        %6831 = vmatpush2.bf16.msra.mxu0 %v4524
        %6832 = vmatprep.subr.bf16.mxu0 %v4521
        %6833 = vmatpush2.bf16.msra.mxu0 %v4520
        %6834 = vmatprep.mubr.bf16.mxu0 %v1601
        %6835 = vmatmul.mubr.bf16.gmra.mxu0 %v1600
        %v6836 = vpop.f32.mrf.mxu0
        %v6837 = vadd.f32 %v6724, %v6836
        %v6838 = vpop.f32.mrf.mxu0
        %v6839 = vadd.f32 %v6726, %v6838
        %v6840 = vpop.f32.mrf.mxu0
        %v6841 = vadd.f32 %v6728, %v6840
        %v6842 = vpop.f32.mrf.mxu0
        %v6843 = vadd.f32 %v6730, %v6842
        %6844 = vmatprep.mubr.bf16.mxu0 %v1603
        %6845 = vmatmul.mubr.bf16.gmra.mxu0 %v1602
        %v6846 = vpop.f32.mrf.mxu0
        %v6847 = vadd.f32 %v6734, %v6846
        %v6848 = vpop.f32.mrf.mxu0
        %v6849 = vadd.f32 %v6736, %v6848
        %v6850 = vpop.f32.mrf.mxu0
        %v6851 = vadd.f32 %v6738, %v6850
        %v6852 = vpop.f32.mrf.mxu0
        %v6853 = vadd.f32 %v6740, %v6852
        %6854 = vmatprep.mubr.bf16.mxu0 %v1605
        %6855 = vmatmul.mubr.bf16.gmra.mxu0 %v1604
        %v6856 = vpop.f32.mrf.mxu0
        %v6857 = vadd.f32 %v6744, %v6856
        %v6858 = vpop.f32.mrf.mxu0
        %v6859 = vadd.f32 %v6746, %v6858
        %v6860 = vpop.f32.mrf.mxu0
        %v6861 = vadd.f32 %v6748, %v6860
        %v6862 = vpop.f32.mrf.mxu0
        %v6863 = vadd.f32 %v6750, %v6862
        %6864 = vmatprep.mubr.bf16.mxu0 %v1607
        %6865 = vmatmul.mubr.bf16.gmra.mxu0 %v1606
        %v6866 = vpop.f32.mrf.mxu0
        %v6867 = vadd.f32 %v6754, %v6866
        %v6868 = vpop.f32.mrf.mxu0
        %v6869 = vadd.f32 %v6756, %v6868
        %v6870 = vpop.f32.mrf.mxu0
        %v6871 = vadd.f32 %v6758, %v6870
        %v6872 = vpop.f32.mrf.mxu0
        %v6873 = vadd.f32 %v6760, %v6872
        %6874 = vmatprep.mubr.bf16.mxu0 %v1609
        %6875 = vmatmul.mubr.bf16.gmra.mxu0 %v1608
        %v6876 = vpop.f32.mrf.mxu0
        %v6877 = vadd.f32 %v6764, %v6876
        %v6878 = vpop.f32.mrf.mxu0
        %v6879 = vadd.f32 %v6766, %v6878
        %v6880 = vpop.f32.mrf.mxu0
        %v6881 = vadd.f32 %v6768, %v6880
        %v6882 = vpop.f32.mrf.mxu0
        %v6883 = vadd.f32 %v6770, %v6882
        %6884 = vmatprep.mubr.bf16.mxu0 %v1611
        %6885 = vmatmul.mubr.bf16.gmra.mxu0 %v1610
        %v6886 = vpop.f32.mrf.mxu0
        %v6887 = vadd.f32 %v6774, %v6886
        %v6888 = vpop.f32.mrf.mxu0
        %v6889 = vadd.f32 %v6776, %v6888
        %v6890 = vpop.f32.mrf.mxu0
        %v6891 = vadd.f32 %v6778, %v6890
        %v6892 = vpop.f32.mrf.mxu0
        %v6893 = vadd.f32 %v6780, %v6892
        %6894 = vmatprep.mubr.bf16.mxu0 %v1613
        %6895 = vmatmul.mubr.bf16.gmra.mxu0 %v1612
        %v6896 = vpop.f32.mrf.mxu0
        %v6897 = vadd.f32 %v6784, %v6896
        %v6898 = vpop.f32.mrf.mxu0
        %v6899 = vadd.f32 %v6786, %v6898
        %v6900 = vpop.f32.mrf.mxu0
        %v6901 = vadd.f32 %v6788, %v6900
        %v6902 = vpop.f32.mrf.mxu0
        %v6903 = vadd.f32 %v6790, %v6902
        %6904 = vmatprep.mubr.bf16.mxu0 %v1615
        %6905 = vmatmul.mubr.bf16.gmra.mxu0 %v1614
        %v6906 = vpop.f32.mrf.mxu0
        %v6907 = vadd.f32 %v6794, %v6906
        %v6908 = vpop.f32.mrf.mxu0
        %v6909 = vadd.f32 %v6796, %v6908
        %v6910 = vpop.f32.mrf.mxu0
        %v6911 = vadd.f32 %v6798, %v6910
        %v6912 = vpop.f32.mrf.mxu0
        %v6913 = vadd.f32 %v6800, %v6912
        %6914 = vdwg.mxu0
        %6915 = vmatprep.subr.bf16.mxu0 %v4581
        %6916 = vmatpush1.bf16.msra.mxu0 %v4580
        %6917 = vmatprep.subr.bf16.mxu0 %v4577
        %6918 = vmatpush1.bf16.msra.mxu0 %v4576
        %6919 = vmatprep.subr.bf16.mxu0 %v4573
        %6920 = vmatpush1.bf16.msra.mxu0 %v4572
        %6921 = vmatprep.subr.bf16.mxu0 %v4569
        %6922 = vmatpush1.bf16.msra.mxu0 %v4568
        %6923 = vmatprep.subr.bf16.mxu0 %v4565
        %6924 = vmatpush1.bf16.msra.mxu0 %v4564
        %6925 = vmatprep.subr.bf16.mxu0 %v4561
        %6926 = vmatpush1.bf16.msra.mxu0 %v4560
        %6927 = vmatprep.subr.bf16.mxu0 %v4557
        %6928 = vmatpush1.bf16.msra.mxu0 %v4556
        %6929 = vmatprep.subr.bf16.mxu0 %v4553
        %6930 = vmatpush1.bf16.msra.mxu0 %v4552
        %6931 = vmatprep.subr.bf16.mxu0 %v4613
        %6932 = vmatpush2.bf16.msra.mxu0 %v4612
        %6933 = vmatprep.subr.bf16.mxu0 %v4609
        %6934 = vmatpush2.bf16.msra.mxu0 %v4608
        %6935 = vmatprep.subr.bf16.mxu0 %v4605
        %6936 = vmatpush2.bf16.msra.mxu0 %v4604
        %6937 = vmatprep.subr.bf16.mxu0 %v4601
        %6938 = vmatpush2.bf16.msra.mxu0 %v4600
        %6939 = vmatprep.subr.bf16.mxu0 %v4597
        %6940 = vmatpush2.bf16.msra.mxu0 %v4596
        %6941 = vmatprep.subr.bf16.mxu0 %v4593
        %6942 = vmatpush2.bf16.msra.mxu0 %v4592
        %6943 = vmatprep.subr.bf16.mxu0 %v4589
        %6944 = vmatpush2.bf16.msra.mxu0 %v4588
        %6945 = vmatprep.subr.bf16.mxu0 %v4585
        %6946 = vmatpush2.bf16.msra.mxu0 %v4584
        %6947 = vmatprep.mubr.bf16.mxu0 %v1665
        %6948 = vmatmul.mubr.bf16.gmra.mxu0 %v1664
        %v6949 = vpop.f32.mrf.mxu0
        %v6950 = vadd.f32 %v6837, %v6949
        %v6951 = vpop.f32.mrf.mxu0
        %v6952 = vadd.f32 %v6839, %v6951
        %v6953 = vpop.f32.mrf.mxu0
        %v6954 = vadd.f32 %v6841, %v6953
        %v6955 = vpop.f32.mrf.mxu0
        %v6956 = vadd.f32 %v6843, %v6955
        %6957 = vmatprep.mubr.bf16.mxu0 %v1667
        %6958 = vmatmul.mubr.bf16.gmra.mxu0 %v1666
        %v6959 = vpop.f32.mrf.mxu0
        %v6960 = vadd.f32 %v6847, %v6959
        %v6961 = vpop.f32.mrf.mxu0
        %v6962 = vadd.f32 %v6849, %v6961
        %v6963 = vpop.f32.mrf.mxu0
        %v6964 = vadd.f32 %v6851, %v6963
        %v6965 = vpop.f32.mrf.mxu0
        %v6966 = vadd.f32 %v6853, %v6965
        %6967 = vmatprep.mubr.bf16.mxu0 %v1669
        %6968 = vmatmul.mubr.bf16.gmra.mxu0 %v1668
        %v6969 = vpop.f32.mrf.mxu0
        %v6970 = vadd.f32 %v6857, %v6969
        %v6971 = vpop.f32.mrf.mxu0
        %v6972 = vadd.f32 %v6859, %v6971
        %v6973 = vpop.f32.mrf.mxu0
        %v6974 = vadd.f32 %v6861, %v6973
        %v6975 = vpop.f32.mrf.mxu0
        %v6976 = vadd.f32 %v6863, %v6975
        %6977 = vmatprep.mubr.bf16.mxu0 %v1671
        %6978 = vmatmul.mubr.bf16.gmra.mxu0 %v1670
        %v6979 = vpop.f32.mrf.mxu0
        %v6980 = vadd.f32 %v6867, %v6979
        %v6981 = vpop.f32.mrf.mxu0
        %v6982 = vadd.f32 %v6869, %v6981
        %v6983 = vpop.f32.mrf.mxu0
        %v6984 = vadd.f32 %v6871, %v6983
        %v6985 = vpop.f32.mrf.mxu0
        %v6986 = vadd.f32 %v6873, %v6985
        %6987 = vmatprep.mubr.bf16.mxu0 %v1673
        %6988 = vmatmul.mubr.bf16.gmra.mxu0 %v1672
        %v6989 = vpop.f32.mrf.mxu0
        %v6990 = vadd.f32 %v6877, %v6989
        %v6991 = vpop.f32.mrf.mxu0
        %v6992 = vadd.f32 %v6879, %v6991
        %v6993 = vpop.f32.mrf.mxu0
        %v6994 = vadd.f32 %v6881, %v6993
        %v6995 = vpop.f32.mrf.mxu0
        %v6996 = vadd.f32 %v6883, %v6995
        %6997 = vmatprep.mubr.bf16.mxu0 %v1675
        %6998 = vmatmul.mubr.bf16.gmra.mxu0 %v1674
        %v6999 = vpop.f32.mrf.mxu0
        %v7000 = vadd.f32 %v6887, %v6999
        %v7001 = vpop.f32.mrf.mxu0
        %v7002 = vadd.f32 %v6889, %v7001
        %v7003 = vpop.f32.mrf.mxu0
        %v7004 = vadd.f32 %v6891, %v7003
        %v7005 = vpop.f32.mrf.mxu0
        %v7006 = vadd.f32 %v6893, %v7005
        %7007 = vmatprep.mubr.bf16.mxu0 %v1677
        %7008 = vmatmul.mubr.bf16.gmra.mxu0 %v1676
        %v7009 = vpop.f32.mrf.mxu0
        %v7010 = vadd.f32 %v6897, %v7009
        %v7011 = vpop.f32.mrf.mxu0
        %v7012 = vadd.f32 %v6899, %v7011
        %v7013 = vpop.f32.mrf.mxu0
        %v7014 = vadd.f32 %v6901, %v7013
        %v7015 = vpop.f32.mrf.mxu0
        %v7016 = vadd.f32 %v6903, %v7015
        %7017 = vmatprep.mubr.bf16.mxu0 %v1679
        %7018 = vmatmul.mubr.bf16.gmra.mxu0 %v1678
        %v7019 = vpop.f32.mrf.mxu0
        %v7020 = vadd.f32 %v6907, %v7019
        %v7021 = vpop.f32.mrf.mxu0
        %v7022 = vadd.f32 %v6909, %v7021
        %v7023 = vpop.f32.mrf.mxu0
        %v7024 = vadd.f32 %v6911, %v7023
        %v7025 = vpop.f32.mrf.mxu0
        %v7026 = vadd.f32 %v6913, %v7025
        %7027 = vdwg.mxu0
        %7028 = vmatprep.subr.bf16.mxu0 %v4645
        %7029 = vmatpush1.bf16.msra.mxu0 %v4644
        %7030 = vmatprep.subr.bf16.mxu0 %v4641
        %7031 = vmatpush1.bf16.msra.mxu0 %v4640
        %7032 = vmatprep.subr.bf16.mxu0 %v4637
        %7033 = vmatpush1.bf16.msra.mxu0 %v4636
        %7034 = vmatprep.subr.bf16.mxu0 %v4633
        %7035 = vmatpush1.bf16.msra.mxu0 %v4632
        %7036 = vmatprep.subr.bf16.mxu0 %v4629
        %7037 = vmatpush1.bf16.msra.mxu0 %v4628
        %7038 = vmatprep.subr.bf16.mxu0 %v4625
        %7039 = vmatpush1.bf16.msra.mxu0 %v4624
        %7040 = vmatprep.subr.bf16.mxu0 %v4621
        %7041 = vmatpush1.bf16.msra.mxu0 %v4620
        %7042 = vmatprep.subr.bf16.mxu0 %v4617
        %7043 = vmatpush1.bf16.msra.mxu0 %v4616
        %7044 = vmatprep.subr.bf16.mxu0 %v4677
        %7045 = vmatpush2.bf16.msra.mxu0 %v4676
        %7046 = vmatprep.subr.bf16.mxu0 %v4673
        %7047 = vmatpush2.bf16.msra.mxu0 %v4672
        %7048 = vmatprep.subr.bf16.mxu0 %v4669
        %7049 = vmatpush2.bf16.msra.mxu0 %v4668
        %7050 = vmatprep.subr.bf16.mxu0 %v4665
        %7051 = vmatpush2.bf16.msra.mxu0 %v4664
        %7052 = vmatprep.subr.bf16.mxu0 %v4661
        %7053 = vmatpush2.bf16.msra.mxu0 %v4660
        %7054 = vmatprep.subr.bf16.mxu0 %v4657
        %7055 = vmatpush2.bf16.msra.mxu0 %v4656
        %7056 = vmatprep.subr.bf16.mxu0 %v4653
        %7057 = vmatpush2.bf16.msra.mxu0 %v4652
        %7058 = vmatprep.subr.bf16.mxu0 %v4649
        %7059 = vmatpush2.bf16.msra.mxu0 %v4648
        %7060 = vmatprep.mubr.bf16.mxu0 %v1729
        %7061 = vmatmul.mubr.bf16.gmra.mxu0 %v1728
        %v7062 = vpop.f32.mrf.mxu0
        %v7063 = vadd.f32 %v6950, %v7062
        %v7064 = vpop.f32.mrf.mxu0
        %v7065 = vadd.f32 %v6952, %v7064
        %v7066 = vpop.f32.mrf.mxu0
        %v7067 = vadd.f32 %v6954, %v7066
        %v7068 = vpop.f32.mrf.mxu0
        %v7069 = vadd.f32 %v6956, %v7068
        %7070 = vmatprep.mubr.bf16.mxu0 %v1731
        %7071 = vmatmul.mubr.bf16.gmra.mxu0 %v1730
        %v7072 = vpop.f32.mrf.mxu0
        %v7073 = vadd.f32 %v6960, %v7072
        %v7074 = vpop.f32.mrf.mxu0
        %v7075 = vadd.f32 %v6962, %v7074
        %v7076 = vpop.f32.mrf.mxu0
        %v7077 = vadd.f32 %v6964, %v7076
        %v7078 = vpop.f32.mrf.mxu0
        %v7079 = vadd.f32 %v6966, %v7078
        %7080 = vmatprep.mubr.bf16.mxu0 %v1733
        %7081 = vmatmul.mubr.bf16.gmra.mxu0 %v1732
        %v7082 = vpop.f32.mrf.mxu0
        %v7083 = vadd.f32 %v6970, %v7082
        %v7084 = vpop.f32.mrf.mxu0
        %v7085 = vadd.f32 %v6972, %v7084
        %v7086 = vpop.f32.mrf.mxu0
        %v7087 = vadd.f32 %v6974, %v7086
        %v7088 = vpop.f32.mrf.mxu0
        %v7089 = vadd.f32 %v6976, %v7088
        %7090 = vmatprep.mubr.bf16.mxu0 %v1735
        %7091 = vmatmul.mubr.bf16.gmra.mxu0 %v1734
        %v7092 = vpop.f32.mrf.mxu0
        %v7093 = vadd.f32 %v6980, %v7092
        %v7094 = vpop.f32.mrf.mxu0
        %v7095 = vadd.f32 %v6982, %v7094
        %v7096 = vpop.f32.mrf.mxu0
        %v7097 = vadd.f32 %v6984, %v7096
        %v7098 = vpop.f32.mrf.mxu0
        %v7099 = vadd.f32 %v6986, %v7098
        %7100 = vmatprep.mubr.bf16.mxu0 %v1737
        %7101 = vmatmul.mubr.bf16.gmra.mxu0 %v1736
        %v7102 = vpop.f32.mrf.mxu0
        %v7103 = vadd.f32 %v6990, %v7102
        %v7104 = vpop.f32.mrf.mxu0
        %v7105 = vadd.f32 %v6992, %v7104
        %v7106 = vpop.f32.mrf.mxu0
        %v7107 = vadd.f32 %v6994, %v7106
        %v7108 = vpop.f32.mrf.mxu0
        %v7109 = vadd.f32 %v6996, %v7108
        %7110 = vmatprep.mubr.bf16.mxu0 %v1739
        %7111 = vmatmul.mubr.bf16.gmra.mxu0 %v1738
        %v7112 = vpop.f32.mrf.mxu0
        %v7113 = vadd.f32 %v7000, %v7112
        %v7114 = vpop.f32.mrf.mxu0
        %v7115 = vadd.f32 %v7002, %v7114
        %v7116 = vpop.f32.mrf.mxu0
        %v7117 = vadd.f32 %v7004, %v7116
        %v7118 = vpop.f32.mrf.mxu0
        %v7119 = vadd.f32 %v7006, %v7118
        %7120 = vmatprep.mubr.bf16.mxu0 %v1741
        %7121 = vmatmul.mubr.bf16.gmra.mxu0 %v1740
        %v7122 = vpop.f32.mrf.mxu0
        %v7123 = vadd.f32 %v7010, %v7122
        %v7124 = vpop.f32.mrf.mxu0
        %v7125 = vadd.f32 %v7012, %v7124
        %v7126 = vpop.f32.mrf.mxu0
        %v7127 = vadd.f32 %v7014, %v7126
        %v7128 = vpop.f32.mrf.mxu0
        %v7129 = vadd.f32 %v7016, %v7128
        %7130 = vmatprep.mubr.bf16.mxu0 %v1743
        %7131 = vmatmul.mubr.bf16.gmra.mxu0 %v1742
        %v7132 = vpop.f32.mrf.mxu0
        %v7133 = vadd.f32 %v7020, %v7132
        %v7134 = vpop.f32.mrf.mxu0
        %v7135 = vadd.f32 %v7022, %v7134
        %v7136 = vpop.f32.mrf.mxu0
        %v7137 = vadd.f32 %v7024, %v7136
        %v7138 = vpop.f32.mrf.mxu0
        %v7139 = vadd.f32 %v7026, %v7138
        %7140 = vdwg.mxu0
        %7141 = vmatprep.subr.bf16.mxu0 %v4709
        %7142 = vmatpush1.bf16.msra.mxu0 %v4708
        %7143 = vmatprep.subr.bf16.mxu0 %v4705
        %7144 = vmatpush1.bf16.msra.mxu0 %v4704
        %7145 = vmatprep.subr.bf16.mxu0 %v4701
        %7146 = vmatpush1.bf16.msra.mxu0 %v4700
        %7147 = vmatprep.subr.bf16.mxu0 %v4697
        %7148 = vmatpush1.bf16.msra.mxu0 %v4696
        %7149 = vmatprep.subr.bf16.mxu0 %v4693
        %7150 = vmatpush1.bf16.msra.mxu0 %v4692
        %7151 = vmatprep.subr.bf16.mxu0 %v4689
        %7152 = vmatpush1.bf16.msra.mxu0 %v4688
        %7153 = vmatprep.subr.bf16.mxu0 %v4685
        %7154 = vmatpush1.bf16.msra.mxu0 %v4684
        %7155 = vmatprep.subr.bf16.mxu0 %v4681
        %7156 = vmatpush1.bf16.msra.mxu0 %v4680
        %7157 = vmatprep.subr.bf16.mxu0 %v4741
        %7158 = vmatpush2.bf16.msra.mxu0 %v4740
        %7159 = vmatprep.subr.bf16.mxu0 %v4737
        %7160 = vmatpush2.bf16.msra.mxu0 %v4736
        %7161 = vmatprep.subr.bf16.mxu0 %v4733
        %7162 = vmatpush2.bf16.msra.mxu0 %v4732
        %7163 = vmatprep.subr.bf16.mxu0 %v4729
        %7164 = vmatpush2.bf16.msra.mxu0 %v4728
        %7165 = vmatprep.subr.bf16.mxu0 %v4725
        %7166 = vmatpush2.bf16.msra.mxu0 %v4724
        %7167 = vmatprep.subr.bf16.mxu0 %v4721
        %7168 = vmatpush2.bf16.msra.mxu0 %v4720
        %7169 = vmatprep.subr.bf16.mxu0 %v4717
        %7170 = vmatpush2.bf16.msra.mxu0 %v4716
        %7171 = vmatprep.subr.bf16.mxu0 %v4713
        %7172 = vmatpush2.bf16.msra.mxu0 %v4712
        %7173 = vmatprep.mubr.bf16.mxu0 %v1809
        %7174 = vmatmul.mubr.bf16.gmra.mxu0 %v1808
        %v7175 = vpop.f32.mrf.mxu0
        %v7176 = vadd.f32 %v7063, %v7175
        %v7177 = vpop.f32.mrf.mxu0
        %v7178 = vadd.f32 %v7065, %v7177
        %v7179 = vpop.f32.mrf.mxu0
        %v7180 = vadd.f32 %v7067, %v7179
        %v7181 = vpop.f32.mrf.mxu0
        %v7182 = vadd.f32 %v7069, %v7181
        %7183 = vmatprep.mubr.bf16.mxu0 %v1811
        %7184 = vmatmul.mubr.bf16.gmra.mxu0 %v1810
        %v7185 = vpop.f32.mrf.mxu0
        %v7186 = vadd.f32 %v7073, %v7185
        %v7187 = vpop.f32.mrf.mxu0
        %v7188 = vadd.f32 %v7075, %v7187
        %v7189 = vpop.f32.mrf.mxu0
        %v7190 = vadd.f32 %v7077, %v7189
        %v7191 = vpop.f32.mrf.mxu0
        %v7192 = vadd.f32 %v7079, %v7191
        %7193 = vmatprep.mubr.bf16.mxu0 %v1813
        %7194 = vmatmul.mubr.bf16.gmra.mxu0 %v1812
        %v7195 = vpop.f32.mrf.mxu0
        %v7196 = vadd.f32 %v7083, %v7195
        %v7197 = vpop.f32.mrf.mxu0
        %v7198 = vadd.f32 %v7085, %v7197
        %v7199 = vpop.f32.mrf.mxu0
        %v7200 = vadd.f32 %v7087, %v7199
        %v7201 = vpop.f32.mrf.mxu0
        %v7202 = vadd.f32 %v7089, %v7201
        %7203 = vmatprep.mubr.bf16.mxu0 %v1815
        %7204 = vmatmul.mubr.bf16.gmra.mxu0 %v1814
        %v7205 = vpop.f32.mrf.mxu0
        %v7206 = vadd.f32 %v7093, %v7205
        %v7207 = vpop.f32.mrf.mxu0
        %v7208 = vadd.f32 %v7095, %v7207
        %v7209 = vpop.f32.mrf.mxu0
        %v7210 = vadd.f32 %v7097, %v7209
        %v7211 = vpop.f32.mrf.mxu0
        %v7212 = vadd.f32 %v7099, %v7211
        %7213 = vmatprep.mubr.bf16.mxu0 %v1817
        %7214 = vmatmul.mubr.bf16.gmra.mxu0 %v1816
        %v7215 = vpop.f32.mrf.mxu0
        %v7216 = vadd.f32 %v7103, %v7215
        %v7217 = vpop.f32.mrf.mxu0
        %v7218 = vadd.f32 %v7105, %v7217
        %v7219 = vpop.f32.mrf.mxu0
        %v7220 = vadd.f32 %v7107, %v7219
        %v7221 = vpop.f32.mrf.mxu0
        %v7222 = vadd.f32 %v7109, %v7221
        %7223 = vmatprep.mubr.bf16.mxu0 %v1819
        %7224 = vmatmul.mubr.bf16.gmra.mxu0 %v1818
        %v7225 = vpop.f32.mrf.mxu0
        %v7226 = vadd.f32 %v7113, %v7225
        %v7227 = vpop.f32.mrf.mxu0
        %v7228 = vadd.f32 %v7115, %v7227
        %v7229 = vpop.f32.mrf.mxu0
        %v7230 = vadd.f32 %v7117, %v7229
        %v7231 = vpop.f32.mrf.mxu0
        %v7232 = vadd.f32 %v7119, %v7231
        %7233 = vmatprep.mubr.bf16.mxu0 %v1821
        %7234 = vmatmul.mubr.bf16.gmra.mxu0 %v1820
        %v7235 = vpop.f32.mrf.mxu0
        %v7236 = vadd.f32 %v7123, %v7235
        %v7237 = vpop.f32.mrf.mxu0
        %v7238 = vadd.f32 %v7125, %v7237
        %v7239 = vpop.f32.mrf.mxu0
        %v7240 = vadd.f32 %v7127, %v7239
        %v7241 = vpop.f32.mrf.mxu0
        %v7242 = vadd.f32 %v7129, %v7241
        %7243 = vmatprep.mubr.bf16.mxu0 %v1823
        %7244 = vmatmul.mubr.bf16.gmra.mxu0 %v1822
        %v7245 = vpop.f32.mrf.mxu0
        %v7246 = vadd.f32 %v7133, %v7245
        %v7247 = vpop.f32.mrf.mxu0
        %v7248 = vadd.f32 %v7135, %v7247
        %v7249 = vpop.f32.mrf.mxu0
        %v7250 = vadd.f32 %v7137, %v7249
        %v7251 = vpop.f32.mrf.mxu0
        %v7252 = vadd.f32 %v7139, %v7251
        %7253 = vdwg.mxu0
        %7254 = vmatprep.subr.bf16.mxu0 %v4773
        %7255 = vmatpush1.bf16.msra.mxu0 %v4772
        %7256 = vmatprep.subr.bf16.mxu0 %v4769
        %7257 = vmatpush1.bf16.msra.mxu0 %v4768
        %7258 = vmatprep.subr.bf16.mxu0 %v4765
        %7259 = vmatpush1.bf16.msra.mxu0 %v4764
        %7260 = vmatprep.subr.bf16.mxu0 %v4761
        %7261 = vmatpush1.bf16.msra.mxu0 %v4760
        %7262 = vmatprep.subr.bf16.mxu0 %v4757
        %7263 = vmatpush1.bf16.msra.mxu0 %v4756
        %7264 = vmatprep.subr.bf16.mxu0 %v4753
        %7265 = vmatpush1.bf16.msra.mxu0 %v4752
        %7266 = vmatprep.subr.bf16.mxu0 %v4749
        %7267 = vmatpush1.bf16.msra.mxu0 %v4748
        %7268 = vmatprep.subr.bf16.mxu0 %v4745
        %7269 = vmatpush1.bf16.msra.mxu0 %v4744
        %7270 = vmatprep.subr.bf16.mxu0 %v4805
        %7271 = vmatpush2.bf16.msra.mxu0 %v4804
        %7272 = vmatprep.subr.bf16.mxu0 %v4801
        %7273 = vmatpush2.bf16.msra.mxu0 %v4800
        %7274 = vmatprep.subr.bf16.mxu0 %v4797
        %7275 = vmatpush2.bf16.msra.mxu0 %v4796
        %7276 = vmatprep.subr.bf16.mxu0 %v4793
        %7277 = vmatpush2.bf16.msra.mxu0 %v4792
        %7278 = vmatprep.subr.bf16.mxu0 %v4789
        %7279 = vmatpush2.bf16.msra.mxu0 %v4788
        %7280 = vmatprep.subr.bf16.mxu0 %v4785
        %7281 = vmatpush2.bf16.msra.mxu0 %v4784
        %7282 = vmatprep.subr.bf16.mxu0 %v4781
        %7283 = vmatpush2.bf16.msra.mxu0 %v4780
        %7284 = vmatprep.subr.bf16.mxu0 %v4777
        %7285 = vmatpush2.bf16.msra.mxu0 %v4776
        %7286 = vmatprep.mubr.bf16.mxu0 %v1873
        %7287 = vmatmul.mubr.bf16.gmra.mxu0 %v1872
        %v7288 = vpop.f32.mrf.mxu0
        %v7289 = vadd.f32 %v7176, %v7288
        %v7290 = vpop.f32.mrf.mxu0
        %v7291 = vadd.f32 %v7178, %v7290
        %v7292 = vpop.f32.mrf.mxu0
        %v7293 = vadd.f32 %v7180, %v7292
        %v7294 = vpop.f32.mrf.mxu0
        %v7295 = vadd.f32 %v7182, %v7294
        %7296 = vmatprep.mubr.bf16.mxu0 %v1875
        %7297 = vmatmul.mubr.bf16.gmra.mxu0 %v1874
        %v7298 = vpop.f32.mrf.mxu0
        %v7299 = vadd.f32 %v7186, %v7298
        %v7300 = vpop.f32.mrf.mxu0
        %v7301 = vadd.f32 %v7188, %v7300
        %v7302 = vpop.f32.mrf.mxu0
        %v7303 = vadd.f32 %v7190, %v7302
        %v7304 = vpop.f32.mrf.mxu0
        %v7305 = vadd.f32 %v7192, %v7304
        %7306 = vmatprep.mubr.bf16.mxu0 %v1877
        %7307 = vmatmul.mubr.bf16.gmra.mxu0 %v1876
        %v7308 = vpop.f32.mrf.mxu0
        %v7309 = vadd.f32 %v7196, %v7308
        %v7310 = vpop.f32.mrf.mxu0
        %v7311 = vadd.f32 %v7198, %v7310
        %v7312 = vpop.f32.mrf.mxu0
        %v7313 = vadd.f32 %v7200, %v7312
        %v7314 = vpop.f32.mrf.mxu0
        %v7315 = vadd.f32 %v7202, %v7314
        %7316 = vmatprep.mubr.bf16.mxu0 %v1879
        %7317 = vmatmul.mubr.bf16.gmra.mxu0 %v1878
        %v7318 = vpop.f32.mrf.mxu0
        %v7319 = vadd.f32 %v7206, %v7318
        %v7320 = vpop.f32.mrf.mxu0
        %v7321 = vadd.f32 %v7208, %v7320
        %v7322 = vpop.f32.mrf.mxu0
        %v7323 = vadd.f32 %v7210, %v7322
        %v7324 = vpop.f32.mrf.mxu0
        %v7325 = vadd.f32 %v7212, %v7324
        %7326 = vmatprep.mubr.bf16.mxu0 %v1881
        %7327 = vmatmul.mubr.bf16.gmra.mxu0 %v1880
        %v7328 = vpop.f32.mrf.mxu0
        %v7329 = vadd.f32 %v7216, %v7328
        %v7330 = vpop.f32.mrf.mxu0
        %v7331 = vadd.f32 %v7218, %v7330
        %v7332 = vpop.f32.mrf.mxu0
        %v7333 = vadd.f32 %v7220, %v7332
        %v7334 = vpop.f32.mrf.mxu0
        %v7335 = vadd.f32 %v7222, %v7334
        %7336 = vmatprep.mubr.bf16.mxu0 %v1883
        %7337 = vmatmul.mubr.bf16.gmra.mxu0 %v1882
        %v7338 = vpop.f32.mrf.mxu0
        %v7339 = vadd.f32 %v7226, %v7338
        %v7340 = vpop.f32.mrf.mxu0
        %v7341 = vadd.f32 %v7228, %v7340
        %v7342 = vpop.f32.mrf.mxu0
        %v7343 = vadd.f32 %v7230, %v7342
        %v7344 = vpop.f32.mrf.mxu0
        %v7345 = vadd.f32 %v7232, %v7344
        %7346 = vmatprep.mubr.bf16.mxu0 %v1885
        %7347 = vmatmul.mubr.bf16.gmra.mxu0 %v1884
        %v7348 = vpop.f32.mrf.mxu0
        %v7349 = vadd.f32 %v7236, %v7348
        %v7350 = vpop.f32.mrf.mxu0
        %v7351 = vadd.f32 %v7238, %v7350
        %v7352 = vpop.f32.mrf.mxu0
        %v7353 = vadd.f32 %v7240, %v7352
        %v7354 = vpop.f32.mrf.mxu0
        %v7355 = vadd.f32 %v7242, %v7354
        %7356 = vmatprep.mubr.bf16.mxu0 %v1887
        %7357 = vmatmul.mubr.bf16.gmra.mxu0 %v1886
        %v7358 = vpop.f32.mrf.mxu0
        %v7359 = vadd.f32 %v7246, %v7358
        %v7360 = vpop.f32.mrf.mxu0
        %v7361 = vadd.f32 %v7248, %v7360
        %v7362 = vpop.f32.mrf.mxu0
        %v7363 = vadd.f32 %v7250, %v7362
        %v7364 = vpop.f32.mrf.mxu0
        %v7365 = vadd.f32 %v7252, %v7364
        %7366 = vdwg.mxu0
        %7367 = vmatprep.subr.bf16.mxu0 %v4837
        %7368 = vmatpush1.bf16.msra.mxu0 %v4836
        %7369 = vmatprep.subr.bf16.mxu0 %v4833
        %7370 = vmatpush1.bf16.msra.mxu0 %v4832
        %7371 = vmatprep.subr.bf16.mxu0 %v4829
        %7372 = vmatpush1.bf16.msra.mxu0 %v4828
        %7373 = vmatprep.subr.bf16.mxu0 %v4825
        %7374 = vmatpush1.bf16.msra.mxu0 %v4824
        %7375 = vmatprep.subr.bf16.mxu0 %v4821
        %7376 = vmatpush1.bf16.msra.mxu0 %v4820
        %7377 = vmatprep.subr.bf16.mxu0 %v4817
        %7378 = vmatpush1.bf16.msra.mxu0 %v4816
        %7379 = vmatprep.subr.bf16.mxu0 %v4813
        %7380 = vmatpush1.bf16.msra.mxu0 %v4812
        %7381 = vmatprep.subr.bf16.mxu0 %v4809
        %7382 = vmatpush1.bf16.msra.mxu0 %v4808
        %7383 = vmatprep.subr.bf16.mxu0 %v4869
        %7384 = vmatpush2.bf16.msra.mxu0 %v4868
        %7385 = vmatprep.subr.bf16.mxu0 %v4865
        %7386 = vmatpush2.bf16.msra.mxu0 %v4864
        %7387 = vmatprep.subr.bf16.mxu0 %v4861
        %7388 = vmatpush2.bf16.msra.mxu0 %v4860
        %7389 = vmatprep.subr.bf16.mxu0 %v4857
        %7390 = vmatpush2.bf16.msra.mxu0 %v4856
        %7391 = vmatprep.subr.bf16.mxu0 %v4853
        %7392 = vmatpush2.bf16.msra.mxu0 %v4852
        %7393 = vmatprep.subr.bf16.mxu0 %v4849
        %7394 = vmatpush2.bf16.msra.mxu0 %v4848
        %7395 = vmatprep.subr.bf16.mxu0 %v4845
        %7396 = vmatpush2.bf16.msra.mxu0 %v4844
        %7397 = vmatprep.subr.bf16.mxu0 %v4841
        %7398 = vmatpush2.bf16.msra.mxu0 %v4840
        %7399 = vmatprep.mubr.bf16.mxu0 %v1937
        %7400 = vmatmul.mubr.bf16.gmra.mxu0 %v1936
        %v7401 = vpop.f32.mrf.mxu0
        %v7402 = vadd.f32 %v7289, %v7401
        %v7403 = vpop.f32.mrf.mxu0
        %v7404 = vadd.f32 %v7291, %v7403
        %v7405 = vpop.f32.mrf.mxu0
        %v7406 = vadd.f32 %v7293, %v7405
        %v7407 = vpop.f32.mrf.mxu0
        %v7408 = vadd.f32 %v7295, %v7407
        %7409 = vmatprep.mubr.bf16.mxu0 %v1939
        %7410 = vmatmul.mubr.bf16.gmra.mxu0 %v1938
        %v7411 = vpop.f32.mrf.mxu0
        %v7412 = vadd.f32 %v7299, %v7411
        %v7413 = vpop.f32.mrf.mxu0
        %v7414 = vadd.f32 %v7301, %v7413
        %v7415 = vpop.f32.mrf.mxu0
        %v7416 = vadd.f32 %v7303, %v7415
        %v7417 = vpop.f32.mrf.mxu0
        %v7418 = vadd.f32 %v7305, %v7417
        %7419 = vmatprep.mubr.bf16.mxu0 %v1941
        %7420 = vmatmul.mubr.bf16.gmra.mxu0 %v1940
        %v7421 = vpop.f32.mrf.mxu0
        %v7422 = vadd.f32 %v7309, %v7421
        %v7423 = vpop.f32.mrf.mxu0
        %v7424 = vadd.f32 %v7311, %v7423
        %v7425 = vpop.f32.mrf.mxu0
        %v7426 = vadd.f32 %v7313, %v7425
        %v7427 = vpop.f32.mrf.mxu0
        %v7428 = vadd.f32 %v7315, %v7427
        %7429 = vmatprep.mubr.bf16.mxu0 %v1943
        %7430 = vmatmul.mubr.bf16.gmra.mxu0 %v1942
        %v7431 = vpop.f32.mrf.mxu0
        %v7432 = vadd.f32 %v7319, %v7431
        %v7433 = vpop.f32.mrf.mxu0
        %v7434 = vadd.f32 %v7321, %v7433
        %v7435 = vpop.f32.mrf.mxu0
        %v7436 = vadd.f32 %v7323, %v7435
        %v7437 = vpop.f32.mrf.mxu0
        %v7438 = vadd.f32 %v7325, %v7437
        %7439 = vmatprep.mubr.bf16.mxu0 %v1945
        %7440 = vmatmul.mubr.bf16.gmra.mxu0 %v1944
        %v7441 = vpop.f32.mrf.mxu0
        %v7442 = vadd.f32 %v7329, %v7441
        %v7443 = vpop.f32.mrf.mxu0
        %v7444 = vadd.f32 %v7331, %v7443
        %v7445 = vpop.f32.mrf.mxu0
        %v7446 = vadd.f32 %v7333, %v7445
        %v7447 = vpop.f32.mrf.mxu0
        %v7448 = vadd.f32 %v7335, %v7447
        %7449 = vmatprep.mubr.bf16.mxu0 %v1947
        %7450 = vmatmul.mubr.bf16.gmra.mxu0 %v1946
        %v7451 = vpop.f32.mrf.mxu0
        %v7452 = vadd.f32 %v7339, %v7451
        %v7453 = vpop.f32.mrf.mxu0
        %v7454 = vadd.f32 %v7341, %v7453
        %v7455 = vpop.f32.mrf.mxu0
        %v7456 = vadd.f32 %v7343, %v7455
        %v7457 = vpop.f32.mrf.mxu0
        %v7458 = vadd.f32 %v7345, %v7457
        %7459 = vmatprep.mubr.bf16.mxu0 %v1949
        %7460 = vmatmul.mubr.bf16.gmra.mxu0 %v1948
        %v7461 = vpop.f32.mrf.mxu0
        %v7462 = vadd.f32 %v7349, %v7461
        %v7463 = vpop.f32.mrf.mxu0
        %v7464 = vadd.f32 %v7351, %v7463
        %v7465 = vpop.f32.mrf.mxu0
        %v7466 = vadd.f32 %v7353, %v7465
        %v7467 = vpop.f32.mrf.mxu0
        %v7468 = vadd.f32 %v7355, %v7467
        %7469 = vmatprep.mubr.bf16.mxu0 %v1951
        %7470 = vmatmul.mubr.bf16.gmra.mxu0 %v1950
        %v7471 = vpop.f32.mrf.mxu0
        %v7472 = vadd.f32 %v7359, %v7471
        %v7473 = vpop.f32.mrf.mxu0
        %v7474 = vadd.f32 %v7361, %v7473
        %v7475 = vpop.f32.mrf.mxu0
        %v7476 = vadd.f32 %v7363, %v7475
        %v7477 = vpop.f32.mrf.mxu0
        %v7478 = vadd.f32 %v7365, %v7477
        %7479 = vdwg.mxu0
        %v7480 = vmax.f32 %v6385, 0.0
        %v7481 = vmax.f32 %v6387, 0.0
        %v7482 = vmax.f32 %v7402, 0.0
        %v7483 = vmax.f32 %v7404, 0.0
        %v7484 = vmax.f32 %v6389, 0.0
        %v7485 = vmax.f32 %v6391, 0.0
        %v7486 = vmax.f32 %v7406, 0.0
        %v7487 = vmax.f32 %v7408, 0.0
        %v7488 = vmax.f32 %v6395, 0.0
        %v7489 = vmax.f32 %v6397, 0.0
        %v7490 = vmax.f32 %v7412, 0.0
        %v7491 = vmax.f32 %v7414, 0.0
        %v7492 = vmax.f32 %v6399, 0.0
        %v7493 = vmax.f32 %v6401, 0.0
        %v7494 = vmax.f32 %v7416, 0.0
        %v7495 = vmax.f32 %v7418, 0.0
        %v7496 = vmax.f32 %v6405, 0.0
        %v7497 = vmax.f32 %v6407, 0.0
        %v7498 = vmax.f32 %v7422, 0.0
        %v7499 = vmax.f32 %v7424, 0.0
        %v7500 = vmax.f32 %v6409, 0.0
        %v7501 = vmax.f32 %v6411, 0.0
        %v7502 = vmax.f32 %v7426, 0.0
        %v7503 = vmax.f32 %v7428, 0.0
        %v7504 = vmax.f32 %v6415, 0.0
        %v7505 = vmax.f32 %v6417, 0.0
        %v7506 = vmax.f32 %v7432, 0.0
        %v7507 = vmax.f32 %v7434, 0.0
        %v7508 = vmax.f32 %v6419, 0.0
        %v7509 = vmax.f32 %v6421, 0.0
        %v7510 = vmax.f32 %v7436, 0.0
        %v7511 = vmax.f32 %v7438, 0.0
        %v7512 = vmax.f32 %v6425, 0.0
        %v7513 = vmax.f32 %v6427, 0.0
        %v7514 = vmax.f32 %v7442, 0.0
        %v7515 = vmax.f32 %v7444, 0.0
        %v7516 = vmax.f32 %v6429, 0.0
        %v7517 = vmax.f32 %v6431, 0.0
        %v7518 = vmax.f32 %v7446, 0.0
        %v7519 = vmax.f32 %v7448, 0.0
        %v7520 = vmax.f32 %v6435, 0.0
        %v7521 = vmax.f32 %v6437, 0.0
        %v7522 = vmax.f32 %v7452, 0.0
        %v7523 = vmax.f32 %v7454, 0.0
        %v7524 = vmax.f32 %v6439, 0.0
        %v7525 = vmax.f32 %v6441, 0.0
        %v7526 = vmax.f32 %v7456, 0.0
        %v7527 = vmax.f32 %v7458, 0.0
        %v7528 = vmax.f32 %v6445, 0.0
        %v7529 = vmax.f32 %v6447, 0.0
        %v7530 = vmax.f32 %v7462, 0.0
        %v7531 = vmax.f32 %v7464, 0.0
        %v7532 = vmax.f32 %v6449, 0.0
        %v7533 = vmax.f32 %v6451, 0.0
        %v7534 = vmax.f32 %v7466, 0.0
        %v7535 = vmax.f32 %v7468, 0.0
        %v7536 = vmax.f32 %v6455, 0.0
        %v7537 = vmax.f32 %v6457, 0.0
        %v7538 = vmax.f32 %v7472, 0.0
        %v7539 = vmax.f32 %v7474, 0.0
        %v7540 = vmax.f32 %v6459, 0.0
        %v7541 = vmax.f32 %v6461, 0.0
        %v7542 = vmax.f32 %v7476, 0.0
        %v7543 = vmax.f32 %v7478, 0.0
        %v7544 = vmax.f32 %v7480, %v7484
        %v7545 = vmax.f32 %v7481, %v7485
        %v7546 = vmax.f32 %v7482, %v7486
        %v7547 = vmax.f32 %v7483, %v7487
        %v7548 = vmax.f32 %v7488, %v7492
        %v7549 = vmax.f32 %v7489, %v7493
        %v7550 = vmax.f32 %v7490, %v7494
        %v7551 = vmax.f32 %v7491, %v7495
        %v7552 = vmax.f32 %v7496, %v7500
        %v7553 = vmax.f32 %v7497, %v7501
        %v7554 = vmax.f32 %v7498, %v7502
        %v7555 = vmax.f32 %v7499, %v7503
        %v7556 = vmax.f32 %v7504, %v7508
        %v7557 = vmax.f32 %v7505, %v7509
        %v7558 = vmax.f32 %v7506, %v7510
        %v7559 = vmax.f32 %v7507, %v7511
        %v7560 = vmax.f32 %v7512, %v7516
        %v7561 = vmax.f32 %v7513, %v7517
        %v7562 = vmax.f32 %v7514, %v7518
        %v7563 = vmax.f32 %v7515, %v7519
        %v7564 = vmax.f32 %v7520, %v7524
        %v7565 = vmax.f32 %v7521, %v7525
        %v7566 = vmax.f32 %v7522, %v7526
        %v7567 = vmax.f32 %v7523, %v7527
        %v7568 = vmax.f32 %v7528, %v7532
        %v7569 = vmax.f32 %v7529, %v7533
        %v7570 = vmax.f32 %v7530, %v7534
        %v7571 = vmax.f32 %v7531, %v7535
        %v7572 = vmax.f32 %v7536, %v7540
        %v7573 = vmax.f32 %v7537, %v7541
        %v7574 = vmax.f32 %v7538, %v7542
        %v7575 = vmax.f32 %v7539, %v7543
        %v7608 = vrot.slane %v7544, 1
        %v7609 = vrot.slane %v7545, 1
        %v7610 = vrot.slane %v7546, 1
        %v7611 = vrot.slane %v7547, 1
        %v7612 = vrot.slane %v7548, 1
        %v7613 = vrot.slane %v7549, 1
        %v7614 = vrot.slane %v7550, 1
        %v7615 = vrot.slane %v7551, 1
        %v7616 = vrot.slane %v7552, 1
        %v7617 = vrot.slane %v7553, 1
        %v7618 = vrot.slane %v7554, 1
        %v7619 = vrot.slane %v7555, 1
        %v7620 = vrot.slane %v7556, 1
        %v7621 = vrot.slane %v7557, 1
        %v7622 = vrot.slane %v7558, 1
        %v7623 = vrot.slane %v7559, 1
        %v7624 = vrot.slane %v7560, 1
        %v7625 = vrot.slane %v7561, 1
        %v7626 = vrot.slane %v7562, 1
        %v7627 = vrot.slane %v7563, 1
        %v7628 = vrot.slane %v7564, 1
        %v7629 = vrot.slane %v7565, 1
        %v7630 = vrot.slane %v7566, 1
        %v7631 = vrot.slane %v7567, 1
        %v7632 = vrot.slane %v7568, 1
        %v7633 = vrot.slane %v7569, 1
        %v7634 = vrot.slane %v7570, 1
        %v7635 = vrot.slane %v7571, 1
        %v7636 = vrot.slane %v7572, 1
        %v7637 = vrot.slane %v7573, 1
        %v7638 = vrot.slane %v7574, 1
        %v7639 = vrot.slane %v7575, 1
        %v7672 = vmax.f32 %v7544, %v7608
        %v7673 = vmax.f32 %v7545, %v7609
        %v7674 = vmax.f32 %v7546, %v7610
        %v7675 = vmax.f32 %v7547, %v7611
        %v7676 = vmax.f32 %v7548, %v7612
        %v7677 = vmax.f32 %v7549, %v7613
        %v7678 = vmax.f32 %v7550, %v7614
        %v7679 = vmax.f32 %v7551, %v7615
        %v7680 = vmax.f32 %v7552, %v7616
        %v7681 = vmax.f32 %v7553, %v7617
        %v7682 = vmax.f32 %v7554, %v7618
        %v7683 = vmax.f32 %v7555, %v7619
        %v7684 = vmax.f32 %v7556, %v7620
        %v7685 = vmax.f32 %v7557, %v7621
        %v7686 = vmax.f32 %v7558, %v7622
        %v7687 = vmax.f32 %v7559, %v7623
        %v7688 = vmax.f32 %v7560, %v7624
        %v7689 = vmax.f32 %v7561, %v7625
        %v7690 = vmax.f32 %v7562, %v7626
        %v7691 = vmax.f32 %v7563, %v7627
        %v7692 = vmax.f32 %v7564, %v7628
        %v7693 = vmax.f32 %v7565, %v7629
        %v7694 = vmax.f32 %v7566, %v7630
        %v7695 = vmax.f32 %v7567, %v7631
        %v7696 = vmax.f32 %v7568, %v7632
        %v7697 = vmax.f32 %v7569, %v7633
        %v7698 = vmax.f32 %v7570, %v7634
        %v7699 = vmax.f32 %v7571, %v7635
        %v7700 = vmax.f32 %v7572, %v7636
        %v7701 = vmax.f32 %v7573, %v7637
        %v7702 = vmax.f32 %v7574, %v7638
        %v7703 = vmax.f32 %v7575, %v7639
        %v7704 = vlaneseq
        %v7705 = vshrl.u32 %v7704, 7
        %vm7706 = vcmp.lt.s32.totalorder %v7705, 0
        %v7707 = vsub.s32 0, %v7705
        %v7708 = vsel %vm7706, %v7707, %v7705
        %v7709 = vshrl.u32 %v7708, 1
        %v7710 = vand.u32 %v7708, 1
        %v7711 = vsub.s32 0, %v7710
        %v7712 = vsel %vm7706, %v7711, %v7710
        %vm7713 = vcmp.ne.s32.totalorder %v7712, 0
        %vm7714 = vcmp.lt.s32.totalorder %v7712, 0
        %vm7715 = vmand %vm7714, %vm7713
        %v7716 = vadd.s32 %v7712, 2
        %v7717 = vsel %vm7715, %v7716, %v7712
        %vm7718 = vcmp.eq.s32.totalorder %v7717, 0
        %v7719 = vsel %vm7718, 1, 0
        %vm7720 = vcmp.eq.s32.totalorder %v7719, 1
        %v7721 = vsel %vm7720, %v7672, 0.0
        %v7722 = vsel %vm7720, %v7673, 0.0
        %v7723 = vsel %vm7720, %v7674, 0.0
        %v7724 = vsel %vm7720, %v7675, 0.0
        %v7725 = vsel %vm7720, %v7676, 0.0
        %v7726 = vsel %vm7720, %v7677, 0.0
        %v7727 = vsel %vm7720, %v7678, 0.0
        %v7728 = vsel %vm7720, %v7679, 0.0
        %v7729 = vsel %vm7720, %v7680, 0.0
        %v7730 = vsel %vm7720, %v7681, 0.0
        %v7731 = vsel %vm7720, %v7682, 0.0
        %v7732 = vsel %vm7720, %v7683, 0.0
        %v7733 = vsel %vm7720, %v7684, 0.0
        %v7734 = vsel %vm7720, %v7685, 0.0
        %v7735 = vsel %vm7720, %v7686, 0.0
        %v7736 = vsel %vm7720, %v7687, 0.0
        %v7737 = vsel %vm7720, %v7688, 0.0
        %v7738 = vsel %vm7720, %v7689, 0.0
        %v7739 = vsel %vm7720, %v7690, 0.0
        %v7740 = vsel %vm7720, %v7691, 0.0
        %v7741 = vsel %vm7720, %v7692, 0.0
        %v7742 = vsel %vm7720, %v7693, 0.0
        %v7743 = vsel %vm7720, %v7694, 0.0
        %v7744 = vsel %vm7720, %v7695, 0.0
        %v7745 = vsel %vm7720, %v7696, 0.0
        %v7746 = vsel %vm7720, %v7697, 0.0
        %v7747 = vsel %vm7720, %v7698, 0.0
        %v7748 = vsel %vm7720, %v7699, 0.0
        %v7749 = vsel %vm7720, %v7700, 0.0
        %v7750 = vsel %vm7720, %v7701, 0.0
        %v7751 = vsel %vm7720, %v7702, 0.0
        %v7752 = vsel %vm7720, %v7703, 0.0
        %vm7753 = vcmask 1046528
        %v7754 = vsel %vm7753, %v7721, 0.0
        %v7755 = vsel %vm7753, %v7725, 0.0
        %v7756 = vadd.f32 %v7754, %v7755
        %v7757 = vsel %vm7753, %v7729, 0.0
        %v7758 = vadd.f32 %v7756, %v7757
        %v7759 = vsel %vm7753, %v7733, 0.0
        %v7760 = vadd.f32 %v7758, %v7759
        %v7761 = vrot.slane %v7760, 4
        %v7762 = vadd.f32 %v7760, %v7761
        %v7763 = vrot.slane %v7762, 2
        %v7764 = vadd.f32 %v7762, %v7763
        %v7765 = vrot.slane %v7764, 1
        %v7766 = vadd.f32 %v7764, %v7765
        %v7767 = vsel %vm7753, %v7722, 0.0
        %v7768 = vsel %vm7753, %v7726, 0.0
        %v7769 = vadd.f32 %v7767, %v7768
        %v7770 = vsel %vm7753, %v7730, 0.0
        %v7771 = vadd.f32 %v7769, %v7770
        %v7772 = vsel %vm7753, %v7734, 0.0
        %v7773 = vadd.f32 %v7771, %v7772
        %v7774 = vrot.slane %v7773, 4
        %v7775 = vadd.f32 %v7773, %v7774
        %v7776 = vrot.slane %v7775, 2
        %v7777 = vadd.f32 %v7775, %v7776
        %v7778 = vrot.slane %v7777, 1
        %v7779 = vadd.f32 %v7777, %v7778
        %v7780 = vsel %vm7753, %v7723, 0.0
        %v7781 = vsel %vm7753, %v7727, 0.0
        %v7782 = vadd.f32 %v7780, %v7781
        %v7783 = vsel %vm7753, %v7731, 0.0
        %v7784 = vadd.f32 %v7782, %v7783
        %v7785 = vsel %vm7753, %v7735, 0.0
        %v7786 = vadd.f32 %v7784, %v7785
        %v7787 = vrot.slane %v7786, 4
        %v7788 = vadd.f32 %v7786, %v7787
        %v7789 = vrot.slane %v7788, 2
        %v7790 = vadd.f32 %v7788, %v7789
        %v7791 = vrot.slane %v7790, 1
        %v7792 = vadd.f32 %v7790, %v7791
        %v7793 = vsel %vm7753, %v7724, 0.0
        %v7794 = vsel %vm7753, %v7728, 0.0
        %v7795 = vadd.f32 %v7793, %v7794
        %v7796 = vsel %vm7753, %v7732, 0.0
        %v7797 = vadd.f32 %v7795, %v7796
        %v7798 = vsel %vm7753, %v7736, 0.0
        %v7799 = vadd.f32 %v7797, %v7798
        %v7800 = vrot.slane %v7799, 4
        %v7801 = vadd.f32 %v7799, %v7800
        %v7802 = vrot.slane %v7801, 2
        %v7803 = vadd.f32 %v7801, %v7802
        %v7804 = vrot.slane %v7803, 1
        %v7805 = vadd.f32 %v7803, %v7804
        %v7806 = vsel %vm7753, %v7737, 0.0
        %v7807 = vsel %vm7753, %v7741, 0.0
        %v7808 = vadd.f32 %v7806, %v7807
        %v7809 = vsel %vm7753, %v7745, 0.0
        %v7810 = vadd.f32 %v7808, %v7809
        %v7811 = vsel %vm7753, %v7749, 0.0
        %v7812 = vadd.f32 %v7810, %v7811
        %v7813 = vrot.slane %v7812, 4
        %v7814 = vadd.f32 %v7812, %v7813
        %v7815 = vrot.slane %v7814, 2
        %v7816 = vadd.f32 %v7814, %v7815
        %v7817 = vrot.slane %v7816, 1
        %v7818 = vadd.f32 %v7816, %v7817
        %v7819 = vsel %vm7753, %v7738, 0.0
        %v7820 = vsel %vm7753, %v7742, 0.0
        %v7821 = vadd.f32 %v7819, %v7820
        %v7822 = vsel %vm7753, %v7746, 0.0
        %v7823 = vadd.f32 %v7821, %v7822
        %v7824 = vsel %vm7753, %v7750, 0.0
        %v7825 = vadd.f32 %v7823, %v7824
        %v7826 = vrot.slane %v7825, 4
        %v7827 = vadd.f32 %v7825, %v7826
        %v7828 = vrot.slane %v7827, 2
        %v7829 = vadd.f32 %v7827, %v7828
        %v7830 = vrot.slane %v7829, 1
        %v7831 = vadd.f32 %v7829, %v7830
        %v7832 = vsel %vm7753, %v7739, 0.0
        %v7833 = vsel %vm7753, %v7743, 0.0
        %v7834 = vadd.f32 %v7832, %v7833
        %v7835 = vsel %vm7753, %v7747, 0.0
        %v7836 = vadd.f32 %v7834, %v7835
        %v7837 = vsel %vm7753, %v7751, 0.0
        %v7838 = vadd.f32 %v7836, %v7837
        %v7839 = vrot.slane %v7838, 4
        %v7840 = vadd.f32 %v7838, %v7839
        %v7841 = vrot.slane %v7840, 2
        %v7842 = vadd.f32 %v7840, %v7841
        %v7843 = vrot.slane %v7842, 1
        %v7844 = vadd.f32 %v7842, %v7843
        %v7845 = vsel %vm7753, %v7740, 0.0
        %v7846 = vsel %vm7753, %v7744, 0.0
        %v7847 = vadd.f32 %v7845, %v7846
        %v7848 = vsel %vm7753, %v7748, 0.0
        %v7849 = vadd.f32 %v7847, %v7848
        %v7850 = vsel %vm7753, %v7752, 0.0
        %v7851 = vadd.f32 %v7849, %v7850
        %v7852 = vrot.slane %v7851, 4
        %v7853 = vadd.f32 %v7851, %v7852
        %v7854 = vrot.slane %v7853, 2
        %v7855 = vadd.f32 %v7853, %v7854
        %v7856 = vrot.slane %v7855, 1
        %v7857 = vadd.f32 %v7855, %v7856
        %v7858 = vmul.f32 %v7766, 0.0625
        %v7859 = vmul.f32 %v7779, 0.0625
        %v7860 = vmul.f32 %v7792, 0.0625
        %v7861 = vmul.f32 %v7805, 0.0625
        %v7862 = vmul.f32 %v7818, 0.0625
        %v7863 = vmul.f32 %v7831, 0.0625
        %v7864 = vmul.f32 %v7844, 0.0625
        %v7865 = vmul.f32 %v7857, 0.0625
        %v7874 = vcombine.low %v7858, %v7859
        %v7875 = vcombine.low %v7860, %v7861
        %v7877 = vunpack.c.l.s4 1983009808
        %v7878 = vunpack.c.0.s8 %v7877
        %v7879 = vlaneseq
        %v7880 = vshrl.u32 %v7879, 7
        %v7881 = vsub.s32 %v7878, %v7880
        %v7882 = vrot.slane %v7874, %v7881
        %v7884 = vunpack.c.l.s4 1983009808
        %v7885 = vunpack.c.0.s8 %v7884
        %v7886 = vlaneseq
        %v7887 = vshrl.u32 %v7886, 7
        %v7888 = vsub.s32 %v7885, %v7887
        %v7889 = vrot.slane %v7875, %v7888
        %v7890 = vcombine.low %v7882, %v7889
        %v7891 = vcombine.low %v7862, %v7863
        %v7892 = vcombine.low %v7864, %v7865
        %v7894 = vunpack.c.l.s4 1983009808
        %v7895 = vunpack.c.0.s8 %v7894
        %v7896 = vlaneseq
        %v7897 = vshrl.u32 %v7896, 7
        %v7898 = vsub.s32 %v7895, %v7897
        %v7899 = vrot.slane %v7891, %v7898
        %v7901 = vunpack.c.l.s4 1983009808
        %v7902 = vunpack.c.0.s8 %v7901
        %v7903 = vlaneseq
        %v7904 = vshrl.u32 %v7903, 7
        %v7905 = vsub.s32 %v7902, %v7904
        %v7906 = vrot.slane %v7892, %v7905
        %v7907 = vcombine.low %v7899, %v7906
        %vm7908 = vcmask 1044484
        %v7909 = vsel %vm7908, %v7890, %v7890
        %vm7910 = vcmask 1046534
        %v7911 = vsel %vm7910, %v7890, %v7909
        %v7912 = vrot.slane %v7907, 7
        %vm7913 = vcmask 1041409
        %v7914 = vsel %vm7913, %v7912, %v7911
        %vm7915 = vcmask 1043459
        %v7916 = vsel %vm7915, %v7912, %v7914
        %vm7917 = vcmask 1045509
        %v7918 = vsel %vm7917, %v7912, %v7916
        %vm7919 = vcmask 1047559
        %v7920 = vsel %vm7919, %v7912, %v7918
        %7922 = vst [vmem:[%s230] sm:$0xff] %v7920
        %s7923 = smul.u32 4, %s20
        %p7924 = scmp.lt.s32.totalorder %s7923, 7
        %s7925 = scalar_select %p7924, %s7923, 7
        %s7926 = smul.addr %s7925, 2
        %s7927 = scalar_lea.vmem %s3, %s7926
        // Predicated region
        $region41: #{simple_cnn_forward.4} parent=31 // pred_check
          %p7928 = pneg %p111
        $region42: #{simple_cnn_forward.4} parent=31 // pred_check_branch
          %7930 = sbr.rel (%p7928) target = $region44
        $region43: #{simple_cnn_forward.4} parent=31 // pred_region
          %s7931 = smul.u32 4, %s20
        $region44: #{simple_cnn_forward.4} parent=31 // pred_fallthru
          _
      $region32: #{simple_cnn_forward.4} parent=5 // pred_fallthru
        _
      %p7932 = scmp.le.s32.totalorder 2, %s15
      // Predicated region
      $region45: #{simple_cnn_forward.4} parent=5 // pred_check
        %p7933 = pneg %p7932
      $region46: #{simple_cnn_forward.4} parent=5 // pred_check_branch
        %7935 = sbr.rel (%p7933) target = $region48
      $region47: #{simple_cnn_forward.4} parent=5 // pred_region
        %s7936 = ssub.s32 %s15, 2
        // Predicated region
        $region49: #{simple_cnn_forward.4} parent=47 // pred_check
          %p7937 = pneg %p117
        $region50: #{simple_cnn_forward.4} parent=47 // pred_check_branch
          %7939 = sbr.rel (%p7937) target = $region52
        $region51: #{simple_cnn_forward.4} parent=47 // pred_region
          %s7940 = smul.u32 4, %s21
          %p7941 = scmp.lt.s32.totalorder %s7940, 7
          %s7942 = scalar_select %p7941, %s7940, 7
          %s7943 = smul.addr %s7942, 2
          %s7944 = scalar_lea.vmem %s3, %s7943
        $region52: #{simple_cnn_forward.4} parent=47 // pred_fallthru
          _
      $region48: #{simple_cnn_forward.4} parent=5 // pred_fallthru
        _
    $region6: #{simple_cnn_forward.4} parent=1 // loop_footer
      %s19 = sadd.s32 1, %s15
    $region7: #{simple_cnn_forward.4} parent=1 // loop_footer_branch
      %14 = sbr.rel target = $region3
    $region8: #{simple_cnn_forward.4} parent=1 // loop_exit
      _
    %7945 = vsyncpa [#allocation3], 1
    %s7946 = scalar_lea.sflag [#allocation3], 1
    %7947 = vsyncpa %s7946, 1
    %7948 = vsyncpa [#allocation5], 1
    %s7949 = scalar_lea.sflag [#allocation5], 1
    %7950 = vsyncpa %s7949, 1

</llo_original>
